<compile_context>
chip_gen: v7x
topology: tpu7x:2x2x1
jax: 0.10.0
libtpu: 0.0.40
codegen_flags: <defaults>
</compile_context>

<pallas_src>
import functools

import jax
import jax.numpy as jnp
from jax.experimental import pallas as pl
from jax.experimental.pallas import tpu as pltpu


# ----------------------------------------------------------------------------
# Fused kernel: conv1+pool1 -> conv2+pool2 -> fc1 -> fc2 -> sigmoid.
# Row layout inside a block: row = s * bb + b  (position-major, sample minor),
# lanes = channels.  bb samples per grid step.
# ----------------------------------------------------------------------------
def protein_cnn_kernel(taps_ref, w1_ref, b1_ref, w2_ref, b2_ref,
                       wf1_ref, bf1_ref, wf2_ref, bf2_ref, o_ref,
                       *, bb, c1, c2, n_chunk):
    f32 = jnp.float32
    bf = jnp.bfloat16
    n2 = taps_ref.shape[0]                        # bb * L2 rows (pooled positions)

    # ---- conv1 + ReLU + pool(2): one K=4 bf16 matmul, both pre-pool taps at once ----
    he_ho = jnp.dot(taps_ref[...], w1_ref[...],
                    preferred_element_type=f32) + b1_ref[...]          # (n2, 2*C1)
    p1 = jnp.maximum(jnp.maximum(he_ho[:, :c1], he_ho[:, c1:]), 0.0)   # (n2, C1) f32

    # ---- conv2 (32->64): prev/next via sublane roll + boundary mask, one K=96 matmul ----
    row = jax.lax.broadcasted_iota(jnp.int32, (n2, 1), 0)
    prev = jnp.where(row >= bb, pltpu.roll(p1, bb, axis=0), 0.0)       # position s-1
    nxt = jnp.where(row < n2 - bb, pltpu.roll(p1, n2 - bb, axis=0), 0.0)  # position s+1
    cat = jnp.concatenate([prev, p1, nxt], axis=1).astype(bf)          # (n2, 3*C1)
    h2 = jnp.dot(cat, w2_ref[...], preferred_element_type=f32) + b2_ref[...]
    h2 = jnp.maximum(h2, 0.0)                                          # (n2, C2) f32

    # ---- pool(2) + fc1 fused: n_chunk accumulated (bb, 2*C2)@(2*C2, H1) matmuls ----
    # chunk j covers pooled seq positions 2j, 2j+1 -> contiguous h2 rows [4j*bb, 4(j+1)*bb)
    cw = 2 * c2
    acc = jnp.zeros((bb, wf1_ref.shape[1]), f32)
    for j in range(n_chunk):
        base = 4 * j * bb
        r0 = h2[base:base + bb, :]
        r1 = h2[base + bb:base + 2 * bb, :]
        r2 = h2[base + 2 * bb:base + 3 * bb, :]
        r3 = h2[base + 3 * bb:base + 4 * bb, :]
        chunk = jnp.concatenate(
            [jnp.maximum(r0, r1), jnp.maximum(r2, r3)], axis=1)        # (bb, 2*C2)
        acc = acc + jnp.dot(chunk.astype(bf), wf1_ref[j * cw:(j + 1) * cw, :],
                            preferred_element_type=f32)
    h = jnp.maximum(acc + bf1_ref[...], 0.0)                           # (bb, H1) f32

    # ---- fc2 + sigmoid: VPU/XLU reduction, lane-dense (1, bb) output ----
    z = jnp.sum(h.T * wf2_ref[...], axis=0, keepdims=True) + bf2_ref[...]   # (1, bb)
    o_ref[0] = 1.0 / (1.0 + jnp.exp(-z))


# ----------------------------------------------------------------------------
# Wrapper
# ----------------------------------------------------------------------------
def protein_cnn_forward(x, params, block_b=None):
    conv1_w, conv1_b, conv2_w, conv2_b, fc1_w, fc1_b, fc2_w, fc2_b = params
    B, L = x.shape                         # L = 200 implied by fc1 = Linear(64*50, 128)
    L2, L4 = L // 2, L // 4
    C1, C2, H1 = conv1_w.shape[0], conv2_w.shape[0], fc1_w.shape[0]
    assert L % 4 == 0 and L4 % 2 == 0 and fc1_w.shape[1] == C2 * L4

    # Batch block: multiple of 8; >= 2 grid steps when B >= 16 (v7x 2-TC sharding);
    # capped at 64 so the per-step VMEM footprint stays well under v7x's 64 MiB.
    if block_b is None:
        block_b = 8 if B <= 8 else min(64, 8 * ((B + 15) // 16))
    assert block_b % 8 == 0
    bb = block_b
    grid_b = (B + bb - 1) // bb
    b_pad = grid_b * bb
    if b_pad != B:
        x = jnp.pad(x, ((0, b_pad - B), (0, 0)))

    # ---- glue: tiny one-time relayouts of input / weights (plain JAX) ----
    # 4-tap window per pooled position: taps[b, s, :] = x[b, 2s-1 .. 2s+2] (zero-padded).
    xp = jnp.pad(x, ((0, 0), (1, 2)))                                   # (b_pad, L+3)
    taps = jnp.stack([xp[:, k:k + L:2] for k in range(4)], axis=-1)     # (b_pad, L2, 4)
    # Position-major row order within each batch block: row = s*bb + b.
    taps = (taps.reshape(grid_b, bb, L2, 4).transpose(0, 2, 1, 3)
            .reshape(grid_b * L2 * bb, 4).astype(jnp.bfloat16))

    # conv1 weights for even / odd pre-pool positions packed side by side: (4, 2*C1).
    w1c = conv1_w[:, 0, :].T                                            # (3, C1)
    zero = jnp.zeros((1, C1), conv1_w.dtype)
    w1m = jnp.concatenate([jnp.concatenate([w1c, zero], axis=0),
                           jnp.concatenate([zero, w1c], axis=0)], axis=1).astype(jnp.bfloat16)
    b1m = jnp.tile(conv1_b[None, :], (1, 2))                            # (1, 2*C1)

    # conv2 weights as a single K=96 matrix: row k*C1 + c_in.
    w2m = jnp.transpose(conv2_w, (2, 1, 0)).reshape(3 * C1, C2).astype(jnp.bfloat16)
    b2m = conv2_b[None, :]                                              # (1, C2)

    # fc1 weight permuted once so the kernel's (seq, chan)-ordered chunks consume it
    # directly (torch flatten order is (chan, seq)); chunk j = rows [128j, 128j+128).
    w1p = (fc1_w.reshape(H1, C2, L4).transpose(2, 1, 0)
           .reshape(L4 * C2, H1).astype(jnp.bfloat16))                  # (L4*C2, H1)
    b1f = fc1_b[None, :]                                                # (1, H1)
    w2f = fc2_w.T                                                       # (H1, 1)
    b2f = fc2_b[None, :]                                                # (1, 1)

    flops = int(b_pad * (L2 * (2 * 4 * 2 * C1 + 2 * 3 * C1 * C2)
                         + 2 * L4 * C2 * H1 + 2 * H1))
    bytes_accessed = int(2 * (taps.size + w1m.size + w2m.size + w1p.size)
                         + 4 * (b1m.size + b2m.size + b1f.size + w2f.size + b2f.size)
                         + 4 * b_pad)
    cost = pl.CostEstimate(flops=flops, transcendentals=int(b_pad),
                           bytes_accessed=bytes_accessed)

    out = pl.pallas_call(
        functools.partial(protein_cnn_kernel, bb=bb, c1=C1, c2=C2, n_chunk=L4 // 2),
        out_shape=jax.ShapeDtypeStruct((grid_b, 1, bb), jnp.float32),
        grid=(grid_b,),
        in_specs=[
            pl.BlockSpec((bb * L2, 4), lambda i: (i, 0)),               # taps (blocked)
            pl.BlockSpec((4, 2 * C1), lambda i: (0, 0)),                # conv1 weight
            pl.BlockSpec((1, 2 * C1), lambda i: (0, 0)),                # conv1 bias (x2)
            pl.BlockSpec((3 * C1, C2), lambda i: (0, 0)),               # conv2 weight
            pl.BlockSpec((1, C2), lambda i: (0, 0)),                    # conv2 bias
            pl.BlockSpec((L4 * C2, H1), lambda i: (0, 0)),              # fc1 weight (resident)
            pl.BlockSpec((1, H1), lambda i: (0, 0)),                    # fc1 bias
            pl.BlockSpec((H1, 1), lambda i: (0, 0)),                    # fc2 weight
            pl.BlockSpec((1, 1), lambda i: (0, 0)),                     # fc2 bias
        ],
        out_specs=pl.BlockSpec((1, 1, bb), lambda i: (i, 0, 0)),        # lane-dense output
        compiler_params=pltpu.CompilerParams(
            dimension_semantics=("parallel",),
            vmem_limit_bytes=32 * 1024 * 1024),
        cost_estimate=cost,
    )(taps, w1m, b1m, w2m, b2m, w1p, b1f, w2f, b2f)

    return out.reshape(b_pad, 1)[:B]


# ----------------------------------------------------------------------------
# Pure-JAX reference (mirrors the PyTorch forward exactly, f32 throughout)
# ----------------------------------------------------------------------------
def reference_forward(x, params):
    conv1_w, conv1_b, conv2_w, conv2_b, fc1_w, fc1_b, fc2_w, fc2_b = params
    B, L = x.shape
    xp = jnp.pad(x, ((0, 0), (1, 1)))                                   # (B, L+2)
    h1 = conv1_b[None, :, None] + sum(
        conv1_w[None, :, 0, k, None] * xp[:, None, k:k + L] for k in range(3))
    h1 = jnp.maximum(h1, 0.0)                                           # (B, 32, L)
    p1 = jnp.maximum(h1[:, :, 0::2], h1[:, :, 1::2])                    # (B, 32, L/2)
    p1p = jnp.pad(p1, ((0, 0), (0, 0), (1, 1)))
    h2 = conv2_b[None, :, None] + sum(
        jnp.einsum('bcl,oc->bol', p1p[:, :, k:k + L // 2], conv2_w[:, :, k])
        for k in range(3))
    h2 = jnp.maximum(h2, 0.0)                                           # (B, 64, L/2)
    p2 = jnp.maximum(h2[:, :, 0::2], h2[:, :, 1::2])                    # (B, 64, L/4)
    flat = p2.reshape(B, -1)
    f1 = jnp.maximum(flat @ fc1_w.T + fc1_b[None, :], 0.0)
    return jax.nn.sigmoid(f1 @ fc2_w.T + fc2_b[None, :])


if __name__ == "__main__":
    # L = 200 is implied by fc1 = Linear(64*50, 128): 200 --pool--> 100 --pool--> 50
    B, L = 2, 200

    key = jax.random.PRNGKey(0)
    ks = jax.random.split(key, 9)
    conv1_w = jax.random.normal(ks[0], (32, 1, 3), jnp.float32) * 0.2
    conv1_b = jax.random.normal(ks[1], (32,), jnp.float32) * 0.1
    conv2_w = jax.random.normal(ks[2], (64, 32, 3), jnp.float32) * 0.1
    conv2_b = jax.random.normal(ks[3], (64,), jnp.float32) * 0.1
    fc1_w = jax.random.normal(ks[4], (128, 64 * 50), jnp.float32) * 0.02
    fc1_b = jax.random.normal(ks[5], (128,), jnp.float32) * 0.05
    fc2_w = jax.random.normal(ks[6], (1, 128), jnp.float32) * 0.1
    fc2_b = jax.random.normal(ks[7], (1,), jnp.float32) * 0.1
    params = (conv1_w, conv1_b, conv2_w, conv2_b, fc1_w, fc1_b, fc2_w, fc2_b)

    x = jax.random.normal(ks[8], (B, L), jnp.float32)

    out = jax.jit(protein_cnn_forward)(x, params)
    out = jax.block_until_ready(out)
    assert out.shape == (B, 1), out.shape

    ref = reference_forward(x, params)
    # conv1/conv2/fc1 matmuls run in bf16 (f32 accumulation) => loosened tolerance.
    if not jnp.allclose(out, ref, atol=5e-3, rtol=5e-3):
        raise AssertionError(
            f"mismatch: pallas={out} reference={ref} "
            f"max_abs_err={jnp.max(jnp.abs(out - ref))}")

    print("KERNEL_OK")
</pallas_src>

<mosaic_0001>
module attributes {stable_mosaic.version = 11 : i64} {
  func.func @protein_cnn_kernel(%arg0: i32, %arg1: memref<800x4xbf16, #tpu.memory_space<vmem>>, %arg2: memref<4x64xbf16, #tpu.memory_space<vmem>>, %arg3: memref<1x64xf32, #tpu.memory_space<vmem>>, %arg4: memref<96x64xbf16, #tpu.memory_space<vmem>>, %arg5: memref<1x64xf32, #tpu.memory_space<vmem>>, %arg6: memref<3200x128xbf16, #tpu.memory_space<vmem>>, %arg7: memref<1x128xf32, #tpu.memory_space<vmem>>, %arg8: memref<128x1xf32, #tpu.memory_space<vmem>>, %arg9: memref<1x1xf32, #tpu.memory_space<vmem>>, %arg10: memref<1x1x8xf32, #tpu.memory_space<vmem>>) attributes {dimension_semantics = [#tpu.dimension_semantics<parallel>], iteration_bounds = array<i64: 1>, scalar_prefetch = 0 : i64, scratch_operands = 0 : i64, tpu.core_type = #tpu.core_type<tc>, window_params = [{transform_indices = @transform_0, window_bounds = array<i64: 800, 4>}, {pipeline_mode = #tpu.pipeline_mode<synchronous>, transform_indices = @transform_1, window_bounds = array<i64: 4, 64>}, {pipeline_mode = #tpu.pipeline_mode<synchronous>, transform_indices = @transform_2, window_bounds = array<i64: 1, 64>}, {pipeline_mode = #tpu.pipeline_mode<synchronous>, transform_indices = @transform_3, window_bounds = array<i64: 96, 64>}, {pipeline_mode = #tpu.pipeline_mode<synchronous>, transform_indices = @transform_4, window_bounds = array<i64: 1, 64>}, {pipeline_mode = #tpu.pipeline_mode<synchronous>, transform_indices = @transform_5, window_bounds = array<i64: 3200, 128>}, {pipeline_mode = #tpu.pipeline_mode<synchronous>, transform_indices = @transform_6, window_bounds = array<i64: 1, 128>}, {pipeline_mode = #tpu.pipeline_mode<synchronous>, transform_indices = @transform_7, window_bounds = array<i64: 128, 1>}, {pipeline_mode = #tpu.pipeline_mode<synchronous>, transform_indices = @transform_8, window_bounds = array<i64: 1, 1>}, {transform_indices = @transform_9, window_bounds = array<i64: 1, 1, 8>}]} {
    %c0 = arith.constant 0 : index
    %c0_0 = arith.constant 0 : index
    %0 = vector.load %arg1[%c0, %c0_0] : memref<800x4xbf16, #tpu.memory_space<vmem>>, vector<800x4xbf16>
    %c0_1 = arith.constant 0 : index
    %c0_2 = arith.constant 0 : index
    %1 = vector.load %arg2[%c0_1, %c0_2] : memref<4x64xbf16, #tpu.memory_space<vmem>>, vector<4x64xbf16>
    %cst = arith.constant dense<0.000000e+00> : vector<800x64xf32>
    %2 = tpu.matmul %0, %1, %cst {dimension_numbers = #tpu.dot_dimension_numbers<[1], [0], [0], [1], [0, 0, 1, 1], [], []>} : vector<800x4xbf16>, vector<4x64xbf16>, vector<800x64xf32> -> vector<800x64xf32>
    %c0_3 = arith.constant 0 : index
    %c0_4 = arith.constant 0 : index
    %3 = vector.load %arg3[%c0_3, %c0_4] : memref<1x64xf32, #tpu.memory_space<vmem>>, vector<1x64xf32>
    %4 = vector.broadcast %3 : vector<1x64xf32> to vector<800x64xf32>
    %5 = arith.addf %2, %4 : vector<800x64xf32>
    %6 = vector.extract_strided_slice %5 {offsets = [0, 0], sizes = [800, 32], strides = [1, 1]} : vector<800x64xf32> to vector<800x32xf32>
    %7 = vector.extract_strided_slice %5 {offsets = [0, 32], sizes = [800, 32], strides = [1, 1]} : vector<800x64xf32> to vector<800x32xf32>
    %8 = arith.maximumf %6, %7 : vector<800x32xf32>
    %cst_5 = arith.constant 0.000000e+00 : f32
    %9 = vector.broadcast %cst_5 : f32 to vector<800x32xf32>
    %10 = arith.maximumf %8, %9 : vector<800x32xf32>
    %11 = tpu.iota {dimensions = array<i32: 0>} : vector<800x1xi32>
    %c8_i32 = arith.constant 8 : i32
    %12 = vector.broadcast %c8_i32 : i32 to vector<800x1xi32>
    %13 = arith.cmpi sge, %11, %12 : vector<800x1xi32>
    %c8_i32_6 = arith.constant 8 : i32
    %14 = tpu.dynamic_rotate %10 by %c8_i32_6 dim 0 : vector<800x32xf32>, i32 -> vector<800x32xf32>
    %cst_7 = arith.constant 0.000000e+00 : f32
    %15 = vector.shape_cast %13 : vector<800x1xi1> to vector<800x1xi1>
    %16 = vector.broadcast %15 : vector<800x1xi1> to vector<800x32xi1>
    %17 = vector.broadcast %cst_7 : f32 to vector<800x32xf32>
    %18 = arith.select %16, %14, %17 : vector<800x32xi1>, vector<800x32xf32>
    %c792_i32 = arith.constant 792 : i32
    %19 = vector.broadcast %c792_i32 : i32 to vector<800x1xi32>
    %20 = arith.cmpi slt, %11, %19 : vector<800x1xi32>
    %c792_i32_8 = arith.constant 792 : i32
    %21 = tpu.dynamic_rotate %10 by %c792_i32_8 dim 0 : vector<800x32xf32>, i32 -> vector<800x32xf32>
    %cst_9 = arith.constant 0.000000e+00 : f32
    %22 = vector.shape_cast %20 : vector<800x1xi1> to vector<800x1xi1>
    %23 = vector.broadcast %22 : vector<800x1xi1> to vector<800x32xi1>
    %24 = vector.broadcast %cst_9 : f32 to vector<800x32xf32>
    %25 = arith.select %23, %21, %24 : vector<800x32xi1>, vector<800x32xf32>
    %26 = tpu.concatenate %18, %10, %25 in 1 : vector<800x32xf32>, vector<800x32xf32>, vector<800x32xf32> -> vector<800x96xf32>
    %27 = arith.truncf %26 : vector<800x96xf32> to vector<800x96xbf16>
    %c0_10 = arith.constant 0 : index
    %c0_11 = arith.constant 0 : index
    %28 = vector.load %arg4[%c0_10, %c0_11] : memref<96x64xbf16, #tpu.memory_space<vmem>>, vector<96x64xbf16>
    %cst_12 = arith.constant dense<0.000000e+00> : vector<800x64xf32>
    %29 = tpu.matmul %27, %28, %cst_12 {dimension_numbers = #tpu.dot_dimension_numbers<[1], [0], [0], [1], [0, 0, 1, 1], [], []>} : vector<800x96xbf16>, vector<96x64xbf16>, vector<800x64xf32> -> vector<800x64xf32>
    %c0_13 = arith.constant 0 : index
    %c0_14 = arith.constant 0 : index
    %30 = vector.load %arg5[%c0_13, %c0_14] : memref<1x64xf32, #tpu.memory_space<vmem>>, vector<1x64xf32>
    %31 = vector.broadcast %30 : vector<1x64xf32> to vector<800x64xf32>
    %32 = arith.addf %29, %31 : vector<800x64xf32>
    %cst_15 = arith.constant 0.000000e+00 : f32
    %33 = vector.broadcast %cst_15 : f32 to vector<800x64xf32>
    %34 = arith.maximumf %32, %33 : vector<800x64xf32>
    %cst_16 = arith.constant 0.000000e+00 : f32
    %35 = vector.broadcast %cst_16 : f32 to vector<8x128xf32>
    %36 = vector.extract_strided_slice %34 {offsets = [0, 0], sizes = [8, 64], strides = [1, 1]} : vector<800x64xf32> to vector<8x64xf32>
    %37 = vector.extract_strided_slice %34 {offsets = [8, 0], sizes = [8, 64], strides = [1, 1]} : vector<800x64xf32> to vector<8x64xf32>
    %38 = vector.extract_strided_slice %34 {offsets = [16, 0], sizes = [8, 64], strides = [1, 1]} : vector<800x64xf32> to vector<8x64xf32>
    %39 = vector.extract_strided_slice %34 {offsets = [24, 0], sizes = [8, 64], strides = [1, 1]} : vector<800x64xf32> to vector<8x64xf32>
    %40 = arith.maximumf %36, %37 : vector<8x64xf32>
    %41 = arith.maximumf %38, %39 : vector<8x64xf32>
    %42 = tpu.concatenate %40, %41 in 1 : vector<8x64xf32>, vector<8x64xf32> -> vector<8x128xf32>
    %43 = arith.truncf %42 : vector<8x128xf32> to vector<8x128xbf16>
    %c0_17 = arith.constant 0 : index
    %c0_18 = arith.constant 0 : index
    %44 = vector.load %arg6[%c0_17, %c0_18] : memref<3200x128xbf16, #tpu.memory_space<vmem>>, vector<128x128xbf16>
    %cst_19 = arith.constant dense<0.000000e+00> : vector<8x128xf32>
    %45 = tpu.matmul %43, %44, %cst_19 {dimension_numbers = #tpu.dot_dimension_numbers<[1], [0], [0], [1], [0, 0, 1, 1], [], []>} : vector<8x128xbf16>, vector<128x128xbf16>, vector<8x128xf32> -> vector<8x128xf32>
    %46 = arith.addf %35, %45 : vector<8x128xf32>
    %47 = vector.extract_strided_slice %34 {offsets = [32, 0], sizes = [8, 64], strides = [1, 1]} : vector<800x64xf32> to vector<8x64xf32>
    %48 = vector.extract_strided_slice %34 {offsets = [40, 0], sizes = [8, 64], strides = [1, 1]} : vector<800x64xf32> to vector<8x64xf32>
    %49 = vector.extract_strided_slice %34 {offsets = [48, 0], sizes = [8, 64], strides = [1, 1]} : vector<800x64xf32> to vector<8x64xf32>
    %50 = vector.extract_strided_slice %34 {offsets = [56, 0], sizes = [8, 64], strides = [1, 1]} : vector<800x64xf32> to vector<8x64xf32>
    %51 = arith.maximumf %47, %48 : vector<8x64xf32>
    %52 = arith.maximumf %49, %50 : vector<8x64xf32>
    %53 = tpu.concatenate %51, %52 in 1 : vector<8x64xf32>, vector<8x64xf32> -> vector<8x128xf32>
    %54 = arith.truncf %53 : vector<8x128xf32> to vector<8x128xbf16>
    %c128 = arith.constant 128 : index
    %c0_20 = arith.constant 0 : index
    %55 = vector.load %arg6[%c128, %c0_20] : memref<3200x128xbf16, #tpu.memory_space<vmem>>, vector<128x128xbf16>
    %cst_21 = arith.constant dense<0.000000e+00> : vector<8x128xf32>
    %56 = tpu.matmul %54, %55, %cst_21 {dimension_numbers = #tpu.dot_dimension_numbers<[1], [0], [0], [1], [0, 0, 1, 1], [], []>} : vector<8x128xbf16>, vector<128x128xbf16>, vector<8x128xf32> -> vector<8x128xf32>
    %57 = arith.addf %46, %56 : vector<8x128xf32>
    %58 = vector.extract_strided_slice %34 {offsets = [64, 0], sizes = [8, 64], strides = [1, 1]} : vector<800x64xf32> to vector<8x64xf32>
    %59 = vector.extract_strided_slice %34 {offsets = [72, 0], sizes = [8, 64], strides = [1, 1]} : vector<800x64xf32> to vector<8x64xf32>
    %60 = vector.extract_strided_slice %34 {offsets = [80, 0], sizes = [8, 64], strides = [1, 1]} : vector<800x64xf32> to vector<8x64xf32>
    %61 = vector.extract_strided_slice %34 {offsets = [88, 0], sizes = [8, 64], strides = [1, 1]} : vector<800x64xf32> to vector<8x64xf32>
    %62 = arith.maximumf %58, %59 : vector<8x64xf32>
    %63 = arith.maximumf %60, %61 : vector<8x64xf32>
    %64 = tpu.concatenate %62, %63 in 1 : vector<8x64xf32>, vector<8x64xf32> -> vector<8x128xf32>
    %65 = arith.truncf %64 : vector<8x128xf32> to vector<8x128xbf16>
    %c256 = arith.constant 256 : index
    %c0_22 = arith.constant 0 : index
    %66 = vector.load %arg6[%c256, %c0_22] : memref<3200x128xbf16, #tpu.memory_space<vmem>>, vector<128x128xbf16>
    %cst_23 = arith.constant dense<0.000000e+00> : vector<8x128xf32>
    %67 = tpu.matmul %65, %66, %cst_23 {dimension_numbers = #tpu.dot_dimension_numbers<[1], [0], [0], [1], [0, 0, 1, 1], [], []>} : vector<8x128xbf16>, vector<128x128xbf16>, vector<8x128xf32> -> vector<8x128xf32>
    %68 = arith.addf %57, %67 : vector<8x128xf32>
    %69 = vector.extract_strided_slice %34 {offsets = [96, 0], sizes = [8, 64], strides = [1, 1]} : vector<800x64xf32> to vector<8x64xf32>
    %70 = vector.extract_strided_slice %34 {offsets = [104, 0], sizes = [8, 64], strides = [1, 1]} : vector<800x64xf32> to vector<8x64xf32>
    %71 = vector.extract_strided_slice %34 {offsets = [112, 0], sizes = [8, 64], strides = [1, 1]} : vector<800x64xf32> to vector<8x64xf32>
    %72 = vector.extract_strided_slice %34 {offsets = [120, 0], sizes = [8, 64], strides = [1, 1]} : vector<800x64xf32> to vector<8x64xf32>
    %73 = arith.maximumf %69, %70 : vector<8x64xf32>
    %74 = arith.maximumf %71, %72 : vector<8x64xf32>
    %75 = tpu.concatenate %73, %74 in 1 : vector<8x64xf32>, vector<8x64xf32> -> vector<8x128xf32>
    %76 = arith.truncf %75 : vector<8x128xf32> to vector<8x128xbf16>
    %c384 = arith.constant 384 : index
    %c0_24 = arith.constant 0 : index
    %77 = vector.load %arg6[%c384, %c0_24] : memref<3200x128xbf16, #tpu.memory_space<vmem>>, vector<128x128xbf16>
    %cst_25 = arith.constant dense<0.000000e+00> : vector<8x128xf32>
    %78 = tpu.matmul %76, %77, %cst_25 {dimension_numbers = #tpu.dot_dimension_numbers<[1], [0], [0], [1], [0, 0, 1, 1], [], []>} : vector<8x128xbf16>, vector<128x128xbf16>, vector<8x128xf32> -> vector<8x128xf32>
    %79 = arith.addf %68, %78 : vector<8x128xf32>
    %80 = vector.extract_strided_slice %34 {offsets = [128, 0], sizes = [8, 64], strides = [1, 1]} : vector<800x64xf32> to vector<8x64xf32>
    %81 = vector.extract_strided_slice %34 {offsets = [136, 0], sizes = [8, 64], strides = [1, 1]} : vector<800x64xf32> to vector<8x64xf32>
    %82 = vector.extract_strided_slice %34 {offsets = [144, 0], sizes = [8, 64], strides = [1, 1]} : vector<800x64xf32> to vector<8x64xf32>
    %83 = vector.extract_strided_slice %34 {offsets = [152, 0], sizes = [8, 64], strides = [1, 1]} : vector<800x64xf32> to vector<8x64xf32>
    %84 = arith.maximumf %80, %81 : vector<8x64xf32>
    %85 = arith.maximumf %82, %83 : vector<8x64xf32>
    %86 = tpu.concatenate %84, %85 in 1 : vector<8x64xf32>, vector<8x64xf32> -> vector<8x128xf32>
    %87 = arith.truncf %86 : vector<8x128xf32> to vector<8x128xbf16>
    %c512 = arith.constant 512 : index
    %c0_26 = arith.constant 0 : index
    %88 = vector.load %arg6[%c512, %c0_26] : memref<3200x128xbf16, #tpu.memory_space<vmem>>, vector<128x128xbf16>
    %cst_27 = arith.constant dense<0.000000e+00> : vector<8x128xf32>
    %89 = tpu.matmul %87, %88, %cst_27 {dimension_numbers = #tpu.dot_dimension_numbers<[1], [0], [0], [1], [0, 0, 1, 1], [], []>} : vector<8x128xbf16>, vector<128x128xbf16>, vector<8x128xf32> -> vector<8x128xf32>
    %90 = arith.addf %79, %89 : vector<8x128xf32>
    %91 = vector.extract_strided_slice %34 {offsets = [160, 0], sizes = [8, 64], strides = [1, 1]} : vector<800x64xf32> to vector<8x64xf32>
    %92 = vector.extract_strided_slice %34 {offsets = [168, 0], sizes = [8, 64], strides = [1, 1]} : vector<800x64xf32> to vector<8x64xf32>
    %93 = vector.extract_strided_slice %34 {offsets = [176, 0], sizes = [8, 64], strides = [1, 1]} : vector<800x64xf32> to vector<8x64xf32>
    %94 = vector.extract_strided_slice %34 {offsets = [184, 0], sizes = [8, 64], strides = [1, 1]} : vector<800x64xf32> to vector<8x64xf32>
    %95 = arith.maximumf %91, %92 : vector<8x64xf32>
    %96 = arith.maximumf %93, %94 : vector<8x64xf32>
    %97 = tpu.concatenate %95, %96 in 1 : vector<8x64xf32>, vector<8x64xf32> -> vector<8x128xf32>
    %98 = arith.truncf %97 : vector<8x128xf32> to vector<8x128xbf16>
    %c640 = arith.constant 640 : index
    %c0_28 = arith.constant 0 : index
    %99 = vector.load %arg6[%c640, %c0_28] : memref<3200x128xbf16, #tpu.memory_space<vmem>>, vector<128x128xbf16>
    %cst_29 = arith.constant dense<0.000000e+00> : vector<8x128xf32>
    %100 = tpu.matmul %98, %99, %cst_29 {dimension_numbers = #tpu.dot_dimension_numbers<[1], [0], [0], [1], [0, 0, 1, 1], [], []>} : vector<8x128xbf16>, vector<128x128xbf16>, vector<8x128xf32> -> vector<8x128xf32>
    %101 = arith.addf %90, %100 : vector<8x128xf32>
    %102 = vector.extract_strided_slice %34 {offsets = [192, 0], sizes = [8, 64], strides = [1, 1]} : vector<800x64xf32> to vector<8x64xf32>
    %103 = vector.extract_strided_slice %34 {offsets = [200, 0], sizes = [8, 64], strides = [1, 1]} : vector<800x64xf32> to vector<8x64xf32>
    %104 = vector.extract_strided_slice %34 {offsets = [208, 0], sizes = [8, 64], strides = [1, 1]} : vector<800x64xf32> to vector<8x64xf32>
    %105 = vector.extract_strided_slice %34 {offsets = [216, 0], sizes = [8, 64], strides = [1, 1]} : vector<800x64xf32> to vector<8x64xf32>
    %106 = arith.maximumf %102, %103 : vector<8x64xf32>
    %107 = arith.maximumf %104, %105 : vector<8x64xf32>
    %108 = tpu.concatenate %106, %107 in 1 : vector<8x64xf32>, vector<8x64xf32> -> vector<8x128xf32>
    %109 = arith.truncf %108 : vector<8x128xf32> to vector<8x128xbf16>
    %c768 = arith.constant 768 : index
    %c0_30 = arith.constant 0 : index
    %110 = vector.load %arg6[%c768, %c0_30] : memref<3200x128xbf16, #tpu.memory_space<vmem>>, vector<128x128xbf16>
    %cst_31 = arith.constant dense<0.000000e+00> : vector<8x128xf32>
    %111 = tpu.matmul %109, %110, %cst_31 {dimension_numbers = #tpu.dot_dimension_numbers<[1], [0], [0], [1], [0, 0, 1, 1], [], []>} : vector<8x128xbf16>, vector<128x128xbf16>, vector<8x128xf32> -> vector<8x128xf32>
    %112 = arith.addf %101, %111 : vector<8x128xf32>
    %113 = vector.extract_strided_slice %34 {offsets = [224, 0], sizes = [8, 64], strides = [1, 1]} : vector<800x64xf32> to vector<8x64xf32>
    %114 = vector.extract_strided_slice %34 {offsets = [232, 0], sizes = [8, 64], strides = [1, 1]} : vector<800x64xf32> to vector<8x64xf32>
    %115 = vector.extract_strided_slice %34 {offsets = [240, 0], sizes = [8, 64], strides = [1, 1]} : vector<800x64xf32> to vector<8x64xf32>
    %116 = vector.extract_strided_slice %34 {offsets = [248, 0], sizes = [8, 64], strides = [1, 1]} : vector<800x64xf32> to vector<8x64xf32>
    %117 = arith.maximumf %113, %114 : vector<8x64xf32>
    %118 = arith.maximumf %115, %116 : vector<8x64xf32>
    %119 = tpu.concatenate %117, %118 in 1 : vector<8x64xf32>, vector<8x64xf32> -> vector<8x128xf32>
    %120 = arith.truncf %119 : vector<8x128xf32> to vector<8x128xbf16>
    %c896 = arith.constant 896 : index
    %c0_32 = arith.constant 0 : index
    %121 = vector.load %arg6[%c896, %c0_32] : memref<3200x128xbf16, #tpu.memory_space<vmem>>, vector<128x128xbf16>
    %cst_33 = arith.constant dense<0.000000e+00> : vector<8x128xf32>
    %122 = tpu.matmul %120, %121, %cst_33 {dimension_numbers = #tpu.dot_dimension_numbers<[1], [0], [0], [1], [0, 0, 1, 1], [], []>} : vector<8x128xbf16>, vector<128x128xbf16>, vector<8x128xf32> -> vector<8x128xf32>
    %123 = arith.addf %112, %122 : vector<8x128xf32>
    %124 = vector.extract_strided_slice %34 {offsets = [256, 0], sizes = [8, 64], strides = [1, 1]} : vector<800x64xf32> to vector<8x64xf32>
    %125 = vector.extract_strided_slice %34 {offsets = [264, 0], sizes = [8, 64], strides = [1, 1]} : vector<800x64xf32> to vector<8x64xf32>
    %126 = vector.extract_strided_slice %34 {offsets = [272, 0], sizes = [8, 64], strides = [1, 1]} : vector<800x64xf32> to vector<8x64xf32>
    %127 = vector.extract_strided_slice %34 {offsets = [280, 0], sizes = [8, 64], strides = [1, 1]} : vector<800x64xf32> to vector<8x64xf32>
    %128 = arith.maximumf %124, %125 : vector<8x64xf32>
    %129 = arith.maximumf %126, %127 : vector<8x64xf32>
    %130 = tpu.concatenate %128, %129 in 1 : vector<8x64xf32>, vector<8x64xf32> -> vector<8x128xf32>
    %131 = arith.truncf %130 : vector<8x128xf32> to vector<8x128xbf16>
    %c1024 = arith.constant 1024 : index
    %c0_34 = arith.constant 0 : index
    %132 = vector.load %arg6[%c1024, %c0_34] : memref<3200x128xbf16, #tpu.memory_space<vmem>>, vector<128x128xbf16>
    %cst_35 = arith.constant dense<0.000000e+00> : vector<8x128xf32>
    %133 = tpu.matmul %131, %132, %cst_35 {dimension_numbers = #tpu.dot_dimension_numbers<[1], [0], [0], [1], [0, 0, 1, 1], [], []>} : vector<8x128xbf16>, vector<128x128xbf16>, vector<8x128xf32> -> vector<8x128xf32>
    %134 = arith.addf %123, %133 : vector<8x128xf32>
    %135 = vector.extract_strided_slice %34 {offsets = [288, 0], sizes = [8, 64], strides = [1, 1]} : vector<800x64xf32> to vector<8x64xf32>
    %136 = vector.extract_strided_slice %34 {offsets = [296, 0], sizes = [8, 64], strides = [1, 1]} : vector<800x64xf32> to vector<8x64xf32>
    %137 = vector.extract_strided_slice %34 {offsets = [304, 0], sizes = [8, 64], strides = [1, 1]} : vector<800x64xf32> to vector<8x64xf32>
    %138 = vector.extract_strided_slice %34 {offsets = [312, 0], sizes = [8, 64], strides = [1, 1]} : vector<800x64xf32> to vector<8x64xf32>
    %139 = arith.maximumf %135, %136 : vector<8x64xf32>
    %140 = arith.maximumf %137, %138 : vector<8x64xf32>
    %141 = tpu.concatenate %139, %140 in 1 : vector<8x64xf32>, vector<8x64xf32> -> vector<8x128xf32>
    %142 = arith.truncf %141 : vector<8x128xf32> to vector<8x128xbf16>
    %c1152 = arith.constant 1152 : index
    %c0_36 = arith.constant 0 : index
    %143 = vector.load %arg6[%c1152, %c0_36] : memref<3200x128xbf16, #tpu.memory_space<vmem>>, vector<128x128xbf16>
    %cst_37 = arith.constant dense<0.000000e+00> : vector<8x128xf32>
    %144 = tpu.matmul %142, %143, %cst_37 {dimension_numbers = #tpu.dot_dimension_numbers<[1], [0], [0], [1], [0, 0, 1, 1], [], []>} : vector<8x128xbf16>, vector<128x128xbf16>, vector<8x128xf32> -> vector<8x128xf32>
    %145 = arith.addf %134, %144 : vector<8x128xf32>
    %146 = vector.extract_strided_slice %34 {offsets = [320, 0], sizes = [8, 64], strides = [1, 1]} : vector<800x64xf32> to vector<8x64xf32>
    %147 = vector.extract_strided_slice %34 {offsets = [328, 0], sizes = [8, 64], strides = [1, 1]} : vector<800x64xf32> to vector<8x64xf32>
    %148 = vector.extract_strided_slice %34 {offsets = [336, 0], sizes = [8, 64], strides = [1, 1]} : vector<800x64xf32> to vector<8x64xf32>
    %149 = vector.extract_strided_slice %34 {offsets = [344, 0], sizes = [8, 64], strides = [1, 1]} : vector<800x64xf32> to vector<8x64xf32>
    %150 = arith.maximumf %146, %147 : vector<8x64xf32>
    %151 = arith.maximumf %148, %149 : vector<8x64xf32>
    %152 = tpu.concatenate %150, %151 in 1 : vector<8x64xf32>, vector<8x64xf32> -> vector<8x128xf32>
    %153 = arith.truncf %152 : vector<8x128xf32> to vector<8x128xbf16>
    %c1280 = arith.constant 1280 : index
    %c0_38 = arith.constant 0 : index
    %154 = vector.load %arg6[%c1280, %c0_38] : memref<3200x128xbf16, #tpu.memory_space<vmem>>, vector<128x128xbf16>
    %cst_39 = arith.constant dense<0.000000e+00> : vector<8x128xf32>
    %155 = tpu.matmul %153, %154, %cst_39 {dimension_numbers = #tpu.dot_dimension_numbers<[1], [0], [0], [1], [0, 0, 1, 1], [], []>} : vector<8x128xbf16>, vector<128x128xbf16>, vector<8x128xf32> -> vector<8x128xf32>
    %156 = arith.addf %145, %155 : vector<8x128xf32>
    %157 = vector.extract_strided_slice %34 {offsets = [352, 0], sizes = [8, 64], strides = [1, 1]} : vector<800x64xf32> to vector<8x64xf32>
    %158 = vector.extract_strided_slice %34 {offsets = [360, 0], sizes = [8, 64], strides = [1, 1]} : vector<800x64xf32> to vector<8x64xf32>
    %159 = vector.extract_strided_slice %34 {offsets = [368, 0], sizes = [8, 64], strides = [1, 1]} : vector<800x64xf32> to vector<8x64xf32>
    %160 = vector.extract_strided_slice %34 {offsets = [376, 0], sizes = [8, 64], strides = [1, 1]} : vector<800x64xf32> to vector<8x64xf32>
    %161 = arith.maximumf %157, %158 : vector<8x64xf32>
    %162 = arith.maximumf %159, %160 : vector<8x64xf32>
    %163 = tpu.concatenate %161, %162 in 1 : vector<8x64xf32>, vector<8x64xf32> -> vector<8x128xf32>
    %164 = arith.truncf %163 : vector<8x128xf32> to vector<8x128xbf16>
    %c1408 = arith.constant 1408 : index
    %c0_40 = arith.constant 0 : index
    %165 = vector.load %arg6[%c1408, %c0_40] : memref<3200x128xbf16, #tpu.memory_space<vmem>>, vector<128x128xbf16>
    %cst_41 = arith.constant dense<0.000000e+00> : vector<8x128xf32>
    %166 = tpu.matmul %164, %165, %cst_41 {dimension_numbers = #tpu.dot_dimension_numbers<[1], [0], [0], [1], [0, 0, 1, 1], [], []>} : vector<8x128xbf16>, vector<128x128xbf16>, vector<8x128xf32> -> vector<8x128xf32>
    %167 = arith.addf %156, %166 : vector<8x128xf32>
    %168 = vector.extract_strided_slice %34 {offsets = [384, 0], sizes = [8, 64], strides = [1, 1]} : vector<800x64xf32> to vector<8x64xf32>
    %169 = vector.extract_strided_slice %34 {offsets = [392, 0], sizes = [8, 64], strides = [1, 1]} : vector<800x64xf32> to vector<8x64xf32>
    %170 = vector.extract_strided_slice %34 {offsets = [400, 0], sizes = [8, 64], strides = [1, 1]} : vector<800x64xf32> to vector<8x64xf32>
    %171 = vector.extract_strided_slice %34 {offsets = [408, 0], sizes = [8, 64], strides = [1, 1]} : vector<800x64xf32> to vector<8x64xf32>
    %172 = arith.maximumf %168, %169 : vector<8x64xf32>
    %173 = arith.maximumf %170, %171 : vector<8x64xf32>
    %174 = tpu.concatenate %172, %173 in 1 : vector<8x64xf32>, vector<8x64xf32> -> vector<8x128xf32>
    %175 = arith.truncf %174 : vector<8x128xf32> to vector<8x128xbf16>
    %c1536 = arith.constant 1536 : index
    %c0_42 = arith.constant 0 : index
    %176 = vector.load %arg6[%c1536, %c0_42] : memref<3200x128xbf16, #tpu.memory_space<vmem>>, vector<128x128xbf16>
    %cst_43 = arith.constant dense<0.000000e+00> : vector<8x128xf32>
    %177 = tpu.matmul %175, %176, %cst_43 {dimension_numbers = #tpu.dot_dimension_numbers<[1], [0], [0], [1], [0, 0, 1, 1], [], []>} : vector<8x128xbf16>, vector<128x128xbf16>, vector<8x128xf32> -> vector<8x128xf32>
    %178 = arith.addf %167, %177 : vector<8x128xf32>
    %179 = vector.extract_strided_slice %34 {offsets = [416, 0], sizes = [8, 64], strides = [1, 1]} : vector<800x64xf32> to vector<8x64xf32>
    %180 = vector.extract_strided_slice %34 {offsets = [424, 0], sizes = [8, 64], strides = [1, 1]} : vector<800x64xf32> to vector<8x64xf32>
    %181 = vector.extract_strided_slice %34 {offsets = [432, 0], sizes = [8, 64], strides = [1, 1]} : vector<800x64xf32> to vector<8x64xf32>
    %182 = vector.extract_strided_slice %34 {offsets = [440, 0], sizes = [8, 64], strides = [1, 1]} : vector<800x64xf32> to vector<8x64xf32>
    %183 = arith.maximumf %179, %180 : vector<8x64xf32>
    %184 = arith.maximumf %181, %182 : vector<8x64xf32>
    %185 = tpu.concatenate %183, %184 in 1 : vector<8x64xf32>, vector<8x64xf32> -> vector<8x128xf32>
    %186 = arith.truncf %185 : vector<8x128xf32> to vector<8x128xbf16>
    %c1664 = arith.constant 1664 : index
    %c0_44 = arith.constant 0 : index
    %187 = vector.load %arg6[%c1664, %c0_44] : memref<3200x128xbf16, #tpu.memory_space<vmem>>, vector<128x128xbf16>
    %cst_45 = arith.constant dense<0.000000e+00> : vector<8x128xf32>
    %188 = tpu.matmul %186, %187, %cst_45 {dimension_numbers = #tpu.dot_dimension_numbers<[1], [0], [0], [1], [0, 0, 1, 1], [], []>} : vector<8x128xbf16>, vector<128x128xbf16>, vector<8x128xf32> -> vector<8x128xf32>
    %189 = arith.addf %178, %188 : vector<8x128xf32>
    %190 = vector.extract_strided_slice %34 {offsets = [448, 0], sizes = [8, 64], strides = [1, 1]} : vector<800x64xf32> to vector<8x64xf32>
    %191 = vector.extract_strided_slice %34 {offsets = [456, 0], sizes = [8, 64], strides = [1, 1]} : vector<800x64xf32> to vector<8x64xf32>
    %192 = vector.extract_strided_slice %34 {offsets = [464, 0], sizes = [8, 64], strides = [1, 1]} : vector<800x64xf32> to vector<8x64xf32>
    %193 = vector.extract_strided_slice %34 {offsets = [472, 0], sizes = [8, 64], strides = [1, 1]} : vector<800x64xf32> to vector<8x64xf32>
    %194 = arith.maximumf %190, %191 : vector<8x64xf32>
    %195 = arith.maximumf %192, %193 : vector<8x64xf32>
    %196 = tpu.concatenate %194, %195 in 1 : vector<8x64xf32>, vector<8x64xf32> -> vector<8x128xf32>
    %197 = arith.truncf %196 : vector<8x128xf32> to vector<8x128xbf16>
    %c1792 = arith.constant 1792 : index
    %c0_46 = arith.constant 0 : index
    %198 = vector.load %arg6[%c1792, %c0_46] : memref<3200x128xbf16, #tpu.memory_space<vmem>>, vector<128x128xbf16>
    %cst_47 = arith.constant dense<0.000000e+00> : vector<8x128xf32>
    %199 = tpu.matmul %197, %198, %cst_47 {dimension_numbers = #tpu.dot_dimension_numbers<[1], [0], [0], [1], [0, 0, 1, 1], [], []>} : vector<8x128xbf16>, vector<128x128xbf16>, vector<8x128xf32> -> vector<8x128xf32>
    %200 = arith.addf %189, %199 : vector<8x128xf32>
    %201 = vector.extract_strided_slice %34 {offsets = [480, 0], sizes = [8, 64], strides = [1, 1]} : vector<800x64xf32> to vector<8x64xf32>
    %202 = vector.extract_strided_slice %34 {offsets = [488, 0], sizes = [8, 64], strides = [1, 1]} : vector<800x64xf32> to vector<8x64xf32>
    %203 = vector.extract_strided_slice %34 {offsets = [496, 0], sizes = [8, 64], strides = [1, 1]} : vector<800x64xf32> to vector<8x64xf32>
    %204 = vector.extract_strided_slice %34 {offsets = [504, 0], sizes = [8, 64], strides = [1, 1]} : vector<800x64xf32> to vector<8x64xf32>
    %205 = arith.maximumf %201, %202 : vector<8x64xf32>
    %206 = arith.maximumf %203, %204 : vector<8x64xf32>
    %207 = tpu.concatenate %205, %206 in 1 : vector<8x64xf32>, vector<8x64xf32> -> vector<8x128xf32>
    %208 = arith.truncf %207 : vector<8x128xf32> to vector<8x128xbf16>
    %c1920 = arith.constant 1920 : index
    %c0_48 = arith.constant 0 : index
    %209 = vector.load %arg6[%c1920, %c0_48] : memref<3200x128xbf16, #tpu.memory_space<vmem>>, vector<128x128xbf16>
    %cst_49 = arith.constant dense<0.000000e+00> : vector<8x128xf32>
    %210 = tpu.matmul %208, %209, %cst_49 {dimension_numbers = #tpu.dot_dimension_numbers<[1], [0], [0], [1], [0, 0, 1, 1], [], []>} : vector<8x128xbf16>, vector<128x128xbf16>, vector<8x128xf32> -> vector<8x128xf32>
    %211 = arith.addf %200, %210 : vector<8x128xf32>
    %212 = vector.extract_strided_slice %34 {offsets = [512, 0], sizes = [8, 64], strides = [1, 1]} : vector<800x64xf32> to vector<8x64xf32>
    %213 = vector.extract_strided_slice %34 {offsets = [520, 0], sizes = [8, 64], strides = [1, 1]} : vector<800x64xf32> to vector<8x64xf32>
    %214 = vector.extract_strided_slice %34 {offsets = [528, 0], sizes = [8, 64], strides = [1, 1]} : vector<800x64xf32> to vector<8x64xf32>
    %215 = vector.extract_strided_slice %34 {offsets = [536, 0], sizes = [8, 64], strides = [1, 1]} : vector<800x64xf32> to vector<8x64xf32>
    %216 = arith.maximumf %212, %213 : vector<8x64xf32>
    %217 = arith.maximumf %214, %215 : vector<8x64xf32>
    %218 = tpu.concatenate %216, %217 in 1 : vector<8x64xf32>, vector<8x64xf32> -> vector<8x128xf32>
    %219 = arith.truncf %218 : vector<8x128xf32> to vector<8x128xbf16>
    %c2048 = arith.constant 2048 : index
    %c0_50 = arith.constant 0 : index
    %220 = vector.load %arg6[%c2048, %c0_50] : memref<3200x128xbf16, #tpu.memory_space<vmem>>, vector<128x128xbf16>
    %cst_51 = arith.constant dense<0.000000e+00> : vector<8x128xf32>
    %221 = tpu.matmul %219, %220, %cst_51 {dimension_numbers = #tpu.dot_dimension_numbers<[1], [0], [0], [1], [0, 0, 1, 1], [], []>} : vector<8x128xbf16>, vector<128x128xbf16>, vector<8x128xf32> -> vector<8x128xf32>
    %222 = arith.addf %211, %221 : vector<8x128xf32>
    %223 = vector.extract_strided_slice %34 {offsets = [544, 0], sizes = [8, 64], strides = [1, 1]} : vector<800x64xf32> to vector<8x64xf32>
    %224 = vector.extract_strided_slice %34 {offsets = [552, 0], sizes = [8, 64], strides = [1, 1]} : vector<800x64xf32> to vector<8x64xf32>
    %225 = vector.extract_strided_slice %34 {offsets = [560, 0], sizes = [8, 64], strides = [1, 1]} : vector<800x64xf32> to vector<8x64xf32>
    %226 = vector.extract_strided_slice %34 {offsets = [568, 0], sizes = [8, 64], strides = [1, 1]} : vector<800x64xf32> to vector<8x64xf32>
    %227 = arith.maximumf %223, %224 : vector<8x64xf32>
    %228 = arith.maximumf %225, %226 : vector<8x64xf32>
    %229 = tpu.concatenate %227, %228 in 1 : vector<8x64xf32>, vector<8x64xf32> -> vector<8x128xf32>
    %230 = arith.truncf %229 : vector<8x128xf32> to vector<8x128xbf16>
    %c2176 = arith.constant 2176 : index
    %c0_52 = arith.constant 0 : index
    %231 = vector.load %arg6[%c2176, %c0_52] : memref<3200x128xbf16, #tpu.memory_space<vmem>>, vector<128x128xbf16>
    %cst_53 = arith.constant dense<0.000000e+00> : vector<8x128xf32>
    %232 = tpu.matmul %230, %231, %cst_53 {dimension_numbers = #tpu.dot_dimension_numbers<[1], [0], [0], [1], [0, 0, 1, 1], [], []>} : vector<8x128xbf16>, vector<128x128xbf16>, vector<8x128xf32> -> vector<8x128xf32>
    %233 = arith.addf %222, %232 : vector<8x128xf32>
    %234 = vector.extract_strided_slice %34 {offsets = [576, 0], sizes = [8, 64], strides = [1, 1]} : vector<800x64xf32> to vector<8x64xf32>
    %235 = vector.extract_strided_slice %34 {offsets = [584, 0], sizes = [8, 64], strides = [1, 1]} : vector<800x64xf32> to vector<8x64xf32>
    %236 = vector.extract_strided_slice %34 {offsets = [592, 0], sizes = [8, 64], strides = [1, 1]} : vector<800x64xf32> to vector<8x64xf32>
    %237 = vector.extract_strided_slice %34 {offsets = [600, 0], sizes = [8, 64], strides = [1, 1]} : vector<800x64xf32> to vector<8x64xf32>
    %238 = arith.maximumf %234, %235 : vector<8x64xf32>
    %239 = arith.maximumf %236, %237 : vector<8x64xf32>
    %240 = tpu.concatenate %238, %239 in 1 : vector<8x64xf32>, vector<8x64xf32> -> vector<8x128xf32>
    %241 = arith.truncf %240 : vector<8x128xf32> to vector<8x128xbf16>
    %c2304 = arith.constant 2304 : index
    %c0_54 = arith.constant 0 : index
    %242 = vector.load %arg6[%c2304, %c0_54] : memref<3200x128xbf16, #tpu.memory_space<vmem>>, vector<128x128xbf16>
    %cst_55 = arith.constant dense<0.000000e+00> : vector<8x128xf32>
    %243 = tpu.matmul %241, %242, %cst_55 {dimension_numbers = #tpu.dot_dimension_numbers<[1], [0], [0], [1], [0, 0, 1, 1], [], []>} : vector<8x128xbf16>, vector<128x128xbf16>, vector<8x128xf32> -> vector<8x128xf32>
    %244 = arith.addf %233, %243 : vector<8x128xf32>
    %245 = vector.extract_strided_slice %34 {offsets = [608, 0], sizes = [8, 64], strides = [1, 1]} : vector<800x64xf32> to vector<8x64xf32>
    %246 = vector.extract_strided_slice %34 {offsets = [616, 0], sizes = [8, 64], strides = [1, 1]} : vector<800x64xf32> to vector<8x64xf32>
    %247 = vector.extract_strided_slice %34 {offsets = [624, 0], sizes = [8, 64], strides = [1, 1]} : vector<800x64xf32> to vector<8x64xf32>
    %248 = vector.extract_strided_slice %34 {offsets = [632, 0], sizes = [8, 64], strides = [1, 1]} : vector<800x64xf32> to vector<8x64xf32>
    %249 = arith.maximumf %245, %246 : vector<8x64xf32>
    %250 = arith.maximumf %247, %248 : vector<8x64xf32>
    %251 = tpu.concatenate %249, %250 in 1 : vector<8x64xf32>, vector<8x64xf32> -> vector<8x128xf32>
    %252 = arith.truncf %251 : vector<8x128xf32> to vector<8x128xbf16>
    %c2432 = arith.constant 2432 : index
    %c0_56 = arith.constant 0 : index
    %253 = vector.load %arg6[%c2432, %c0_56] : memref<3200x128xbf16, #tpu.memory_space<vmem>>, vector<128x128xbf16>
    %cst_57 = arith.constant dense<0.000000e+00> : vector<8x128xf32>
    %254 = tpu.matmul %252, %253, %cst_57 {dimension_numbers = #tpu.dot_dimension_numbers<[1], [0], [0], [1], [0, 0, 1, 1], [], []>} : vector<8x128xbf16>, vector<128x128xbf16>, vector<8x128xf32> -> vector<8x128xf32>
    %255 = arith.addf %244, %254 : vector<8x128xf32>
    %256 = vector.extract_strided_slice %34 {offsets = [640, 0], sizes = [8, 64], strides = [1, 1]} : vector<800x64xf32> to vector<8x64xf32>
    %257 = vector.extract_strided_slice %34 {offsets = [648, 0], sizes = [8, 64], strides = [1, 1]} : vector<800x64xf32> to vector<8x64xf32>
    %258 = vector.extract_strided_slice %34 {offsets = [656, 0], sizes = [8, 64], strides = [1, 1]} : vector<800x64xf32> to vector<8x64xf32>
    %259 = vector.extract_strided_slice %34 {offsets = [664, 0], sizes = [8, 64], strides = [1, 1]} : vector<800x64xf32> to vector<8x64xf32>
    %260 = arith.maximumf %256, %257 : vector<8x64xf32>
    %261 = arith.maximumf %258, %259 : vector<8x64xf32>
    %262 = tpu.concatenate %260, %261 in 1 : vector<8x64xf32>, vector<8x64xf32> -> vector<8x128xf32>
    %263 = arith.truncf %262 : vector<8x128xf32> to vector<8x128xbf16>
    %c2560 = arith.constant 2560 : index
    %c0_58 = arith.constant 0 : index
    %264 = vector.load %arg6[%c2560, %c0_58] : memref<3200x128xbf16, #tpu.memory_space<vmem>>, vector<128x128xbf16>
    %cst_59 = arith.constant dense<0.000000e+00> : vector<8x128xf32>
    %265 = tpu.matmul %263, %264, %cst_59 {dimension_numbers = #tpu.dot_dimension_numbers<[1], [0], [0], [1], [0, 0, 1, 1], [], []>} : vector<8x128xbf16>, vector<128x128xbf16>, vector<8x128xf32> -> vector<8x128xf32>
    %266 = arith.addf %255, %265 : vector<8x128xf32>
    %267 = vector.extract_strided_slice %34 {offsets = [672, 0], sizes = [8, 64], strides = [1, 1]} : vector<800x64xf32> to vector<8x64xf32>
    %268 = vector.extract_strided_slice %34 {offsets = [680, 0], sizes = [8, 64], strides = [1, 1]} : vector<800x64xf32> to vector<8x64xf32>
    %269 = vector.extract_strided_slice %34 {offsets = [688, 0], sizes = [8, 64], strides = [1, 1]} : vector<800x64xf32> to vector<8x64xf32>
    %270 = vector.extract_strided_slice %34 {offsets = [696, 0], sizes = [8, 64], strides = [1, 1]} : vector<800x64xf32> to vector<8x64xf32>
    %271 = arith.maximumf %267, %268 : vector<8x64xf32>
    %272 = arith.maximumf %269, %270 : vector<8x64xf32>
    %273 = tpu.concatenate %271, %272 in 1 : vector<8x64xf32>, vector<8x64xf32> -> vector<8x128xf32>
    %274 = arith.truncf %273 : vector<8x128xf32> to vector<8x128xbf16>
    %c2688 = arith.constant 2688 : index
    %c0_60 = arith.constant 0 : index
    %275 = vector.load %arg6[%c2688, %c0_60] : memref<3200x128xbf16, #tpu.memory_space<vmem>>, vector<128x128xbf16>
    %cst_61 = arith.constant dense<0.000000e+00> : vector<8x128xf32>
    %276 = tpu.matmul %274, %275, %cst_61 {dimension_numbers = #tpu.dot_dimension_numbers<[1], [0], [0], [1], [0, 0, 1, 1], [], []>} : vector<8x128xbf16>, vector<128x128xbf16>, vector<8x128xf32> -> vector<8x128xf32>
    %277 = arith.addf %266, %276 : vector<8x128xf32>
    %278 = vector.extract_strided_slice %34 {offsets = [704, 0], sizes = [8, 64], strides = [1, 1]} : vector<800x64xf32> to vector<8x64xf32>
    %279 = vector.extract_strided_slice %34 {offsets = [712, 0], sizes = [8, 64], strides = [1, 1]} : vector<800x64xf32> to vector<8x64xf32>
    %280 = vector.extract_strided_slice %34 {offsets = [720, 0], sizes = [8, 64], strides = [1, 1]} : vector<800x64xf32> to vector<8x64xf32>
    %281 = vector.extract_strided_slice %34 {offsets = [728, 0], sizes = [8, 64], strides = [1, 1]} : vector<800x64xf32> to vector<8x64xf32>
    %282 = arith.maximumf %278, %279 : vector<8x64xf32>
    %283 = arith.maximumf %280, %281 : vector<8x64xf32>
    %284 = tpu.concatenate %282, %283 in 1 : vector<8x64xf32>, vector<8x64xf32> -> vector<8x128xf32>
    %285 = arith.truncf %284 : vector<8x128xf32> to vector<8x128xbf16>
    %c2816 = arith.constant 2816 : index
    %c0_62 = arith.constant 0 : index
    %286 = vector.load %arg6[%c2816, %c0_62] : memref<3200x128xbf16, #tpu.memory_space<vmem>>, vector<128x128xbf16>
    %cst_63 = arith.constant dense<0.000000e+00> : vector<8x128xf32>
    %287 = tpu.matmul %285, %286, %cst_63 {dimension_numbers = #tpu.dot_dimension_numbers<[1], [0], [0], [1], [0, 0, 1, 1], [], []>} : vector<8x128xbf16>, vector<128x128xbf16>, vector<8x128xf32> -> vector<8x128xf32>
    %288 = arith.addf %277, %287 : vector<8x128xf32>
    %289 = vector.extract_strided_slice %34 {offsets = [736, 0], sizes = [8, 64], strides = [1, 1]} : vector<800x64xf32> to vector<8x64xf32>
    %290 = vector.extract_strided_slice %34 {offsets = [744, 0], sizes = [8, 64], strides = [1, 1]} : vector<800x64xf32> to vector<8x64xf32>
    %291 = vector.extract_strided_slice %34 {offsets = [752, 0], sizes = [8, 64], strides = [1, 1]} : vector<800x64xf32> to vector<8x64xf32>
    %292 = vector.extract_strided_slice %34 {offsets = [760, 0], sizes = [8, 64], strides = [1, 1]} : vector<800x64xf32> to vector<8x64xf32>
    %293 = arith.maximumf %289, %290 : vector<8x64xf32>
    %294 = arith.maximumf %291, %292 : vector<8x64xf32>
    %295 = tpu.concatenate %293, %294 in 1 : vector<8x64xf32>, vector<8x64xf32> -> vector<8x128xf32>
    %296 = arith.truncf %295 : vector<8x128xf32> to vector<8x128xbf16>
    %c2944 = arith.constant 2944 : index
    %c0_64 = arith.constant 0 : index
    %297 = vector.load %arg6[%c2944, %c0_64] : memref<3200x128xbf16, #tpu.memory_space<vmem>>, vector<128x128xbf16>
    %cst_65 = arith.constant dense<0.000000e+00> : vector<8x128xf32>
    %298 = tpu.matmul %296, %297, %cst_65 {dimension_numbers = #tpu.dot_dimension_numbers<[1], [0], [0], [1], [0, 0, 1, 1], [], []>} : vector<8x128xbf16>, vector<128x128xbf16>, vector<8x128xf32> -> vector<8x128xf32>
    %299 = arith.addf %288, %298 : vector<8x128xf32>
    %300 = vector.extract_strided_slice %34 {offsets = [768, 0], sizes = [8, 64], strides = [1, 1]} : vector<800x64xf32> to vector<8x64xf32>
    %301 = vector.extract_strided_slice %34 {offsets = [776, 0], sizes = [8, 64], strides = [1, 1]} : vector<800x64xf32> to vector<8x64xf32>
    %302 = vector.extract_strided_slice %34 {offsets = [784, 0], sizes = [8, 64], strides = [1, 1]} : vector<800x64xf32> to vector<8x64xf32>
    %303 = vector.extract_strided_slice %34 {offsets = [792, 0], sizes = [8, 64], strides = [1, 1]} : vector<800x64xf32> to vector<8x64xf32>
    %304 = arith.maximumf %300, %301 : vector<8x64xf32>
    %305 = arith.maximumf %302, %303 : vector<8x64xf32>
    %306 = tpu.concatenate %304, %305 in 1 : vector<8x64xf32>, vector<8x64xf32> -> vector<8x128xf32>
    %307 = arith.truncf %306 : vector<8x128xf32> to vector<8x128xbf16>
    %c3072 = arith.constant 3072 : index
    %c0_66 = arith.constant 0 : index
    %308 = vector.load %arg6[%c3072, %c0_66] : memref<3200x128xbf16, #tpu.memory_space<vmem>>, vector<128x128xbf16>
    %cst_67 = arith.constant dense<0.000000e+00> : vector<8x128xf32>
    %309 = tpu.matmul %307, %308, %cst_67 {dimension_numbers = #tpu.dot_dimension_numbers<[1], [0], [0], [1], [0, 0, 1, 1], [], []>} : vector<8x128xbf16>, vector<128x128xbf16>, vector<8x128xf32> -> vector<8x128xf32>
    %310 = arith.addf %299, %309 : vector<8x128xf32>
    %c0_68 = arith.constant 0 : index
    %c0_69 = arith.constant 0 : index
    %311 = vector.load %arg7[%c0_68, %c0_69] : memref<1x128xf32, #tpu.memory_space<vmem>>, vector<1x128xf32>
    %312 = vector.broadcast %311 : vector<1x128xf32> to vector<8x128xf32>
    %313 = arith.addf %310, %312 : vector<8x128xf32>
    %cst_70 = arith.constant 0.000000e+00 : f32
    %314 = vector.broadcast %cst_70 : f32 to vector<8x128xf32>
    %315 = arith.maximumf %313, %314 : vector<8x128xf32>
    %316 = tpu.transpose %315, [1, 0] : vector<8x128xf32> -> vector<128x8xf32>
    %c0_71 = arith.constant 0 : index
    %c0_72 = arith.constant 0 : index
    %317 = vector.load %arg8[%c0_71, %c0_72] : memref<128x1xf32, #tpu.memory_space<vmem>>, vector<128x1xf32>
    %318 = vector.broadcast %317 : vector<128x1xf32> to vector<128x8xf32>
    %319 = arith.mulf %316, %318 : vector<128x8xf32>
    %cst_73 = arith.constant dense<0.000000e+00> : vector<8xf32>
    %320 = vector.multi_reduction <add>, %319, %cst_73 [0] : vector<128x8xf32> to vector<8xf32>
    %321 = vector.shape_cast %320 : vector<8xf32> to vector<1x8xf32>
    %c0_74 = arith.constant 0 : index
    %c0_75 = arith.constant 0 : index
    %322 = vector.load %arg9[%c0_74, %c0_75] : memref<1x1xf32, #tpu.memory_space<vmem>>, vector<1x1xf32>
    %323 = vector.broadcast %322 : vector<1x1xf32> to vector<1x8xf32>
    %324 = arith.addf %321, %323 : vector<1x8xf32>
    %cst_76 = arith.constant 0.000000e+00 : f32
    %325 = vector.broadcast %cst_76 : f32 to vector<1x8xf32>
    %326 = arith.subf %325, %324 : vector<1x8xf32>
    %327 = math.exp %326 : vector<1x8xf32>
    %cst_77 = arith.constant 1.000000e+00 : f32
    %328 = vector.broadcast %cst_77 : f32 to vector<1x8xf32>
    %329 = arith.addf %328, %327 : vector<1x8xf32>
    %cst_78 = arith.constant 1.000000e+00 : f32
    %330 = vector.broadcast %cst_78 : f32 to vector<1x8xf32>
    %331 = arith.divf %330, %329 : vector<1x8xf32>
    %c0_79 = arith.constant 0 : index
    %c0_80 = arith.constant 0 : index
    %c0_81 = arith.constant 0 : index
    %332 = vector.load %arg10[%c0_79, %c0_80, %c0_81] : memref<1x1x8xf32, #tpu.memory_space<vmem>>, vector<1x1x8xf32>
    %333 = vector.shape_cast %332 : vector<1x1x8xf32> to vector<1x8xf32>
    %334 = vector.shape_cast %331 : vector<1x8xf32> to vector<1x1x8xf32>
    tpu.vector_store %arg10[%c0_79, %c0_80, %c0_81], %334 {strides = array<i32>} : memref<1x1x8xf32, #tpu.memory_space<vmem>>, vector<1x1x8xf32>,
    return
  }
  func.func @transform_0(%arg0: i32) -> (i32, i32) {
    %c0_i32 = arith.constant 0 : i32
    %c0_i32_0 = arith.constant 0 : i32
    return %arg0, %c0_i32 : i32, i32
  }
  func.func @transform_1(%arg0: i32) -> (i32, i32) {
    %c0_i32 = arith.constant 0 : i32
    %c0_i32_0 = arith.constant 0 : i32
    %c0_i32_1 = arith.constant 0 : i32
    return %c0_i32, %c0_i32_0 : i32, i32
  }
  func.func @transform_2(%arg0: i32) -> (i32, i32) {
    %c0_i32 = arith.constant 0 : i32
    %c0_i32_0 = arith.constant 0 : i32
    %c0_i32_1 = arith.constant 0 : i32
    return %c0_i32, %c0_i32_0 : i32, i32
  }
  func.func @transform_3(%arg0: i32) -> (i32, i32) {
    %c0_i32 = arith.constant 0 : i32
    %c0_i32_0 = arith.constant 0 : i32
    %c0_i32_1 = arith.constant 0 : i32
    return %c0_i32, %c0_i32_0 : i32, i32
  }
  func.func @transform_4(%arg0: i32) -> (i32, i32) {
    %c0_i32 = arith.constant 0 : i32
    %c0_i32_0 = arith.constant 0 : i32
    %c0_i32_1 = arith.constant 0 : i32
    return %c0_i32, %c0_i32_0 : i32, i32
  }
  func.func @transform_5(%arg0: i32) -> (i32, i32) {
    %c0_i32 = arith.constant 0 : i32
    %c0_i32_0 = arith.constant 0 : i32
    %c0_i32_1 = arith.constant 0 : i32
    return %c0_i32, %c0_i32_0 : i32, i32
  }
  func.func @transform_6(%arg0: i32) -> (i32, i32) {
    %c0_i32 = arith.constant 0 : i32
    %c0_i32_0 = arith.constant 0 : i32
    %c0_i32_1 = arith.constant 0 : i32
    return %c0_i32, %c0_i32_0 : i32, i32
  }
  func.func @transform_7(%arg0: i32) -> (i32, i32) {
    %c0_i32 = arith.constant 0 : i32
    %c0_i32_0 = arith.constant 0 : i32
    %c0_i32_1 = arith.constant 0 : i32
    return %c0_i32, %c0_i32_0 : i32, i32
  }
  func.func @transform_8(%arg0: i32) -> (i32, i32) {
    %c0_i32 = arith.constant 0 : i32
    %c0_i32_0 = arith.constant 0 : i32
    %c0_i32_1 = arith.constant 0 : i32
    return %c0_i32, %c0_i32_0 : i32, i32
  }
  func.func @transform_9(%arg0: i32) -> (i32, i32, i32) {
    %c0_i32 = arith.constant 0 : i32
    %c0_i32_0 = arith.constant 0 : i32
    %c0_i32_1 = arith.constant 0 : i32
    return %arg0, %c0_i32, %c0_i32_0 : i32, i32, i32
  }
}

</mosaic_0001>

<llo_original>
// kernel: protein_cnn_forward.1
$region0: #{protein_cnn_forward.1}
  #allocation0 [shape = 'u32[]', space=smem, size = 0x4, offset = 0x4, fixed_abs, tag = 'smem constant byte address 0x4 - core index']
  #allocation1 [shape = 'u32[144,128]{1,0:T(1,128)}', space=vmem, size = 0x12000, scoped, tag = 'internal scratch']
  #allocation2 [shape = 'f32[1,1]{1,0:T(1,128)S(1)}', space=vmem, size = 0x200, scoped, tag = 'scoped memory for protein_cnn_forward.1']
  %s0 = inlined_call_operand.vmem [shape: bf16[800,4], index: 0, kind: input, shape index: {}]
  %s1 = inlined_call_operand.vmem [shape: bf16[4,64], index: 1, kind: input, shape index: {}]
  %s2 = inlined_call_operand.vmem [shape: f32[1,64], index: 2, kind: input, shape index: {}]
  %s3 = inlined_call_operand.vmem [shape: bf16[96,64], index: 3, kind: input, shape index: {}]
  %s4 = inlined_call_operand.vmem [shape: f32[1,64], index: 4, kind: input, shape index: {}]
  %s5 = inlined_call_operand.vmem [shape: bf16[3200,128], index: 5, kind: input, shape index: {}]
  %s6 = inlined_call_operand.vmem [shape: f32[1,128], index: 6, kind: input, shape index: {}]
  %s7 = inlined_call_operand.vmem [shape: f32[128,1], index: 7, kind: input, shape index: {}]
  %s8 = inlined_call_operand.<no memory space> [shape: f32[1,1], index: 8, kind: input, shape index: {}]
  %s9 = inlined_call_operand.vmem [shape: f32[1,1,8], index: 9, kind: output, shape index: {}]
  %s10 = sld [smem:[#allocation0]]
  $region46: #{protein_cnn_forward.1} parent=0
    _
  %s12 = ssub.s32 1, %s10
  %s13 = scalar_select 0, %s12, %s10
  %v14 = vstv %s8
  %15 = vst [vmem:[#allocation2] sm:$0x1] %v14
  // Predicated region
  $region2: #{protein_cnn_forward.1} parent=0 // pred_check
    _
  $region3: #{protein_cnn_forward.1} parent=0 // pred_check_branch
    %17 = sbr.rel (0) target = $region5
  $region4: #{protein_cnn_forward.1} parent=0 // pred_region
    _
  $region5: #{protein_cnn_forward.1} parent=0 // pred_fallthru
    _
  // Predicated region
  $region6: #{protein_cnn_forward.1} parent=0 // pred_check
    _
  $region7: #{protein_cnn_forward.1} parent=0 // pred_check_branch
    %19 = sbr.rel (0) target = $region9
  $region8: #{protein_cnn_forward.1} parent=0 // pred_region
    _
  $region9: #{protein_cnn_forward.1} parent=0 // pred_fallthru
    _
  // Predicated region
  $region10: #{protein_cnn_forward.1} parent=0 // pred_check
    _
  $region11: #{protein_cnn_forward.1} parent=0 // pred_check_branch
    %21 = sbr.rel (0) target = $region13
  $region12: #{protein_cnn_forward.1} parent=0 // pred_region
    _
  $region13: #{protein_cnn_forward.1} parent=0 // pred_fallthru
    _
  // Predicated region
  $region14: #{protein_cnn_forward.1} parent=0 // pred_check
    _
  $region15: #{protein_cnn_forward.1} parent=0 // pred_check_branch
    %23 = sbr.rel (0) target = $region17
  $region16: #{protein_cnn_forward.1} parent=0 // pred_region
    _
  $region17: #{protein_cnn_forward.1} parent=0 // pred_fallthru
    _
  // Predicated region
  $region18: #{protein_cnn_forward.1} parent=0 // pred_check
    _
  $region19: #{protein_cnn_forward.1} parent=0 // pred_check_branch
    %25 = sbr.rel (0) target = $region21
  $region20: #{protein_cnn_forward.1} parent=0 // pred_region
    _
  $region21: #{protein_cnn_forward.1} parent=0 // pred_fallthru
    _
  // Predicated region
  $region22: #{protein_cnn_forward.1} parent=0 // pred_check
    _
  $region23: #{protein_cnn_forward.1} parent=0 // pred_check_branch
    %27 = sbr.rel (0) target = $region25
  $region24: #{protein_cnn_forward.1} parent=0 // pred_region
    _
  $region25: #{protein_cnn_forward.1} parent=0 // pred_fallthru
    _
  // Predicated region
  $region26: #{protein_cnn_forward.1} parent=0 // pred_check
    _
  $region27: #{protein_cnn_forward.1} parent=0 // pred_check_branch
    %29 = sbr.rel (0) target = $region29
  $region28: #{protein_cnn_forward.1} parent=0 // pred_region
    _
  $region29: #{protein_cnn_forward.1} parent=0 // pred_fallthru
    _
  // Predicated region
  $region30: #{protein_cnn_forward.1} parent=0 // pred_check
    _
  $region31: #{protein_cnn_forward.1} parent=0 // pred_check_branch
    %31 = sbr.rel (0) target = $region33
  $region32: #{protein_cnn_forward.1} parent=0 // pred_region
    _
  $region33: #{protein_cnn_forward.1} parent=0 // pred_fallthru
    _
  // Predicated region
  $region34: #{protein_cnn_forward.1} parent=0 // pred_check
    _
  $region35: #{protein_cnn_forward.1} parent=0 // pred_check_branch
    %33 = sbr.rel (0) target = $region37
  $region36: #{protein_cnn_forward.1} parent=0 // pred_region
    _
  $region37: #{protein_cnn_forward.1} parent=0 // pred_fallthru
    _
  %v35 = vld [vmem:[%s0] sm:$0xf]
  %v36 = vld [vmem:[%s0 + $0x4] sm:$0xf]
  %v37 = vld [vmem:[%s0 + $0x8] sm:$0xf]
  %v38 = vld [vmem:[%s0 + $0xc] sm:$0xf]
  %v39 = vld [vmem:[%s0 + $0x10] sm:$0xf]
  %v40 = vld [vmem:[%s0 + $0x14] sm:$0xf]
  %v41 = vld [vmem:[%s0 + $0x18] sm:$0xf]
  %v42 = vld [vmem:[%s0 + $0x1c] sm:$0xf]
  %v43 = vld [vmem:[%s0 + $0x20] sm:$0xf]
  %v44 = vld [vmem:[%s0 + $0x24] sm:$0xf]
  %v45 = vld [vmem:[%s0 + $0x28] sm:$0xf]
  %v46 = vld [vmem:[%s0 + $0x2c] sm:$0xf]
  %v47 = vld [vmem:[%s0 + $0x30] sm:$0xf]
  %v48 = vld [vmem:[%s0 + $0x34] sm:$0xf]
  %v49 = vld [vmem:[%s0 + $0x38] sm:$0xf]
  %v50 = vld [vmem:[%s0 + $0x3c] sm:$0xf]
  %v51 = vld [vmem:[%s0 + $0x40] sm:$0xf]
  %v52 = vld [vmem:[%s0 + $0x44] sm:$0xf]
  %v53 = vld [vmem:[%s0 + $0x48] sm:$0xf]
  %v54 = vld [vmem:[%s0 + $0x4c] sm:$0xf]
  %v55 = vld [vmem:[%s0 + $0x50] sm:$0xf]
  %v56 = vld [vmem:[%s0 + $0x54] sm:$0xf]
  %v57 = vld [vmem:[%s0 + $0x58] sm:$0xf]
  %v58 = vld [vmem:[%s0 + $0x5c] sm:$0xf]
  %v59 = vld [vmem:[%s0 + $0x60] sm:$0xf]
  %v60 = vld [vmem:[%s0 + $0x64] sm:$0xf]
  %v61 = vld [vmem:[%s0 + $0x68] sm:$0xf]
  %v62 = vld [vmem:[%s0 + $0x6c] sm:$0xf]
  %v63 = vld [vmem:[%s0 + $0x70] sm:$0xf]
  %v64 = vld [vmem:[%s0 + $0x74] sm:$0xf]
  %v65 = vld [vmem:[%s0 + $0x78] sm:$0xf]
  %v66 = vld [vmem:[%s0 + $0x7c] sm:$0xf]
  %v67 = vld [vmem:[%s0 + $0x80] sm:$0xf]
  %v68 = vld [vmem:[%s0 + $0x84] sm:$0xf]
  %v69 = vld [vmem:[%s0 + $0x88] sm:$0xf]
  %v70 = vld [vmem:[%s0 + $0x8c] sm:$0xf]
  %v71 = vld [vmem:[%s0 + $0x90] sm:$0xf]
  %v72 = vld [vmem:[%s0 + $0x94] sm:$0xf]
  %v73 = vld [vmem:[%s0 + $0x98] sm:$0xf]
  %v74 = vld [vmem:[%s0 + $0x9c] sm:$0xf]
  %v75 = vld [vmem:[%s0 + $0xa0] sm:$0xf]
  %v76 = vld [vmem:[%s0 + $0xa4] sm:$0xf]
  %v77 = vld [vmem:[%s0 + $0xa8] sm:$0xf]
  %v78 = vld [vmem:[%s0 + $0xac] sm:$0xf]
  %v79 = vld [vmem:[%s0 + $0xb0] sm:$0xf]
  %v80 = vld [vmem:[%s0 + $0xb4] sm:$0xf]
  %v81 = vld [vmem:[%s0 + $0xb8] sm:$0xf]
  %v82 = vld [vmem:[%s0 + $0xbc] sm:$0xf]
  %v83 = vld [vmem:[%s0 + $0xc0] sm:$0xf]
  %v84 = vld [vmem:[%s0 + $0xc4] sm:$0xf]
  %v85 = vld [vmem:[%s0 + $0xc8] sm:$0xf]
  %v86 = vld [vmem:[%s0 + $0xcc] sm:$0xf]
  %v87 = vld [vmem:[%s0 + $0xd0] sm:$0xf]
  %v88 = vld [vmem:[%s0 + $0xd4] sm:$0xf]
  %v89 = vld [vmem:[%s0 + $0xd8] sm:$0xf]
  %v90 = vld [vmem:[%s0 + $0xdc] sm:$0xf]
  %v91 = vld [vmem:[%s0 + $0xe0] sm:$0xf]
  %v92 = vld [vmem:[%s0 + $0xe4] sm:$0xf]
  %v93 = vld [vmem:[%s0 + $0xe8] sm:$0xf]
  %v94 = vld [vmem:[%s0 + $0xec] sm:$0xf]
  %v95 = vld [vmem:[%s0 + $0xf0] sm:$0xf]
  %v96 = vld [vmem:[%s0 + $0xf4] sm:$0xf]
  %v97 = vld [vmem:[%s0 + $0xf8] sm:$0xf]
  %v98 = vld [vmem:[%s0 + $0xfc] sm:$0xf]
  %v99 = vld [vmem:[%s0 + $0x100] sm:$0xf]
  %v100 = vld [vmem:[%s0 + $0x104] sm:$0xf]
  %v101 = vld [vmem:[%s0 + $0x108] sm:$0xf]
  %v102 = vld [vmem:[%s0 + $0x10c] sm:$0xf]
  %v103 = vld [vmem:[%s0 + $0x110] sm:$0xf]
  %v104 = vld [vmem:[%s0 + $0x114] sm:$0xf]
  %v105 = vld [vmem:[%s0 + $0x118] sm:$0xf]
  %v106 = vld [vmem:[%s0 + $0x11c] sm:$0xf]
  %v107 = vld [vmem:[%s0 + $0x120] sm:$0xf]
  %v108 = vld [vmem:[%s0 + $0x124] sm:$0xf]
  %v109 = vld [vmem:[%s0 + $0x128] sm:$0xf]
  %v110 = vld [vmem:[%s0 + $0x12c] sm:$0xf]
  %v111 = vld [vmem:[%s0 + $0x130] sm:$0xf]
  %v112 = vld [vmem:[%s0 + $0x134] sm:$0xf]
  %v113 = vld [vmem:[%s0 + $0x138] sm:$0xf]
  %v114 = vld [vmem:[%s0 + $0x13c] sm:$0xf]
  %v115 = vld [vmem:[%s0 + $0x140] sm:$0xf]
  %v116 = vld [vmem:[%s0 + $0x144] sm:$0xf]
  %v117 = vld [vmem:[%s0 + $0x148] sm:$0xf]
  %v118 = vld [vmem:[%s0 + $0x14c] sm:$0xf]
  %v119 = vld [vmem:[%s0 + $0x150] sm:$0xf]
  %v120 = vld [vmem:[%s0 + $0x154] sm:$0xf]
  %v121 = vld [vmem:[%s0 + $0x158] sm:$0xf]
  %v122 = vld [vmem:[%s0 + $0x15c] sm:$0xf]
  %v123 = vld [vmem:[%s0 + $0x160] sm:$0xf]
  %v124 = vld [vmem:[%s0 + $0x164] sm:$0xf]
  %v125 = vld [vmem:[%s0 + $0x168] sm:$0xf]
  %v126 = vld [vmem:[%s0 + $0x16c] sm:$0xf]
  %v127 = vld [vmem:[%s0 + $0x170] sm:$0xf]
  %v128 = vld [vmem:[%s0 + $0x174] sm:$0xf]
  %v129 = vld [vmem:[%s0 + $0x178] sm:$0xf]
  %v130 = vld [vmem:[%s0 + $0x17c] sm:$0xf]
  %v131 = vld [vmem:[%s0 + $0x180] sm:$0xf]
  %v132 = vld [vmem:[%s0 + $0x184] sm:$0xf]
  %v133 = vld [vmem:[%s0 + $0x188] sm:$0xf]
  %v134 = vld [vmem:[%s0 + $0x18c] sm:$0xf]
  %v135 = vld [vmem:[%s1] sm:$0x3]
  %v136 = vld [vmem:[%s2] sm:$0x1]
  %v138 = vlaneseq
  %v139 = vshrl.u32 %v138, 7
  %v140 = vsub.s32 0, %v139
  %v141 = vrot.slane %v136, %v140
  %v243 = vunpack.c.l.b16 %v35
  %v244 = vunpack.c.l.b16 %v36
  %v245 = vunpack.c.l.b16 %v37
  %v246 = vunpack.c.l.b16 %v38
  %v247 = vunpack.c.l.b16 %v39
  %v248 = vunpack.c.l.b16 %v40
  %v249 = vunpack.c.l.b16 %v41
  %v250 = vunpack.c.l.b16 %v42
  %v251 = vunpack.c.l.b16 %v43
  %v252 = vunpack.c.l.b16 %v44
  %v253 = vunpack.c.l.b16 %v45
  %v254 = vunpack.c.l.b16 %v46
  %v255 = vunpack.c.l.b16 %v47
  %v256 = vunpack.c.l.b16 %v48
  %v257 = vunpack.c.l.b16 %v49
  %v258 = vunpack.c.l.b16 %v50
  %v259 = vunpack.c.l.b16 %v51
  %v260 = vunpack.c.l.b16 %v52
  %v261 = vunpack.c.l.b16 %v53
  %v262 = vunpack.c.l.b16 %v54
  %v263 = vunpack.c.l.b16 %v55
  %v264 = vunpack.c.l.b16 %v56
  %v265 = vunpack.c.l.b16 %v57
  %v266 = vunpack.c.l.b16 %v58
  %v267 = vunpack.c.l.b16 %v59
  %v268 = vunpack.c.l.b16 %v60
  %v269 = vunpack.c.l.b16 %v61
  %v270 = vunpack.c.l.b16 %v62
  %v271 = vunpack.c.l.b16 %v63
  %v272 = vunpack.c.l.b16 %v64
  %v273 = vunpack.c.l.b16 %v65
  %v274 = vunpack.c.l.b16 %v66
  %v275 = vunpack.c.l.b16 %v67
  %v276 = vunpack.c.l.b16 %v68
  %v277 = vunpack.c.l.b16 %v69
  %v278 = vunpack.c.l.b16 %v70
  %v279 = vunpack.c.l.b16 %v71
  %v280 = vunpack.c.l.b16 %v72
  %v281 = vunpack.c.l.b16 %v73
  %v282 = vunpack.c.l.b16 %v74
  %v283 = vunpack.c.l.b16 %v75
  %v284 = vunpack.c.l.b16 %v76
  %v285 = vunpack.c.l.b16 %v77
  %v286 = vunpack.c.l.b16 %v78
  %v287 = vunpack.c.l.b16 %v79
  %v288 = vunpack.c.l.b16 %v80
  %v289 = vunpack.c.l.b16 %v81
  %v290 = vunpack.c.l.b16 %v82
  %v291 = vunpack.c.l.b16 %v83
  %v292 = vunpack.c.l.b16 %v84
  %v293 = vunpack.c.l.b16 %v85
  %v294 = vunpack.c.l.b16 %v86
  %v295 = vunpack.c.l.b16 %v87
  %v296 = vunpack.c.l.b16 %v88
  %v297 = vunpack.c.l.b16 %v89
  %v298 = vunpack.c.l.b16 %v90
  %v299 = vunpack.c.l.b16 %v91
  %v300 = vunpack.c.l.b16 %v92
  %v301 = vunpack.c.l.b16 %v93
  %v302 = vunpack.c.l.b16 %v94
  %v303 = vunpack.c.l.b16 %v95
  %v304 = vunpack.c.l.b16 %v96
  %v305 = vunpack.c.l.b16 %v97
  %v306 = vunpack.c.l.b16 %v98
  %v307 = vunpack.c.l.b16 %v99
  %v308 = vunpack.c.l.b16 %v100
  %v309 = vunpack.c.l.b16 %v101
  %v310 = vunpack.c.l.b16 %v102
  %v311 = vunpack.c.l.b16 %v103
  %v312 = vunpack.c.l.b16 %v104
  %v313 = vunpack.c.l.b16 %v105
  %v314 = vunpack.c.l.b16 %v106
  %v315 = vunpack.c.l.b16 %v107
  %v316 = vunpack.c.l.b16 %v108
  %v317 = vunpack.c.l.b16 %v109
  %v318 = vunpack.c.l.b16 %v110
  %v319 = vunpack.c.l.b16 %v111
  %v320 = vunpack.c.l.b16 %v112
  %v321 = vunpack.c.l.b16 %v113
  %v322 = vunpack.c.l.b16 %v114
  %v323 = vunpack.c.l.b16 %v115
  %v324 = vunpack.c.l.b16 %v116
  %v325 = vunpack.c.l.b16 %v117
  %v326 = vunpack.c.l.b16 %v118
  %v327 = vunpack.c.l.b16 %v119
  %v328 = vunpack.c.l.b16 %v120
  %v329 = vunpack.c.l.b16 %v121
  %v330 = vunpack.c.l.b16 %v122
  %v331 = vunpack.c.l.b16 %v123
  %v332 = vunpack.c.l.b16 %v124
  %v333 = vunpack.c.l.b16 %v125
  %v334 = vunpack.c.l.b16 %v126
  %v335 = vunpack.c.l.b16 %v127
  %v336 = vunpack.c.l.b16 %v128
  %v337 = vunpack.c.l.b16 %v129
  %v338 = vunpack.c.l.b16 %v130
  %v339 = vunpack.c.l.b16 %v131
  %v340 = vunpack.c.l.b16 %v132
  %v341 = vunpack.c.l.b16 %v133
  %v342 = vunpack.c.l.b16 %v134
  %v343 = vpack.c.b16 %v244, %v243
  %v344 = vpack.c.b16 %v246, %v245
  %v345 = vpack.c.b16 %v248, %v247
  %v346 = vpack.c.b16 %v250, %v249
  %v347 = vpack.c.b16 %v252, %v251
  %v348 = vpack.c.b16 %v254, %v253
  %v349 = vpack.c.b16 %v256, %v255
  %v350 = vpack.c.b16 %v258, %v257
  %v351 = vpack.c.b16 %v260, %v259
  %v352 = vpack.c.b16 %v262, %v261
  %v353 = vpack.c.b16 %v264, %v263
  %v354 = vpack.c.b16 %v266, %v265
  %v355 = vpack.c.b16 %v268, %v267
  %v356 = vpack.c.b16 %v270, %v269
  %v357 = vpack.c.b16 %v272, %v271
  %v358 = vpack.c.b16 %v274, %v273
  %v359 = vpack.c.b16 %v276, %v275
  %v360 = vpack.c.b16 %v278, %v277
  %v361 = vpack.c.b16 %v280, %v279
  %v362 = vpack.c.b16 %v282, %v281
  %v363 = vpack.c.b16 %v284, %v283
  %v364 = vpack.c.b16 %v286, %v285
  %v365 = vpack.c.b16 %v288, %v287
  %v366 = vpack.c.b16 %v290, %v289
  %v367 = vpack.c.b16 %v292, %v291
  %v368 = vpack.c.b16 %v294, %v293
  %v369 = vpack.c.b16 %v296, %v295
  %v370 = vpack.c.b16 %v298, %v297
  %v371 = vpack.c.b16 %v300, %v299
  %v372 = vpack.c.b16 %v302, %v301
  %v373 = vpack.c.b16 %v304, %v303
  %v374 = vpack.c.b16 %v306, %v305
  %v375 = vpack.c.b16 %v308, %v307
  %v376 = vpack.c.b16 %v310, %v309
  %v377 = vpack.c.b16 %v312, %v311
  %v378 = vpack.c.b16 %v314, %v313
  %v379 = vpack.c.b16 %v316, %v315
  %v380 = vpack.c.b16 %v318, %v317
  %v381 = vpack.c.b16 %v320, %v319
  %v382 = vpack.c.b16 %v322, %v321
  %v383 = vpack.c.b16 %v324, %v323
  %v384 = vpack.c.b16 %v326, %v325
  %v385 = vpack.c.b16 %v328, %v327
  %v386 = vpack.c.b16 %v330, %v329
  %v387 = vpack.c.b16 %v332, %v331
  %v388 = vpack.c.b16 %v334, %v333
  %v389 = vpack.c.b16 %v336, %v335
  %v390 = vpack.c.b16 %v338, %v337
  %v391 = vpack.c.b16 %v340, %v339
  %v392 = vpack.c.b16 %v342, %v341
  %vm393 = vcmask 31744
  %v395 = vsel %vm393, %v343, 0
  %v398 = vsel %vm393, %v344, 0
  %v401 = vsel %vm393, %v345, 0
  %v404 = vsel %vm393, %v346, 0
  %v407 = vsel %vm393, %v347, 0
  %v410 = vsel %vm393, %v348, 0
  %v413 = vsel %vm393, %v349, 0
  %v416 = vsel %vm393, %v350, 0
  %v419 = vsel %vm393, %v351, 0
  %v422 = vsel %vm393, %v352, 0
  %v425 = vsel %vm393, %v353, 0
  %v428 = vsel %vm393, %v354, 0
  %v431 = vsel %vm393, %v355, 0
  %v434 = vsel %vm393, %v356, 0
  %v437 = vsel %vm393, %v357, 0
  %v440 = vsel %vm393, %v358, 0
  %v443 = vsel %vm393, %v359, 0
  %v446 = vsel %vm393, %v360, 0
  %v449 = vsel %vm393, %v361, 0
  %v452 = vsel %vm393, %v362, 0
  %v455 = vsel %vm393, %v363, 0
  %v458 = vsel %vm393, %v364, 0
  %v461 = vsel %vm393, %v365, 0
  %v464 = vsel %vm393, %v366, 0
  %v467 = vsel %vm393, %v367, 0
  %v470 = vsel %vm393, %v368, 0
  %v473 = vsel %vm393, %v369, 0
  %v476 = vsel %vm393, %v370, 0
  %v479 = vsel %vm393, %v371, 0
  %v482 = vsel %vm393, %v372, 0
  %v485 = vsel %vm393, %v373, 0
  %v488 = vsel %vm393, %v374, 0
  %v491 = vsel %vm393, %v375, 0
  %v494 = vsel %vm393, %v376, 0
  %v497 = vsel %vm393, %v377, 0
  %v500 = vsel %vm393, %v378, 0
  %v503 = vsel %vm393, %v379, 0
  %v506 = vsel %vm393, %v380, 0
  %v509 = vsel %vm393, %v381, 0
  %v512 = vsel %vm393, %v382, 0
  %v515 = vsel %vm393, %v383, 0
  %v518 = vsel %vm393, %v384, 0
  %v521 = vsel %vm393, %v385, 0
  %v524 = vsel %vm393, %v386, 0
  %v527 = vsel %vm393, %v387, 0
  %v530 = vsel %vm393, %v388, 0
  %v533 = vsel %vm393, %v389, 0
  %v536 = vsel %vm393, %v390, 0
  %v539 = vsel %vm393, %v391, 0
  %v542 = vsel %vm393, %v392, 0
  %vm544 = vcmask 1041408
  %v546 = vsel %vm544, %v135, 0
  %548 = vmatprep.subr.bf16.mxu0 0
  %549 = vmatpush1.bf16.msra.mxu0 %v546
  %550 = vmatprep.subr.bf16.mxu0 0
  %551 = vmatpush1.bf16.msra.mxu0 0
  %552 = vmatprep.subr.bf16.mxu0 0
  %553 = vmatpush1.bf16.msra.mxu0 0
  %554 = vmatprep.subr.bf16.mxu0 0
  %555 = vmatpush1.bf16.msra.mxu0 0
  %556 = vmatprep.subr.bf16.mxu0 0
  %557 = vmatpush1.bf16.msra.mxu0 0
  %558 = vmatprep.subr.bf16.mxu0 0
  %559 = vmatpush1.bf16.msra.mxu0 0
  %560 = vmatprep.subr.bf16.mxu0 0
  %561 = vmatpush1.bf16.msra.mxu0 0
  %562 = vmatprep.subr.bf16.mxu0 0
  %563 = vmatpush1.bf16.msra.mxu0 0
  %564 = vmatprep.subr.bf16.mxu0 0
  %565 = vmatpush1.bf16.msra.mxu0 0
  %566 = vmatprep.subr.bf16.mxu0 0
  %567 = vmatpush1.bf16.msra.mxu0 0
  %568 = vmatprep.subr.bf16.mxu0 0
  %569 = vmatpush1.bf16.msra.mxu0 0
  %570 = vmatprep.subr.bf16.mxu0 0
  %571 = vmatpush1.bf16.msra.mxu0 0
  %572 = vmatprep.subr.bf16.mxu0 0
  %573 = vmatpush1.bf16.msra.mxu0 0
  %574 = vmatprep.subr.bf16.mxu0 0
  %575 = vmatpush1.bf16.msra.mxu0 0
  %576 = vmatprep.subr.bf16.mxu0 0
  %577 = vmatpush1.bf16.msra.mxu0 0
  %578 = vmatprep.subr.bf16.mxu0 0
  %579 = vmatpush1.bf16.msra.mxu0 0
  %580 = vmatprep.mubr.bf16.mxu0 0
  %581 = vmatmul.mubr.bf16.gmra.mrb[0].mxu0 %v395
  %v582 = vpop.f32.mrb[0].mxu0
  %v583 = vadd.f32 %v141, %v582
  %v584 = vpop.f32.mrb[0].mxu0
  %v585 = vpop.f32.mrb[0].mxu0
  %v586 = vadd.f32 %v141, %v585
  %v587 = vpop.f32.mrb[0].mxu0
  %588 = vmatprep.mubr.bf16.mxu0 0
  %589 = vmatmul.mubr.bf16.gmra.mrb[0].mxu0 %v398
  %v590 = vpop.f32.mrb[0].mxu0
  %v591 = vadd.f32 %v141, %v590
  %v592 = vpop.f32.mrb[0].mxu0
  %v593 = vpop.f32.mrb[0].mxu0
  %v594 = vadd.f32 %v141, %v593
  %v595 = vpop.f32.mrb[0].mxu0
  %596 = vmatprep.mubr.bf16.mxu0 0
  %597 = vmatmul.mubr.bf16.gmra.mrb[0].mxu0 %v401
  %v598 = vpop.f32.mrb[0].mxu0
  %v599 = vadd.f32 %v141, %v598
  %v600 = vpop.f32.mrb[0].mxu0
  %v601 = vpop.f32.mrb[0].mxu0
  %v602 = vadd.f32 %v141, %v601
  %v603 = vpop.f32.mrb[0].mxu0
  %604 = vmatprep.mubr.bf16.mxu0 0
  %605 = vmatmul.mubr.bf16.gmra.mrb[0].mxu0 %v404
  %v606 = vpop.f32.mrb[0].mxu0
  %v607 = vadd.f32 %v141, %v606
  %v608 = vpop.f32.mrb[0].mxu0
  %v609 = vpop.f32.mrb[0].mxu0
  %v610 = vadd.f32 %v141, %v609
  %v611 = vpop.f32.mrb[0].mxu0
  %612 = vmatprep.mubr.bf16.mxu0 0
  %613 = vmatmul.mubr.bf16.gmra.mrb[0].mxu0 %v407
  %v614 = vpop.f32.mrb[0].mxu0
  %v615 = vadd.f32 %v141, %v614
  %v616 = vpop.f32.mrb[0].mxu0
  %v617 = vpop.f32.mrb[0].mxu0
  %v618 = vadd.f32 %v141, %v617
  %v619 = vpop.f32.mrb[0].mxu0
  %620 = vmatprep.mubr.bf16.mxu0 0
  %621 = vmatmul.mubr.bf16.gmra.mrb[0].mxu0 %v410
  %v622 = vpop.f32.mrb[0].mxu0
  %v623 = vadd.f32 %v141, %v622
  %v624 = vpop.f32.mrb[0].mxu0
  %v625 = vpop.f32.mrb[0].mxu0
  %v626 = vadd.f32 %v141, %v625
  %v627 = vpop.f32.mrb[0].mxu0
  %628 = vmatprep.mubr.bf16.mxu0 0
  %629 = vmatmul.mubr.bf16.gmra.mrb[0].mxu0 %v413
  %v630 = vpop.f32.mrb[0].mxu0
  %v631 = vadd.f32 %v141, %v630
  %v632 = vpop.f32.mrb[0].mxu0
  %v633 = vpop.f32.mrb[0].mxu0
  %v634 = vadd.f32 %v141, %v633
  %v635 = vpop.f32.mrb[0].mxu0
  %636 = vmatprep.mubr.bf16.mxu0 0
  %637 = vmatmul.mubr.bf16.gmra.mrb[0].mxu0 %v416
  %v638 = vpop.f32.mrb[0].mxu0
  %v639 = vadd.f32 %v141, %v638
  %v640 = vpop.f32.mrb[0].mxu0
  %v641 = vpop.f32.mrb[0].mxu0
  %v642 = vadd.f32 %v141, %v641
  %v643 = vpop.f32.mrb[0].mxu0
  %644 = vmatprep.mubr.bf16.mxu0 0
  %645 = vmatmul.mubr.bf16.gmra.mrb[0].mxu0 %v419
  %v646 = vpop.f32.mrb[0].mxu0
  %v647 = vadd.f32 %v141, %v646
  %v648 = vpop.f32.mrb[0].mxu0
  %v649 = vpop.f32.mrb[0].mxu0
  %v650 = vadd.f32 %v141, %v649
  %v651 = vpop.f32.mrb[0].mxu0
  %652 = vmatprep.mubr.bf16.mxu0 0
  %653 = vmatmul.mubr.bf16.gmra.mrb[0].mxu0 %v422
  %v654 = vpop.f32.mrb[0].mxu0
  %v655 = vadd.f32 %v141, %v654
  %v656 = vpop.f32.mrb[0].mxu0
  %v657 = vpop.f32.mrb[0].mxu0
  %v658 = vadd.f32 %v141, %v657
  %v659 = vpop.f32.mrb[0].mxu0
  %660 = vmatprep.mubr.bf16.mxu0 0
  %661 = vmatmul.mubr.bf16.gmra.mrb[0].mxu0 %v425
  %v662 = vpop.f32.mrb[0].mxu0
  %v663 = vadd.f32 %v141, %v662
  %v664 = vpop.f32.mrb[0].mxu0
  %v665 = vpop.f32.mrb[0].mxu0
  %v666 = vadd.f32 %v141, %v665
  %v667 = vpop.f32.mrb[0].mxu0
  %668 = vmatprep.mubr.bf16.mxu0 0
  %669 = vmatmul.mubr.bf16.gmra.mrb[0].mxu0 %v428
  %v670 = vpop.f32.mrb[0].mxu0
  %v671 = vadd.f32 %v141, %v670
  %v672 = vpop.f32.mrb[0].mxu0
  %v673 = vpop.f32.mrb[0].mxu0
  %v674 = vadd.f32 %v141, %v673
  %v675 = vpop.f32.mrb[0].mxu0
  %676 = vmatprep.mubr.bf16.mxu0 0
  %677 = vmatmul.mubr.bf16.gmra.mrb[0].mxu0 %v431
  %v678 = vpop.f32.mrb[0].mxu0
  %v679 = vadd.f32 %v141, %v678
  %v680 = vpop.f32.mrb[0].mxu0
  %v681 = vpop.f32.mrb[0].mxu0
  %v682 = vadd.f32 %v141, %v681
  %v683 = vpop.f32.mrb[0].mxu0
  %684 = vmatprep.mubr.bf16.mxu0 0
  %685 = vmatmul.mubr.bf16.gmra.mrb[0].mxu0 %v434
  %v686 = vpop.f32.mrb[0].mxu0
  %v687 = vadd.f32 %v141, %v686
  %v688 = vpop.f32.mrb[0].mxu0
  %v689 = vpop.f32.mrb[0].mxu0
  %v690 = vadd.f32 %v141, %v689
  %v691 = vpop.f32.mrb[0].mxu0
  %692 = vmatprep.mubr.bf16.mxu0 0
  %693 = vmatmul.mubr.bf16.gmra.mrb[0].mxu0 %v437
  %v694 = vpop.f32.mrb[0].mxu0
  %v695 = vadd.f32 %v141, %v694
  %v696 = vpop.f32.mrb[0].mxu0
  %v697 = vpop.f32.mrb[0].mxu0
  %v698 = vadd.f32 %v141, %v697
  %v699 = vpop.f32.mrb[0].mxu0
  %700 = vmatprep.mubr.bf16.mxu0 0
  %701 = vmatmul.mubr.bf16.gmra.mrb[0].mxu0 %v440
  %v702 = vpop.f32.mrb[0].mxu0
  %v703 = vadd.f32 %v141, %v702
  %v704 = vpop.f32.mrb[0].mxu0
  %v705 = vpop.f32.mrb[0].mxu0
  %v706 = vadd.f32 %v141, %v705
  %v707 = vpop.f32.mrb[0].mxu0
  %708 = vmatprep.mubr.bf16.mxu0 0
  %709 = vmatmul.mubr.bf16.gmra.mrb[0].mxu0 %v443
  %v710 = vpop.f32.mrb[0].mxu0
  %v711 = vadd.f32 %v141, %v710
  %v712 = vpop.f32.mrb[0].mxu0
  %v713 = vpop.f32.mrb[0].mxu0
  %v714 = vadd.f32 %v141, %v713
  %v715 = vpop.f32.mrb[0].mxu0
  %716 = vmatprep.mubr.bf16.mxu0 0
  %717 = vmatmul.mubr.bf16.gmra.mrb[0].mxu0 %v446
  %v718 = vpop.f32.mrb[0].mxu0
  %v719 = vadd.f32 %v141, %v718
  %v720 = vpop.f32.mrb[0].mxu0
  %v721 = vpop.f32.mrb[0].mxu0
  %v722 = vadd.f32 %v141, %v721
  %v723 = vpop.f32.mrb[0].mxu0
  %724 = vmatprep.mubr.bf16.mxu0 0
  %725 = vmatmul.mubr.bf16.gmra.mrb[0].mxu0 %v449
  %v726 = vpop.f32.mrb[0].mxu0
  %v727 = vadd.f32 %v141, %v726
  %v728 = vpop.f32.mrb[0].mxu0
  %v729 = vpop.f32.mrb[0].mxu0
  %v730 = vadd.f32 %v141, %v729
  %v731 = vpop.f32.mrb[0].mxu0
  %732 = vmatprep.mubr.bf16.mxu0 0
  %733 = vmatmul.mubr.bf16.gmra.mrb[0].mxu0 %v452
  %v734 = vpop.f32.mrb[0].mxu0
  %v735 = vadd.f32 %v141, %v734
  %v736 = vpop.f32.mrb[0].mxu0
  %v737 = vpop.f32.mrb[0].mxu0
  %v738 = vadd.f32 %v141, %v737
  %v739 = vpop.f32.mrb[0].mxu0
  %740 = vmatprep.mubr.bf16.mxu0 0
  %741 = vmatmul.mubr.bf16.gmra.mrb[0].mxu0 %v455
  %v742 = vpop.f32.mrb[0].mxu0
  %v743 = vadd.f32 %v141, %v742
  %v744 = vpop.f32.mrb[0].mxu0
  %v745 = vpop.f32.mrb[0].mxu0
  %v746 = vadd.f32 %v141, %v745
  %v747 = vpop.f32.mrb[0].mxu0
  %748 = vmatprep.mubr.bf16.mxu0 0
  %749 = vmatmul.mubr.bf16.gmra.mrb[0].mxu0 %v458
  %v750 = vpop.f32.mrb[0].mxu0
  %v751 = vadd.f32 %v141, %v750
  %v752 = vpop.f32.mrb[0].mxu0
  %v753 = vpop.f32.mrb[0].mxu0
  %v754 = vadd.f32 %v141, %v753
  %v755 = vpop.f32.mrb[0].mxu0
  %756 = vmatprep.mubr.bf16.mxu0 0
  %757 = vmatmul.mubr.bf16.gmra.mrb[0].mxu0 %v461
  %v758 = vpop.f32.mrb[0].mxu0
  %v759 = vadd.f32 %v141, %v758
  %v760 = vpop.f32.mrb[0].mxu0
  %v761 = vpop.f32.mrb[0].mxu0
  %v762 = vadd.f32 %v141, %v761
  %v763 = vpop.f32.mrb[0].mxu0
  %764 = vmatprep.mubr.bf16.mxu0 0
  %765 = vmatmul.mubr.bf16.gmra.mrb[0].mxu0 %v464
  %v766 = vpop.f32.mrb[0].mxu0
  %v767 = vadd.f32 %v141, %v766
  %v768 = vpop.f32.mrb[0].mxu0
  %v769 = vpop.f32.mrb[0].mxu0
  %v770 = vadd.f32 %v141, %v769
  %v771 = vpop.f32.mrb[0].mxu0
  %772 = vmatprep.mubr.bf16.mxu0 0
  %773 = vmatmul.mubr.bf16.gmra.mrb[0].mxu0 %v467
  %v774 = vpop.f32.mrb[0].mxu0
  %v775 = vadd.f32 %v141, %v774
  %v776 = vpop.f32.mrb[0].mxu0
  %v777 = vpop.f32.mrb[0].mxu0
  %v778 = vadd.f32 %v141, %v777
  %v779 = vpop.f32.mrb[0].mxu0
  %780 = vmatprep.mubr.bf16.mxu0 0
  %781 = vmatmul.mubr.bf16.gmra.mrb[0].mxu0 %v470
  %v782 = vpop.f32.mrb[0].mxu0
  %v783 = vadd.f32 %v141, %v782
  %v784 = vpop.f32.mrb[0].mxu0
  %v785 = vpop.f32.mrb[0].mxu0
  %v786 = vadd.f32 %v141, %v785
  %v787 = vpop.f32.mrb[0].mxu0
  %788 = vmatprep.mubr.bf16.mxu0 0
  %789 = vmatmul.mubr.bf16.gmra.mrb[0].mxu0 %v473
  %v790 = vpop.f32.mrb[0].mxu0
  %v791 = vadd.f32 %v141, %v790
  %v792 = vpop.f32.mrb[0].mxu0
  %v793 = vpop.f32.mrb[0].mxu0
  %v794 = vadd.f32 %v141, %v793
  %v795 = vpop.f32.mrb[0].mxu0
  %796 = vmatprep.mubr.bf16.mxu0 0
  %797 = vmatmul.mubr.bf16.gmra.mrb[0].mxu0 %v476
  %v798 = vpop.f32.mrb[0].mxu0
  %v799 = vadd.f32 %v141, %v798
  %v800 = vpop.f32.mrb[0].mxu0
  %v801 = vpop.f32.mrb[0].mxu0
  %v802 = vadd.f32 %v141, %v801
  %v803 = vpop.f32.mrb[0].mxu0
  %804 = vmatprep.mubr.bf16.mxu0 0
  %805 = vmatmul.mubr.bf16.gmra.mrb[0].mxu0 %v479
  %v806 = vpop.f32.mrb[0].mxu0
  %v807 = vadd.f32 %v141, %v806
  %v808 = vpop.f32.mrb[0].mxu0
  %v809 = vpop.f32.mrb[0].mxu0
  %v810 = vadd.f32 %v141, %v809
  %v811 = vpop.f32.mrb[0].mxu0
  %812 = vmatprep.mubr.bf16.mxu0 0
  %813 = vmatmul.mubr.bf16.gmra.mrb[0].mxu0 %v482
  %v814 = vpop.f32.mrb[0].mxu0
  %v815 = vadd.f32 %v141, %v814
  %v816 = vpop.f32.mrb[0].mxu0
  %v817 = vpop.f32.mrb[0].mxu0
  %v818 = vadd.f32 %v141, %v817
  %v819 = vpop.f32.mrb[0].mxu0
  %820 = vmatprep.mubr.bf16.mxu0 0
  %821 = vmatmul.mubr.bf16.gmra.mrb[0].mxu0 %v485
  %v822 = vpop.f32.mrb[0].mxu0
  %v823 = vadd.f32 %v141, %v822
  %v824 = vpop.f32.mrb[0].mxu0
  %v825 = vpop.f32.mrb[0].mxu0
  %v826 = vadd.f32 %v141, %v825
  %v827 = vpop.f32.mrb[0].mxu0
  %828 = vmatprep.mubr.bf16.mxu0 0
  %829 = vmatmul.mubr.bf16.gmra.mrb[0].mxu0 %v488
  %v830 = vpop.f32.mrb[0].mxu0
  %v831 = vadd.f32 %v141, %v830
  %v832 = vpop.f32.mrb[0].mxu0
  %v833 = vpop.f32.mrb[0].mxu0
  %v834 = vadd.f32 %v141, %v833
  %v835 = vpop.f32.mrb[0].mxu0
  %836 = vmatprep.mubr.bf16.mxu0 0
  %837 = vmatmul.mubr.bf16.gmra.mrb[0].mxu0 %v491
  %v838 = vpop.f32.mrb[0].mxu0
  %v839 = vadd.f32 %v141, %v838
  %v840 = vpop.f32.mrb[0].mxu0
  %v841 = vpop.f32.mrb[0].mxu0
  %v842 = vadd.f32 %v141, %v841
  %v843 = vpop.f32.mrb[0].mxu0
  %844 = vmatprep.mubr.bf16.mxu0 0
  %845 = vmatmul.mubr.bf16.gmra.mrb[0].mxu0 %v494
  %v846 = vpop.f32.mrb[0].mxu0
  %v847 = vadd.f32 %v141, %v846
  %v848 = vpop.f32.mrb[0].mxu0
  %v849 = vpop.f32.mrb[0].mxu0
  %v850 = vadd.f32 %v141, %v849
  %v851 = vpop.f32.mrb[0].mxu0
  %852 = vmatprep.mubr.bf16.mxu0 0
  %853 = vmatmul.mubr.bf16.gmra.mrb[0].mxu0 %v497
  %v854 = vpop.f32.mrb[0].mxu0
  %v855 = vadd.f32 %v141, %v854
  %v856 = vpop.f32.mrb[0].mxu0
  %v857 = vpop.f32.mrb[0].mxu0
  %v858 = vadd.f32 %v141, %v857
  %v859 = vpop.f32.mrb[0].mxu0
  %860 = vmatprep.mubr.bf16.mxu0 0
  %861 = vmatmul.mubr.bf16.gmra.mrb[0].mxu0 %v500
  %v862 = vpop.f32.mrb[0].mxu0
  %v863 = vadd.f32 %v141, %v862
  %v864 = vpop.f32.mrb[0].mxu0
  %v865 = vpop.f32.mrb[0].mxu0
  %v866 = vadd.f32 %v141, %v865
  %v867 = vpop.f32.mrb[0].mxu0
  %868 = vmatprep.mubr.bf16.mxu0 0
  %869 = vmatmul.mubr.bf16.gmra.mrb[0].mxu0 %v503
  %v870 = vpop.f32.mrb[0].mxu0
  %v871 = vadd.f32 %v141, %v870
  %v872 = vpop.f32.mrb[0].mxu0
  %v873 = vpop.f32.mrb[0].mxu0
  %v874 = vadd.f32 %v141, %v873
  %v875 = vpop.f32.mrb[0].mxu0
  %876 = vmatprep.mubr.bf16.mxu0 0
  %877 = vmatmul.mubr.bf16.gmra.mrb[0].mxu0 %v506
  %v878 = vpop.f32.mrb[0].mxu0
  %v879 = vadd.f32 %v141, %v878
  %v880 = vpop.f32.mrb[0].mxu0
  %v881 = vpop.f32.mrb[0].mxu0
  %v882 = vadd.f32 %v141, %v881
  %v883 = vpop.f32.mrb[0].mxu0
  %884 = vmatprep.mubr.bf16.mxu0 0
  %885 = vmatmul.mubr.bf16.gmra.mrb[0].mxu0 %v509
  %v886 = vpop.f32.mrb[0].mxu0
  %v887 = vadd.f32 %v141, %v886
  %v888 = vpop.f32.mrb[0].mxu0
  %v889 = vpop.f32.mrb[0].mxu0
  %v890 = vadd.f32 %v141, %v889
  %v891 = vpop.f32.mrb[0].mxu0
  %892 = vmatprep.mubr.bf16.mxu0 0
  %893 = vmatmul.mubr.bf16.gmra.mrb[0].mxu0 %v512
  %v894 = vpop.f32.mrb[0].mxu0
  %v895 = vadd.f32 %v141, %v894
  %v896 = vpop.f32.mrb[0].mxu0
  %v897 = vpop.f32.mrb[0].mxu0
  %v898 = vadd.f32 %v141, %v897
  %v899 = vpop.f32.mrb[0].mxu0
  %900 = vmatprep.mubr.bf16.mxu0 0
  %901 = vmatmul.mubr.bf16.gmra.mrb[0].mxu0 %v515
  %v902 = vpop.f32.mrb[0].mxu0
  %v903 = vadd.f32 %v141, %v902
  %v904 = vpop.f32.mrb[0].mxu0
  %v905 = vpop.f32.mrb[0].mxu0
  %v906 = vadd.f32 %v141, %v905
  %v907 = vpop.f32.mrb[0].mxu0
  %908 = vmatprep.mubr.bf16.mxu0 0
  %909 = vmatmul.mubr.bf16.gmra.mrb[0].mxu0 %v518
  %v910 = vpop.f32.mrb[0].mxu0
  %v911 = vadd.f32 %v141, %v910
  %v912 = vpop.f32.mrb[0].mxu0
  %v913 = vpop.f32.mrb[0].mxu0
  %v914 = vadd.f32 %v141, %v913
  %v915 = vpop.f32.mrb[0].mxu0
  %916 = vmatprep.mubr.bf16.mxu0 0
  %917 = vmatmul.mubr.bf16.gmra.mrb[0].mxu0 %v521
  %v918 = vpop.f32.mrb[0].mxu0
  %v919 = vadd.f32 %v141, %v918
  %v920 = vpop.f32.mrb[0].mxu0
  %v921 = vpop.f32.mrb[0].mxu0
  %v922 = vadd.f32 %v141, %v921
  %v923 = vpop.f32.mrb[0].mxu0
  %924 = vmatprep.mubr.bf16.mxu0 0
  %925 = vmatmul.mubr.bf16.gmra.mrb[0].mxu0 %v524
  %v926 = vpop.f32.mrb[0].mxu0
  %v927 = vadd.f32 %v141, %v926
  %v928 = vpop.f32.mrb[0].mxu0
  %v929 = vpop.f32.mrb[0].mxu0
  %v930 = vadd.f32 %v141, %v929
  %v931 = vpop.f32.mrb[0].mxu0
  %932 = vmatprep.mubr.bf16.mxu0 0
  %933 = vmatmul.mubr.bf16.gmra.mrb[0].mxu0 %v527
  %v934 = vpop.f32.mrb[0].mxu0
  %v935 = vadd.f32 %v141, %v934
  %v936 = vpop.f32.mrb[0].mxu0
  %v937 = vpop.f32.mrb[0].mxu0
  %v938 = vadd.f32 %v141, %v937
  %v939 = vpop.f32.mrb[0].mxu0
  %940 = vmatprep.mubr.bf16.mxu0 0
  %941 = vmatmul.mubr.bf16.gmra.mrb[0].mxu0 %v530
  %v942 = vpop.f32.mrb[0].mxu0
  %v943 = vadd.f32 %v141, %v942
  %v944 = vpop.f32.mrb[0].mxu0
  %v945 = vpop.f32.mrb[0].mxu0
  %v946 = vadd.f32 %v141, %v945
  %v947 = vpop.f32.mrb[0].mxu0
  %948 = vmatprep.mubr.bf16.mxu0 0
  %949 = vmatmul.mubr.bf16.gmra.mrb[0].mxu0 %v533
  %v950 = vpop.f32.mrb[0].mxu0
  %v951 = vadd.f32 %v141, %v950
  %v952 = vpop.f32.mrb[0].mxu0
  %v953 = vpop.f32.mrb[0].mxu0
  %v954 = vadd.f32 %v141, %v953
  %v955 = vpop.f32.mrb[0].mxu0
  %956 = vmatprep.mubr.bf16.mxu0 0
  %957 = vmatmul.mubr.bf16.gmra.mrb[0].mxu0 %v536
  %v958 = vpop.f32.mrb[0].mxu0
  %v959 = vadd.f32 %v141, %v958
  %v960 = vpop.f32.mrb[0].mxu0
  %v961 = vpop.f32.mrb[0].mxu0
  %v962 = vadd.f32 %v141, %v961
  %v963 = vpop.f32.mrb[0].mxu0
  %964 = vmatprep.mubr.bf16.mxu0 0
  %965 = vmatmul.mubr.bf16.gmra.mrb[0].mxu0 %v539
  %v966 = vpop.f32.mrb[0].mxu0
  %v967 = vadd.f32 %v141, %v966
  %v968 = vpop.f32.mrb[0].mxu0
  %v969 = vpop.f32.mrb[0].mxu0
  %v970 = vadd.f32 %v141, %v969
  %v971 = vpop.f32.mrb[0].mxu0
  %972 = vmatprep.mubr.bf16.mxu0 0
  %973 = vmatmul.mubr.bf16.gmra.mrb[0].mxu0 %v542
  %v974 = vpop.f32.mrb[0].mxu0
  %v975 = vadd.f32 %v141, %v974
  %v976 = vpop.f32.mrb[0].mxu0
  %v977 = vpop.f32.mrb[0].mxu0
  %v978 = vadd.f32 %v141, %v977
  %v979 = vpop.f32.mrb[0].mxu0
  %980 = vdwg.mxu0
  %1081 = vrot.lane.b32.xlu0 %v583, 96
  %v1082 = vpop.permute.xlu0 %1081
  %1083 = vrot.lane.b32.xlu0 %v586, 96
  %v1084 = vpop.permute.xlu0 %1083
  %1085 = vrot.lane.b32.xlu0 %v591, 96
  %v1086 = vpop.permute.xlu0 %1085
  %1087 = vrot.lane.b32.xlu0 %v594, 96
  %v1088 = vpop.permute.xlu0 %1087
  %1089 = vrot.lane.b32.xlu0 %v599, 96
  %v1090 = vpop.permute.xlu0 %1089
  %1091 = vrot.lane.b32.xlu0 %v602, 96
  %v1092 = vpop.permute.xlu0 %1091
  %1093 = vrot.lane.b32.xlu0 %v607, 96
  %v1094 = vpop.permute.xlu0 %1093
  %1095 = vrot.lane.b32.xlu0 %v610, 96
  %v1096 = vpop.permute.xlu0 %1095
  %1097 = vrot.lane.b32.xlu0 %v615, 96
  %v1098 = vpop.permute.xlu0 %1097
  %1099 = vrot.lane.b32.xlu0 %v618, 96
  %v1100 = vpop.permute.xlu0 %1099
  %1101 = vrot.lane.b32.xlu0 %v623, 96
  %v1102 = vpop.permute.xlu0 %1101
  %1103 = vrot.lane.b32.xlu0 %v626, 96
  %v1104 = vpop.permute.xlu0 %1103
  %1105 = vrot.lane.b32.xlu0 %v631, 96
  %v1106 = vpop.permute.xlu0 %1105
  %1107 = vrot.lane.b32.xlu0 %v634, 96
  %v1108 = vpop.permute.xlu0 %1107
  %1109 = vrot.lane.b32.xlu0 %v639, 96
  %v1110 = vpop.permute.xlu0 %1109
  %1111 = vrot.lane.b32.xlu0 %v642, 96
  %v1112 = vpop.permute.xlu0 %1111
  %1113 = vrot.lane.b32.xlu0 %v647, 96
  %v1114 = vpop.permute.xlu0 %1113
  %1115 = vrot.lane.b32.xlu0 %v650, 96
  %v1116 = vpop.permute.xlu0 %1115
  %1117 = vrot.lane.b32.xlu0 %v655, 96
  %v1118 = vpop.permute.xlu0 %1117
  %1119 = vrot.lane.b32.xlu0 %v658, 96
  %v1120 = vpop.permute.xlu0 %1119
  %1121 = vrot.lane.b32.xlu0 %v663, 96
  %v1122 = vpop.permute.xlu0 %1121
  %1123 = vrot.lane.b32.xlu0 %v666, 96
  %v1124 = vpop.permute.xlu0 %1123
  %1125 = vrot.lane.b32.xlu0 %v671, 96
  %v1126 = vpop.permute.xlu0 %1125
  %1127 = vrot.lane.b32.xlu0 %v674, 96
  %v1128 = vpop.permute.xlu0 %1127
  %1129 = vrot.lane.b32.xlu0 %v679, 96
  %v1130 = vpop.permute.xlu0 %1129
  %1131 = vrot.lane.b32.xlu0 %v682, 96
  %v1132 = vpop.permute.xlu0 %1131
  %1133 = vrot.lane.b32.xlu0 %v687, 96
  %v1134 = vpop.permute.xlu0 %1133
  %1135 = vrot.lane.b32.xlu0 %v690, 96
  %v1136 = vpop.permute.xlu0 %1135
  %1137 = vrot.lane.b32.xlu0 %v695, 96
  %v1138 = vpop.permute.xlu0 %1137
  %1139 = vrot.lane.b32.xlu0 %v698, 96
  %v1140 = vpop.permute.xlu0 %1139
  %1141 = vrot.lane.b32.xlu0 %v703, 96
  %v1142 = vpop.permute.xlu0 %1141
  %1143 = vrot.lane.b32.xlu0 %v706, 96
  %v1144 = vpop.permute.xlu0 %1143
  %1145 = vrot.lane.b32.xlu0 %v711, 96
  %v1146 = vpop.permute.xlu0 %1145
  %1147 = vrot.lane.b32.xlu0 %v714, 96
  %v1148 = vpop.permute.xlu0 %1147
  %1149 = vrot.lane.b32.xlu0 %v719, 96
  %v1150 = vpop.permute.xlu0 %1149
  %1151 = vrot.lane.b32.xlu0 %v722, 96
  %v1152 = vpop.permute.xlu0 %1151
  %1153 = vrot.lane.b32.xlu0 %v727, 96
  %v1154 = vpop.permute.xlu0 %1153
  %1155 = vrot.lane.b32.xlu0 %v730, 96
  %v1156 = vpop.permute.xlu0 %1155
  %1157 = vrot.lane.b32.xlu0 %v735, 96
  %v1158 = vpop.permute.xlu0 %1157
  %1159 = vrot.lane.b32.xlu0 %v738, 96
  %v1160 = vpop.permute.xlu0 %1159
  %1161 = vrot.lane.b32.xlu0 %v743, 96
  %v1162 = vpop.permute.xlu0 %1161
  %1163 = vrot.lane.b32.xlu0 %v746, 96
  %v1164 = vpop.permute.xlu0 %1163
  %1165 = vrot.lane.b32.xlu0 %v751, 96
  %v1166 = vpop.permute.xlu0 %1165
  %1167 = vrot.lane.b32.xlu0 %v754, 96
  %v1168 = vpop.permute.xlu0 %1167
  %1169 = vrot.lane.b32.xlu0 %v759, 96
  %v1170 = vpop.permute.xlu0 %1169
  %1171 = vrot.lane.b32.xlu0 %v762, 96
  %v1172 = vpop.permute.xlu0 %1171
  %1173 = vrot.lane.b32.xlu0 %v767, 96
  %v1174 = vpop.permute.xlu0 %1173
  %1175 = vrot.lane.b32.xlu0 %v770, 96
  %v1176 = vpop.permute.xlu0 %1175
  %1177 = vrot.lane.b32.xlu0 %v775, 96
  %v1178 = vpop.permute.xlu0 %1177
  %1179 = vrot.lane.b32.xlu0 %v778, 96
  %v1180 = vpop.permute.xlu0 %1179
  %1181 = vrot.lane.b32.xlu0 %v783, 96
  %v1182 = vpop.permute.xlu0 %1181
  %1183 = vrot.lane.b32.xlu0 %v786, 96
  %v1184 = vpop.permute.xlu0 %1183
  %1185 = vrot.lane.b32.xlu0 %v791, 96
  %v1186 = vpop.permute.xlu0 %1185
  %1187 = vrot.lane.b32.xlu0 %v794, 96
  %v1188 = vpop.permute.xlu0 %1187
  %1189 = vrot.lane.b32.xlu0 %v799, 96
  %v1190 = vpop.permute.xlu0 %1189
  %1191 = vrot.lane.b32.xlu0 %v802, 96
  %v1192 = vpop.permute.xlu0 %1191
  %1193 = vrot.lane.b32.xlu0 %v807, 96
  %v1194 = vpop.permute.xlu0 %1193
  %1195 = vrot.lane.b32.xlu0 %v810, 96
  %v1196 = vpop.permute.xlu0 %1195
  %1197 = vrot.lane.b32.xlu0 %v815, 96
  %v1198 = vpop.permute.xlu0 %1197
  %1199 = vrot.lane.b32.xlu0 %v818, 96
  %v1200 = vpop.permute.xlu0 %1199
  %1201 = vrot.lane.b32.xlu0 %v823, 96
  %v1202 = vpop.permute.xlu0 %1201
  %1203 = vrot.lane.b32.xlu0 %v826, 96
  %v1204 = vpop.permute.xlu0 %1203
  %1205 = vrot.lane.b32.xlu0 %v831, 96
  %v1206 = vpop.permute.xlu0 %1205
  %1207 = vrot.lane.b32.xlu0 %v834, 96
  %v1208 = vpop.permute.xlu0 %1207
  %1209 = vrot.lane.b32.xlu0 %v839, 96
  %v1210 = vpop.permute.xlu0 %1209
  %1211 = vrot.lane.b32.xlu0 %v842, 96
  %v1212 = vpop.permute.xlu0 %1211
  %1213 = vrot.lane.b32.xlu0 %v847, 96
  %v1214 = vpop.permute.xlu0 %1213
  %1215 = vrot.lane.b32.xlu0 %v850, 96
  %v1216 = vpop.permute.xlu0 %1215
  %1217 = vrot.lane.b32.xlu0 %v855, 96
  %v1218 = vpop.permute.xlu0 %1217
  %1219 = vrot.lane.b32.xlu0 %v858, 96
  %v1220 = vpop.permute.xlu0 %1219
  %1221 = vrot.lane.b32.xlu0 %v863, 96
  %v1222 = vpop.permute.xlu0 %1221
  %1223 = vrot.lane.b32.xlu0 %v866, 96
  %v1224 = vpop.permute.xlu0 %1223
  %1225 = vrot.lane.b32.xlu0 %v871, 96
  %v1226 = vpop.permute.xlu0 %1225
  %1227 = vrot.lane.b32.xlu0 %v874, 96
  %v1228 = vpop.permute.xlu0 %1227
  %1229 = vrot.lane.b32.xlu0 %v879, 96
  %v1230 = vpop.permute.xlu0 %1229
  %1231 = vrot.lane.b32.xlu0 %v882, 96
  %v1232 = vpop.permute.xlu0 %1231
  %1233 = vrot.lane.b32.xlu0 %v887, 96
  %v1234 = vpop.permute.xlu0 %1233
  %1235 = vrot.lane.b32.xlu0 %v890, 96
  %v1236 = vpop.permute.xlu0 %1235
  %1237 = vrot.lane.b32.xlu0 %v895, 96
  %v1238 = vpop.permute.xlu0 %1237
  %1239 = vrot.lane.b32.xlu0 %v898, 96
  %v1240 = vpop.permute.xlu0 %1239
  %1241 = vrot.lane.b32.xlu0 %v903, 96
  %v1242 = vpop.permute.xlu0 %1241
  %1243 = vrot.lane.b32.xlu0 %v906, 96
  %v1244 = vpop.permute.xlu0 %1243
  %1245 = vrot.lane.b32.xlu0 %v911, 96
  %v1246 = vpop.permute.xlu0 %1245
  %1247 = vrot.lane.b32.xlu0 %v914, 96
  %v1248 = vpop.permute.xlu0 %1247
  %1249 = vrot.lane.b32.xlu0 %v919, 96
  %v1250 = vpop.permute.xlu0 %1249
  %1251 = vrot.lane.b32.xlu0 %v922, 96
  %v1252 = vpop.permute.xlu0 %1251
  %1253 = vrot.lane.b32.xlu0 %v927, 96
  %v1254 = vpop.permute.xlu0 %1253
  %1255 = vrot.lane.b32.xlu0 %v930, 96
  %v1256 = vpop.permute.xlu0 %1255
  %1257 = vrot.lane.b32.xlu0 %v935, 96
  %v1258 = vpop.permute.xlu0 %1257
  %1259 = vrot.lane.b32.xlu0 %v938, 96
  %v1260 = vpop.permute.xlu0 %1259
  %1261 = vrot.lane.b32.xlu0 %v943, 96
  %v1262 = vpop.permute.xlu0 %1261
  %1263 = vrot.lane.b32.xlu0 %v946, 96
  %v1264 = vpop.permute.xlu0 %1263
  %1265 = vrot.lane.b32.xlu0 %v951, 96
  %v1266 = vpop.permute.xlu0 %1265
  %1267 = vrot.lane.b32.xlu0 %v954, 96
  %v1268 = vpop.permute.xlu0 %1267
  %1269 = vrot.lane.b32.xlu0 %v959, 96
  %v1270 = vpop.permute.xlu0 %1269
  %1271 = vrot.lane.b32.xlu0 %v962, 96
  %v1272 = vpop.permute.xlu0 %1271
  %1273 = vrot.lane.b32.xlu0 %v967, 96
  %v1274 = vpop.permute.xlu0 %1273
  %1275 = vrot.lane.b32.xlu0 %v970, 96
  %v1276 = vpop.permute.xlu0 %1275
  %1277 = vrot.lane.b32.xlu0 %v975, 96
  %v1278 = vpop.permute.xlu0 %1277
  %1279 = vrot.lane.b32.xlu0 %v978, 96
  %v1280 = vpop.permute.xlu0 %1279
  %v1381 = vmax.f32 %v583, %v1082
  %v1382 = vmax.f32 %v586, %v1084
  %v1383 = vmax.f32 %v591, %v1086
  %v1384 = vmax.f32 %v594, %v1088
  %v1385 = vmax.f32 %v599, %v1090
  %v1386 = vmax.f32 %v602, %v1092
  %v1387 = vmax.f32 %v607, %v1094
  %v1388 = vmax.f32 %v610, %v1096
  %v1389 = vmax.f32 %v615, %v1098
  %v1390 = vmax.f32 %v618, %v1100
  %v1391 = vmax.f32 %v623, %v1102
  %v1392 = vmax.f32 %v626, %v1104
  %v1393 = vmax.f32 %v631, %v1106
  %v1394 = vmax.f32 %v634, %v1108
  %v1395 = vmax.f32 %v639, %v1110
  %v1396 = vmax.f32 %v642, %v1112
  %v1397 = vmax.f32 %v647, %v1114
  %v1398 = vmax.f32 %v650, %v1116
  %v1399 = vmax.f32 %v655, %v1118
  %v1400 = vmax.f32 %v658, %v1120
  %v1401 = vmax.f32 %v663, %v1122
  %v1402 = vmax.f32 %v666, %v1124
  %v1403 = vmax.f32 %v671, %v1126
  %v1404 = vmax.f32 %v674, %v1128
  %v1405 = vmax.f32 %v679, %v1130
  %v1406 = vmax.f32 %v682, %v1132
  %v1407 = vmax.f32 %v687, %v1134
  %v1408 = vmax.f32 %v690, %v1136
  %v1409 = vmax.f32 %v695, %v1138
  %v1410 = vmax.f32 %v698, %v1140
  %v1411 = vmax.f32 %v703, %v1142
  %v1412 = vmax.f32 %v706, %v1144
  %v1413 = vmax.f32 %v711, %v1146
  %v1414 = vmax.f32 %v714, %v1148
  %v1415 = vmax.f32 %v719, %v1150
  %v1416 = vmax.f32 %v722, %v1152
  %v1417 = vmax.f32 %v727, %v1154
  %v1418 = vmax.f32 %v730, %v1156
  %v1419 = vmax.f32 %v735, %v1158
  %v1420 = vmax.f32 %v738, %v1160
  %v1421 = vmax.f32 %v743, %v1162
  %v1422 = vmax.f32 %v746, %v1164
  %v1423 = vmax.f32 %v751, %v1166
  %v1424 = vmax.f32 %v754, %v1168
  %v1425 = vmax.f32 %v759, %v1170
  %v1426 = vmax.f32 %v762, %v1172
  %v1427 = vmax.f32 %v767, %v1174
  %v1428 = vmax.f32 %v770, %v1176
  %v1429 = vmax.f32 %v775, %v1178
  %v1430 = vmax.f32 %v778, %v1180
  %v1431 = vmax.f32 %v783, %v1182
  %v1432 = vmax.f32 %v786, %v1184
  %v1433 = vmax.f32 %v791, %v1186
  %v1434 = vmax.f32 %v794, %v1188
  %v1435 = vmax.f32 %v799, %v1190
  %v1436 = vmax.f32 %v802, %v1192
  %v1437 = vmax.f32 %v807, %v1194
  %v1438 = vmax.f32 %v810, %v1196
  %v1439 = vmax.f32 %v815, %v1198
  %v1440 = vmax.f32 %v818, %v1200
  %v1441 = vmax.f32 %v823, %v1202
  %v1442 = vmax.f32 %v826, %v1204
  %v1443 = vmax.f32 %v831, %v1206
  %v1444 = vmax.f32 %v834, %v1208
  %v1445 = vmax.f32 %v839, %v1210
  %v1446 = vmax.f32 %v842, %v1212
  %v1447 = vmax.f32 %v847, %v1214
  %v1448 = vmax.f32 %v850, %v1216
  %v1449 = vmax.f32 %v855, %v1218
  %v1450 = vmax.f32 %v858, %v1220
  %v1451 = vmax.f32 %v863, %v1222
  %v1452 = vmax.f32 %v866, %v1224
  %v1453 = vmax.f32 %v871, %v1226
  %v1454 = vmax.f32 %v874, %v1228
  %v1455 = vmax.f32 %v879, %v1230
  %v1456 = vmax.f32 %v882, %v1232
  %v1457 = vmax.f32 %v887, %v1234
  %v1458 = vmax.f32 %v890, %v1236
  %v1459 = vmax.f32 %v895, %v1238
  %v1460 = vmax.f32 %v898, %v1240
  %v1461 = vmax.f32 %v903, %v1242
  %v1462 = vmax.f32 %v906, %v1244
  %v1463 = vmax.f32 %v911, %v1246
  %v1464 = vmax.f32 %v914, %v1248
  %v1465 = vmax.f32 %v919, %v1250
  %v1466 = vmax.f32 %v922, %v1252
  %v1467 = vmax.f32 %v927, %v1254
  %v1468 = vmax.f32 %v930, %v1256
  %v1469 = vmax.f32 %v935, %v1258
  %v1470 = vmax.f32 %v938, %v1260
  %v1471 = vmax.f32 %v943, %v1262
  %v1472 = vmax.f32 %v946, %v1264
  %v1473 = vmax.f32 %v951, %v1266
  %v1474 = vmax.f32 %v954, %v1268
  %v1475 = vmax.f32 %v959, %v1270
  %v1476 = vmax.f32 %v962, %v1272
  %v1477 = vmax.f32 %v967, %v1274
  %v1478 = vmax.f32 %v970, %v1276
  %v1479 = vmax.f32 %v975, %v1278
  %v1480 = vmax.f32 %v978, %v1280
  %v1481 = vmax.f32 %v1381, 0.0
  %v1482 = vmax.f32 %v1382, 0.0
  %v1483 = vmax.f32 %v1383, 0.0
  %v1484 = vmax.f32 %v1384, 0.0
  %v1485 = vmax.f32 %v1385, 0.0
  %v1486 = vmax.f32 %v1386, 0.0
  %v1487 = vmax.f32 %v1387, 0.0
  %v1488 = vmax.f32 %v1388, 0.0
  %v1489 = vmax.f32 %v1389, 0.0
  %v1490 = vmax.f32 %v1390, 0.0
  %v1491 = vmax.f32 %v1391, 0.0
  %v1492 = vmax.f32 %v1392, 0.0
  %v1493 = vmax.f32 %v1393, 0.0
  %v1494 = vmax.f32 %v1394, 0.0
  %v1495 = vmax.f32 %v1395, 0.0
  %v1496 = vmax.f32 %v1396, 0.0
  %v1497 = vmax.f32 %v1397, 0.0
  %v1498 = vmax.f32 %v1398, 0.0
  %v1499 = vmax.f32 %v1399, 0.0
  %v1500 = vmax.f32 %v1400, 0.0
  %v1501 = vmax.f32 %v1401, 0.0
  %v1502 = vmax.f32 %v1402, 0.0
  %v1503 = vmax.f32 %v1403, 0.0
  %v1504 = vmax.f32 %v1404, 0.0
  %v1505 = vmax.f32 %v1405, 0.0
  %v1506 = vmax.f32 %v1406, 0.0
  %v1507 = vmax.f32 %v1407, 0.0
  %v1508 = vmax.f32 %v1408, 0.0
  %v1509 = vmax.f32 %v1409, 0.0
  %v1510 = vmax.f32 %v1410, 0.0
  %v1511 = vmax.f32 %v1411, 0.0
  %v1512 = vmax.f32 %v1412, 0.0
  %v1513 = vmax.f32 %v1413, 0.0
  %v1514 = vmax.f32 %v1414, 0.0
  %v1515 = vmax.f32 %v1415, 0.0
  %v1516 = vmax.f32 %v1416, 0.0
  %v1517 = vmax.f32 %v1417, 0.0
  %v1518 = vmax.f32 %v1418, 0.0
  %v1519 = vmax.f32 %v1419, 0.0
  %v1520 = vmax.f32 %v1420, 0.0
  %v1521 = vmax.f32 %v1421, 0.0
  %v1522 = vmax.f32 %v1422, 0.0
  %v1523 = vmax.f32 %v1423, 0.0
  %v1524 = vmax.f32 %v1424, 0.0
  %v1525 = vmax.f32 %v1425, 0.0
  %v1526 = vmax.f32 %v1426, 0.0
  %v1527 = vmax.f32 %v1427, 0.0
  %v1528 = vmax.f32 %v1428, 0.0
  %v1529 = vmax.f32 %v1429, 0.0
  %v1530 = vmax.f32 %v1430, 0.0
  %v1531 = vmax.f32 %v1431, 0.0
  %v1532 = vmax.f32 %v1432, 0.0
  %v1533 = vmax.f32 %v1433, 0.0
  %v1534 = vmax.f32 %v1434, 0.0
  %v1535 = vmax.f32 %v1435, 0.0
  %v1536 = vmax.f32 %v1436, 0.0
  %v1537 = vmax.f32 %v1437, 0.0
  %v1538 = vmax.f32 %v1438, 0.0
  %v1539 = vmax.f32 %v1439, 0.0
  %v1540 = vmax.f32 %v1440, 0.0
  %v1541 = vmax.f32 %v1441, 0.0
  %v1542 = vmax.f32 %v1442, 0.0
  %v1543 = vmax.f32 %v1443, 0.0
  %v1544 = vmax.f32 %v1444, 0.0
  %v1545 = vmax.f32 %v1445, 0.0
  %v1546 = vmax.f32 %v1446, 0.0
  %v1547 = vmax.f32 %v1447, 0.0
  %v1548 = vmax.f32 %v1448, 0.0
  %v1549 = vmax.f32 %v1449, 0.0
  %v1550 = vmax.f32 %v1450, 0.0
  %v1551 = vmax.f32 %v1451, 0.0
  %v1552 = vmax.f32 %v1452, 0.0
  %v1553 = vmax.f32 %v1453, 0.0
  %v1554 = vmax.f32 %v1454, 0.0
  %v1555 = vmax.f32 %v1455, 0.0
  %v1556 = vmax.f32 %v1456, 0.0
  %v1557 = vmax.f32 %v1457, 0.0
  %v1558 = vmax.f32 %v1458, 0.0
  %v1559 = vmax.f32 %v1459, 0.0
  %v1560 = vmax.f32 %v1460, 0.0
  %v1561 = vmax.f32 %v1461, 0.0
  %v1562 = vmax.f32 %v1462, 0.0
  %v1563 = vmax.f32 %v1463, 0.0
  %v1564 = vmax.f32 %v1464, 0.0
  %v1565 = vmax.f32 %v1465, 0.0
  %v1566 = vmax.f32 %v1466, 0.0
  %v1567 = vmax.f32 %v1467, 0.0
  %v1568 = vmax.f32 %v1468, 0.0
  %v1569 = vmax.f32 %v1469, 0.0
  %v1570 = vmax.f32 %v1470, 0.0
  %v1571 = vmax.f32 %v1471, 0.0
  %v1572 = vmax.f32 %v1472, 0.0
  %v1573 = vmax.f32 %v1473, 0.0
  %v1574 = vmax.f32 %v1474, 0.0
  %v1575 = vmax.f32 %v1475, 0.0
  %v1576 = vmax.f32 %v1476, 0.0
  %v1577 = vmax.f32 %v1477, 0.0
  %v1578 = vmax.f32 %v1478, 0.0
  %v1579 = vmax.f32 %v1479, 0.0
  %v1580 = vmax.f32 %v1480, 0.0
  %v1581 = vlaneseq
  %v1582 = vshrl.u32 %v1581, 7
  %v1583 = vadd.s32 %v1582, 8
  %v1584 = vadd.s32 %v1582, 16
  %v1585 = vadd.s32 %v1582, 24
  %v1586 = vadd.s32 %v1582, 32
  %v1587 = vadd.s32 %v1582, 40
  %v1588 = vadd.s32 %v1582, 48
  %v1589 = vadd.s32 %v1582, 56
  %v1590 = vadd.s32 %v1582, 64
  %v1591 = vadd.s32 %v1582, 72
  %v1592 = vadd.s32 %v1582, 80
  %v1593 = vadd.s32 %v1582, 88
  %v1594 = vadd.s32 %v1582, 96
  %v1595 = vadd.s32 %v1582, 104
  %v1596 = vadd.s32 %v1582, 112
  %v1597 = vadd.s32 %v1582, 120
  %v1598 = vadd.s32 %v1582, 128
  %v1599 = vadd.s32 %v1582, 136
  %v1600 = vadd.s32 %v1582, 144
  %v1601 = vadd.s32 %v1582, 152
  %v1602 = vadd.s32 %v1582, 160
  %v1603 = vadd.s32 %v1582, 168
  %v1604 = vadd.s32 %v1582, 176
  %v1605 = vadd.s32 %v1582, 184
  %v1606 = vadd.s32 %v1582, 192
  %v1607 = vadd.s32 %v1582, 200
  %v1608 = vadd.s32 %v1582, 208
  %v1609 = vadd.s32 %v1582, 216
  %v1610 = vadd.s32 %v1582, 224
  %v1611 = vadd.s32 %v1582, 232
  %v1612 = vadd.s32 %v1582, 240
  %v1613 = vadd.s32 %v1582, 248
  %v1614 = vadd.s32 %v1582, 256
  %v1615 = vadd.s32 %v1582, 264
  %v1616 = vadd.s32 %v1582, 272
  %v1617 = vadd.s32 %v1582, 280
  %v1618 = vadd.s32 %v1582, 288
  %v1619 = vadd.s32 %v1582, 296
  %v1620 = vadd.s32 %v1582, 304
  %v1621 = vadd.s32 %v1582, 312
  %v1622 = vadd.s32 %v1582, 320
  %v1623 = vadd.s32 %v1582, 328
  %v1624 = vadd.s32 %v1582, 336
  %v1625 = vadd.s32 %v1582, 344
  %v1626 = vadd.s32 %v1582, 352
  %v1627 = vadd.s32 %v1582, 360
  %v1628 = vadd.s32 %v1582, 368
  %v1629 = vadd.s32 %v1582, 376
  %v1630 = vadd.s32 %v1582, 384
  %v1631 = vadd.s32 %v1582, 392
  %v1632 = vadd.s32 %v1582, 400
  %v1633 = vadd.s32 %v1582, 408
  %v1634 = vadd.s32 %v1582, 416
  %v1635 = vadd.s32 %v1582, 424
  %v1636 = vadd.s32 %v1582, 432
  %v1637 = vadd.s32 %v1582, 440
  %v1638 = vadd.s32 %v1582, 448
  %v1639 = vadd.s32 %v1582, 456
  %v1640 = vadd.s32 %v1582, 464
  %v1641 = vadd.s32 %v1582, 472
  %v1642 = vadd.s32 %v1582, 480
  %v1643 = vadd.s32 %v1582, 488
  %v1644 = vadd.s32 %v1582, 496
  %v1645 = vadd.s32 %v1582, 504
  %v1646 = vadd.s32 %v1582, 512
  %v1647 = vadd.s32 %v1582, 520
  %v1648 = vadd.s32 %v1582, 528
  %v1649 = vadd.s32 %v1582, 536
  %v1650 = vadd.s32 %v1582, 544
  %v1651 = vadd.s32 %v1582, 552
  %v1652 = vadd.s32 %v1582, 560
  %v1653 = vadd.s32 %v1582, 568
  %v1654 = vadd.s32 %v1582, 576
  %v1655 = vadd.s32 %v1582, 584
  %v1656 = vadd.s32 %v1582, 592
  %v1657 = vadd.s32 %v1582, 600
  %v1658 = vadd.s32 %v1582, 608
  %v1659 = vadd.s32 %v1582, 616
  %v1660 = vadd.s32 %v1582, 624
  %v1661 = vadd.s32 %v1582, 632
  %v1662 = vadd.s32 %v1582, 640
  %v1663 = vadd.s32 %v1582, 648
  %v1664 = vadd.s32 %v1582, 656
  %v1665 = vadd.s32 %v1582, 664
  %v1666 = vadd.s32 %v1582, 672
  %v1667 = vadd.s32 %v1582, 680
  %v1668 = vadd.s32 %v1582, 688
  %v1669 = vadd.s32 %v1582, 696
  %v1670 = vadd.s32 %v1582, 704
  %v1671 = vadd.s32 %v1582, 712
  %v1672 = vadd.s32 %v1582, 720
  %v1673 = vadd.s32 %v1582, 728
  %v1674 = vadd.s32 %v1582, 736
  %v1675 = vadd.s32 %v1582, 744
  %v1676 = vadd.s32 %v1582, 752
  %v1677 = vadd.s32 %v1582, 760
  %v1678 = vadd.s32 %v1582, 768
  %v1679 = vadd.s32 %v1582, 776
  %v1680 = vadd.s32 %v1582, 784
  %v1681 = vadd.s32 %v1582, 792
  %vm1682 = vcmp.ge.s32.totalorder %v1582, 8
  %vm1683 = vcmp.ge.s32.totalorder %v1583, 8
  %vm1684 = vcmp.ge.s32.totalorder %v1584, 8
  %vm1685 = vcmp.ge.s32.totalorder %v1585, 8
  %vm1686 = vcmp.ge.s32.totalorder %v1586, 8
  %vm1687 = vcmp.ge.s32.totalorder %v1587, 8
  %vm1688 = vcmp.ge.s32.totalorder %v1588, 8
  %vm1689 = vcmp.ge.s32.totalorder %v1589, 8
  %vm1690 = vcmp.ge.s32.totalorder %v1590, 8
  %vm1691 = vcmp.ge.s32.totalorder %v1591, 8
  %vm1692 = vcmp.ge.s32.totalorder %v1592, 8
  %vm1693 = vcmp.ge.s32.totalorder %v1593, 8
  %vm1694 = vcmp.ge.s32.totalorder %v1594, 8
  %vm1695 = vcmp.ge.s32.totalorder %v1595, 8
  %vm1696 = vcmp.ge.s32.totalorder %v1596, 8
  %vm1697 = vcmp.ge.s32.totalorder %v1597, 8
  %vm1698 = vcmp.ge.s32.totalorder %v1598, 8
  %vm1699 = vcmp.ge.s32.totalorder %v1599, 8
  %vm1700 = vcmp.ge.s32.totalorder %v1600, 8
  %vm1701 = vcmp.ge.s32.totalorder %v1601, 8
  %vm1702 = vcmp.ge.s32.totalorder %v1602, 8
  %vm1703 = vcmp.ge.s32.totalorder %v1603, 8
  %vm1704 = vcmp.ge.s32.totalorder %v1604, 8
  %vm1705 = vcmp.ge.s32.totalorder %v1605, 8
  %vm1706 = vcmp.ge.s32.totalorder %v1606, 8
  %vm1707 = vcmp.ge.s32.totalorder %v1607, 8
  %vm1708 = vcmp.ge.s32.totalorder %v1608, 8
  %vm1709 = vcmp.ge.s32.totalorder %v1609, 8
  %vm1710 = vcmp.ge.s32.totalorder %v1610, 8
  %vm1711 = vcmp.ge.s32.totalorder %v1611, 8
  %vm1712 = vcmp.ge.s32.totalorder %v1612, 8
  %vm1713 = vcmp.ge.s32.totalorder %v1613, 8
  %vm1714 = vcmp.ge.s32.totalorder %v1614, 8
  %vm1715 = vcmp.ge.s32.totalorder %v1615, 8
  %vm1716 = vcmp.ge.s32.totalorder %v1616, 8
  %vm1717 = vcmp.ge.s32.totalorder %v1617, 8
  %vm1718 = vcmp.ge.s32.totalorder %v1618, 8
  %vm1719 = vcmp.ge.s32.totalorder %v1619, 8
  %vm1720 = vcmp.ge.s32.totalorder %v1620, 8
  %vm1721 = vcmp.ge.s32.totalorder %v1621, 8
  %vm1722 = vcmp.ge.s32.totalorder %v1622, 8
  %vm1723 = vcmp.ge.s32.totalorder %v1623, 8
  %vm1724 = vcmp.ge.s32.totalorder %v1624, 8
  %vm1725 = vcmp.ge.s32.totalorder %v1625, 8
  %vm1726 = vcmp.ge.s32.totalorder %v1626, 8
  %vm1727 = vcmp.ge.s32.totalorder %v1627, 8
  %vm1728 = vcmp.ge.s32.totalorder %v1628, 8
  %vm1729 = vcmp.ge.s32.totalorder %v1629, 8
  %vm1730 = vcmp.ge.s32.totalorder %v1630, 8
  %vm1731 = vcmp.ge.s32.totalorder %v1631, 8
  %vm1732 = vcmp.ge.s32.totalorder %v1632, 8
  %vm1733 = vcmp.ge.s32.totalorder %v1633, 8
  %vm1734 = vcmp.ge.s32.totalorder %v1634, 8
  %vm1735 = vcmp.ge.s32.totalorder %v1635, 8
  %vm1736 = vcmp.ge.s32.totalorder %v1636, 8
  %vm1737 = vcmp.ge.s32.totalorder %v1637, 8
  %vm1738 = vcmp.ge.s32.totalorder %v1638, 8
  %vm1739 = vcmp.ge.s32.totalorder %v1639, 8
  %vm1740 = vcmp.ge.s32.totalorder %v1640, 8
  %vm1741 = vcmp.ge.s32.totalorder %v1641, 8
  %vm1742 = vcmp.ge.s32.totalorder %v1642, 8
  %vm1743 = vcmp.ge.s32.totalorder %v1643, 8
  %vm1744 = vcmp.ge.s32.totalorder %v1644, 8
  %vm1745 = vcmp.ge.s32.totalorder %v1645, 8
  %vm1746 = vcmp.ge.s32.totalorder %v1646, 8
  %vm1747 = vcmp.ge.s32.totalorder %v1647, 8
  %vm1748 = vcmp.ge.s32.totalorder %v1648, 8
  %vm1749 = vcmp.ge.s32.totalorder %v1649, 8
  %vm1750 = vcmp.ge.s32.totalorder %v1650, 8
  %vm1751 = vcmp.ge.s32.totalorder %v1651, 8
  %vm1752 = vcmp.ge.s32.totalorder %v1652, 8
  %vm1753 = vcmp.ge.s32.totalorder %v1653, 8
  %vm1754 = vcmp.ge.s32.totalorder %v1654, 8
  %vm1755 = vcmp.ge.s32.totalorder %v1655, 8
  %vm1756 = vcmp.ge.s32.totalorder %v1656, 8
  %vm1757 = vcmp.ge.s32.totalorder %v1657, 8
  %vm1758 = vcmp.ge.s32.totalorder %v1658, 8
  %vm1759 = vcmp.ge.s32.totalorder %v1659, 8
  %vm1760 = vcmp.ge.s32.totalorder %v1660, 8
  %vm1761 = vcmp.ge.s32.totalorder %v1661, 8
  %vm1762 = vcmp.ge.s32.totalorder %v1662, 8
  %vm1763 = vcmp.ge.s32.totalorder %v1663, 8
  %vm1764 = vcmp.ge.s32.totalorder %v1664, 8
  %vm1765 = vcmp.ge.s32.totalorder %v1665, 8
  %vm1766 = vcmp.ge.s32.totalorder %v1666, 8
  %vm1767 = vcmp.ge.s32.totalorder %v1667, 8
  %vm1768 = vcmp.ge.s32.totalorder %v1668, 8
  %vm1769 = vcmp.ge.s32.totalorder %v1669, 8
  %vm1770 = vcmp.ge.s32.totalorder %v1670, 8
  %vm1771 = vcmp.ge.s32.totalorder %v1671, 8
  %vm1772 = vcmp.ge.s32.totalorder %v1672, 8
  %vm1773 = vcmp.ge.s32.totalorder %v1673, 8
  %vm1774 = vcmp.ge.s32.totalorder %v1674, 8
  %vm1775 = vcmp.ge.s32.totalorder %v1675, 8
  %vm1776 = vcmp.ge.s32.totalorder %v1676, 8
  %vm1777 = vcmp.ge.s32.totalorder %v1677, 8
  %vm1778 = vcmp.ge.s32.totalorder %v1678, 8
  %vm1779 = vcmp.ge.s32.totalorder %v1679, 8
  %vm1780 = vcmp.ge.s32.totalorder %v1680, 8
  %vm1781 = vcmp.ge.s32.totalorder %v1681, 8
  %v1782 = vsel %vm1682, 1, 0
  %v1783 = vsel %vm1683, 1, 0
  %v1784 = vsel %vm1684, 1, 0
  %v1785 = vsel %vm1685, 1, 0
  %v1786 = vsel %vm1686, 1, 0
  %v1787 = vsel %vm1687, 1, 0
  %v1788 = vsel %vm1688, 1, 0
  %v1789 = vsel %vm1689, 1, 0
  %v1790 = vsel %vm1690, 1, 0
  %v1791 = vsel %vm1691, 1, 0
  %v1792 = vsel %vm1692, 1, 0
  %v1793 = vsel %vm1693, 1, 0
  %v1794 = vsel %vm1694, 1, 0
  %v1795 = vsel %vm1695, 1, 0
  %v1796 = vsel %vm1696, 1, 0
  %v1797 = vsel %vm1697, 1, 0
  %v1798 = vsel %vm1698, 1, 0
  %v1799 = vsel %vm1699, 1, 0
  %v1800 = vsel %vm1700, 1, 0
  %v1801 = vsel %vm1701, 1, 0
  %v1802 = vsel %vm1702, 1, 0
  %v1803 = vsel %vm1703, 1, 0
  %v1804 = vsel %vm1704, 1, 0
  %v1805 = vsel %vm1705, 1, 0
  %v1806 = vsel %vm1706, 1, 0
  %v1807 = vsel %vm1707, 1, 0
  %v1808 = vsel %vm1708, 1, 0
  %v1809 = vsel %vm1709, 1, 0
  %v1810 = vsel %vm1710, 1, 0
  %v1811 = vsel %vm1711, 1, 0
  %v1812 = vsel %vm1712, 1, 0
  %v1813 = vsel %vm1713, 1, 0
  %v1814 = vsel %vm1714, 1, 0
  %v1815 = vsel %vm1715, 1, 0
  %v1816 = vsel %vm1716, 1, 0
  %v1817 = vsel %vm1717, 1, 0
  %v1818 = vsel %vm1718, 1, 0
  %v1819 = vsel %vm1719, 1, 0
  %v1820 = vsel %vm1720, 1, 0
  %v1821 = vsel %vm1721, 1, 0
  %v1822 = vsel %vm1722, 1, 0
  %v1823 = vsel %vm1723, 1, 0
  %v1824 = vsel %vm1724, 1, 0
  %v1825 = vsel %vm1725, 1, 0
  %v1826 = vsel %vm1726, 1, 0
  %v1827 = vsel %vm1727, 1, 0
  %v1828 = vsel %vm1728, 1, 0
  %v1829 = vsel %vm1729, 1, 0
  %v1830 = vsel %vm1730, 1, 0
  %v1831 = vsel %vm1731, 1, 0
  %v1832 = vsel %vm1732, 1, 0
  %v1833 = vsel %vm1733, 1, 0
  %v1834 = vsel %vm1734, 1, 0
  %v1835 = vsel %vm1735, 1, 0
  %v1836 = vsel %vm1736, 1, 0
  %v1837 = vsel %vm1737, 1, 0
  %v1838 = vsel %vm1738, 1, 0
  %v1839 = vsel %vm1739, 1, 0
  %v1840 = vsel %vm1740, 1, 0
  %v1841 = vsel %vm1741, 1, 0
  %v1842 = vsel %vm1742, 1, 0
  %v1843 = vsel %vm1743, 1, 0
  %v1844 = vsel %vm1744, 1, 0
  %v1845 = vsel %vm1745, 1, 0
  %v1846 = vsel %vm1746, 1, 0
  %v1847 = vsel %vm1747, 1, 0
  %v1848 = vsel %vm1748, 1, 0
  %v1849 = vsel %vm1749, 1, 0
  %v1850 = vsel %vm1750, 1, 0
  %v1851 = vsel %vm1751, 1, 0
  %v1852 = vsel %vm1752, 1, 0
  %v1853 = vsel %vm1753, 1, 0
  %v1854 = vsel %vm1754, 1, 0
  %v1855 = vsel %vm1755, 1, 0
  %v1856 = vsel %vm1756, 1, 0
  %v1857 = vsel %vm1757, 1, 0
  %v1858 = vsel %vm1758, 1, 0
  %v1859 = vsel %vm1759, 1, 0
  %v1860 = vsel %vm1760, 1, 0
  %v1861 = vsel %vm1761, 1, 0
  %v1862 = vsel %vm1762, 1, 0
  %v1863 = vsel %vm1763, 1, 0
  %v1864 = vsel %vm1764, 1, 0
  %v1865 = vsel %vm1765, 1, 0
  %v1866 = vsel %vm1766, 1, 0
  %v1867 = vsel %vm1767, 1, 0
  %v1868 = vsel %vm1768, 1, 0
  %v1869 = vsel %vm1769, 1, 0
  %v1870 = vsel %vm1770, 1, 0
  %v1871 = vsel %vm1771, 1, 0
  %v1872 = vsel %vm1772, 1, 0
  %v1873 = vsel %vm1773, 1, 0
  %v1874 = vsel %vm1774, 1, 0
  %v1875 = vsel %vm1775, 1, 0
  %v1876 = vsel %vm1776, 1, 0
  %v1877 = vsel %vm1777, 1, 0
  %v1878 = vsel %vm1778, 1, 0
  %v1879 = vsel %vm1779, 1, 0
  %v1880 = vsel %vm1780, 1, 0
  %v1881 = vsel %vm1781, 1, 0
  %vm1882 = vcmp.eq.s32.totalorder %v1782, 1
  %vm1883 = vcmp.eq.s32.totalorder %v1783, 1
  %vm1884 = vcmp.eq.s32.totalorder %v1784, 1
  %vm1885 = vcmp.eq.s32.totalorder %v1785, 1
  %vm1886 = vcmp.eq.s32.totalorder %v1786, 1
  %vm1887 = vcmp.eq.s32.totalorder %v1787, 1
  %vm1888 = vcmp.eq.s32.totalorder %v1788, 1
  %vm1889 = vcmp.eq.s32.totalorder %v1789, 1
  %vm1890 = vcmp.eq.s32.totalorder %v1790, 1
  %vm1891 = vcmp.eq.s32.totalorder %v1791, 1
  %vm1892 = vcmp.eq.s32.totalorder %v1792, 1
  %vm1893 = vcmp.eq.s32.totalorder %v1793, 1
  %vm1894 = vcmp.eq.s32.totalorder %v1794, 1
  %vm1895 = vcmp.eq.s32.totalorder %v1795, 1
  %vm1896 = vcmp.eq.s32.totalorder %v1796, 1
  %vm1897 = vcmp.eq.s32.totalorder %v1797, 1
  %vm1898 = vcmp.eq.s32.totalorder %v1798, 1
  %vm1899 = vcmp.eq.s32.totalorder %v1799, 1
  %vm1900 = vcmp.eq.s32.totalorder %v1800, 1
  %vm1901 = vcmp.eq.s32.totalorder %v1801, 1
  %vm1902 = vcmp.eq.s32.totalorder %v1802, 1
  %vm1903 = vcmp.eq.s32.totalorder %v1803, 1
  %vm1904 = vcmp.eq.s32.totalorder %v1804, 1
  %vm1905 = vcmp.eq.s32.totalorder %v1805, 1
  %vm1906 = vcmp.eq.s32.totalorder %v1806, 1
  %vm1907 = vcmp.eq.s32.totalorder %v1807, 1
  %vm1908 = vcmp.eq.s32.totalorder %v1808, 1
  %vm1909 = vcmp.eq.s32.totalorder %v1809, 1
  %vm1910 = vcmp.eq.s32.totalorder %v1810, 1
  %vm1911 = vcmp.eq.s32.totalorder %v1811, 1
  %vm1912 = vcmp.eq.s32.totalorder %v1812, 1
  %vm1913 = vcmp.eq.s32.totalorder %v1813, 1
  %vm1914 = vcmp.eq.s32.totalorder %v1814, 1
  %vm1915 = vcmp.eq.s32.totalorder %v1815, 1
  %vm1916 = vcmp.eq.s32.totalorder %v1816, 1
  %vm1917 = vcmp.eq.s32.totalorder %v1817, 1
  %vm1918 = vcmp.eq.s32.totalorder %v1818, 1
  %vm1919 = vcmp.eq.s32.totalorder %v1819, 1
  %vm1920 = vcmp.eq.s32.totalorder %v1820, 1
  %vm1921 = vcmp.eq.s32.totalorder %v1821, 1
  %vm1922 = vcmp.eq.s32.totalorder %v1822, 1
  %vm1923 = vcmp.eq.s32.totalorder %v1823, 1
  %vm1924 = vcmp.eq.s32.totalorder %v1824, 1
  %vm1925 = vcmp.eq.s32.totalorder %v1825, 1
  %vm1926 = vcmp.eq.s32.totalorder %v1826, 1
  %vm1927 = vcmp.eq.s32.totalorder %v1827, 1
  %vm1928 = vcmp.eq.s32.totalorder %v1828, 1
  %vm1929 = vcmp.eq.s32.totalorder %v1829, 1
  %vm1930 = vcmp.eq.s32.totalorder %v1830, 1
  %vm1931 = vcmp.eq.s32.totalorder %v1831, 1
  %vm1932 = vcmp.eq.s32.totalorder %v1832, 1
  %vm1933 = vcmp.eq.s32.totalorder %v1833, 1
  %vm1934 = vcmp.eq.s32.totalorder %v1834, 1
  %vm1935 = vcmp.eq.s32.totalorder %v1835, 1
  %vm1936 = vcmp.eq.s32.totalorder %v1836, 1
  %vm1937 = vcmp.eq.s32.totalorder %v1837, 1
  %vm1938 = vcmp.eq.s32.totalorder %v1838, 1
  %vm1939 = vcmp.eq.s32.totalorder %v1839, 1
  %vm1940 = vcmp.eq.s32.totalorder %v1840, 1
  %vm1941 = vcmp.eq.s32.totalorder %v1841, 1
  %vm1942 = vcmp.eq.s32.totalorder %v1842, 1
  %vm1943 = vcmp.eq.s32.totalorder %v1843, 1
  %vm1944 = vcmp.eq.s32.totalorder %v1844, 1
  %vm1945 = vcmp.eq.s32.totalorder %v1845, 1
  %vm1946 = vcmp.eq.s32.totalorder %v1846, 1
  %vm1947 = vcmp.eq.s32.totalorder %v1847, 1
  %vm1948 = vcmp.eq.s32.totalorder %v1848, 1
  %vm1949 = vcmp.eq.s32.totalorder %v1849, 1
  %vm1950 = vcmp.eq.s32.totalorder %v1850, 1
  %vm1951 = vcmp.eq.s32.totalorder %v1851, 1
  %vm1952 = vcmp.eq.s32.totalorder %v1852, 1
  %vm1953 = vcmp.eq.s32.totalorder %v1853, 1
  %vm1954 = vcmp.eq.s32.totalorder %v1854, 1
  %vm1955 = vcmp.eq.s32.totalorder %v1855, 1
  %vm1956 = vcmp.eq.s32.totalorder %v1856, 1
  %vm1957 = vcmp.eq.s32.totalorder %v1857, 1
  %vm1958 = vcmp.eq.s32.totalorder %v1858, 1
  %vm1959 = vcmp.eq.s32.totalorder %v1859, 1
  %vm1960 = vcmp.eq.s32.totalorder %v1860, 1
  %vm1961 = vcmp.eq.s32.totalorder %v1861, 1
  %vm1962 = vcmp.eq.s32.totalorder %v1862, 1
  %vm1963 = vcmp.eq.s32.totalorder %v1863, 1
  %vm1964 = vcmp.eq.s32.totalorder %v1864, 1
  %vm1965 = vcmp.eq.s32.totalorder %v1865, 1
  %vm1966 = vcmp.eq.s32.totalorder %v1866, 1
  %vm1967 = vcmp.eq.s32.totalorder %v1867, 1
  %vm1968 = vcmp.eq.s32.totalorder %v1868, 1
  %vm1969 = vcmp.eq.s32.totalorder %v1869, 1
  %vm1970 = vcmp.eq.s32.totalorder %v1870, 1
  %vm1971 = vcmp.eq.s32.totalorder %v1871, 1
  %vm1972 = vcmp.eq.s32.totalorder %v1872, 1
  %vm1973 = vcmp.eq.s32.totalorder %v1873, 1
  %vm1974 = vcmp.eq.s32.totalorder %v1874, 1
  %vm1975 = vcmp.eq.s32.totalorder %v1875, 1
  %vm1976 = vcmp.eq.s32.totalorder %v1876, 1
  %vm1977 = vcmp.eq.s32.totalorder %v1877, 1
  %vm1978 = vcmp.eq.s32.totalorder %v1878, 1
  %vm1979 = vcmp.eq.s32.totalorder %v1879, 1
  %vm1980 = vcmp.eq.s32.totalorder %v1880, 1
  %vm1981 = vcmp.eq.s32.totalorder %v1881, 1
  %v1982 = vsel %vm1882, %v1580, 0.0
  %v1983 = vsel %vm1883, %v1481, 0.0
  %v1984 = vsel %vm1884, %v1482, 0.0
  %v1985 = vsel %vm1885, %v1483, 0.0
  %v1986 = vsel %vm1886, %v1484, 0.0
  %v1987 = vsel %vm1887, %v1485, 0.0
  %v1988 = vsel %vm1888, %v1486, 0.0
  %v1989 = vsel %vm1889, %v1487, 0.0
  %v1990 = vsel %vm1890, %v1488, 0.0
  %v1991 = vsel %vm1891, %v1489, 0.0
  %v1992 = vsel %vm1892, %v1490, 0.0
  %v1993 = vsel %vm1893, %v1491, 0.0
  %v1994 = vsel %vm1894, %v1492, 0.0
  %v1995 = vsel %vm1895, %v1493, 0.0
  %v1996 = vsel %vm1896, %v1494, 0.0
  %v1997 = vsel %vm1897, %v1495, 0.0
  %v1998 = vsel %vm1898, %v1496, 0.0
  %v1999 = vsel %vm1899, %v1497, 0.0
  %v2000 = vsel %vm1900, %v1498, 0.0
  %v2001 = vsel %vm1901, %v1499, 0.0
  %v2002 = vsel %vm1902, %v1500, 0.0
  %v2003 = vsel %vm1903, %v1501, 0.0
  %v2004 = vsel %vm1904, %v1502, 0.0
  %v2005 = vsel %vm1905, %v1503, 0.0
  %v2006 = vsel %vm1906, %v1504, 0.0
  %v2007 = vsel %vm1907, %v1505, 0.0
  %v2008 = vsel %vm1908, %v1506, 0.0
  %v2009 = vsel %vm1909, %v1507, 0.0
  %v2010 = vsel %vm1910, %v1508, 0.0
  %v2011 = vsel %vm1911, %v1509, 0.0
  %v2012 = vsel %vm1912, %v1510, 0.0
  %v2013 = vsel %vm1913, %v1511, 0.0
  %v2014 = vsel %vm1914, %v1512, 0.0
  %v2015 = vsel %vm1915, %v1513, 0.0
  %v2016 = vsel %vm1916, %v1514, 0.0
  %v2017 = vsel %vm1917, %v1515, 0.0
  %v2018 = vsel %vm1918, %v1516, 0.0
  %v2019 = vsel %vm1919, %v1517, 0.0
  %v2020 = vsel %vm1920, %v1518, 0.0
  %v2021 = vsel %vm1921, %v1519, 0.0
  %v2022 = vsel %vm1922, %v1520, 0.0
  %v2023 = vsel %vm1923, %v1521, 0.0
  %v2024 = vsel %vm1924, %v1522, 0.0
  %v2025 = vsel %vm1925, %v1523, 0.0
  %v2026 = vsel %vm1926, %v1524, 0.0
  %v2027 = vsel %vm1927, %v1525, 0.0
  %v2028 = vsel %vm1928, %v1526, 0.0
  %v2029 = vsel %vm1929, %v1527, 0.0
  %v2030 = vsel %vm1930, %v1528, 0.0
  %v2031 = vsel %vm1931, %v1529, 0.0
  %v2032 = vsel %vm1932, %v1530, 0.0
  %v2033 = vsel %vm1933, %v1531, 0.0
  %v2034 = vsel %vm1934, %v1532, 0.0
  %v2035 = vsel %vm1935, %v1533, 0.0
  %v2036 = vsel %vm1936, %v1534, 0.0
  %v2037 = vsel %vm1937, %v1535, 0.0
  %v2038 = vsel %vm1938, %v1536, 0.0
  %v2039 = vsel %vm1939, %v1537, 0.0
  %v2040 = vsel %vm1940, %v1538, 0.0
  %v2041 = vsel %vm1941, %v1539, 0.0
  %v2042 = vsel %vm1942, %v1540, 0.0
  %v2043 = vsel %vm1943, %v1541, 0.0
  %v2044 = vsel %vm1944, %v1542, 0.0
  %v2045 = vsel %vm1945, %v1543, 0.0
  %v2046 = vsel %vm1946, %v1544, 0.0
  %v2047 = vsel %vm1947, %v1545, 0.0
  %v2048 = vsel %vm1948, %v1546, 0.0
  %v2049 = vsel %vm1949, %v1547, 0.0
  %v2050 = vsel %vm1950, %v1548, 0.0
  %v2051 = vsel %vm1951, %v1549, 0.0
  %v2052 = vsel %vm1952, %v1550, 0.0
  %v2053 = vsel %vm1953, %v1551, 0.0
  %v2054 = vsel %vm1954, %v1552, 0.0
  %v2055 = vsel %vm1955, %v1553, 0.0
  %v2056 = vsel %vm1956, %v1554, 0.0
  %v2057 = vsel %vm1957, %v1555, 0.0
  %v2058 = vsel %vm1958, %v1556, 0.0
  %v2059 = vsel %vm1959, %v1557, 0.0
  %v2060 = vsel %vm1960, %v1558, 0.0
  %v2061 = vsel %vm1961, %v1559, 0.0
  %v2062 = vsel %vm1962, %v1560, 0.0
  %v2063 = vsel %vm1963, %v1561, 0.0
  %v2064 = vsel %vm1964, %v1562, 0.0
  %v2065 = vsel %vm1965, %v1563, 0.0
  %v2066 = vsel %vm1966, %v1564, 0.0
  %v2067 = vsel %vm1967, %v1565, 0.0
  %v2068 = vsel %vm1968, %v1566, 0.0
  %v2069 = vsel %vm1969, %v1567, 0.0
  %v2070 = vsel %vm1970, %v1568, 0.0
  %v2071 = vsel %vm1971, %v1569, 0.0
  %v2072 = vsel %vm1972, %v1570, 0.0
  %v2073 = vsel %vm1973, %v1571, 0.0
  %v2074 = vsel %vm1974, %v1572, 0.0
  %v2075 = vsel %vm1975, %v1573, 0.0
  %v2076 = vsel %vm1976, %v1574, 0.0
  %v2077 = vsel %vm1977, %v1575, 0.0
  %v2078 = vsel %vm1978, %v1576, 0.0
  %v2079 = vsel %vm1979, %v1577, 0.0
  %v2080 = vsel %vm1980, %v1578, 0.0
  %v2081 = vsel %vm1981, %v1579, 0.0
  %vm2082 = vcmp.lt.s32.totalorder %v1582, 792
  %vm2083 = vcmp.lt.s32.totalorder %v1583, 792
  %vm2084 = vcmp.lt.s32.totalorder %v1584, 792
  %vm2085 = vcmp.lt.s32.totalorder %v1585, 792
  %vm2086 = vcmp.lt.s32.totalorder %v1586, 792
  %vm2087 = vcmp.lt.s32.totalorder %v1587, 792
  %vm2088 = vcmp.lt.s32.totalorder %v1588, 792
  %vm2089 = vcmp.lt.s32.totalorder %v1589, 792
  %vm2090 = vcmp.lt.s32.totalorder %v1590, 792
  %vm2091 = vcmp.lt.s32.totalorder %v1591, 792
  %vm2092 = vcmp.lt.s32.totalorder %v1592, 792
  %vm2093 = vcmp.lt.s32.totalorder %v1593, 792
  %vm2094 = vcmp.lt.s32.totalorder %v1594, 792
  %vm2095 = vcmp.lt.s32.totalorder %v1595, 792
  %vm2096 = vcmp.lt.s32.totalorder %v1596, 792
  %vm2097 = vcmp.lt.s32.totalorder %v1597, 792
  %vm2098 = vcmp.lt.s32.totalorder %v1598, 792
  %vm2099 = vcmp.lt.s32.totalorder %v1599, 792
  %vm2100 = vcmp.lt.s32.totalorder %v1600, 792
  %vm2101 = vcmp.lt.s32.totalorder %v1601, 792
  %vm2102 = vcmp.lt.s32.totalorder %v1602, 792
  %vm2103 = vcmp.lt.s32.totalorder %v1603, 792
  %vm2104 = vcmp.lt.s32.totalorder %v1604, 792
  %vm2105 = vcmp.lt.s32.totalorder %v1605, 792
  %vm2106 = vcmp.lt.s32.totalorder %v1606, 792
  %vm2107 = vcmp.lt.s32.totalorder %v1607, 792
  %vm2108 = vcmp.lt.s32.totalorder %v1608, 792
  %vm2109 = vcmp.lt.s32.totalorder %v1609, 792
  %vm2110 = vcmp.lt.s32.totalorder %v1610, 792
  %vm2111 = vcmp.lt.s32.totalorder %v1611, 792
  %vm2112 = vcmp.lt.s32.totalorder %v1612, 792
  %vm2113 = vcmp.lt.s32.totalorder %v1613, 792
  %vm2114 = vcmp.lt.s32.totalorder %v1614, 792
  %vm2115 = vcmp.lt.s32.totalorder %v1615, 792
  %vm2116 = vcmp.lt.s32.totalorder %v1616, 792
  %vm2117 = vcmp.lt.s32.totalorder %v1617, 792
  %vm2118 = vcmp.lt.s32.totalorder %v1618, 792
  %vm2119 = vcmp.lt.s32.totalorder %v1619, 792
  %vm2120 = vcmp.lt.s32.totalorder %v1620, 792
  %vm2121 = vcmp.lt.s32.totalorder %v1621, 792
  %vm2122 = vcmp.lt.s32.totalorder %v1622, 792
  %vm2123 = vcmp.lt.s32.totalorder %v1623, 792
  %vm2124 = vcmp.lt.s32.totalorder %v1624, 792
  %vm2125 = vcmp.lt.s32.totalorder %v1625, 792
  %vm2126 = vcmp.lt.s32.totalorder %v1626, 792
  %vm2127 = vcmp.lt.s32.totalorder %v1627, 792
  %vm2128 = vcmp.lt.s32.totalorder %v1628, 792
  %vm2129 = vcmp.lt.s32.totalorder %v1629, 792
  %vm2130 = vcmp.lt.s32.totalorder %v1630, 792
  %vm2131 = vcmp.lt.s32.totalorder %v1631, 792
  %vm2132 = vcmp.lt.s32.totalorder %v1632, 792
  %vm2133 = vcmp.lt.s32.totalorder %v1633, 792
  %vm2134 = vcmp.lt.s32.totalorder %v1634, 792
  %vm2135 = vcmp.lt.s32.totalorder %v1635, 792
  %vm2136 = vcmp.lt.s32.totalorder %v1636, 792
  %vm2137 = vcmp.lt.s32.totalorder %v1637, 792
  %vm2138 = vcmp.lt.s32.totalorder %v1638, 792
  %vm2139 = vcmp.lt.s32.totalorder %v1639, 792
  %vm2140 = vcmp.lt.s32.totalorder %v1640, 792
  %vm2141 = vcmp.lt.s32.totalorder %v1641, 792
  %vm2142 = vcmp.lt.s32.totalorder %v1642, 792
  %vm2143 = vcmp.lt.s32.totalorder %v1643, 792
  %vm2144 = vcmp.lt.s32.totalorder %v1644, 792
  %vm2145 = vcmp.lt.s32.totalorder %v1645, 792
  %vm2146 = vcmp.lt.s32.totalorder %v1646, 792
  %vm2147 = vcmp.lt.s32.totalorder %v1647, 792
  %vm2148 = vcmp.lt.s32.totalorder %v1648, 792
  %vm2149 = vcmp.lt.s32.totalorder %v1649, 792
  %vm2150 = vcmp.lt.s32.totalorder %v1650, 792
  %vm2151 = vcmp.lt.s32.totalorder %v1651, 792
  %vm2152 = vcmp.lt.s32.totalorder %v1652, 792
  %vm2153 = vcmp.lt.s32.totalorder %v1653, 792
  %vm2154 = vcmp.lt.s32.totalorder %v1654, 792
  %vm2155 = vcmp.lt.s32.totalorder %v1655, 792
  %vm2156 = vcmp.lt.s32.totalorder %v1656, 792
  %vm2157 = vcmp.lt.s32.totalorder %v1657, 792
  %vm2158 = vcmp.lt.s32.totalorder %v1658, 792
  %vm2159 = vcmp.lt.s32.totalorder %v1659, 792
  %vm2160 = vcmp.lt.s32.totalorder %v1660, 792
  %vm2161 = vcmp.lt.s32.totalorder %v1661, 792
  %vm2162 = vcmp.lt.s32.totalorder %v1662, 792
  %vm2163 = vcmp.lt.s32.totalorder %v1663, 792
  %vm2164 = vcmp.lt.s32.totalorder %v1664, 792
  %vm2165 = vcmp.lt.s32.totalorder %v1665, 792
  %vm2166 = vcmp.lt.s32.totalorder %v1666, 792
  %vm2167 = vcmp.lt.s32.totalorder %v1667, 792
  %vm2168 = vcmp.lt.s32.totalorder %v1668, 792
  %vm2169 = vcmp.lt.s32.totalorder %v1669, 792
  %vm2170 = vcmp.lt.s32.totalorder %v1670, 792
  %vm2171 = vcmp.lt.s32.totalorder %v1671, 792
  %vm2172 = vcmp.lt.s32.totalorder %v1672, 792
  %vm2173 = vcmp.lt.s32.totalorder %v1673, 792
  %vm2174 = vcmp.lt.s32.totalorder %v1674, 792
  %vm2175 = vcmp.lt.s32.totalorder %v1675, 792
  %vm2176 = vcmp.lt.s32.totalorder %v1676, 792
  %vm2177 = vcmp.lt.s32.totalorder %v1677, 792
  %vm2178 = vcmp.lt.s32.totalorder %v1678, 792
  %vm2179 = vcmp.lt.s32.totalorder %v1679, 792
  %vm2180 = vcmp.lt.s32.totalorder %v1680, 792
  %vm2181 = vcmp.lt.s32.totalorder %v1681, 792
  %v2182 = vsel %vm2082, 1, 0
  %v2183 = vsel %vm2083, 1, 0
  %v2184 = vsel %vm2084, 1, 0
  %v2185 = vsel %vm2085, 1, 0
  %v2186 = vsel %vm2086, 1, 0
  %v2187 = vsel %vm2087, 1, 0
  %v2188 = vsel %vm2088, 1, 0
  %v2189 = vsel %vm2089, 1, 0
  %v2190 = vsel %vm2090, 1, 0
  %v2191 = vsel %vm2091, 1, 0
  %v2192 = vsel %vm2092, 1, 0
  %v2193 = vsel %vm2093, 1, 0
  %v2194 = vsel %vm2094, 1, 0
  %v2195 = vsel %vm2095, 1, 0
  %v2196 = vsel %vm2096, 1, 0
  %v2197 = vsel %vm2097, 1, 0
  %v2198 = vsel %vm2098, 1, 0
  %v2199 = vsel %vm2099, 1, 0
  %v2200 = vsel %vm2100, 1, 0
  %v2201 = vsel %vm2101, 1, 0
  %v2202 = vsel %vm2102, 1, 0
  %v2203 = vsel %vm2103, 1, 0
  %v2204 = vsel %vm2104, 1, 0
  %v2205 = vsel %vm2105, 1, 0
  %v2206 = vsel %vm2106, 1, 0
  %v2207 = vsel %vm2107, 1, 0
  %v2208 = vsel %vm2108, 1, 0
  %v2209 = vsel %vm2109, 1, 0
  %v2210 = vsel %vm2110, 1, 0
  %v2211 = vsel %vm2111, 1, 0
  %v2212 = vsel %vm2112, 1, 0
  %v2213 = vsel %vm2113, 1, 0
  %v2214 = vsel %vm2114, 1, 0
  %v2215 = vsel %vm2115, 1, 0
  %v2216 = vsel %vm2116, 1, 0
  %v2217 = vsel %vm2117, 1, 0
  %v2218 = vsel %vm2118, 1, 0
  %v2219 = vsel %vm2119, 1, 0
  %v2220 = vsel %vm2120, 1, 0
  %v2221 = vsel %vm2121, 1, 0
  %v2222 = vsel %vm2122, 1, 0
  %v2223 = vsel %vm2123, 1, 0
  %v2224 = vsel %vm2124, 1, 0
  %v2225 = vsel %vm2125, 1, 0
  %v2226 = vsel %vm2126, 1, 0
  %v2227 = vsel %vm2127, 1, 0
  %v2228 = vsel %vm2128, 1, 0
  %v2229 = vsel %vm2129, 1, 0
  %v2230 = vsel %vm2130, 1, 0
  %v2231 = vsel %vm2131, 1, 0
  %v2232 = vsel %vm2132, 1, 0
  %v2233 = vsel %vm2133, 1, 0
  %v2234 = vsel %vm2134, 1, 0
  %v2235 = vsel %vm2135, 1, 0
  %v2236 = vsel %vm2136, 1, 0
  %v2237 = vsel %vm2137, 1, 0
  %v2238 = vsel %vm2138, 1, 0
  %v2239 = vsel %vm2139, 1, 0
  %v2240 = vsel %vm2140, 1, 0
  %v2241 = vsel %vm2141, 1, 0
  %v2242 = vsel %vm2142, 1, 0
  %v2243 = vsel %vm2143, 1, 0
  %v2244 = vsel %vm2144, 1, 0
  %v2245 = vsel %vm2145, 1, 0
  %v2246 = vsel %vm2146, 1, 0
  %v2247 = vsel %vm2147, 1, 0
  %v2248 = vsel %vm2148, 1, 0
  %v2249 = vsel %vm2149, 1, 0
  %v2250 = vsel %vm2150, 1, 0
  %v2251 = vsel %vm2151, 1, 0
  %v2252 = vsel %vm2152, 1, 0
  %v2253 = vsel %vm2153, 1, 0
  %v2254 = vsel %vm2154, 1, 0
  %v2255 = vsel %vm2155, 1, 0
  %v2256 = vsel %vm2156, 1, 0
  %v2257 = vsel %vm2157, 1, 0
  %v2258 = vsel %vm2158, 1, 0
  %v2259 = vsel %vm2159, 1, 0
  %v2260 = vsel %vm2160, 1, 0
  %v2261 = vsel %vm2161, 1, 0
  %v2262 = vsel %vm2162, 1, 0
  %v2263 = vsel %vm2163, 1, 0
  %v2264 = vsel %vm2164, 1, 0
  %v2265 = vsel %vm2165, 1, 0
  %v2266 = vsel %vm2166, 1, 0
  %v2267 = vsel %vm2167, 1, 0
  %v2268 = vsel %vm2168, 1, 0
  %v2269 = vsel %vm2169, 1, 0
  %v2270 = vsel %vm2170, 1, 0
  %v2271 = vsel %vm2171, 1, 0
  %v2272 = vsel %vm2172, 1, 0
  %v2273 = vsel %vm2173, 1, 0
  %v2274 = vsel %vm2174, 1, 0
  %v2275 = vsel %vm2175, 1, 0
  %v2276 = vsel %vm2176, 1, 0
  %v2277 = vsel %vm2177, 1, 0
  %v2278 = vsel %vm2178, 1, 0
  %v2279 = vsel %vm2179, 1, 0
  %v2280 = vsel %vm2180, 1, 0
  %v2281 = vsel %vm2181, 1, 0
  %vm2282 = vcmp.eq.s32.totalorder %v2182, 1
  %vm2283 = vcmp.eq.s32.totalorder %v2183, 1
  %vm2284 = vcmp.eq.s32.totalorder %v2184, 1
  %vm2285 = vcmp.eq.s32.totalorder %v2185, 1
  %vm2286 = vcmp.eq.s32.totalorder %v2186, 1
  %vm2287 = vcmp.eq.s32.totalorder %v2187, 1
  %vm2288 = vcmp.eq.s32.totalorder %v2188, 1
  %vm2289 = vcmp.eq.s32.totalorder %v2189, 1
  %vm2290 = vcmp.eq.s32.totalorder %v2190, 1
  %vm2291 = vcmp.eq.s32.totalorder %v2191, 1
  %vm2292 = vcmp.eq.s32.totalorder %v2192, 1
  %vm2293 = vcmp.eq.s32.totalorder %v2193, 1
  %vm2294 = vcmp.eq.s32.totalorder %v2194, 1
  %vm2295 = vcmp.eq.s32.totalorder %v2195, 1
  %vm2296 = vcmp.eq.s32.totalorder %v2196, 1
  %vm2297 = vcmp.eq.s32.totalorder %v2197, 1
  %vm2298 = vcmp.eq.s32.totalorder %v2198, 1
  %vm2299 = vcmp.eq.s32.totalorder %v2199, 1
  %vm2300 = vcmp.eq.s32.totalorder %v2200, 1
  %vm2301 = vcmp.eq.s32.totalorder %v2201, 1
  %vm2302 = vcmp.eq.s32.totalorder %v2202, 1
  %vm2303 = vcmp.eq.s32.totalorder %v2203, 1
  %vm2304 = vcmp.eq.s32.totalorder %v2204, 1
  %vm2305 = vcmp.eq.s32.totalorder %v2205, 1
  %vm2306 = vcmp.eq.s32.totalorder %v2206, 1
  %vm2307 = vcmp.eq.s32.totalorder %v2207, 1
  %vm2308 = vcmp.eq.s32.totalorder %v2208, 1
  %vm2309 = vcmp.eq.s32.totalorder %v2209, 1
  %vm2310 = vcmp.eq.s32.totalorder %v2210, 1
  %vm2311 = vcmp.eq.s32.totalorder %v2211, 1
  %vm2312 = vcmp.eq.s32.totalorder %v2212, 1
  %vm2313 = vcmp.eq.s32.totalorder %v2213, 1
  %vm2314 = vcmp.eq.s32.totalorder %v2214, 1
  %vm2315 = vcmp.eq.s32.totalorder %v2215, 1
  %vm2316 = vcmp.eq.s32.totalorder %v2216, 1
  %vm2317 = vcmp.eq.s32.totalorder %v2217, 1
  %vm2318 = vcmp.eq.s32.totalorder %v2218, 1
  %vm2319 = vcmp.eq.s32.totalorder %v2219, 1
  %vm2320 = vcmp.eq.s32.totalorder %v2220, 1
  %vm2321 = vcmp.eq.s32.totalorder %v2221, 1
  %vm2322 = vcmp.eq.s32.totalorder %v2222, 1
  %vm2323 = vcmp.eq.s32.totalorder %v2223, 1
  %vm2324 = vcmp.eq.s32.totalorder %v2224, 1
  %vm2325 = vcmp.eq.s32.totalorder %v2225, 1
  %vm2326 = vcmp.eq.s32.totalorder %v2226, 1
  %vm2327 = vcmp.eq.s32.totalorder %v2227, 1
  %vm2328 = vcmp.eq.s32.totalorder %v2228, 1
  %vm2329 = vcmp.eq.s32.totalorder %v2229, 1
  %vm2330 = vcmp.eq.s32.totalorder %v2230, 1
  %vm2331 = vcmp.eq.s32.totalorder %v2231, 1
  %vm2332 = vcmp.eq.s32.totalorder %v2232, 1
  %vm2333 = vcmp.eq.s32.totalorder %v2233, 1
  %vm2334 = vcmp.eq.s32.totalorder %v2234, 1
  %vm2335 = vcmp.eq.s32.totalorder %v2235, 1
  %vm2336 = vcmp.eq.s32.totalorder %v2236, 1
  %vm2337 = vcmp.eq.s32.totalorder %v2237, 1
  %vm2338 = vcmp.eq.s32.totalorder %v2238, 1
  %vm2339 = vcmp.eq.s32.totalorder %v2239, 1
  %vm2340 = vcmp.eq.s32.totalorder %v2240, 1
  %vm2341 = vcmp.eq.s32.totalorder %v2241, 1
  %vm2342 = vcmp.eq.s32.totalorder %v2242, 1
  %vm2343 = vcmp.eq.s32.totalorder %v2243, 1
  %vm2344 = vcmp.eq.s32.totalorder %v2244, 1
  %vm2345 = vcmp.eq.s32.totalorder %v2245, 1
  %vm2346 = vcmp.eq.s32.totalorder %v2246, 1
  %vm2347 = vcmp.eq.s32.totalorder %v2247, 1
  %vm2348 = vcmp.eq.s32.totalorder %v2248, 1
  %vm2349 = vcmp.eq.s32.totalorder %v2249, 1
  %vm2350 = vcmp.eq.s32.totalorder %v2250, 1
  %vm2351 = vcmp.eq.s32.totalorder %v2251, 1
  %vm2352 = vcmp.eq.s32.totalorder %v2252, 1
  %vm2353 = vcmp.eq.s32.totalorder %v2253, 1
  %vm2354 = vcmp.eq.s32.totalorder %v2254, 1
  %vm2355 = vcmp.eq.s32.totalorder %v2255, 1
  %vm2356 = vcmp.eq.s32.totalorder %v2256, 1
  %vm2357 = vcmp.eq.s32.totalorder %v2257, 1
  %vm2358 = vcmp.eq.s32.totalorder %v2258, 1
  %vm2359 = vcmp.eq.s32.totalorder %v2259, 1
  %vm2360 = vcmp.eq.s32.totalorder %v2260, 1
  %vm2361 = vcmp.eq.s32.totalorder %v2261, 1
  %vm2362 = vcmp.eq.s32.totalorder %v2262, 1
  %vm2363 = vcmp.eq.s32.totalorder %v2263, 1
  %vm2364 = vcmp.eq.s32.totalorder %v2264, 1
  %vm2365 = vcmp.eq.s32.totalorder %v2265, 1
  %vm2366 = vcmp.eq.s32.totalorder %v2266, 1
  %vm2367 = vcmp.eq.s32.totalorder %v2267, 1
  %vm2368 = vcmp.eq.s32.totalorder %v2268, 1
  %vm2369 = vcmp.eq.s32.totalorder %v2269, 1
  %vm2370 = vcmp.eq.s32.totalorder %v2270, 1
  %vm2371 = vcmp.eq.s32.totalorder %v2271, 1
  %vm2372 = vcmp.eq.s32.totalorder %v2272, 1
  %vm2373 = vcmp.eq.s32.totalorder %v2273, 1
  %vm2374 = vcmp.eq.s32.totalorder %v2274, 1
  %vm2375 = vcmp.eq.s32.totalorder %v2275, 1
  %vm2376 = vcmp.eq.s32.totalorder %v2276, 1
  %vm2377 = vcmp.eq.s32.totalorder %v2277, 1
  %vm2378 = vcmp.eq.s32.totalorder %v2278, 1
  %vm2379 = vcmp.eq.s32.totalorder %v2279, 1
  %vm2380 = vcmp.eq.s32.totalorder %v2280, 1
  %vm2381 = vcmp.eq.s32.totalorder %v2281, 1
  %v2382 = vsel %vm2282, %v1482, 0.0
  %v2383 = vsel %vm2283, %v1483, 0.0
  %v2384 = vsel %vm2284, %v1484, 0.0
  %v2385 = vsel %vm2285, %v1485, 0.0
  %v2386 = vsel %vm2286, %v1486, 0.0
  %v2387 = vsel %vm2287, %v1487, 0.0
  %v2388 = vsel %vm2288, %v1488, 0.0
  %v2389 = vsel %vm2289, %v1489, 0.0
  %v2390 = vsel %vm2290, %v1490, 0.0
  %v2391 = vsel %vm2291, %v1491, 0.0
  %v2392 = vsel %vm2292, %v1492, 0.0
  %v2393 = vsel %vm2293, %v1493, 0.0
  %v2394 = vsel %vm2294, %v1494, 0.0
  %v2395 = vsel %vm2295, %v1495, 0.0
  %v2396 = vsel %vm2296, %v1496, 0.0
  %v2397 = vsel %vm2297, %v1497, 0.0
  %v2398 = vsel %vm2298, %v1498, 0.0
  %v2399 = vsel %vm2299, %v1499, 0.0
  %v2400 = vsel %vm2300, %v1500, 0.0
  %v2401 = vsel %vm2301, %v1501, 0.0
  %v2402 = vsel %vm2302, %v1502, 0.0
  %v2403 = vsel %vm2303, %v1503, 0.0
  %v2404 = vsel %vm2304, %v1504, 0.0
  %v2405 = vsel %vm2305, %v1505, 0.0
  %v2406 = vsel %vm2306, %v1506, 0.0
  %v2407 = vsel %vm2307, %v1507, 0.0
  %v2408 = vsel %vm2308, %v1508, 0.0
  %v2409 = vsel %vm2309, %v1509, 0.0
  %v2410 = vsel %vm2310, %v1510, 0.0
  %v2411 = vsel %vm2311, %v1511, 0.0
  %v2412 = vsel %vm2312, %v1512, 0.0
  %v2413 = vsel %vm2313, %v1513, 0.0
  %v2414 = vsel %vm2314, %v1514, 0.0
  %v2415 = vsel %vm2315, %v1515, 0.0
  %v2416 = vsel %vm2316, %v1516, 0.0
  %v2417 = vsel %vm2317, %v1517, 0.0
  %v2418 = vsel %vm2318, %v1518, 0.0
  %v2419 = vsel %vm2319, %v1519, 0.0
  %v2420 = vsel %vm2320, %v1520, 0.0
  %v2421 = vsel %vm2321, %v1521, 0.0
  %v2422 = vsel %vm2322, %v1522, 0.0
  %v2423 = vsel %vm2323, %v1523, 0.0
  %v2424 = vsel %vm2324, %v1524, 0.0
  %v2425 = vsel %vm2325, %v1525, 0.0
  %v2426 = vsel %vm2326, %v1526, 0.0
  %v2427 = vsel %vm2327, %v1527, 0.0
  %v2428 = vsel %vm2328, %v1528, 0.0
  %v2429 = vsel %vm2329, %v1529, 0.0
  %v2430 = vsel %vm2330, %v1530, 0.0
  %v2431 = vsel %vm2331, %v1531, 0.0
  %v2432 = vsel %vm2332, %v1532, 0.0
  %v2433 = vsel %vm2333, %v1533, 0.0
  %v2434 = vsel %vm2334, %v1534, 0.0
  %v2435 = vsel %vm2335, %v1535, 0.0
  %v2436 = vsel %vm2336, %v1536, 0.0
  %v2437 = vsel %vm2337, %v1537, 0.0
  %v2438 = vsel %vm2338, %v1538, 0.0
  %v2439 = vsel %vm2339, %v1539, 0.0
  %v2440 = vsel %vm2340, %v1540, 0.0
  %v2441 = vsel %vm2341, %v1541, 0.0
  %v2442 = vsel %vm2342, %v1542, 0.0
  %v2443 = vsel %vm2343, %v1543, 0.0
  %v2444 = vsel %vm2344, %v1544, 0.0
  %v2445 = vsel %vm2345, %v1545, 0.0
  %v2446 = vsel %vm2346, %v1546, 0.0
  %v2447 = vsel %vm2347, %v1547, 0.0
  %v2448 = vsel %vm2348, %v1548, 0.0
  %v2449 = vsel %vm2349, %v1549, 0.0
  %v2450 = vsel %vm2350, %v1550, 0.0
  %v2451 = vsel %vm2351, %v1551, 0.0
  %v2452 = vsel %vm2352, %v1552, 0.0
  %v2453 = vsel %vm2353, %v1553, 0.0
  %v2454 = vsel %vm2354, %v1554, 0.0
  %v2455 = vsel %vm2355, %v1555, 0.0
  %v2456 = vsel %vm2356, %v1556, 0.0
  %v2457 = vsel %vm2357, %v1557, 0.0
  %v2458 = vsel %vm2358, %v1558, 0.0
  %v2459 = vsel %vm2359, %v1559, 0.0
  %v2460 = vsel %vm2360, %v1560, 0.0
  %v2461 = vsel %vm2361, %v1561, 0.0
  %v2462 = vsel %vm2362, %v1562, 0.0
  %v2463 = vsel %vm2363, %v1563, 0.0
  %v2464 = vsel %vm2364, %v1564, 0.0
  %v2465 = vsel %vm2365, %v1565, 0.0
  %v2466 = vsel %vm2366, %v1566, 0.0
  %v2467 = vsel %vm2367, %v1567, 0.0
  %v2468 = vsel %vm2368, %v1568, 0.0
  %v2469 = vsel %vm2369, %v1569, 0.0
  %v2470 = vsel %vm2370, %v1570, 0.0
  %v2471 = vsel %vm2371, %v1571, 0.0
  %v2472 = vsel %vm2372, %v1572, 0.0
  %v2473 = vsel %vm2373, %v1573, 0.0
  %v2474 = vsel %vm2374, %v1574, 0.0
  %v2475 = vsel %vm2375, %v1575, 0.0
  %v2476 = vsel %vm2376, %v1576, 0.0
  %v2477 = vsel %vm2377, %v1577, 0.0
  %v2478 = vsel %vm2378, %v1578, 0.0
  %v2479 = vsel %vm2379, %v1579, 0.0
  %v2480 = vsel %vm2380, %v1580, 0.0
  %v2481 = vsel %vm2381, %v1481, 0.0
  %2582 = vrot.lane.b32.xlu0 %v1481, 32
  %v2583 = vpop.permute.xlu0 %2582
  %2584 = vrot.lane.b32.xlu0 %v1482, 32
  %v2585 = vpop.permute.xlu0 %2584
  %2586 = vrot.lane.b32.xlu0 %v1483, 32
  %v2587 = vpop.permute.xlu0 %2586
  %2588 = vrot.lane.b32.xlu0 %v1484, 32
  %v2589 = vpop.permute.xlu0 %2588
  %2590 = vrot.lane.b32.xlu0 %v1485, 32
  %v2591 = vpop.permute.xlu0 %2590
  %2592 = vrot.lane.b32.xlu0 %v1486, 32
  %v2593 = vpop.permute.xlu0 %2592
  %2594 = vrot.lane.b32.xlu0 %v1487, 32
  %v2595 = vpop.permute.xlu0 %2594
  %2596 = vrot.lane.b32.xlu0 %v1488, 32
  %v2597 = vpop.permute.xlu0 %2596
  %2598 = vrot.lane.b32.xlu0 %v1489, 32
  %v2599 = vpop.permute.xlu0 %2598
  %2600 = vrot.lane.b32.xlu0 %v1490, 32
  %v2601 = vpop.permute.xlu0 %2600
  %2602 = vrot.lane.b32.xlu0 %v1491, 32
  %v2603 = vpop.permute.xlu0 %2602
  %2604 = vrot.lane.b32.xlu0 %v1492, 32
  %v2605 = vpop.permute.xlu0 %2604
  %2606 = vrot.lane.b32.xlu0 %v1493, 32
  %v2607 = vpop.permute.xlu0 %2606
  %2608 = vrot.lane.b32.xlu0 %v1494, 32
  %v2609 = vpop.permute.xlu0 %2608
  %2610 = vrot.lane.b32.xlu0 %v1495, 32
  %v2611 = vpop.permute.xlu0 %2610
  %2612 = vrot.lane.b32.xlu0 %v1496, 32
  %v2613 = vpop.permute.xlu0 %2612
  %2614 = vrot.lane.b32.xlu0 %v1497, 32
  %v2615 = vpop.permute.xlu0 %2614
  %2616 = vrot.lane.b32.xlu0 %v1498, 32
  %v2617 = vpop.permute.xlu0 %2616
  %2618 = vrot.lane.b32.xlu0 %v1499, 32
  %v2619 = vpop.permute.xlu0 %2618
  %2620 = vrot.lane.b32.xlu0 %v1500, 32
  %v2621 = vpop.permute.xlu0 %2620
  %2622 = vrot.lane.b32.xlu0 %v1501, 32
  %v2623 = vpop.permute.xlu0 %2622
  %2624 = vrot.lane.b32.xlu0 %v1502, 32
  %v2625 = vpop.permute.xlu0 %2624
  %2626 = vrot.lane.b32.xlu0 %v1503, 32
  %v2627 = vpop.permute.xlu0 %2626
  %2628 = vrot.lane.b32.xlu0 %v1504, 32
  %v2629 = vpop.permute.xlu0 %2628
  %2630 = vrot.lane.b32.xlu0 %v1505, 32
  %v2631 = vpop.permute.xlu0 %2630
  %2632 = vrot.lane.b32.xlu0 %v1506, 32
  %v2633 = vpop.permute.xlu0 %2632
  %2634 = vrot.lane.b32.xlu0 %v1507, 32
  %v2635 = vpop.permute.xlu0 %2634
  %2636 = vrot.lane.b32.xlu0 %v1508, 32
  %v2637 = vpop.permute.xlu0 %2636
  %2638 = vrot.lane.b32.xlu0 %v1509, 32
  %v2639 = vpop.permute.xlu0 %2638
  %2640 = vrot.lane.b32.xlu0 %v1510, 32
  %v2641 = vpop.permute.xlu0 %2640
  %2642 = vrot.lane.b32.xlu0 %v1511, 32
  %v2643 = vpop.permute.xlu0 %2642
  %2644 = vrot.lane.b32.xlu0 %v1512, 32
  %v2645 = vpop.permute.xlu0 %2644
  %2646 = vrot.lane.b32.xlu0 %v1513, 32
  %v2647 = vpop.permute.xlu0 %2646
  %2648 = vrot.lane.b32.xlu0 %v1514, 32
  %v2649 = vpop.permute.xlu0 %2648
  %2650 = vrot.lane.b32.xlu0 %v1515, 32
  %v2651 = vpop.permute.xlu0 %2650
  %2652 = vrot.lane.b32.xlu0 %v1516, 32
  %v2653 = vpop.permute.xlu0 %2652
  %2654 = vrot.lane.b32.xlu0 %v1517, 32
  %v2655 = vpop.permute.xlu0 %2654
  %2656 = vrot.lane.b32.xlu0 %v1518, 32
  %v2657 = vpop.permute.xlu0 %2656
  %2658 = vrot.lane.b32.xlu0 %v1519, 32
  %v2659 = vpop.permute.xlu0 %2658
  %2660 = vrot.lane.b32.xlu0 %v1520, 32
  %v2661 = vpop.permute.xlu0 %2660
  %2662 = vrot.lane.b32.xlu0 %v1521, 32
  %v2663 = vpop.permute.xlu0 %2662
  %2664 = vrot.lane.b32.xlu0 %v1522, 32
  %v2665 = vpop.permute.xlu0 %2664
  %2666 = vrot.lane.b32.xlu0 %v1523, 32
  %v2667 = vpop.permute.xlu0 %2666
  %2668 = vrot.lane.b32.xlu0 %v1524, 32
  %v2669 = vpop.permute.xlu0 %2668
  %2670 = vrot.lane.b32.xlu0 %v1525, 32
  %v2671 = vpop.permute.xlu0 %2670
  %2672 = vrot.lane.b32.xlu0 %v1526, 32
  %v2673 = vpop.permute.xlu0 %2672
  %2674 = vrot.lane.b32.xlu0 %v1527, 32
  %v2675 = vpop.permute.xlu0 %2674
  %2676 = vrot.lane.b32.xlu0 %v1528, 32
  %v2677 = vpop.permute.xlu0 %2676
  %2678 = vrot.lane.b32.xlu0 %v1529, 32
  %v2679 = vpop.permute.xlu0 %2678
  %2680 = vrot.lane.b32.xlu0 %v1530, 32
  %v2681 = vpop.permute.xlu0 %2680
  %2682 = vrot.lane.b32.xlu0 %v1531, 32
  %v2683 = vpop.permute.xlu0 %2682
  %2684 = vrot.lane.b32.xlu0 %v1532, 32
  %v2685 = vpop.permute.xlu0 %2684
  %2686 = vrot.lane.b32.xlu0 %v1533, 32
  %v2687 = vpop.permute.xlu0 %2686
  %2688 = vrot.lane.b32.xlu0 %v1534, 32
  %v2689 = vpop.permute.xlu0 %2688
  %2690 = vrot.lane.b32.xlu0 %v1535, 32
  %v2691 = vpop.permute.xlu0 %2690
  %2692 = vrot.lane.b32.xlu0 %v1536, 32
  %v2693 = vpop.permute.xlu0 %2692
  %2694 = vrot.lane.b32.xlu0 %v1537, 32
  %v2695 = vpop.permute.xlu0 %2694
  %2696 = vrot.lane.b32.xlu0 %v1538, 32
  %v2697 = vpop.permute.xlu0 %2696
  %2698 = vrot.lane.b32.xlu0 %v1539, 32
  %v2699 = vpop.permute.xlu0 %2698
  %2700 = vrot.lane.b32.xlu0 %v1540, 32
  %v2701 = vpop.permute.xlu0 %2700
  %2702 = vrot.lane.b32.xlu0 %v1541, 32
  %v2703 = vpop.permute.xlu0 %2702
  %2704 = vrot.lane.b32.xlu0 %v1542, 32
  %v2705 = vpop.permute.xlu0 %2704
  %2706 = vrot.lane.b32.xlu0 %v1543, 32
  %v2707 = vpop.permute.xlu0 %2706
  %2708 = vrot.lane.b32.xlu0 %v1544, 32
  %v2709 = vpop.permute.xlu0 %2708
  %2710 = vrot.lane.b32.xlu0 %v1545, 32
  %v2711 = vpop.permute.xlu0 %2710
  %2712 = vrot.lane.b32.xlu0 %v1546, 32
  %v2713 = vpop.permute.xlu0 %2712
  %2714 = vrot.lane.b32.xlu0 %v1547, 32
  %v2715 = vpop.permute.xlu0 %2714
  %2716 = vrot.lane.b32.xlu0 %v1548, 32
  %v2717 = vpop.permute.xlu0 %2716
  %2718 = vrot.lane.b32.xlu0 %v1549, 32
  %v2719 = vpop.permute.xlu0 %2718
  %2720 = vrot.lane.b32.xlu0 %v1550, 32
  %v2721 = vpop.permute.xlu0 %2720
  %2722 = vrot.lane.b32.xlu0 %v1551, 32
  %v2723 = vpop.permute.xlu0 %2722
  %2724 = vrot.lane.b32.xlu0 %v1552, 32
  %v2725 = vpop.permute.xlu0 %2724
  %2726 = vrot.lane.b32.xlu0 %v1553, 32
  %v2727 = vpop.permute.xlu0 %2726
  %2728 = vrot.lane.b32.xlu0 %v1554, 32
  %v2729 = vpop.permute.xlu0 %2728
  %2730 = vrot.lane.b32.xlu0 %v1555, 32
  %v2731 = vpop.permute.xlu0 %2730
  %2732 = vrot.lane.b32.xlu0 %v1556, 32
  %v2733 = vpop.permute.xlu0 %2732
  %2734 = vrot.lane.b32.xlu0 %v1557, 32
  %v2735 = vpop.permute.xlu0 %2734
  %2736 = vrot.lane.b32.xlu0 %v1558, 32
  %v2737 = vpop.permute.xlu0 %2736
  %2738 = vrot.lane.b32.xlu0 %v1559, 32
  %v2739 = vpop.permute.xlu0 %2738
  %2740 = vrot.lane.b32.xlu0 %v1560, 32
  %v2741 = vpop.permute.xlu0 %2740
  %2742 = vrot.lane.b32.xlu0 %v1561, 32
  %v2743 = vpop.permute.xlu0 %2742
  %2744 = vrot.lane.b32.xlu0 %v1562, 32
  %v2745 = vpop.permute.xlu0 %2744
  %2746 = vrot.lane.b32.xlu0 %v1563, 32
  %v2747 = vpop.permute.xlu0 %2746
  %2748 = vrot.lane.b32.xlu0 %v1564, 32
  %v2749 = vpop.permute.xlu0 %2748
  %2750 = vrot.lane.b32.xlu0 %v1565, 32
  %v2751 = vpop.permute.xlu0 %2750
  %2752 = vrot.lane.b32.xlu0 %v1566, 32
  %v2753 = vpop.permute.xlu0 %2752
  %2754 = vrot.lane.b32.xlu0 %v1567, 32
  %v2755 = vpop.permute.xlu0 %2754
  %2756 = vrot.lane.b32.xlu0 %v1568, 32
  %v2757 = vpop.permute.xlu0 %2756
  %2758 = vrot.lane.b32.xlu0 %v1569, 32
  %v2759 = vpop.permute.xlu0 %2758
  %2760 = vrot.lane.b32.xlu0 %v1570, 32
  %v2761 = vpop.permute.xlu0 %2760
  %2762 = vrot.lane.b32.xlu0 %v1571, 32
  %v2763 = vpop.permute.xlu0 %2762
  %2764 = vrot.lane.b32.xlu0 %v1572, 32
  %v2765 = vpop.permute.xlu0 %2764
  %2766 = vrot.lane.b32.xlu0 %v1573, 32
  %v2767 = vpop.permute.xlu0 %2766
  %2768 = vrot.lane.b32.xlu0 %v1574, 32
  %v2769 = vpop.permute.xlu0 %2768
  %2770 = vrot.lane.b32.xlu0 %v1575, 32
  %v2771 = vpop.permute.xlu0 %2770
  %2772 = vrot.lane.b32.xlu0 %v1576, 32
  %v2773 = vpop.permute.xlu0 %2772
  %2774 = vrot.lane.b32.xlu0 %v1577, 32
  %v2775 = vpop.permute.xlu0 %2774
  %2776 = vrot.lane.b32.xlu0 %v1578, 32
  %v2777 = vpop.permute.xlu0 %2776
  %2778 = vrot.lane.b32.xlu0 %v1579, 32
  %v2779 = vpop.permute.xlu0 %2778
  %2780 = vrot.lane.b32.xlu0 %v1580, 32
  %v2781 = vpop.permute.xlu0 %2780
  %2982 = vrot.lane.b32.xlu0 %v2382, 64
  %v2983 = vpop.permute.xlu0 %2982
  %2984 = vrot.lane.b32.xlu0 %v2383, 64
  %v2985 = vpop.permute.xlu0 %2984
  %2986 = vrot.lane.b32.xlu0 %v2384, 64
  %v2987 = vpop.permute.xlu0 %2986
  %2988 = vrot.lane.b32.xlu0 %v2385, 64
  %v2989 = vpop.permute.xlu0 %2988
  %2990 = vrot.lane.b32.xlu0 %v2386, 64
  %v2991 = vpop.permute.xlu0 %2990
  %2992 = vrot.lane.b32.xlu0 %v2387, 64
  %v2993 = vpop.permute.xlu0 %2992
  %2994 = vrot.lane.b32.xlu0 %v2388, 64
  %v2995 = vpop.permute.xlu0 %2994
  %2996 = vrot.lane.b32.xlu0 %v2389, 64
  %v2997 = vpop.permute.xlu0 %2996
  %2998 = vrot.lane.b32.xlu0 %v2390, 64
  %v2999 = vpop.permute.xlu0 %2998
  %3000 = vrot.lane.b32.xlu0 %v2391, 64
  %v3001 = vpop.permute.xlu0 %3000
  %3002 = vrot.lane.b32.xlu0 %v2392, 64
  %v3003 = vpop.permute.xlu0 %3002
  %3004 = vrot.lane.b32.xlu0 %v2393, 64
  %v3005 = vpop.permute.xlu0 %3004
  %3006 = vrot.lane.b32.xlu0 %v2394, 64
  %v3007 = vpop.permute.xlu0 %3006
  %3008 = vrot.lane.b32.xlu0 %v2395, 64
  %v3009 = vpop.permute.xlu0 %3008
  %3010 = vrot.lane.b32.xlu0 %v2396, 64
  %v3011 = vpop.permute.xlu0 %3010
  %3012 = vrot.lane.b32.xlu0 %v2397, 64
  %v3013 = vpop.permute.xlu0 %3012
  %3014 = vrot.lane.b32.xlu0 %v2398, 64
  %v3015 = vpop.permute.xlu0 %3014
  %3016 = vrot.lane.b32.xlu0 %v2399, 64
  %v3017 = vpop.permute.xlu0 %3016
  %3018 = vrot.lane.b32.xlu0 %v2400, 64
  %v3019 = vpop.permute.xlu0 %3018
  %3020 = vrot.lane.b32.xlu0 %v2401, 64
  %v3021 = vpop.permute.xlu0 %3020
  %3022 = vrot.lane.b32.xlu0 %v2402, 64
  %v3023 = vpop.permute.xlu0 %3022
  %3024 = vrot.lane.b32.xlu0 %v2403, 64
  %v3025 = vpop.permute.xlu0 %3024
  %3026 = vrot.lane.b32.xlu0 %v2404, 64
  %v3027 = vpop.permute.xlu0 %3026
  %3028 = vrot.lane.b32.xlu0 %v2405, 64
  %v3029 = vpop.permute.xlu0 %3028
  %3030 = vrot.lane.b32.xlu0 %v2406, 64
  %v3031 = vpop.permute.xlu0 %3030
  %3032 = vrot.lane.b32.xlu0 %v2407, 64
  %v3033 = vpop.permute.xlu0 %3032
  %3034 = vrot.lane.b32.xlu0 %v2408, 64
  %v3035 = vpop.permute.xlu0 %3034
  %3036 = vrot.lane.b32.xlu0 %v2409, 64
  %v3037 = vpop.permute.xlu0 %3036
  %3038 = vrot.lane.b32.xlu0 %v2410, 64
  %v3039 = vpop.permute.xlu0 %3038
  %3040 = vrot.lane.b32.xlu0 %v2411, 64
  %v3041 = vpop.permute.xlu0 %3040
  %3042 = vrot.lane.b32.xlu0 %v2412, 64
  %v3043 = vpop.permute.xlu0 %3042
  %3044 = vrot.lane.b32.xlu0 %v2413, 64
  %v3045 = vpop.permute.xlu0 %3044
  %3046 = vrot.lane.b32.xlu0 %v2414, 64
  %v3047 = vpop.permute.xlu0 %3046
  %3048 = vrot.lane.b32.xlu0 %v2415, 64
  %v3049 = vpop.permute.xlu0 %3048
  %3050 = vrot.lane.b32.xlu0 %v2416, 64
  %v3051 = vpop.permute.xlu0 %3050
  %3052 = vrot.lane.b32.xlu0 %v2417, 64
  %v3053 = vpop.permute.xlu0 %3052
  %3054 = vrot.lane.b32.xlu0 %v2418, 64
  %v3055 = vpop.permute.xlu0 %3054
  %3056 = vrot.lane.b32.xlu0 %v2419, 64
  %v3057 = vpop.permute.xlu0 %3056
  %3058 = vrot.lane.b32.xlu0 %v2420, 64
  %v3059 = vpop.permute.xlu0 %3058
  %3060 = vrot.lane.b32.xlu0 %v2421, 64
  %v3061 = vpop.permute.xlu0 %3060
  %3062 = vrot.lane.b32.xlu0 %v2422, 64
  %v3063 = vpop.permute.xlu0 %3062
  %3064 = vrot.lane.b32.xlu0 %v2423, 64
  %v3065 = vpop.permute.xlu0 %3064
  %3066 = vrot.lane.b32.xlu0 %v2424, 64
  %v3067 = vpop.permute.xlu0 %3066
  %3068 = vrot.lane.b32.xlu0 %v2425, 64
  %v3069 = vpop.permute.xlu0 %3068
  %3070 = vrot.lane.b32.xlu0 %v2426, 64
  %v3071 = vpop.permute.xlu0 %3070
  %3072 = vrot.lane.b32.xlu0 %v2427, 64
  %v3073 = vpop.permute.xlu0 %3072
  %3074 = vrot.lane.b32.xlu0 %v2428, 64
  %v3075 = vpop.permute.xlu0 %3074
  %3076 = vrot.lane.b32.xlu0 %v2429, 64
  %v3077 = vpop.permute.xlu0 %3076
  %3078 = vrot.lane.b32.xlu0 %v2430, 64
  %v3079 = vpop.permute.xlu0 %3078
  %3080 = vrot.lane.b32.xlu0 %v2431, 64
  %v3081 = vpop.permute.xlu0 %3080
  %3082 = vrot.lane.b32.xlu0 %v2432, 64
  %v3083 = vpop.permute.xlu0 %3082
  %3084 = vrot.lane.b32.xlu0 %v2433, 64
  %v3085 = vpop.permute.xlu0 %3084
  %3086 = vrot.lane.b32.xlu0 %v2434, 64
  %v3087 = vpop.permute.xlu0 %3086
  %3088 = vrot.lane.b32.xlu0 %v2435, 64
  %v3089 = vpop.permute.xlu0 %3088
  %3090 = vrot.lane.b32.xlu0 %v2436, 64
  %v3091 = vpop.permute.xlu0 %3090
  %3092 = vrot.lane.b32.xlu0 %v2437, 64
  %v3093 = vpop.permute.xlu0 %3092
  %3094 = vrot.lane.b32.xlu0 %v2438, 64
  %v3095 = vpop.permute.xlu0 %3094
  %3096 = vrot.lane.b32.xlu0 %v2439, 64
  %v3097 = vpop.permute.xlu0 %3096
  %3098 = vrot.lane.b32.xlu0 %v2440, 64
  %v3099 = vpop.permute.xlu0 %3098
  %3100 = vrot.lane.b32.xlu0 %v2441, 64
  %v3101 = vpop.permute.xlu0 %3100
  %3102 = vrot.lane.b32.xlu0 %v2442, 64
  %v3103 = vpop.permute.xlu0 %3102
  %3104 = vrot.lane.b32.xlu0 %v2443, 64
  %v3105 = vpop.permute.xlu0 %3104
  %3106 = vrot.lane.b32.xlu0 %v2444, 64
  %v3107 = vpop.permute.xlu0 %3106
  %3108 = vrot.lane.b32.xlu0 %v2445, 64
  %v3109 = vpop.permute.xlu0 %3108
  %3110 = vrot.lane.b32.xlu0 %v2446, 64
  %v3111 = vpop.permute.xlu0 %3110
  %3112 = vrot.lane.b32.xlu0 %v2447, 64
  %v3113 = vpop.permute.xlu0 %3112
  %3114 = vrot.lane.b32.xlu0 %v2448, 64
  %v3115 = vpop.permute.xlu0 %3114
  %3116 = vrot.lane.b32.xlu0 %v2449, 64
  %v3117 = vpop.permute.xlu0 %3116
  %3118 = vrot.lane.b32.xlu0 %v2450, 64
  %v3119 = vpop.permute.xlu0 %3118
  %3120 = vrot.lane.b32.xlu0 %v2451, 64
  %v3121 = vpop.permute.xlu0 %3120
  %3122 = vrot.lane.b32.xlu0 %v2452, 64
  %v3123 = vpop.permute.xlu0 %3122
  %3124 = vrot.lane.b32.xlu0 %v2453, 64
  %v3125 = vpop.permute.xlu0 %3124
  %3126 = vrot.lane.b32.xlu0 %v2454, 64
  %v3127 = vpop.permute.xlu0 %3126
  %3128 = vrot.lane.b32.xlu0 %v2455, 64
  %v3129 = vpop.permute.xlu0 %3128
  %3130 = vrot.lane.b32.xlu0 %v2456, 64
  %v3131 = vpop.permute.xlu0 %3130
  %3132 = vrot.lane.b32.xlu0 %v2457, 64
  %v3133 = vpop.permute.xlu0 %3132
  %3134 = vrot.lane.b32.xlu0 %v2458, 64
  %v3135 = vpop.permute.xlu0 %3134
  %3136 = vrot.lane.b32.xlu0 %v2459, 64
  %v3137 = vpop.permute.xlu0 %3136
  %3138 = vrot.lane.b32.xlu0 %v2460, 64
  %v3139 = vpop.permute.xlu0 %3138
  %3140 = vrot.lane.b32.xlu0 %v2461, 64
  %v3141 = vpop.permute.xlu0 %3140
  %3142 = vrot.lane.b32.xlu0 %v2462, 64
  %v3143 = vpop.permute.xlu0 %3142
  %3144 = vrot.lane.b32.xlu0 %v2463, 64
  %v3145 = vpop.permute.xlu0 %3144
  %3146 = vrot.lane.b32.xlu0 %v2464, 64
  %v3147 = vpop.permute.xlu0 %3146
  %3148 = vrot.lane.b32.xlu0 %v2465, 64
  %v3149 = vpop.permute.xlu0 %3148
  %3150 = vrot.lane.b32.xlu0 %v2466, 64
  %v3151 = vpop.permute.xlu0 %3150
  %3152 = vrot.lane.b32.xlu0 %v2467, 64
  %v3153 = vpop.permute.xlu0 %3152
  %3154 = vrot.lane.b32.xlu0 %v2468, 64
  %v3155 = vpop.permute.xlu0 %3154
  %3156 = vrot.lane.b32.xlu0 %v2469, 64
  %v3157 = vpop.permute.xlu0 %3156
  %3158 = vrot.lane.b32.xlu0 %v2470, 64
  %v3159 = vpop.permute.xlu0 %3158
  %3160 = vrot.lane.b32.xlu0 %v2471, 64
  %v3161 = vpop.permute.xlu0 %3160
  %3162 = vrot.lane.b32.xlu0 %v2472, 64
  %v3163 = vpop.permute.xlu0 %3162
  %3164 = vrot.lane.b32.xlu0 %v2473, 64
  %v3165 = vpop.permute.xlu0 %3164
  %3166 = vrot.lane.b32.xlu0 %v2474, 64
  %v3167 = vpop.permute.xlu0 %3166
  %3168 = vrot.lane.b32.xlu0 %v2475, 64
  %v3169 = vpop.permute.xlu0 %3168
  %3170 = vrot.lane.b32.xlu0 %v2476, 64
  %v3171 = vpop.permute.xlu0 %3170
  %3172 = vrot.lane.b32.xlu0 %v2477, 64
  %v3173 = vpop.permute.xlu0 %3172
  %3174 = vrot.lane.b32.xlu0 %v2478, 64
  %v3175 = vpop.permute.xlu0 %3174
  %3176 = vrot.lane.b32.xlu0 %v2479, 64
  %v3177 = vpop.permute.xlu0 %3176
  %3178 = vrot.lane.b32.xlu0 %v2480, 64
  %v3179 = vpop.permute.xlu0 %3178
  %3180 = vrot.lane.b32.xlu0 %v2481, 64
  %v3181 = vpop.permute.xlu0 %3180
  %vm3282 = vcmask 261120
  %v3283 = vsel %vm3282, %v1982, %v2583
  %v3284 = vsel %vm3282, %v1983, %v2585
  %v3285 = vsel %vm3282, %v1984, %v2587
  %v3286 = vsel %vm3282, %v1985, %v2589
  %v3287 = vsel %vm3282, %v1986, %v2591
  %v3288 = vsel %vm3282, %v1987, %v2593
  %v3289 = vsel %vm3282, %v1988, %v2595
  %v3290 = vsel %vm3282, %v1989, %v2597
  %v3291 = vsel %vm3282, %v1990, %v2599
  %v3292 = vsel %vm3282, %v1991, %v2601
  %v3293 = vsel %vm3282, %v1992, %v2603
  %v3294 = vsel %vm3282, %v1993, %v2605
  %v3295 = vsel %vm3282, %v1994, %v2607
  %v3296 = vsel %vm3282, %v1995, %v2609
  %v3297 = vsel %vm3282, %v1996, %v2611
  %v3298 = vsel %vm3282, %v1997, %v2613
  %v3299 = vsel %vm3282, %v1998, %v2615
  %v3300 = vsel %vm3282, %v1999, %v2617
  %v3301 = vsel %vm3282, %v2000, %v2619
  %v3302 = vsel %vm3282, %v2001, %v2621
  %v3303 = vsel %vm3282, %v2002, %v2623
  %v3304 = vsel %vm3282, %v2003, %v2625
  %v3305 = vsel %vm3282, %v2004, %v2627
  %v3306 = vsel %vm3282, %v2005, %v2629
  %v3307 = vsel %vm3282, %v2006, %v2631
  %v3308 = vsel %vm3282, %v2007, %v2633
  %v3309 = vsel %vm3282, %v2008, %v2635
  %v3310 = vsel %vm3282, %v2009, %v2637
  %v3311 = vsel %vm3282, %v2010, %v2639
  %v3312 = vsel %vm3282, %v2011, %v2641
  %v3313 = vsel %vm3282, %v2012, %v2643
  %v3314 = vsel %vm3282, %v2013, %v2645
  %v3315 = vsel %vm3282, %v2014, %v2647
  %v3316 = vsel %vm3282, %v2015, %v2649
  %v3317 = vsel %vm3282, %v2016, %v2651
  %v3318 = vsel %vm3282, %v2017, %v2653
  %v3319 = vsel %vm3282, %v2018, %v2655
  %v3320 = vsel %vm3282, %v2019, %v2657
  %v3321 = vsel %vm3282, %v2020, %v2659
  %v3322 = vsel %vm3282, %v2021, %v2661
  %v3323 = vsel %vm3282, %v2022, %v2663
  %v3324 = vsel %vm3282, %v2023, %v2665
  %v3325 = vsel %vm3282, %v2024, %v2667
  %v3326 = vsel %vm3282, %v2025, %v2669
  %v3327 = vsel %vm3282, %v2026, %v2671
  %v3328 = vsel %vm3282, %v2027, %v2673
  %v3329 = vsel %vm3282, %v2028, %v2675
  %v3330 = vsel %vm3282, %v2029, %v2677
  %v3331 = vsel %vm3282, %v2030, %v2679
  %v3332 = vsel %vm3282, %v2031, %v2681
  %v3333 = vsel %vm3282, %v2032, %v2683
  %v3334 = vsel %vm3282, %v2033, %v2685
  %v3335 = vsel %vm3282, %v2034, %v2687
  %v3336 = vsel %vm3282, %v2035, %v2689
  %v3337 = vsel %vm3282, %v2036, %v2691
  %v3338 = vsel %vm3282, %v2037, %v2693
  %v3339 = vsel %vm3282, %v2038, %v2695
  %v3340 = vsel %vm3282, %v2039, %v2697
  %v3341 = vsel %vm3282, %v2040, %v2699
  %v3342 = vsel %vm3282, %v2041, %v2701
  %v3343 = vsel %vm3282, %v2042, %v2703
  %v3344 = vsel %vm3282, %v2043, %v2705
  %v3345 = vsel %vm3282, %v2044, %v2707
  %v3346 = vsel %vm3282, %v2045, %v2709
  %v3347 = vsel %vm3282, %v2046, %v2711
  %v3348 = vsel %vm3282, %v2047, %v2713
  %v3349 = vsel %vm3282, %v2048, %v2715
  %v3350 = vsel %vm3282, %v2049, %v2717
  %v3351 = vsel %vm3282, %v2050, %v2719
  %v3352 = vsel %vm3282, %v2051, %v2721
  %v3353 = vsel %vm3282, %v2052, %v2723
  %v3354 = vsel %vm3282, %v2053, %v2725
  %v3355 = vsel %vm3282, %v2054, %v2727
  %v3356 = vsel %vm3282, %v2055, %v2729
  %v3357 = vsel %vm3282, %v2056, %v2731
  %v3358 = vsel %vm3282, %v2057, %v2733
  %v3359 = vsel %vm3282, %v2058, %v2735
  %v3360 = vsel %vm3282, %v2059, %v2737
  %v3361 = vsel %vm3282, %v2060, %v2739
  %v3362 = vsel %vm3282, %v2061, %v2741
  %v3363 = vsel %vm3282, %v2062, %v2743
  %v3364 = vsel %vm3282, %v2063, %v2745
  %v3365 = vsel %vm3282, %v2064, %v2747
  %v3366 = vsel %vm3282, %v2065, %v2749
  %v3367 = vsel %vm3282, %v2066, %v2751
  %v3368 = vsel %vm3282, %v2067, %v2753
  %v3369 = vsel %vm3282, %v2068, %v2755
  %v3370 = vsel %vm3282, %v2069, %v2757
  %v3371 = vsel %vm3282, %v2070, %v2759
  %v3372 = vsel %vm3282, %v2071, %v2761
  %v3373 = vsel %vm3282, %v2072, %v2763
  %v3374 = vsel %vm3282, %v2073, %v2765
  %v3375 = vsel %vm3282, %v2074, %v2767
  %v3376 = vsel %vm3282, %v2075, %v2769
  %v3377 = vsel %vm3282, %v2076, %v2771
  %v3378 = vsel %vm3282, %v2077, %v2773
  %v3379 = vsel %vm3282, %v2078, %v2775
  %v3380 = vsel %vm3282, %v2079, %v2777
  %v3381 = vsel %vm3282, %v2080, %v2779
  %v3382 = vsel %vm3282, %v2081, %v2781
  %vm3383 = vcmask 523264
  %v3384 = vsel %vm3383, %v3283, %v2983
  %v3385 = vsel %vm3383, %v3284, %v2985
  %v3386 = vsel %vm3383, %v3285, %v2987
  %v3387 = vsel %vm3383, %v3286, %v2989
  %v3388 = vsel %vm3383, %v3287, %v2991
  %v3389 = vsel %vm3383, %v3288, %v2993
  %v3390 = vsel %vm3383, %v3289, %v2995
  %v3391 = vsel %vm3383, %v3290, %v2997
  %v3392 = vsel %vm3383, %v3291, %v2999
  %v3393 = vsel %vm3383, %v3292, %v3001
  %v3394 = vsel %vm3383, %v3293, %v3003
  %v3395 = vsel %vm3383, %v3294, %v3005
  %v3396 = vsel %vm3383, %v3295, %v3007
  %v3397 = vsel %vm3383, %v3296, %v3009
  %v3398 = vsel %vm3383, %v3297, %v3011
  %v3399 = vsel %vm3383, %v3298, %v3013
  %v3400 = vsel %vm3383, %v3299, %v3015
  %v3401 = vsel %vm3383, %v3300, %v3017
  %v3402 = vsel %vm3383, %v3301, %v3019
  %v3403 = vsel %vm3383, %v3302, %v3021
  %v3404 = vsel %vm3383, %v3303, %v3023
  %v3405 = vsel %vm3383, %v3304, %v3025
  %v3406 = vsel %vm3383, %v3305, %v3027
  %v3407 = vsel %vm3383, %v3306, %v3029
  %v3408 = vsel %vm3383, %v3307, %v3031
  %v3409 = vsel %vm3383, %v3308, %v3033
  %v3410 = vsel %vm3383, %v3309, %v3035
  %v3411 = vsel %vm3383, %v3310, %v3037
  %v3412 = vsel %vm3383, %v3311, %v3039
  %v3413 = vsel %vm3383, %v3312, %v3041
  %v3414 = vsel %vm3383, %v3313, %v3043
  %v3415 = vsel %vm3383, %v3314, %v3045
  %v3416 = vsel %vm3383, %v3315, %v3047
  %v3417 = vsel %vm3383, %v3316, %v3049
  %v3418 = vsel %vm3383, %v3317, %v3051
  %v3419 = vsel %vm3383, %v3318, %v3053
  %v3420 = vsel %vm3383, %v3319, %v3055
  %v3421 = vsel %vm3383, %v3320, %v3057
  %v3422 = vsel %vm3383, %v3321, %v3059
  %v3423 = vsel %vm3383, %v3322, %v3061
  %v3424 = vsel %vm3383, %v3323, %v3063
  %v3425 = vsel %vm3383, %v3324, %v3065
  %v3426 = vsel %vm3383, %v3325, %v3067
  %v3427 = vsel %vm3383, %v3326, %v3069
  %v3428 = vsel %vm3383, %v3327, %v3071
  %v3429 = vsel %vm3383, %v3328, %v3073
  %v3430 = vsel %vm3383, %v3329, %v3075
  %v3431 = vsel %vm3383, %v3330, %v3077
  %v3432 = vsel %vm3383, %v3331, %v3079
  %v3433 = vsel %vm3383, %v3332, %v3081
  %v3434 = vsel %vm3383, %v3333, %v3083
  %v3435 = vsel %vm3383, %v3334, %v3085
  %v3436 = vsel %vm3383, %v3335, %v3087
  %v3437 = vsel %vm3383, %v3336, %v3089
  %v3438 = vsel %vm3383, %v3337, %v3091
  %v3439 = vsel %vm3383, %v3338, %v3093
  %v3440 = vsel %vm3383, %v3339, %v3095
  %v3441 = vsel %vm3383, %v3340, %v3097
  %v3442 = vsel %vm3383, %v3341, %v3099
  %v3443 = vsel %vm3383, %v3342, %v3101
  %v3444 = vsel %vm3383, %v3343, %v3103
  %v3445 = vsel %vm3383, %v3344, %v3105
  %v3446 = vsel %vm3383, %v3345, %v3107
  %v3447 = vsel %vm3383, %v3346, %v3109
  %v3448 = vsel %vm3383, %v3347, %v3111
  %v3449 = vsel %vm3383, %v3348, %v3113
  %v3450 = vsel %vm3383, %v3349, %v3115
  %v3451 = vsel %vm3383, %v3350, %v3117
  %v3452 = vsel %vm3383, %v3351, %v3119
  %v3453 = vsel %vm3383, %v3352, %v3121
  %v3454 = vsel %vm3383, %v3353, %v3123
  %v3455 = vsel %vm3383, %v3354, %v3125
  %v3456 = vsel %vm3383, %v3355, %v3127
  %v3457 = vsel %vm3383, %v3356, %v3129
  %v3458 = vsel %vm3383, %v3357, %v3131
  %v3459 = vsel %vm3383, %v3358, %v3133
  %v3460 = vsel %vm3383, %v3359, %v3135
  %v3461 = vsel %vm3383, %v3360, %v3137
  %v3462 = vsel %vm3383, %v3361, %v3139
  %v3463 = vsel %vm3383, %v3362, %v3141
  %v3464 = vsel %vm3383, %v3363, %v3143
  %v3465 = vsel %vm3383, %v3364, %v3145
  %v3466 = vsel %vm3383, %v3365, %v3147
  %v3467 = vsel %vm3383, %v3366, %v3149
  %v3468 = vsel %vm3383, %v3367, %v3151
  %v3469 = vsel %vm3383, %v3368, %v3153
  %v3470 = vsel %vm3383, %v3369, %v3155
  %v3471 = vsel %vm3383, %v3370, %v3157
  %v3472 = vsel %vm3383, %v3371, %v3159
  %v3473 = vsel %vm3383, %v3372, %v3161
  %v3474 = vsel %vm3383, %v3373, %v3163
  %v3475 = vsel %vm3383, %v3374, %v3165
  %v3476 = vsel %vm3383, %v3375, %v3167
  %v3477 = vsel %vm3383, %v3376, %v3169
  %v3478 = vsel %vm3383, %v3377, %v3171
  %v3479 = vsel %vm3383, %v3378, %v3173
  %v3480 = vsel %vm3383, %v3379, %v3175
  %v3481 = vsel %vm3383, %v3380, %v3177
  %v3482 = vsel %vm3383, %v3381, %v3179
  %v3483 = vsel %vm3383, %v3382, %v3181
  %v3484 = vpack.c.bf16 %v3385, %v3384
  %v3485 = vpack.c.bf16 %v3387, %v3386
  %v3486 = vpack.c.bf16 %v3389, %v3388
  %v3487 = vpack.c.bf16 %v3391, %v3390
  %v3488 = vpack.c.bf16 %v3393, %v3392
  %v3489 = vpack.c.bf16 %v3395, %v3394
  %v3490 = vpack.c.bf16 %v3397, %v3396
  %v3491 = vpack.c.bf16 %v3399, %v3398
  %v3492 = vpack.c.bf16 %v3401, %v3400
  %v3493 = vpack.c.bf16 %v3403, %v3402
  %v3494 = vpack.c.bf16 %v3405, %v3404
  %v3495 = vpack.c.bf16 %v3407, %v3406
  %v3496 = vpack.c.bf16 %v3409, %v3408
  %v3497 = vpack.c.bf16 %v3411, %v3410
  %v3498 = vpack.c.bf16 %v3413, %v3412
  %v3499 = vpack.c.bf16 %v3415, %v3414
  %v3500 = vpack.c.bf16 %v3417, %v3416
  %v3501 = vpack.c.bf16 %v3419, %v3418
  %v3502 = vpack.c.bf16 %v3421, %v3420
  %v3503 = vpack.c.bf16 %v3423, %v3422
  %v3504 = vpack.c.bf16 %v3425, %v3424
  %v3505 = vpack.c.bf16 %v3427, %v3426
  %v3506 = vpack.c.bf16 %v3429, %v3428
  %v3507 = vpack.c.bf16 %v3431, %v3430
  %v3508 = vpack.c.bf16 %v3433, %v3432
  %v3509 = vpack.c.bf16 %v3435, %v3434
  %v3510 = vpack.c.bf16 %v3437, %v3436
  %v3511 = vpack.c.bf16 %v3439, %v3438
  %v3512 = vpack.c.bf16 %v3441, %v3440
  %v3513 = vpack.c.bf16 %v3443, %v3442
  %v3514 = vpack.c.bf16 %v3445, %v3444
  %v3515 = vpack.c.bf16 %v3447, %v3446
  %v3516 = vpack.c.bf16 %v3449, %v3448
  %v3517 = vpack.c.bf16 %v3451, %v3450
  %v3518 = vpack.c.bf16 %v3453, %v3452
  %v3519 = vpack.c.bf16 %v3455, %v3454
  %v3520 = vpack.c.bf16 %v3457, %v3456
  %v3521 = vpack.c.bf16 %v3459, %v3458
  %v3522 = vpack.c.bf16 %v3461, %v3460
  %v3523 = vpack.c.bf16 %v3463, %v3462
  %v3524 = vpack.c.bf16 %v3465, %v3464
  %v3525 = vpack.c.bf16 %v3467, %v3466
  %v3526 = vpack.c.bf16 %v3469, %v3468
  %v3527 = vpack.c.bf16 %v3471, %v3470
  %v3528 = vpack.c.bf16 %v3473, %v3472
  %v3529 = vpack.c.bf16 %v3475, %v3474
  %v3530 = vpack.c.bf16 %v3477, %v3476
  %v3531 = vpack.c.bf16 %v3479, %v3478
  %v3532 = vpack.c.bf16 %v3481, %v3480
  %v3533 = vpack.c.bf16 %v3483, %v3482
  %v3534 = vld [vmem:[%s3] sm:$0xf]
  %v3535 = vld [vmem:[%s3 + $0x4] sm:$0xf]
  %v3536 = vld [vmem:[%s3 + $0x8] sm:$0xf]
  %v3537 = vld [vmem:[%s3 + $0xc] sm:$0xf]
  %v3538 = vld [vmem:[%s3 + $0x10] sm:$0xf]
  %v3539 = vld [vmem:[%s3 + $0x14] sm:$0xf]
  %v3540 = vld [vmem:[%s3 + $0x18] sm:$0xf]
  %v3541 = vld [vmem:[%s3 + $0x1c] sm:$0xf]
  %v3542 = vld [vmem:[%s3 + $0x20] sm:$0xf]
  %v3543 = vld [vmem:[%s3 + $0x24] sm:$0xf]
  %v3544 = vld [vmem:[%s3 + $0x28] sm:$0xf]
  %v3545 = vld [vmem:[%s3 + $0x2c] sm:$0xf]
  %v3546 = vld [vmem:[%s4] sm:$0x1]
  %v3548 = vlaneseq
  %v3549 = vshrl.u32 %v3548, 7
  %v3550 = vsub.s32 0, %v3549
  %v3551 = vrot.slane %v3546, %v3550
  %v3565 = vunpack.c.l.b16 %v3534
  %v3566 = vunpack.c.l.b16 %v3535
  %v3567 = vunpack.c.l.b16 %v3536
  %v3568 = vunpack.c.l.b16 %v3537
  %v3569 = vunpack.c.l.b16 %v3538
  %v3570 = vunpack.c.l.b16 %v3539
  %v3571 = vunpack.c.l.b16 %v3540
  %v3572 = vunpack.c.l.b16 %v3541
  %v3573 = vunpack.c.l.b16 %v3542
  %v3574 = vunpack.c.l.b16 %v3543
  %v3575 = vunpack.c.l.b16 %v3544
  %v3576 = vunpack.c.l.b16 %v3545
  %v3577 = vpack.c.b16 %v3566, %v3565
  %v3578 = vpack.c.b16 %v3568, %v3567
  %v3579 = vpack.c.b16 %v3570, %v3569
  %v3580 = vpack.c.b16 %v3572, %v3571
  %v3581 = vpack.c.b16 %v3574, %v3573
  %v3582 = vpack.c.b16 %v3576, %v3575
  %vm3589 = vcmask 785408
  %v3591 = vsel %vm3589, %v3484, 0
  %v3594 = vsel %vm3589, %v3485, 0
  %v3597 = vsel %vm3589, %v3486, 0
  %v3600 = vsel %vm3589, %v3487, 0
  %v3603 = vsel %vm3589, %v3488, 0
  %v3606 = vsel %vm3589, %v3489, 0
  %v3609 = vsel %vm3589, %v3490, 0
  %v3612 = vsel %vm3589, %v3491, 0
  %v3615 = vsel %vm3589, %v3492, 0
  %v3618 = vsel %vm3589, %v3493, 0
  %v3621 = vsel %vm3589, %v3494, 0
  %v3624 = vsel %vm3589, %v3495, 0
  %v3627 = vsel %vm3589, %v3496, 0
  %v3630 = vsel %vm3589, %v3497, 0
  %v3633 = vsel %vm3589, %v3498, 0
  %v3636 = vsel %vm3589, %v3499, 0
  %v3639 = vsel %vm3589, %v3500, 0
  %v3642 = vsel %vm3589, %v3501, 0
  %v3645 = vsel %vm3589, %v3502, 0
  %v3648 = vsel %vm3589, %v3503, 0
  %v3651 = vsel %vm3589, %v3504, 0
  %v3654 = vsel %vm3589, %v3505, 0
  %v3657 = vsel %vm3589, %v3506, 0
  %v3660 = vsel %vm3589, %v3507, 0
  %v3663 = vsel %vm3589, %v3508, 0
  %v3666 = vsel %vm3589, %v3509, 0
  %v3669 = vsel %vm3589, %v3510, 0
  %v3672 = vsel %vm3589, %v3511, 0
  %v3675 = vsel %vm3589, %v3512, 0
  %v3678 = vsel %vm3589, %v3513, 0
  %v3681 = vsel %vm3589, %v3514, 0
  %v3684 = vsel %vm3589, %v3515, 0
  %v3687 = vsel %vm3589, %v3516, 0
  %v3690 = vsel %vm3589, %v3517, 0
  %v3693 = vsel %vm3589, %v3518, 0
  %v3696 = vsel %vm3589, %v3519, 0
  %v3699 = vsel %vm3589, %v3520, 0
  %v3702 = vsel %vm3589, %v3521, 0
  %v3705 = vsel %vm3589, %v3522, 0
  %v3708 = vsel %vm3589, %v3523, 0
  %v3711 = vsel %vm3589, %v3524, 0
  %v3714 = vsel %vm3589, %v3525, 0
  %v3717 = vsel %vm3589, %v3526, 0
  %v3720 = vsel %vm3589, %v3527, 0
  %v3723 = vsel %vm3589, %v3528, 0
  %v3726 = vsel %vm3589, %v3529, 0
  %v3729 = vsel %vm3589, %v3530, 0
  %v3732 = vsel %vm3589, %v3531, 0
  %v3735 = vsel %vm3589, %v3532, 0
  %v3738 = vsel %vm3589, %v3533, 0
  %3740 = vmatprep.subr.bf16.mxu0 0
  %3741 = vmatpush1.bf16.msra.mxu0 %v3577
  %3742 = vmatprep.subr.bf16.mxu0 0
  %3743 = vmatpush1.bf16.msra.mxu0 %v3578
  %3744 = vmatprep.subr.bf16.mxu0 0
  %3745 = vmatpush1.bf16.msra.mxu0 %v3579
  %3746 = vmatprep.subr.bf16.mxu0 0
  %3747 = vmatpush1.bf16.msra.mxu0 %v3580
  %3748 = vmatprep.subr.bf16.mxu0 0
  %3749 = vmatpush1.bf16.msra.mxu0 %v3581
  %3750 = vmatprep.subr.bf16.mxu0 0
  %3751 = vmatpush1.bf16.msra.mxu0 %v3582
  %3752 = vmatprep.subr.bf16.mxu0 0
  %3753 = vmatpush1.bf16.msra.mxu0 0
  %3754 = vmatprep.subr.bf16.mxu0 0
  %3755 = vmatpush1.bf16.msra.mxu0 0
  %3756 = vmatprep.subr.bf16.mxu0 0
  %3757 = vmatpush1.bf16.msra.mxu0 0
  %3758 = vmatprep.subr.bf16.mxu0 0
  %3759 = vmatpush1.bf16.msra.mxu0 0
  %3760 = vmatprep.subr.bf16.mxu0 0
  %3761 = vmatpush1.bf16.msra.mxu0 0
  %3762 = vmatprep.subr.bf16.mxu0 0
  %3763 = vmatpush1.bf16.msra.mxu0 0
  %3764 = vmatprep.subr.bf16.mxu0 0
  %3765 = vmatpush1.bf16.msra.mxu0 0
  %3766 = vmatprep.subr.bf16.mxu0 0
  %3767 = vmatpush1.bf16.msra.mxu0 0
  %3768 = vmatprep.subr.bf16.mxu0 0
  %3769 = vmatpush1.bf16.msra.mxu0 0
  %3770 = vmatprep.subr.bf16.mxu0 0
  %3771 = vmatpush1.bf16.msra.mxu0 0
  %3772 = vmatprep.mubr.bf16.mxu0 0
  %3773 = vmatmul.mubr.bf16.gmra.mrb[0].mxu0 %v3591
  %v3774 = vpop.f32.mrb[0].mxu0
  %v3775 = vadd.f32 %v3551, %v3774
  %v3776 = vpop.f32.mrb[0].mxu0
  %v3777 = vpop.f32.mrb[0].mxu0
  %v3778 = vadd.f32 %v3551, %v3777
  %v3779 = vpop.f32.mrb[0].mxu0
  %3780 = vmatprep.mubr.bf16.mxu0 0
  %3781 = vmatmul.mubr.bf16.gmra.mrb[0].mxu0 %v3594
  %v3782 = vpop.f32.mrb[0].mxu0
  %v3783 = vadd.f32 %v3551, %v3782
  %v3784 = vpop.f32.mrb[0].mxu0
  %v3785 = vpop.f32.mrb[0].mxu0
  %v3786 = vadd.f32 %v3551, %v3785
  %v3787 = vpop.f32.mrb[0].mxu0
  %3788 = vmatprep.mubr.bf16.mxu0 0
  %3789 = vmatmul.mubr.bf16.gmra.mrb[0].mxu0 %v3597
  %v3790 = vpop.f32.mrb[0].mxu0
  %v3791 = vadd.f32 %v3551, %v3790
  %v3792 = vpop.f32.mrb[0].mxu0
  %v3793 = vpop.f32.mrb[0].mxu0
  %v3794 = vadd.f32 %v3551, %v3793
  %v3795 = vpop.f32.mrb[0].mxu0
  %3796 = vmatprep.mubr.bf16.mxu0 0
  %3797 = vmatmul.mubr.bf16.gmra.mrb[0].mxu0 %v3600
  %v3798 = vpop.f32.mrb[0].mxu0
  %v3799 = vadd.f32 %v3551, %v3798
  %v3800 = vpop.f32.mrb[0].mxu0
  %v3801 = vpop.f32.mrb[0].mxu0
  %v3802 = vadd.f32 %v3551, %v3801
  %v3803 = vpop.f32.mrb[0].mxu0
  %3804 = vmatprep.mubr.bf16.mxu0 0
  %3805 = vmatmul.mubr.bf16.gmra.mrb[0].mxu0 %v3603
  %v3806 = vpop.f32.mrb[0].mxu0
  %v3807 = vadd.f32 %v3551, %v3806
  %v3808 = vpop.f32.mrb[0].mxu0
  %v3809 = vpop.f32.mrb[0].mxu0
  %v3810 = vadd.f32 %v3551, %v3809
  %v3811 = vpop.f32.mrb[0].mxu0
  %3812 = vmatprep.mubr.bf16.mxu0 0
  %3813 = vmatmul.mubr.bf16.gmra.mrb[0].mxu0 %v3606
  %v3814 = vpop.f32.mrb[0].mxu0
  %v3815 = vadd.f32 %v3551, %v3814
  %v3816 = vpop.f32.mrb[0].mxu0
  %v3817 = vpop.f32.mrb[0].mxu0
  %v3818 = vadd.f32 %v3551, %v3817
  %v3819 = vpop.f32.mrb[0].mxu0
  %3820 = vmatprep.mubr.bf16.mxu0 0
  %3821 = vmatmul.mubr.bf16.gmra.mrb[0].mxu0 %v3609
  %v3822 = vpop.f32.mrb[0].mxu0
  %v3823 = vadd.f32 %v3551, %v3822
  %v3824 = vpop.f32.mrb[0].mxu0
  %v3825 = vpop.f32.mrb[0].mxu0
  %v3826 = vadd.f32 %v3551, %v3825
  %v3827 = vpop.f32.mrb[0].mxu0
  %3828 = vmatprep.mubr.bf16.mxu0 0
  %3829 = vmatmul.mubr.bf16.gmra.mrb[0].mxu0 %v3612
  %v3830 = vpop.f32.mrb[0].mxu0
  %v3831 = vadd.f32 %v3551, %v3830
  %v3832 = vpop.f32.mrb[0].mxu0
  %v3833 = vpop.f32.mrb[0].mxu0
  %v3834 = vadd.f32 %v3551, %v3833
  %v3835 = vpop.f32.mrb[0].mxu0
  %3836 = vmatprep.mubr.bf16.mxu0 0
  %3837 = vmatmul.mubr.bf16.gmra.mrb[0].mxu0 %v3615
  %v3838 = vpop.f32.mrb[0].mxu0
  %v3839 = vadd.f32 %v3551, %v3838
  %v3840 = vpop.f32.mrb[0].mxu0
  %v3841 = vpop.f32.mrb[0].mxu0
  %v3842 = vadd.f32 %v3551, %v3841
  %v3843 = vpop.f32.mrb[0].mxu0
  %3844 = vmatprep.mubr.bf16.mxu0 0
  %3845 = vmatmul.mubr.bf16.gmra.mrb[0].mxu0 %v3618
  %v3846 = vpop.f32.mrb[0].mxu0
  %v3847 = vadd.f32 %v3551, %v3846
  %v3848 = vpop.f32.mrb[0].mxu0
  %v3849 = vpop.f32.mrb[0].mxu0
  %v3850 = vadd.f32 %v3551, %v3849
  %v3851 = vpop.f32.mrb[0].mxu0
  %3852 = vmatprep.mubr.bf16.mxu0 0
  %3853 = vmatmul.mubr.bf16.gmra.mrb[0].mxu0 %v3621
  %v3854 = vpop.f32.mrb[0].mxu0
  %v3855 = vadd.f32 %v3551, %v3854
  %v3856 = vpop.f32.mrb[0].mxu0
  %v3857 = vpop.f32.mrb[0].mxu0
  %v3858 = vadd.f32 %v3551, %v3857
  %v3859 = vpop.f32.mrb[0].mxu0
  %3860 = vmatprep.mubr.bf16.mxu0 0
  %3861 = vmatmul.mubr.bf16.gmra.mrb[0].mxu0 %v3624
  %v3862 = vpop.f32.mrb[0].mxu0
  %v3863 = vadd.f32 %v3551, %v3862
  %v3864 = vpop.f32.mrb[0].mxu0
  %v3865 = vpop.f32.mrb[0].mxu0
  %v3866 = vadd.f32 %v3551, %v3865
  %v3867 = vpop.f32.mrb[0].mxu0
  %3868 = vmatprep.mubr.bf16.mxu0 0
  %3869 = vmatmul.mubr.bf16.gmra.mrb[0].mxu0 %v3627
  %v3870 = vpop.f32.mrb[0].mxu0
  %v3871 = vadd.f32 %v3551, %v3870
  %v3872 = vpop.f32.mrb[0].mxu0
  %v3873 = vpop.f32.mrb[0].mxu0
  %v3874 = vadd.f32 %v3551, %v3873
  %v3875 = vpop.f32.mrb[0].mxu0
  %3876 = vmatprep.mubr.bf16.mxu0 0
  %3877 = vmatmul.mubr.bf16.gmra.mrb[0].mxu0 %v3630
  %v3878 = vpop.f32.mrb[0].mxu0
  %v3879 = vadd.f32 %v3551, %v3878
  %v3880 = vpop.f32.mrb[0].mxu0
  %v3881 = vpop.f32.mrb[0].mxu0
  %v3882 = vadd.f32 %v3551, %v3881
  %v3883 = vpop.f32.mrb[0].mxu0
  %3884 = vmatprep.mubr.bf16.mxu0 0
  %3885 = vmatmul.mubr.bf16.gmra.mrb[0].mxu0 %v3633
  %v3886 = vpop.f32.mrb[0].mxu0
  %v3887 = vadd.f32 %v3551, %v3886
  %v3888 = vpop.f32.mrb[0].mxu0
  %v3889 = vpop.f32.mrb[0].mxu0
  %v3890 = vadd.f32 %v3551, %v3889
  %v3891 = vpop.f32.mrb[0].mxu0
  %3892 = vmatprep.mubr.bf16.mxu0 0
  %3893 = vmatmul.mubr.bf16.gmra.mrb[0].mxu0 %v3636
  %v3894 = vpop.f32.mrb[0].mxu0
  %v3895 = vadd.f32 %v3551, %v3894
  %v3896 = vpop.f32.mrb[0].mxu0
  %v3897 = vpop.f32.mrb[0].mxu0
  %v3898 = vadd.f32 %v3551, %v3897
  %v3899 = vpop.f32.mrb[0].mxu0
  %3900 = vmatprep.mubr.bf16.mxu0 0
  %3901 = vmatmul.mubr.bf16.gmra.mrb[0].mxu0 %v3639
  %v3902 = vpop.f32.mrb[0].mxu0
  %v3903 = vadd.f32 %v3551, %v3902
  %v3904 = vpop.f32.mrb[0].mxu0
  %v3905 = vpop.f32.mrb[0].mxu0
  %v3906 = vadd.f32 %v3551, %v3905
  %v3907 = vpop.f32.mrb[0].mxu0
  %3908 = vmatprep.mubr.bf16.mxu0 0
  %3909 = vmatmul.mubr.bf16.gmra.mrb[0].mxu0 %v3642
  %v3910 = vpop.f32.mrb[0].mxu0
  %v3911 = vadd.f32 %v3551, %v3910
  %v3912 = vpop.f32.mrb[0].mxu0
  %v3913 = vpop.f32.mrb[0].mxu0
  %v3914 = vadd.f32 %v3551, %v3913
  %v3915 = vpop.f32.mrb[0].mxu0
  %3916 = vmatprep.mubr.bf16.mxu0 0
  %3917 = vmatmul.mubr.bf16.gmra.mrb[0].mxu0 %v3645
  %v3918 = vpop.f32.mrb[0].mxu0
  %v3919 = vadd.f32 %v3551, %v3918
  %v3920 = vpop.f32.mrb[0].mxu0
  %v3921 = vpop.f32.mrb[0].mxu0
  %v3922 = vadd.f32 %v3551, %v3921
  %v3923 = vpop.f32.mrb[0].mxu0
  %3924 = vmatprep.mubr.bf16.mxu0 0
  %3925 = vmatmul.mubr.bf16.gmra.mrb[0].mxu0 %v3648
  %v3926 = vpop.f32.mrb[0].mxu0
  %v3927 = vadd.f32 %v3551, %v3926
  %v3928 = vpop.f32.mrb[0].mxu0
  %v3929 = vpop.f32.mrb[0].mxu0
  %v3930 = vadd.f32 %v3551, %v3929
  %v3931 = vpop.f32.mrb[0].mxu0
  %3932 = vmatprep.mubr.bf16.mxu0 0
  %3933 = vmatmul.mubr.bf16.gmra.mrb[0].mxu0 %v3651
  %v3934 = vpop.f32.mrb[0].mxu0
  %v3935 = vadd.f32 %v3551, %v3934
  %v3936 = vpop.f32.mrb[0].mxu0
  %v3937 = vpop.f32.mrb[0].mxu0
  %v3938 = vadd.f32 %v3551, %v3937
  %v3939 = vpop.f32.mrb[0].mxu0
  %3940 = vmatprep.mubr.bf16.mxu0 0
  %3941 = vmatmul.mubr.bf16.gmra.mrb[0].mxu0 %v3654
  %v3942 = vpop.f32.mrb[0].mxu0
  %v3943 = vadd.f32 %v3551, %v3942
  %v3944 = vpop.f32.mrb[0].mxu0
  %v3945 = vpop.f32.mrb[0].mxu0
  %v3946 = vadd.f32 %v3551, %v3945
  %v3947 = vpop.f32.mrb[0].mxu0
  %3948 = vmatprep.mubr.bf16.mxu0 0
  %3949 = vmatmul.mubr.bf16.gmra.mrb[0].mxu0 %v3657
  %v3950 = vpop.f32.mrb[0].mxu0
  %v3951 = vadd.f32 %v3551, %v3950
  %v3952 = vpop.f32.mrb[0].mxu0
  %v3953 = vpop.f32.mrb[0].mxu0
  %v3954 = vadd.f32 %v3551, %v3953
  %v3955 = vpop.f32.mrb[0].mxu0
  %3956 = vmatprep.mubr.bf16.mxu0 0
  %3957 = vmatmul.mubr.bf16.gmra.mrb[0].mxu0 %v3660
  %v3958 = vpop.f32.mrb[0].mxu0
  %v3959 = vadd.f32 %v3551, %v3958
  %v3960 = vpop.f32.mrb[0].mxu0
  %v3961 = vpop.f32.mrb[0].mxu0
  %v3962 = vadd.f32 %v3551, %v3961
  %v3963 = vpop.f32.mrb[0].mxu0
  %3964 = vmatprep.mubr.bf16.mxu0 0
  %3965 = vmatmul.mubr.bf16.gmra.mrb[0].mxu0 %v3663
  %v3966 = vpop.f32.mrb[0].mxu0
  %v3967 = vadd.f32 %v3551, %v3966
  %v3968 = vpop.f32.mrb[0].mxu0
  %v3969 = vpop.f32.mrb[0].mxu0
  %v3970 = vadd.f32 %v3551, %v3969
  %v3971 = vpop.f32.mrb[0].mxu0
  %3972 = vmatprep.mubr.bf16.mxu0 0
  %3973 = vmatmul.mubr.bf16.gmra.mrb[0].mxu0 %v3666
  %v3974 = vpop.f32.mrb[0].mxu0
  %v3975 = vadd.f32 %v3551, %v3974
  %v3976 = vpop.f32.mrb[0].mxu0
  %v3977 = vpop.f32.mrb[0].mxu0
  %v3978 = vadd.f32 %v3551, %v3977
  %v3979 = vpop.f32.mrb[0].mxu0
  %3980 = vmatprep.mubr.bf16.mxu0 0
  %3981 = vmatmul.mubr.bf16.gmra.mrb[0].mxu0 %v3669
  %v3982 = vpop.f32.mrb[0].mxu0
  %v3983 = vadd.f32 %v3551, %v3982
  %v3984 = vpop.f32.mrb[0].mxu0
  %v3985 = vpop.f32.mrb[0].mxu0
  %v3986 = vadd.f32 %v3551, %v3985
  %v3987 = vpop.f32.mrb[0].mxu0
  %3988 = vmatprep.mubr.bf16.mxu0 0
  %3989 = vmatmul.mubr.bf16.gmra.mrb[0].mxu0 %v3672
  %v3990 = vpop.f32.mrb[0].mxu0
  %v3991 = vadd.f32 %v3551, %v3990
  %v3992 = vpop.f32.mrb[0].mxu0
  %v3993 = vpop.f32.mrb[0].mxu0
  %v3994 = vadd.f32 %v3551, %v3993
  %v3995 = vpop.f32.mrb[0].mxu0
  %3996 = vmatprep.mubr.bf16.mxu0 0
  %3997 = vmatmul.mubr.bf16.gmra.mrb[0].mxu0 %v3675
  %v3998 = vpop.f32.mrb[0].mxu0
  %v3999 = vadd.f32 %v3551, %v3998
  %v4000 = vpop.f32.mrb[0].mxu0
  %v4001 = vpop.f32.mrb[0].mxu0
  %v4002 = vadd.f32 %v3551, %v4001
  %v4003 = vpop.f32.mrb[0].mxu0
  %4004 = vmatprep.mubr.bf16.mxu0 0
  %4005 = vmatmul.mubr.bf16.gmra.mrb[0].mxu0 %v3678
  %v4006 = vpop.f32.mrb[0].mxu0
  %v4007 = vadd.f32 %v3551, %v4006
  %v4008 = vpop.f32.mrb[0].mxu0
  %v4009 = vpop.f32.mrb[0].mxu0
  %v4010 = vadd.f32 %v3551, %v4009
  %v4011 = vpop.f32.mrb[0].mxu0
  %4012 = vmatprep.mubr.bf16.mxu0 0
  %4013 = vmatmul.mubr.bf16.gmra.mrb[0].mxu0 %v3681
  %v4014 = vpop.f32.mrb[0].mxu0
  %v4015 = vadd.f32 %v3551, %v4014
  %v4016 = vpop.f32.mrb[0].mxu0
  %v4017 = vpop.f32.mrb[0].mxu0
  %v4018 = vadd.f32 %v3551, %v4017
  %v4019 = vpop.f32.mrb[0].mxu0
  %4020 = vmatprep.mubr.bf16.mxu0 0
  %4021 = vmatmul.mubr.bf16.gmra.mrb[0].mxu0 %v3684
  %v4022 = vpop.f32.mrb[0].mxu0
  %v4023 = vadd.f32 %v3551, %v4022
  %v4024 = vpop.f32.mrb[0].mxu0
  %v4025 = vpop.f32.mrb[0].mxu0
  %v4026 = vadd.f32 %v3551, %v4025
  %v4027 = vpop.f32.mrb[0].mxu0
  %4028 = vmatprep.mubr.bf16.mxu0 0
  %4029 = vmatmul.mubr.bf16.gmra.mrb[0].mxu0 %v3687
  %v4030 = vpop.f32.mrb[0].mxu0
  %v4031 = vadd.f32 %v3551, %v4030
  %v4032 = vpop.f32.mrb[0].mxu0
  %v4033 = vpop.f32.mrb[0].mxu0
  %v4034 = vadd.f32 %v3551, %v4033
  %v4035 = vpop.f32.mrb[0].mxu0
  %4036 = vmatprep.mubr.bf16.mxu0 0
  %4037 = vmatmul.mubr.bf16.gmra.mrb[0].mxu0 %v3690
  %v4038 = vpop.f32.mrb[0].mxu0
  %v4039 = vadd.f32 %v3551, %v4038
  %v4040 = vpop.f32.mrb[0].mxu0
  %v4041 = vpop.f32.mrb[0].mxu0
  %v4042 = vadd.f32 %v3551, %v4041
  %v4043 = vpop.f32.mrb[0].mxu0
  %4044 = vmatprep.mubr.bf16.mxu0 0
  %4045 = vmatmul.mubr.bf16.gmra.mrb[0].mxu0 %v3693
  %v4046 = vpop.f32.mrb[0].mxu0
  %v4047 = vadd.f32 %v3551, %v4046
  %v4048 = vpop.f32.mrb[0].mxu0
  %v4049 = vpop.f32.mrb[0].mxu0
  %v4050 = vadd.f32 %v3551, %v4049
  %v4051 = vpop.f32.mrb[0].mxu0
  %4052 = vmatprep.mubr.bf16.mxu0 0
  %4053 = vmatmul.mubr.bf16.gmra.mrb[0].mxu0 %v3696
  %v4054 = vpop.f32.mrb[0].mxu0
  %v4055 = vadd.f32 %v3551, %v4054
  %v4056 = vpop.f32.mrb[0].mxu0
  %v4057 = vpop.f32.mrb[0].mxu0
  %v4058 = vadd.f32 %v3551, %v4057
  %v4059 = vpop.f32.mrb[0].mxu0
  %4060 = vmatprep.mubr.bf16.mxu0 0
  %4061 = vmatmul.mubr.bf16.gmra.mrb[0].mxu0 %v3699
  %v4062 = vpop.f32.mrb[0].mxu0
  %v4063 = vadd.f32 %v3551, %v4062
  %v4064 = vpop.f32.mrb[0].mxu0
  %v4065 = vpop.f32.mrb[0].mxu0
  %v4066 = vadd.f32 %v3551, %v4065
  %v4067 = vpop.f32.mrb[0].mxu0
  %4068 = vmatprep.mubr.bf16.mxu0 0
  %4069 = vmatmul.mubr.bf16.gmra.mrb[0].mxu0 %v3702
  %v4070 = vpop.f32.mrb[0].mxu0
  %v4071 = vadd.f32 %v3551, %v4070
  %v4072 = vpop.f32.mrb[0].mxu0
  %v4073 = vpop.f32.mrb[0].mxu0
  %v4074 = vadd.f32 %v3551, %v4073
  %v4075 = vpop.f32.mrb[0].mxu0
  %4076 = vmatprep.mubr.bf16.mxu0 0
  %4077 = vmatmul.mubr.bf16.gmra.mrb[0].mxu0 %v3705
  %v4078 = vpop.f32.mrb[0].mxu0
  %v4079 = vadd.f32 %v3551, %v4078
  %v4080 = vpop.f32.mrb[0].mxu0
  %v4081 = vpop.f32.mrb[0].mxu0
  %v4082 = vadd.f32 %v3551, %v4081
  %v4083 = vpop.f32.mrb[0].mxu0
  %4084 = vmatprep.mubr.bf16.mxu0 0
  %4085 = vmatmul.mubr.bf16.gmra.mrb[0].mxu0 %v3708
  %v4086 = vpop.f32.mrb[0].mxu0
  %v4087 = vadd.f32 %v3551, %v4086
  %v4088 = vpop.f32.mrb[0].mxu0
  %v4089 = vpop.f32.mrb[0].mxu0
  %v4090 = vadd.f32 %v3551, %v4089
  %v4091 = vpop.f32.mrb[0].mxu0
  %4092 = vmatprep.mubr.bf16.mxu0 0
  %4093 = vmatmul.mubr.bf16.gmra.mrb[0].mxu0 %v3711
  %v4094 = vpop.f32.mrb[0].mxu0
  %v4095 = vadd.f32 %v3551, %v4094
  %v4096 = vpop.f32.mrb[0].mxu0
  %v4097 = vpop.f32.mrb[0].mxu0
  %v4098 = vadd.f32 %v3551, %v4097
  %v4099 = vpop.f32.mrb[0].mxu0
  %4100 = vmatprep.mubr.bf16.mxu0 0
  %4101 = vmatmul.mubr.bf16.gmra.mrb[0].mxu0 %v3714
  %v4102 = vpop.f32.mrb[0].mxu0
  %v4103 = vadd.f32 %v3551, %v4102
  %v4104 = vpop.f32.mrb[0].mxu0
  %v4105 = vpop.f32.mrb[0].mxu0
  %v4106 = vadd.f32 %v3551, %v4105
  %v4107 = vpop.f32.mrb[0].mxu0
  %4108 = vmatprep.mubr.bf16.mxu0 0
  %4109 = vmatmul.mubr.bf16.gmra.mrb[0].mxu0 %v3717
  %v4110 = vpop.f32.mrb[0].mxu0
  %v4111 = vadd.f32 %v3551, %v4110
  %v4112 = vpop.f32.mrb[0].mxu0
  %v4113 = vpop.f32.mrb[0].mxu0
  %v4114 = vadd.f32 %v3551, %v4113
  %v4115 = vpop.f32.mrb[0].mxu0
  %4116 = vmatprep.mubr.bf16.mxu0 0
  %4117 = vmatmul.mubr.bf16.gmra.mrb[0].mxu0 %v3720
  %v4118 = vpop.f32.mrb[0].mxu0
  %v4119 = vadd.f32 %v3551, %v4118
  %v4120 = vpop.f32.mrb[0].mxu0
  %v4121 = vpop.f32.mrb[0].mxu0
  %v4122 = vadd.f32 %v3551, %v4121
  %v4123 = vpop.f32.mrb[0].mxu0
  %4124 = vmatprep.mubr.bf16.mxu0 0
  %4125 = vmatmul.mubr.bf16.gmra.mrb[0].mxu0 %v3723
  %v4126 = vpop.f32.mrb[0].mxu0
  %v4127 = vadd.f32 %v3551, %v4126
  %v4128 = vpop.f32.mrb[0].mxu0
  %v4129 = vpop.f32.mrb[0].mxu0
  %v4130 = vadd.f32 %v3551, %v4129
  %v4131 = vpop.f32.mrb[0].mxu0
  %4132 = vmatprep.mubr.bf16.mxu0 0
  %4133 = vmatmul.mubr.bf16.gmra.mrb[0].mxu0 %v3726
  %v4134 = vpop.f32.mrb[0].mxu0
  %v4135 = vadd.f32 %v3551, %v4134
  %v4136 = vpop.f32.mrb[0].mxu0
  %v4137 = vpop.f32.mrb[0].mxu0
  %v4138 = vadd.f32 %v3551, %v4137
  %v4139 = vpop.f32.mrb[0].mxu0
  %4140 = vmatprep.mubr.bf16.mxu0 0
  %4141 = vmatmul.mubr.bf16.gmra.mrb[0].mxu0 %v3729
  %v4142 = vpop.f32.mrb[0].mxu0
  %v4143 = vadd.f32 %v3551, %v4142
  %v4144 = vpop.f32.mrb[0].mxu0
  %v4145 = vpop.f32.mrb[0].mxu0
  %v4146 = vadd.f32 %v3551, %v4145
  %v4147 = vpop.f32.mrb[0].mxu0
  %4148 = vmatprep.mubr.bf16.mxu0 0
  %4149 = vmatmul.mubr.bf16.gmra.mrb[0].mxu0 %v3732
  %v4150 = vpop.f32.mrb[0].mxu0
  %v4151 = vadd.f32 %v3551, %v4150
  %v4152 = vpop.f32.mrb[0].mxu0
  %v4153 = vpop.f32.mrb[0].mxu0
  %v4154 = vadd.f32 %v3551, %v4153
  %v4155 = vpop.f32.mrb[0].mxu0
  %4156 = vmatprep.mubr.bf16.mxu0 0
  %4157 = vmatmul.mubr.bf16.gmra.mrb[0].mxu0 %v3735
  %v4158 = vpop.f32.mrb[0].mxu0
  %v4159 = vadd.f32 %v3551, %v4158
  %v4160 = vpop.f32.mrb[0].mxu0
  %v4161 = vpop.f32.mrb[0].mxu0
  %v4162 = vadd.f32 %v3551, %v4161
  %v4163 = vpop.f32.mrb[0].mxu0
  %4164 = vmatprep.mubr.bf16.mxu0 0
  %4165 = vmatmul.mubr.bf16.gmra.mrb[0].mxu0 %v3738
  %v4166 = vpop.f32.mrb[0].mxu0
  %v4167 = vadd.f32 %v3551, %v4166
  %v4168 = vpop.f32.mrb[0].mxu0
  %v4169 = vpop.f32.mrb[0].mxu0
  %v4170 = vadd.f32 %v3551, %v4169
  %v4171 = vpop.f32.mrb[0].mxu0
  %4172 = vdwg.mxu0
  %v4173 = vmax.f32 %v3775, 0.0
  %v4174 = vmax.f32 %v3778, 0.0
  %v4175 = vmax.f32 %v3783, 0.0
  %v4176 = vmax.f32 %v3786, 0.0
  %v4177 = vmax.f32 %v3791, 0.0
  %v4178 = vmax.f32 %v3794, 0.0
  %v4179 = vmax.f32 %v3799, 0.0
  %v4180 = vmax.f32 %v3802, 0.0
  %v4181 = vmax.f32 %v3807, 0.0
  %v4182 = vmax.f32 %v3810, 0.0
  %v4183 = vmax.f32 %v3815, 0.0
  %v4184 = vmax.f32 %v3818, 0.0
  %v4185 = vmax.f32 %v3823, 0.0
  %v4186 = vmax.f32 %v3826, 0.0
  %v4187 = vmax.f32 %v3831, 0.0
  %v4188 = vmax.f32 %v3834, 0.0
  %v4189 = vmax.f32 %v3839, 0.0
  %v4190 = vmax.f32 %v3842, 0.0
  %v4191 = vmax.f32 %v3847, 0.0
  %v4192 = vmax.f32 %v3850, 0.0
  %v4193 = vmax.f32 %v3855, 0.0
  %v4194 = vmax.f32 %v3858, 0.0
  %v4195 = vmax.f32 %v3863, 0.0
  %v4196 = vmax.f32 %v3866, 0.0
  %v4197 = vmax.f32 %v3871, 0.0
  %v4198 = vmax.f32 %v3874, 0.0
  %v4199 = vmax.f32 %v3879, 0.0
  %v4200 = vmax.f32 %v3882, 0.0
  %v4201 = vmax.f32 %v3887, 0.0
  %v4202 = vmax.f32 %v3890, 0.0
  %v4203 = vmax.f32 %v3895, 0.0
  %v4204 = vmax.f32 %v3898, 0.0
  %v4205 = vmax.f32 %v3903, 0.0
  %v4206 = vmax.f32 %v3906, 0.0
  %v4207 = vmax.f32 %v3911, 0.0
  %v4208 = vmax.f32 %v3914, 0.0
  %v4209 = vmax.f32 %v3919, 0.0
  %v4210 = vmax.f32 %v3922, 0.0
  %v4211 = vmax.f32 %v3927, 0.0
  %v4212 = vmax.f32 %v3930, 0.0
  %v4213 = vmax.f32 %v3935, 0.0
  %v4214 = vmax.f32 %v3938, 0.0
  %v4215 = vmax.f32 %v3943, 0.0
  %v4216 = vmax.f32 %v3946, 0.0
  %v4217 = vmax.f32 %v3951, 0.0
  %v4218 = vmax.f32 %v3954, 0.0
  %v4219 = vmax.f32 %v3959, 0.0
  %v4220 = vmax.f32 %v3962, 0.0
  %v4221 = vmax.f32 %v3967, 0.0
  %v4222 = vmax.f32 %v3970, 0.0
  %v4223 = vmax.f32 %v3975, 0.0
  %v4224 = vmax.f32 %v3978, 0.0
  %v4225 = vmax.f32 %v3983, 0.0
  %v4226 = vmax.f32 %v3986, 0.0
  %v4227 = vmax.f32 %v3991, 0.0
  %v4228 = vmax.f32 %v3994, 0.0
  %v4229 = vmax.f32 %v3999, 0.0
  %v4230 = vmax.f32 %v4002, 0.0
  %v4231 = vmax.f32 %v4007, 0.0
  %v4232 = vmax.f32 %v4010, 0.0
  %v4233 = vmax.f32 %v4015, 0.0
  %v4234 = vmax.f32 %v4018, 0.0
  %v4235 = vmax.f32 %v4023, 0.0
  %v4236 = vmax.f32 %v4026, 0.0
  %v4237 = vmax.f32 %v4031, 0.0
  %v4238 = vmax.f32 %v4034, 0.0
  %v4239 = vmax.f32 %v4039, 0.0
  %v4240 = vmax.f32 %v4042, 0.0
  %v4241 = vmax.f32 %v4047, 0.0
  %v4242 = vmax.f32 %v4050, 0.0
  %v4243 = vmax.f32 %v4055, 0.0
  %v4244 = vmax.f32 %v4058, 0.0
  %v4245 = vmax.f32 %v4063, 0.0
  %v4246 = vmax.f32 %v4066, 0.0
  %v4247 = vmax.f32 %v4071, 0.0
  %v4248 = vmax.f32 %v4074, 0.0
  %v4249 = vmax.f32 %v4079, 0.0
  %v4250 = vmax.f32 %v4082, 0.0
  %v4251 = vmax.f32 %v4087, 0.0
  %v4252 = vmax.f32 %v4090, 0.0
  %v4253 = vmax.f32 %v4095, 0.0
  %v4254 = vmax.f32 %v4098, 0.0
  %v4255 = vmax.f32 %v4103, 0.0
  %v4256 = vmax.f32 %v4106, 0.0
  %v4257 = vmax.f32 %v4111, 0.0
  %v4258 = vmax.f32 %v4114, 0.0
  %v4259 = vmax.f32 %v4119, 0.0
  %v4260 = vmax.f32 %v4122, 0.0
  %v4261 = vmax.f32 %v4127, 0.0
  %v4262 = vmax.f32 %v4130, 0.0
  %v4263 = vmax.f32 %v4135, 0.0
  %v4264 = vmax.f32 %v4138, 0.0
  %v4265 = vmax.f32 %v4143, 0.0
  %v4266 = vmax.f32 %v4146, 0.0
  %v4267 = vmax.f32 %v4151, 0.0
  %v4268 = vmax.f32 %v4154, 0.0
  %v4269 = vmax.f32 %v4159, 0.0
  %v4270 = vmax.f32 %v4162, 0.0
  %v4271 = vmax.f32 %v4167, 0.0
  %v4272 = vmax.f32 %v4170, 0.0
  %v4273 = vmax.f32 %v4173, %v4174
  %v4274 = vmax.f32 %v4175, %v4176
  %4276 = vrot.lane.b32.xlu0 %v4274, 64
  %v4277 = vpop.permute.xlu0 %4276
  %v4279 = vsel %vm3383, %v4273, %v4277
  %v4280 = vpack.c.bf16 %v4279, %v4279
  %v4281 = vld [vmem:[%s5] sm:$0xf]
  %v4282 = vld [vmem:[%s5 + $0x4] sm:$0xf]
  %v4283 = vld [vmem:[%s5 + $0x8] sm:$0xf]
  %v4284 = vld [vmem:[%s5 + $0xc] sm:$0xf]
  %v4285 = vld [vmem:[%s5 + $0x10] sm:$0xf]
  %v4286 = vld [vmem:[%s5 + $0x14] sm:$0xf]
  %v4287 = vld [vmem:[%s5 + $0x18] sm:$0xf]
  %v4288 = vld [vmem:[%s5 + $0x1c] sm:$0xf]
  %v4289 = vld [vmem:[%s5 + $0x20] sm:$0xf]
  %v4290 = vld [vmem:[%s5 + $0x24] sm:$0xf]
  %v4291 = vld [vmem:[%s5 + $0x28] sm:$0xf]
  %v4292 = vld [vmem:[%s5 + $0x2c] sm:$0xf]
  %v4293 = vld [vmem:[%s5 + $0x30] sm:$0xf]
  %v4294 = vld [vmem:[%s5 + $0x34] sm:$0xf]
  %v4295 = vld [vmem:[%s5 + $0x38] sm:$0xf]
  %v4296 = vld [vmem:[%s5 + $0x3c] sm:$0xf]
  %v4297 = vmax.f32 %v4177, %v4178
  %v4298 = vmax.f32 %v4179, %v4180
  %4300 = vrot.lane.b32.xlu0 %v4298, 64
  %v4301 = vpop.permute.xlu0 %4300
  %v4303 = vsel %vm3383, %v4297, %v4301
  %v4304 = vpack.c.bf16 %v4303, %v4303
  %v4305 = vld [vmem:[%s5 + $0x40] sm:$0xf]
  %v4306 = vld [vmem:[%s5 + $0x44] sm:$0xf]
  %v4307 = vld [vmem:[%s5 + $0x48] sm:$0xf]
  %v4308 = vld [vmem:[%s5 + $0x4c] sm:$0xf]
  %v4309 = vld [vmem:[%s5 + $0x50] sm:$0xf]
  %v4310 = vld [vmem:[%s5 + $0x54] sm:$0xf]
  %v4311 = vld [vmem:[%s5 + $0x58] sm:$0xf]
  %v4312 = vld [vmem:[%s5 + $0x5c] sm:$0xf]
  %v4313 = vld [vmem:[%s5 + $0x60] sm:$0xf]
  %v4314 = vld [vmem:[%s5 + $0x64] sm:$0xf]
  %v4315 = vld [vmem:[%s5 + $0x68] sm:$0xf]
  %v4316 = vld [vmem:[%s5 + $0x6c] sm:$0xf]
  %v4317 = vld [vmem:[%s5 + $0x70] sm:$0xf]
  %v4318 = vld [vmem:[%s5 + $0x74] sm:$0xf]
  %v4319 = vld [vmem:[%s5 + $0x78] sm:$0xf]
  %v4320 = vld [vmem:[%s5 + $0x7c] sm:$0xf]
  %v4337 = vunpack.c.l.b16 %v4305
  %v4338 = vunpack.c.l.b16 %v4306
  %v4339 = vunpack.c.l.b16 %v4307
  %v4340 = vunpack.c.l.b16 %v4308
  %v4341 = vunpack.c.l.b16 %v4309
  %v4342 = vunpack.c.l.b16 %v4310
  %v4343 = vunpack.c.l.b16 %v4311
  %v4344 = vunpack.c.l.b16 %v4312
  %v4345 = vunpack.c.l.b16 %v4313
  %v4346 = vunpack.c.l.b16 %v4314
  %v4347 = vunpack.c.l.b16 %v4315
  %v4348 = vunpack.c.l.b16 %v4316
  %v4349 = vunpack.c.l.b16 %v4317
  %v4350 = vunpack.c.l.b16 %v4318
  %v4351 = vunpack.c.l.b16 %v4319
  %v4352 = vunpack.c.l.b16 %v4320
  %v4353 = vpack.c.b16 %v4338, %v4337
  %v4354 = vpack.c.b16 %v4340, %v4339
  %v4355 = vpack.c.b16 %v4342, %v4341
  %v4356 = vpack.c.b16 %v4344, %v4343
  %v4357 = vpack.c.b16 %v4346, %v4345
  %v4358 = vpack.c.b16 %v4348, %v4347
  %v4359 = vpack.c.b16 %v4350, %v4349
  %v4360 = vpack.c.b16 %v4352, %v4351
  %4369 = vmatprep.subr.bf16.mxu0 0
  %4370 = vmatpush1.bf16.msra.mxu0 %v4353
  %4371 = vmatprep.subr.bf16.mxu0 0
  %4372 = vmatpush1.bf16.msra.mxu0 %v4354
  %4373 = vmatprep.subr.bf16.mxu0 0
  %4374 = vmatpush1.bf16.msra.mxu0 %v4355
  %4375 = vmatprep.subr.bf16.mxu0 0
  %4376 = vmatpush1.bf16.msra.mxu0 %v4356
  %4377 = vmatprep.subr.bf16.mxu0 0
  %4378 = vmatpush1.bf16.msra.mxu0 %v4357
  %4379 = vmatprep.subr.bf16.mxu0 0
  %4380 = vmatpush1.bf16.msra.mxu0 %v4358
  %4381 = vmatprep.subr.bf16.mxu0 0
  %4382 = vmatpush1.bf16.msra.mxu0 %v4359
  %4383 = vmatprep.subr.bf16.mxu0 0
  %4384 = vmatpush1.bf16.msra.mxu0 %v4360
  %4385 = vmatprep.subr.bf16.mxu0 0
  %4386 = vmatpush1.bf16.msra.mxu0 0
  %4387 = vmatprep.subr.bf16.mxu0 0
  %4388 = vmatpush1.bf16.msra.mxu0 0
  %4389 = vmatprep.subr.bf16.mxu0 0
  %4390 = vmatpush1.bf16.msra.mxu0 0
  %4391 = vmatprep.subr.bf16.mxu0 0
  %4392 = vmatpush1.bf16.msra.mxu0 0
  %4393 = vmatprep.subr.bf16.mxu0 0
  %4394 = vmatpush1.bf16.msra.mxu0 0
  %4395 = vmatprep.subr.bf16.mxu0 0
  %4396 = vmatpush1.bf16.msra.mxu0 0
  %4397 = vmatprep.subr.bf16.mxu0 0
  %4398 = vmatpush1.bf16.msra.mxu0 0
  %4399 = vmatprep.subr.bf16.mxu0 0
  %4400 = vmatpush1.bf16.msra.mxu0 0
  %4401 = vmatprep.mubr.bf16.mxu0 0
  %4402 = vmatmul.mubr.bf16.gmra.mrb[0].mxu0 %v4304
  %v4403 = vpop.f32.mrb[0].mxu0
  %v4404 = vadd.f32 0.0, %v4403
  %v4405 = vpop.f32.mrb[0].mxu0
  %v4406 = vpop.f32.mrb[0].mxu0
  %v4407 = vpop.f32.mrb[0].mxu0
  %4408 = vdwg.mxu0
  %v4425 = vunpack.c.l.b16 %v4281
  %v4426 = vunpack.c.l.b16 %v4282
  %v4427 = vunpack.c.l.b16 %v4283
  %v4428 = vunpack.c.l.b16 %v4284
  %v4429 = vunpack.c.l.b16 %v4285
  %v4430 = vunpack.c.l.b16 %v4286
  %v4431 = vunpack.c.l.b16 %v4287
  %v4432 = vunpack.c.l.b16 %v4288
  %v4433 = vunpack.c.l.b16 %v4289
  %v4434 = vunpack.c.l.b16 %v4290
  %v4435 = vunpack.c.l.b16 %v4291
  %v4436 = vunpack.c.l.b16 %v4292
  %v4437 = vunpack.c.l.b16 %v4293
  %v4438 = vunpack.c.l.b16 %v4294
  %v4439 = vunpack.c.l.b16 %v4295
  %v4440 = vunpack.c.l.b16 %v4296
  %v4441 = vpack.c.b16 %v4426, %v4425
  %v4442 = vpack.c.b16 %v4428, %v4427
  %v4443 = vpack.c.b16 %v4430, %v4429
  %v4444 = vpack.c.b16 %v4432, %v4431
  %v4445 = vpack.c.b16 %v4434, %v4433
  %v4446 = vpack.c.b16 %v4436, %v4435
  %v4447 = vpack.c.b16 %v4438, %v4437
  %v4448 = vpack.c.b16 %v4440, %v4439
  %4457 = vmatprep.subr.bf16.mxu0 0
  %4458 = vmatpush1.bf16.msra.mxu0 %v4441
  %4459 = vmatprep.subr.bf16.mxu0 0
  %4460 = vmatpush1.bf16.msra.mxu0 %v4442
  %4461 = vmatprep.subr.bf16.mxu0 0
  %4462 = vmatpush1.bf16.msra.mxu0 %v4443
  %4463 = vmatprep.subr.bf16.mxu0 0
  %4464 = vmatpush1.bf16.msra.mxu0 %v4444
  %4465 = vmatprep.subr.bf16.mxu0 0
  %4466 = vmatpush1.bf16.msra.mxu0 %v4445
  %4467 = vmatprep.subr.bf16.mxu0 0
  %4468 = vmatpush1.bf16.msra.mxu0 %v4446
  %4469 = vmatprep.subr.bf16.mxu0 0
  %4470 = vmatpush1.bf16.msra.mxu0 %v4447
  %4471 = vmatprep.subr.bf16.mxu0 0
  %4472 = vmatpush1.bf16.msra.mxu0 %v4448
  %4473 = vmatprep.subr.bf16.mxu0 0
  %4474 = vmatpush1.bf16.msra.mxu0 0
  %4475 = vmatprep.subr.bf16.mxu0 0
  %4476 = vmatpush1.bf16.msra.mxu0 0
  %4477 = vmatprep.subr.bf16.mxu0 0
  %4478 = vmatpush1.bf16.msra.mxu0 0
  %4479 = vmatprep.subr.bf16.mxu0 0
  %4480 = vmatpush1.bf16.msra.mxu0 0
  %4481 = vmatprep.subr.bf16.mxu0 0
  %4482 = vmatpush1.bf16.msra.mxu0 0
  %4483 = vmatprep.subr.bf16.mxu0 0
  %4484 = vmatpush1.bf16.msra.mxu0 0
  %4485 = vmatprep.subr.bf16.mxu0 0
  %4486 = vmatpush1.bf16.msra.mxu0 0
  %4487 = vmatprep.subr.bf16.mxu0 0
  %4488 = vmatpush1.bf16.msra.mxu0 0
  %4489 = vmatprep.mubr.bf16.mxu0 0
  %4490 = vmatmul.mubr.bf16.gmra.mrb[0].mxu0 %v4280
  %v4491 = vpop.f32.mrb[0].mxu0
  %v4492 = vadd.f32 %v4404, %v4491
  %v4493 = vpop.f32.mrb[0].mxu0
  %v4494 = vpop.f32.mrb[0].mxu0
  %v4495 = vpop.f32.mrb[0].mxu0
  %4496 = vdwg.mxu0
  %v4497 = vmax.f32 %v4181, %v4182
  %v4498 = vmax.f32 %v4183, %v4184
  %4500 = vrot.lane.b32.xlu0 %v4498, 64
  %v4501 = vpop.permute.xlu0 %4500
  %v4503 = vsel %vm3383, %v4497, %v4501
  %v4504 = vpack.c.bf16 %v4503, %v4503
  %v4505 = vld [vmem:[%s5 + $0x80] sm:$0xf]
  %v4506 = vld [vmem:[%s5 + $0x84] sm:$0xf]
  %v4507 = vld [vmem:[%s5 + $0x88] sm:$0xf]
  %v4508 = vld [vmem:[%s5 + $0x8c] sm:$0xf]
  %v4509 = vld [vmem:[%s5 + $0x90] sm:$0xf]
  %v4510 = vld [vmem:[%s5 + $0x94] sm:$0xf]
  %v4511 = vld [vmem:[%s5 + $0x98] sm:$0xf]
  %v4512 = vld [vmem:[%s5 + $0x9c] sm:$0xf]
  %v4513 = vld [vmem:[%s5 + $0xa0] sm:$0xf]
  %v4514 = vld [vmem:[%s5 + $0xa4] sm:$0xf]
  %v4515 = vld [vmem:[%s5 + $0xa8] sm:$0xf]
  %v4516 = vld [vmem:[%s5 + $0xac] sm:$0xf]
  %v4517 = vld [vmem:[%s5 + $0xb0] sm:$0xf]
  %v4518 = vld [vmem:[%s5 + $0xb4] sm:$0xf]
  %v4519 = vld [vmem:[%s5 + $0xb8] sm:$0xf]
  %v4520 = vld [vmem:[%s5 + $0xbc] sm:$0xf]
  %v4537 = vunpack.c.l.b16 %v4505
  %v4538 = vunpack.c.l.b16 %v4506
  %v4539 = vunpack.c.l.b16 %v4507
  %v4540 = vunpack.c.l.b16 %v4508
  %v4541 = vunpack.c.l.b16 %v4509
  %v4542 = vunpack.c.l.b16 %v4510
  %v4543 = vunpack.c.l.b16 %v4511
  %v4544 = vunpack.c.l.b16 %v4512
  %v4545 = vunpack.c.l.b16 %v4513
  %v4546 = vunpack.c.l.b16 %v4514
  %v4547 = vunpack.c.l.b16 %v4515
  %v4548 = vunpack.c.l.b16 %v4516
  %v4549 = vunpack.c.l.b16 %v4517
  %v4550 = vunpack.c.l.b16 %v4518
  %v4551 = vunpack.c.l.b16 %v4519
  %v4552 = vunpack.c.l.b16 %v4520
  %v4553 = vpack.c.b16 %v4538, %v4537
  %v4554 = vpack.c.b16 %v4540, %v4539
  %v4555 = vpack.c.b16 %v4542, %v4541
  %v4556 = vpack.c.b16 %v4544, %v4543
  %v4557 = vpack.c.b16 %v4546, %v4545
  %v4558 = vpack.c.b16 %v4548, %v4547
  %v4559 = vpack.c.b16 %v4550, %v4549
  %v4560 = vpack.c.b16 %v4552, %v4551
  %4569 = vmatprep.subr.bf16.mxu0 0
  %4570 = vmatpush1.bf16.msra.mxu0 %v4553
  %4571 = vmatprep.subr.bf16.mxu0 0
  %4572 = vmatpush1.bf16.msra.mxu0 %v4554
  %4573 = vmatprep.subr.bf16.mxu0 0
  %4574 = vmatpush1.bf16.msra.mxu0 %v4555
  %4575 = vmatprep.subr.bf16.mxu0 0
  %4576 = vmatpush1.bf16.msra.mxu0 %v4556
  %4577 = vmatprep.subr.bf16.mxu0 0
  %4578 = vmatpush1.bf16.msra.mxu0 %v4557
  %4579 = vmatprep.subr.bf16.mxu0 0
  %4580 = vmatpush1.bf16.msra.mxu0 %v4558
  %4581 = vmatprep.subr.bf16.mxu0 0
  %4582 = vmatpush1.bf16.msra.mxu0 %v4559
  %4583 = vmatprep.subr.bf16.mxu0 0
  %4584 = vmatpush1.bf16.msra.mxu0 %v4560
  %4585 = vmatprep.subr.bf16.mxu0 0
  %4586 = vmatpush1.bf16.msra.mxu0 0
  %4587 = vmatprep.subr.bf16.mxu0 0
  %4588 = vmatpush1.bf16.msra.mxu0 0
  %4589 = vmatprep.subr.bf16.mxu0 0
  %4590 = vmatpush1.bf16.msra.mxu0 0
  %4591 = vmatprep.subr.bf16.mxu0 0
  %4592 = vmatpush1.bf16.msra.mxu0 0
  %4593 = vmatprep.subr.bf16.mxu0 0
  %4594 = vmatpush1.bf16.msra.mxu0 0
  %4595 = vmatprep.subr.bf16.mxu0 0
  %4596 = vmatpush1.bf16.msra.mxu0 0
  %4597 = vmatprep.subr.bf16.mxu0 0
  %4598 = vmatpush1.bf16.msra.mxu0 0
  %4599 = vmatprep.subr.bf16.mxu0 0
  %4600 = vmatpush1.bf16.msra.mxu0 0
  %4601 = vmatprep.mubr.bf16.mxu0 0
  %4602 = vmatmul.mubr.bf16.gmra.mrb[0].mxu0 %v4504
  %v4603 = vpop.f32.mrb[0].mxu0
  %v4604 = vadd.f32 0.0, %v4603
  %v4605 = vpop.f32.mrb[0].mxu0
  %v4606 = vpop.f32.mrb[0].mxu0
  %v4607 = vpop.f32.mrb[0].mxu0
  %4608 = vdwg.mxu0
  %v4609 = vadd.f32 %v4492, %v4604
  %v4610 = vmax.f32 %v4185, %v4186
  %v4611 = vmax.f32 %v4187, %v4188
  %4613 = vrot.lane.b32.xlu0 %v4611, 64
  %v4614 = vpop.permute.xlu0 %4613
  %v4616 = vsel %vm3383, %v4610, %v4614
  %v4617 = vpack.c.bf16 %v4616, %v4616
  %v4618 = vld [vmem:[%s5 + $0xc0] sm:$0xf]
  %v4619 = vld [vmem:[%s5 + $0xc4] sm:$0xf]
  %v4620 = vld [vmem:[%s5 + $0xc8] sm:$0xf]
  %v4621 = vld [vmem:[%s5 + $0xcc] sm:$0xf]
  %v4622 = vld [vmem:[%s5 + $0xd0] sm:$0xf]
  %v4623 = vld [vmem:[%s5 + $0xd4] sm:$0xf]
  %v4624 = vld [vmem:[%s5 + $0xd8] sm:$0xf]
  %v4625 = vld [vmem:[%s5 + $0xdc] sm:$0xf]
  %v4626 = vld [vmem:[%s5 + $0xe0] sm:$0xf]
  %v4627 = vld [vmem:[%s5 + $0xe4] sm:$0xf]
  %v4628 = vld [vmem:[%s5 + $0xe8] sm:$0xf]
  %v4629 = vld [vmem:[%s5 + $0xec] sm:$0xf]
  %v4630 = vld [vmem:[%s5 + $0xf0] sm:$0xf]
  %v4631 = vld [vmem:[%s5 + $0xf4] sm:$0xf]
  %v4632 = vld [vmem:[%s5 + $0xf8] sm:$0xf]
  %v4633 = vld [vmem:[%s5 + $0xfc] sm:$0xf]
  %v4650 = vunpack.c.l.b16 %v4618
  %v4651 = vunpack.c.l.b16 %v4619
  %v4652 = vunpack.c.l.b16 %v4620
  %v4653 = vunpack.c.l.b16 %v4621
  %v4654 = vunpack.c.l.b16 %v4622
  %v4655 = vunpack.c.l.b16 %v4623
  %v4656 = vunpack.c.l.b16 %v4624
  %v4657 = vunpack.c.l.b16 %v4625
  %v4658 = vunpack.c.l.b16 %v4626
  %v4659 = vunpack.c.l.b16 %v4627
  %v4660 = vunpack.c.l.b16 %v4628
  %v4661 = vunpack.c.l.b16 %v4629
  %v4662 = vunpack.c.l.b16 %v4630
  %v4663 = vunpack.c.l.b16 %v4631
  %v4664 = vunpack.c.l.b16 %v4632
  %v4665 = vunpack.c.l.b16 %v4633
  %v4666 = vpack.c.b16 %v4651, %v4650
  %v4667 = vpack.c.b16 %v4653, %v4652
  %v4668 = vpack.c.b16 %v4655, %v4654
  %v4669 = vpack.c.b16 %v4657, %v4656
  %v4670 = vpack.c.b16 %v4659, %v4658
  %v4671 = vpack.c.b16 %v4661, %v4660
  %v4672 = vpack.c.b16 %v4663, %v4662
  %v4673 = vpack.c.b16 %v4665, %v4664
  %4682 = vmatprep.subr.bf16.mxu0 0
  %4683 = vmatpush1.bf16.msra.mxu0 %v4666
  %4684 = vmatprep.subr.bf16.mxu0 0
  %4685 = vmatpush1.bf16.msra.mxu0 %v4667
  %4686 = vmatprep.subr.bf16.mxu0 0
  %4687 = vmatpush1.bf16.msra.mxu0 %v4668
  %4688 = vmatprep.subr.bf16.mxu0 0
  %4689 = vmatpush1.bf16.msra.mxu0 %v4669
  %4690 = vmatprep.subr.bf16.mxu0 0
  %4691 = vmatpush1.bf16.msra.mxu0 %v4670
  %4692 = vmatprep.subr.bf16.mxu0 0
  %4693 = vmatpush1.bf16.msra.mxu0 %v4671
  %4694 = vmatprep.subr.bf16.mxu0 0
  %4695 = vmatpush1.bf16.msra.mxu0 %v4672
  %4696 = vmatprep.subr.bf16.mxu0 0
  %4697 = vmatpush1.bf16.msra.mxu0 %v4673
  %4698 = vmatprep.subr.bf16.mxu0 0
  %4699 = vmatpush1.bf16.msra.mxu0 0
  %4700 = vmatprep.subr.bf16.mxu0 0
  %4701 = vmatpush1.bf16.msra.mxu0 0
  %4702 = vmatprep.subr.bf16.mxu0 0
  %4703 = vmatpush1.bf16.msra.mxu0 0
  %4704 = vmatprep.subr.bf16.mxu0 0
  %4705 = vmatpush1.bf16.msra.mxu0 0
  %4706 = vmatprep.subr.bf16.mxu0 0
  %4707 = vmatpush1.bf16.msra.mxu0 0
  %4708 = vmatprep.subr.bf16.mxu0 0
  %4709 = vmatpush1.bf16.msra.mxu0 0
  %4710 = vmatprep.subr.bf16.mxu0 0
  %4711 = vmatpush1.bf16.msra.mxu0 0
  %4712 = vmatprep.subr.bf16.mxu0 0
  %4713 = vmatpush1.bf16.msra.mxu0 0
  %4714 = vmatprep.mubr.bf16.mxu0 0
  %4715 = vmatmul.mubr.bf16.gmra.mrb[0].mxu0 %v4617
  %v4716 = vpop.f32.mrb[0].mxu0
  %v4717 = vadd.f32 0.0, %v4716
  %v4718 = vpop.f32.mrb[0].mxu0
  %v4719 = vpop.f32.mrb[0].mxu0
  %v4720 = vpop.f32.mrb[0].mxu0
  %4721 = vdwg.mxu0
  %v4722 = vadd.f32 %v4609, %v4717
  %v4723 = vmax.f32 %v4189, %v4190
  %v4724 = vmax.f32 %v4191, %v4192
  %4726 = vrot.lane.b32.xlu0 %v4724, 64
  %v4727 = vpop.permute.xlu0 %4726
  %v4729 = vsel %vm3383, %v4723, %v4727
  %v4730 = vpack.c.bf16 %v4729, %v4729
  %v4731 = vld [vmem:[%s5 + $0x100] sm:$0xf]
  %v4732 = vld [vmem:[%s5 + $0x104] sm:$0xf]
  %v4733 = vld [vmem:[%s5 + $0x108] sm:$0xf]
  %v4734 = vld [vmem:[%s5 + $0x10c] sm:$0xf]
  %v4735 = vld [vmem:[%s5 + $0x110] sm:$0xf]
  %v4736 = vld [vmem:[%s5 + $0x114] sm:$0xf]
  %v4737 = vld [vmem:[%s5 + $0x118] sm:$0xf]
  %v4738 = vld [vmem:[%s5 + $0x11c] sm:$0xf]
  %v4739 = vld [vmem:[%s5 + $0x120] sm:$0xf]
  %v4740 = vld [vmem:[%s5 + $0x124] sm:$0xf]
  %v4741 = vld [vmem:[%s5 + $0x128] sm:$0xf]
  %v4742 = vld [vmem:[%s5 + $0x12c] sm:$0xf]
  %v4743 = vld [vmem:[%s5 + $0x130] sm:$0xf]
  %v4744 = vld [vmem:[%s5 + $0x134] sm:$0xf]
  %v4745 = vld [vmem:[%s5 + $0x138] sm:$0xf]
  %v4746 = vld [vmem:[%s5 + $0x13c] sm:$0xf]
  %v4763 = vunpack.c.l.b16 %v4731
  %v4764 = vunpack.c.l.b16 %v4732
  %v4765 = vunpack.c.l.b16 %v4733
  %v4766 = vunpack.c.l.b16 %v4734
  %v4767 = vunpack.c.l.b16 %v4735
  %v4768 = vunpack.c.l.b16 %v4736
  %v4769 = vunpack.c.l.b16 %v4737
  %v4770 = vunpack.c.l.b16 %v4738
  %v4771 = vunpack.c.l.b16 %v4739
  %v4772 = vunpack.c.l.b16 %v4740
  %v4773 = vunpack.c.l.b16 %v4741
  %v4774 = vunpack.c.l.b16 %v4742
  %v4775 = vunpack.c.l.b16 %v4743
  %v4776 = vunpack.c.l.b16 %v4744
  %v4777 = vunpack.c.l.b16 %v4745
  %v4778 = vunpack.c.l.b16 %v4746
  %v4779 = vpack.c.b16 %v4764, %v4763
  %v4780 = vpack.c.b16 %v4766, %v4765
  %v4781 = vpack.c.b16 %v4768, %v4767
  %v4782 = vpack.c.b16 %v4770, %v4769
  %v4783 = vpack.c.b16 %v4772, %v4771
  %v4784 = vpack.c.b16 %v4774, %v4773
  %v4785 = vpack.c.b16 %v4776, %v4775
  %v4786 = vpack.c.b16 %v4778, %v4777
  %4795 = vmatprep.subr.bf16.mxu0 0
  %4796 = vmatpush1.bf16.msra.mxu0 %v4779
  %4797 = vmatprep.subr.bf16.mxu0 0
  %4798 = vmatpush1.bf16.msra.mxu0 %v4780
  %4799 = vmatprep.subr.bf16.mxu0 0
  %4800 = vmatpush1.bf16.msra.mxu0 %v4781
  %4801 = vmatprep.subr.bf16.mxu0 0
  %4802 = vmatpush1.bf16.msra.mxu0 %v4782
  %4803 = vmatprep.subr.bf16.mxu0 0
  %4804 = vmatpush1.bf16.msra.mxu0 %v4783
  %4805 = vmatprep.subr.bf16.mxu0 0
  %4806 = vmatpush1.bf16.msra.mxu0 %v4784
  %4807 = vmatprep.subr.bf16.mxu0 0
  %4808 = vmatpush1.bf16.msra.mxu0 %v4785
  %4809 = vmatprep.subr.bf16.mxu0 0
  %4810 = vmatpush1.bf16.msra.mxu0 %v4786
  %4811 = vmatprep.subr.bf16.mxu0 0
  %4812 = vmatpush1.bf16.msra.mxu0 0
  %4813 = vmatprep.subr.bf16.mxu0 0
  %4814 = vmatpush1.bf16.msra.mxu0 0
  %4815 = vmatprep.subr.bf16.mxu0 0
  %4816 = vmatpush1.bf16.msra.mxu0 0
  %4817 = vmatprep.subr.bf16.mxu0 0
  %4818 = vmatpush1.bf16.msra.mxu0 0
  %4819 = vmatprep.subr.bf16.mxu0 0
  %4820 = vmatpush1.bf16.msra.mxu0 0
  %4821 = vmatprep.subr.bf16.mxu0 0
  %4822 = vmatpush1.bf16.msra.mxu0 0
  %4823 = vmatprep.subr.bf16.mxu0 0
  %4824 = vmatpush1.bf16.msra.mxu0 0
  %4825 = vmatprep.subr.bf16.mxu0 0
  %4826 = vmatpush1.bf16.msra.mxu0 0
  %4827 = vmatprep.mubr.bf16.mxu0 0
  %4828 = vmatmul.mubr.bf16.gmra.mrb[0].mxu0 %v4730
  %v4829 = vpop.f32.mrb[0].mxu0
  %v4830 = vadd.f32 0.0, %v4829
  %v4831 = vpop.f32.mrb[0].mxu0
  %v4832 = vpop.f32.mrb[0].mxu0
  %v4833 = vpop.f32.mrb[0].mxu0
  %4834 = vdwg.mxu0
  %v4835 = vadd.f32 %v4722, %v4830
  %v4836 = vmax.f32 %v4193, %v4194
  %v4837 = vmax.f32 %v4195, %v4196
  %4839 = vrot.lane.b32.xlu0 %v4837, 64
  %v4840 = vpop.permute.xlu0 %4839
  %v4842 = vsel %vm3383, %v4836, %v4840
  %v4843 = vpack.c.bf16 %v4842, %v4842
  %v4844 = vld [vmem:[%s5 + $0x140] sm:$0xf]
  %v4845 = vld [vmem:[%s5 + $0x144] sm:$0xf]
  %v4846 = vld [vmem:[%s5 + $0x148] sm:$0xf]
  %v4847 = vld [vmem:[%s5 + $0x14c] sm:$0xf]
  %v4848 = vld [vmem:[%s5 + $0x150] sm:$0xf]
  %v4849 = vld [vmem:[%s5 + $0x154] sm:$0xf]
  %v4850 = vld [vmem:[%s5 + $0x158] sm:$0xf]
  %v4851 = vld [vmem:[%s5 + $0x15c] sm:$0xf]
  %v4852 = vld [vmem:[%s5 + $0x160] sm:$0xf]
  %v4853 = vld [vmem:[%s5 + $0x164] sm:$0xf]
  %v4854 = vld [vmem:[%s5 + $0x168] sm:$0xf]
  %v4855 = vld [vmem:[%s5 + $0x16c] sm:$0xf]
  %v4856 = vld [vmem:[%s5 + $0x170] sm:$0xf]
  %v4857 = vld [vmem:[%s5 + $0x174] sm:$0xf]
  %v4858 = vld [vmem:[%s5 + $0x178] sm:$0xf]
  %v4859 = vld [vmem:[%s5 + $0x17c] sm:$0xf]
  %v4876 = vunpack.c.l.b16 %v4844
  %v4877 = vunpack.c.l.b16 %v4845
  %v4878 = vunpack.c.l.b16 %v4846
  %v4879 = vunpack.c.l.b16 %v4847
  %v4880 = vunpack.c.l.b16 %v4848
  %v4881 = vunpack.c.l.b16 %v4849
  %v4882 = vunpack.c.l.b16 %v4850
  %v4883 = vunpack.c.l.b16 %v4851
  %v4884 = vunpack.c.l.b16 %v4852
  %v4885 = vunpack.c.l.b16 %v4853
  %v4886 = vunpack.c.l.b16 %v4854
  %v4887 = vunpack.c.l.b16 %v4855
  %v4888 = vunpack.c.l.b16 %v4856
  %v4889 = vunpack.c.l.b16 %v4857
  %v4890 = vunpack.c.l.b16 %v4858
  %v4891 = vunpack.c.l.b16 %v4859
  %v4892 = vpack.c.b16 %v4877, %v4876
  %v4893 = vpack.c.b16 %v4879, %v4878
  %v4894 = vpack.c.b16 %v4881, %v4880
  %v4895 = vpack.c.b16 %v4883, %v4882
  %v4896 = vpack.c.b16 %v4885, %v4884
  %v4897 = vpack.c.b16 %v4887, %v4886
  %v4898 = vpack.c.b16 %v4889, %v4888
  %v4899 = vpack.c.b16 %v4891, %v4890
  %4908 = vmatprep.subr.bf16.mxu0 0
  %4909 = vmatpush1.bf16.msra.mxu0 %v4892
  %4910 = vmatprep.subr.bf16.mxu0 0
  %4911 = vmatpush1.bf16.msra.mxu0 %v4893
  %4912 = vmatprep.subr.bf16.mxu0 0
  %4913 = vmatpush1.bf16.msra.mxu0 %v4894
  %4914 = vmatprep.subr.bf16.mxu0 0
  %4915 = vmatpush1.bf16.msra.mxu0 %v4895
  %4916 = vmatprep.subr.bf16.mxu0 0
  %4917 = vmatpush1.bf16.msra.mxu0 %v4896
  %4918 = vmatprep.subr.bf16.mxu0 0
  %4919 = vmatpush1.bf16.msra.mxu0 %v4897
  %4920 = vmatprep.subr.bf16.mxu0 0
  %4921 = vmatpush1.bf16.msra.mxu0 %v4898
  %4922 = vmatprep.subr.bf16.mxu0 0
  %4923 = vmatpush1.bf16.msra.mxu0 %v4899
  %4924 = vmatprep.subr.bf16.mxu0 0
  %4925 = vmatpush1.bf16.msra.mxu0 0
  %4926 = vmatprep.subr.bf16.mxu0 0
  %4927 = vmatpush1.bf16.msra.mxu0 0
  %4928 = vmatprep.subr.bf16.mxu0 0
  %4929 = vmatpush1.bf16.msra.mxu0 0
  %4930 = vmatprep.subr.bf16.mxu0 0
  %4931 = vmatpush1.bf16.msra.mxu0 0
  %4932 = vmatprep.subr.bf16.mxu0 0
  %4933 = vmatpush1.bf16.msra.mxu0 0
  %4934 = vmatprep.subr.bf16.mxu0 0
  %4935 = vmatpush1.bf16.msra.mxu0 0
  %4936 = vmatprep.subr.bf16.mxu0 0
  %4937 = vmatpush1.bf16.msra.mxu0 0
  %4938 = vmatprep.subr.bf16.mxu0 0
  %4939 = vmatpush1.bf16.msra.mxu0 0
  %4940 = vmatprep.mubr.bf16.mxu0 0
  %4941 = vmatmul.mubr.bf16.gmra.mrb[0].mxu0 %v4843
  %v4942 = vpop.f32.mrb[0].mxu0
  %v4943 = vadd.f32 0.0, %v4942
  %v4944 = vpop.f32.mrb[0].mxu0
  %v4945 = vpop.f32.mrb[0].mxu0
  %v4946 = vpop.f32.mrb[0].mxu0
  %4947 = vdwg.mxu0
  %v4948 = vadd.f32 %v4835, %v4943
  %v4949 = vmax.f32 %v4197, %v4198
  %v4950 = vmax.f32 %v4199, %v4200
  %4952 = vrot.lane.b32.xlu0 %v4950, 64
  %v4953 = vpop.permute.xlu0 %4952
  %v4955 = vsel %vm3383, %v4949, %v4953
  %v4956 = vpack.c.bf16 %v4955, %v4955
  %v4957 = vld [vmem:[%s5 + $0x180] sm:$0xf]
  %v4958 = vld [vmem:[%s5 + $0x184] sm:$0xf]
  %v4959 = vld [vmem:[%s5 + $0x188] sm:$0xf]
  %v4960 = vld [vmem:[%s5 + $0x18c] sm:$0xf]
  %v4961 = vld [vmem:[%s5 + $0x190] sm:$0xf]
  %v4962 = vld [vmem:[%s5 + $0x194] sm:$0xf]
  %v4963 = vld [vmem:[%s5 + $0x198] sm:$0xf]
  %v4964 = vld [vmem:[%s5 + $0x19c] sm:$0xf]
  %v4965 = vld [vmem:[%s5 + $0x1a0] sm:$0xf]
  %v4966 = vld [vmem:[%s5 + $0x1a4] sm:$0xf]
  %v4967 = vld [vmem:[%s5 + $0x1a8] sm:$0xf]
  %v4968 = vld [vmem:[%s5 + $0x1ac] sm:$0xf]
  %v4969 = vld [vmem:[%s5 + $0x1b0] sm:$0xf]
  %v4970 = vld [vmem:[%s5 + $0x1b4] sm:$0xf]
  %v4971 = vld [vmem:[%s5 + $0x1b8] sm:$0xf]
  %v4972 = vld [vmem:[%s5 + $0x1bc] sm:$0xf]
  %v4989 = vunpack.c.l.b16 %v4957
  %v4990 = vunpack.c.l.b16 %v4958
  %v4991 = vunpack.c.l.b16 %v4959
  %v4992 = vunpack.c.l.b16 %v4960
  %v4993 = vunpack.c.l.b16 %v4961
  %v4994 = vunpack.c.l.b16 %v4962
  %v4995 = vunpack.c.l.b16 %v4963
  %v4996 = vunpack.c.l.b16 %v4964
  %v4997 = vunpack.c.l.b16 %v4965
  %v4998 = vunpack.c.l.b16 %v4966
  %v4999 = vunpack.c.l.b16 %v4967
  %v5000 = vunpack.c.l.b16 %v4968
  %v5001 = vunpack.c.l.b16 %v4969
  %v5002 = vunpack.c.l.b16 %v4970
  %v5003 = vunpack.c.l.b16 %v4971
  %v5004 = vunpack.c.l.b16 %v4972
  %v5005 = vpack.c.b16 %v4990, %v4989
  %v5006 = vpack.c.b16 %v4992, %v4991
  %v5007 = vpack.c.b16 %v4994, %v4993
  %v5008 = vpack.c.b16 %v4996, %v4995
  %v5009 = vpack.c.b16 %v4998, %v4997
  %v5010 = vpack.c.b16 %v5000, %v4999
  %v5011 = vpack.c.b16 %v5002, %v5001
  %v5012 = vpack.c.b16 %v5004, %v5003
  %5021 = vmatprep.subr.bf16.mxu0 0
  %5022 = vmatpush1.bf16.msra.mxu0 %v5005
  %5023 = vmatprep.subr.bf16.mxu0 0
  %5024 = vmatpush1.bf16.msra.mxu0 %v5006
  %5025 = vmatprep.subr.bf16.mxu0 0
  %5026 = vmatpush1.bf16.msra.mxu0 %v5007
  %5027 = vmatprep.subr.bf16.mxu0 0
  %5028 = vmatpush1.bf16.msra.mxu0 %v5008
  %5029 = vmatprep.subr.bf16.mxu0 0
  %5030 = vmatpush1.bf16.msra.mxu0 %v5009
  %5031 = vmatprep.subr.bf16.mxu0 0
  %5032 = vmatpush1.bf16.msra.mxu0 %v5010
  %5033 = vmatprep.subr.bf16.mxu0 0
  %5034 = vmatpush1.bf16.msra.mxu0 %v5011
  %5035 = vmatprep.subr.bf16.mxu0 0
  %5036 = vmatpush1.bf16.msra.mxu0 %v5012
  %5037 = vmatprep.subr.bf16.mxu0 0
  %5038 = vmatpush1.bf16.msra.mxu0 0
  %5039 = vmatprep.subr.bf16.mxu0 0
  %5040 = vmatpush1.bf16.msra.mxu0 0
  %5041 = vmatprep.subr.bf16.mxu0 0
  %5042 = vmatpush1.bf16.msra.mxu0 0
  %5043 = vmatprep.subr.bf16.mxu0 0
  %5044 = vmatpush1.bf16.msra.mxu0 0
  %5045 = vmatprep.subr.bf16.mxu0 0
  %5046 = vmatpush1.bf16.msra.mxu0 0
  %5047 = vmatprep.subr.bf16.mxu0 0
  %5048 = vmatpush1.bf16.msra.mxu0 0
  %5049 = vmatprep.subr.bf16.mxu0 0
  %5050 = vmatpush1.bf16.msra.mxu0 0
  %5051 = vmatprep.subr.bf16.mxu0 0
  %5052 = vmatpush1.bf16.msra.mxu0 0
  %5053 = vmatprep.mubr.bf16.mxu0 0
  %5054 = vmatmul.mubr.bf16.gmra.mrb[0].mxu0 %v4956
  %v5055 = vpop.f32.mrb[0].mxu0
  %v5056 = vadd.f32 0.0, %v5055
  %v5057 = vpop.f32.mrb[0].mxu0
  %v5058 = vpop.f32.mrb[0].mxu0
  %v5059 = vpop.f32.mrb[0].mxu0
  %5060 = vdwg.mxu0
  %v5061 = vadd.f32 %v4948, %v5056
  %v5062 = vmax.f32 %v4201, %v4202
  %v5063 = vmax.f32 %v4203, %v4204
  %5065 = vrot.lane.b32.xlu0 %v5063, 64
  %v5066 = vpop.permute.xlu0 %5065
  %v5068 = vsel %vm3383, %v5062, %v5066
  %v5069 = vpack.c.bf16 %v5068, %v5068
  %v5070 = vld [vmem:[%s5 + $0x1c0] sm:$0xf]
  %v5071 = vld [vmem:[%s5 + $0x1c4] sm:$0xf]
  %v5072 = vld [vmem:[%s5 + $0x1c8] sm:$0xf]
  %v5073 = vld [vmem:[%s5 + $0x1cc] sm:$0xf]
  %v5074 = vld [vmem:[%s5 + $0x1d0] sm:$0xf]
  %v5075 = vld [vmem:[%s5 + $0x1d4] sm:$0xf]
  %v5076 = vld [vmem:[%s5 + $0x1d8] sm:$0xf]
  %v5077 = vld [vmem:[%s5 + $0x1dc] sm:$0xf]
  %v5078 = vld [vmem:[%s5 + $0x1e0] sm:$0xf]
  %v5079 = vld [vmem:[%s5 + $0x1e4] sm:$0xf]
  %v5080 = vld [vmem:[%s5 + $0x1e8] sm:$0xf]
  %v5081 = vld [vmem:[%s5 + $0x1ec] sm:$0xf]
  %v5082 = vld [vmem:[%s5 + $0x1f0] sm:$0xf]
  %v5083 = vld [vmem:[%s5 + $0x1f4] sm:$0xf]
  %v5084 = vld [vmem:[%s5 + $0x1f8] sm:$0xf]
  %v5085 = vld [vmem:[%s5 + $0x1fc] sm:$0xf]
  %v5102 = vunpack.c.l.b16 %v5070
  %v5103 = vunpack.c.l.b16 %v5071
  %v5104 = vunpack.c.l.b16 %v5072
  %v5105 = vunpack.c.l.b16 %v5073
  %v5106 = vunpack.c.l.b16 %v5074
  %v5107 = vunpack.c.l.b16 %v5075
  %v5108 = vunpack.c.l.b16 %v5076
  %v5109 = vunpack.c.l.b16 %v5077
  %v5110 = vunpack.c.l.b16 %v5078
  %v5111 = vunpack.c.l.b16 %v5079
  %v5112 = vunpack.c.l.b16 %v5080
  %v5113 = vunpack.c.l.b16 %v5081
  %v5114 = vunpack.c.l.b16 %v5082
  %v5115 = vunpack.c.l.b16 %v5083
  %v5116 = vunpack.c.l.b16 %v5084
  %v5117 = vunpack.c.l.b16 %v5085
  %v5118 = vpack.c.b16 %v5103, %v5102
  %v5119 = vpack.c.b16 %v5105, %v5104
  %v5120 = vpack.c.b16 %v5107, %v5106
  %v5121 = vpack.c.b16 %v5109, %v5108
  %v5122 = vpack.c.b16 %v5111, %v5110
  %v5123 = vpack.c.b16 %v5113, %v5112
  %v5124 = vpack.c.b16 %v5115, %v5114
  %v5125 = vpack.c.b16 %v5117, %v5116
  %5134 = vmatprep.subr.bf16.mxu0 0
  %5135 = vmatpush1.bf16.msra.mxu0 %v5118
  %5136 = vmatprep.subr.bf16.mxu0 0
  %5137 = vmatpush1.bf16.msra.mxu0 %v5119
  %5138 = vmatprep.subr.bf16.mxu0 0
  %5139 = vmatpush1.bf16.msra.mxu0 %v5120
  %5140 = vmatprep.subr.bf16.mxu0 0
  %5141 = vmatpush1.bf16.msra.mxu0 %v5121
  %5142 = vmatprep.subr.bf16.mxu0 0
  %5143 = vmatpush1.bf16.msra.mxu0 %v5122
  %5144 = vmatprep.subr.bf16.mxu0 0
  %5145 = vmatpush1.bf16.msra.mxu0 %v5123
  %5146 = vmatprep.subr.bf16.mxu0 0
  %5147 = vmatpush1.bf16.msra.mxu0 %v5124
  %5148 = vmatprep.subr.bf16.mxu0 0
  %5149 = vmatpush1.bf16.msra.mxu0 %v5125
  %5150 = vmatprep.subr.bf16.mxu0 0
  %5151 = vmatpush1.bf16.msra.mxu0 0
  %5152 = vmatprep.subr.bf16.mxu0 0
  %5153 = vmatpush1.bf16.msra.mxu0 0
  %5154 = vmatprep.subr.bf16.mxu0 0
  %5155 = vmatpush1.bf16.msra.mxu0 0
  %5156 = vmatprep.subr.bf16.mxu0 0
  %5157 = vmatpush1.bf16.msra.mxu0 0
  %5158 = vmatprep.subr.bf16.mxu0 0
  %5159 = vmatpush1.bf16.msra.mxu0 0
  %5160 = vmatprep.subr.bf16.mxu0 0
  %5161 = vmatpush1.bf16.msra.mxu0 0
  %5162 = vmatprep.subr.bf16.mxu0 0
  %5163 = vmatpush1.bf16.msra.mxu0 0
  %5164 = vmatprep.subr.bf16.mxu0 0
  %5165 = vmatpush1.bf16.msra.mxu0 0
  %5166 = vmatprep.mubr.bf16.mxu0 0
  %5167 = vmatmul.mubr.bf16.gmra.mrb[0].mxu0 %v5069
  %v5168 = vpop.f32.mrb[0].mxu0
  %v5169 = vadd.f32 0.0, %v5168
  %v5170 = vpop.f32.mrb[0].mxu0
  %v5171 = vpop.f32.mrb[0].mxu0
  %v5172 = vpop.f32.mrb[0].mxu0
  %5173 = vdwg.mxu0
  %v5174 = vadd.f32 %v5061, %v5169
  %v5175 = vmax.f32 %v4205, %v4206
  %v5176 = vmax.f32 %v4207, %v4208
  %5178 = vrot.lane.b32.xlu0 %v5176, 64
  %v5179 = vpop.permute.xlu0 %5178
  %v5181 = vsel %vm3383, %v5175, %v5179
  %v5182 = vpack.c.bf16 %v5181, %v5181
  %v5183 = vld [vmem:[%s5 + $0x200] sm:$0xf]
  %v5184 = vld [vmem:[%s5 + $0x204] sm:$0xf]
  %v5185 = vld [vmem:[%s5 + $0x208] sm:$0xf]
  %v5186 = vld [vmem:[%s5 + $0x20c] sm:$0xf]
  %v5187 = vld [vmem:[%s5 + $0x210] sm:$0xf]
  %v5188 = vld [vmem:[%s5 + $0x214] sm:$0xf]
  %v5189 = vld [vmem:[%s5 + $0x218] sm:$0xf]
  %v5190 = vld [vmem:[%s5 + $0x21c] sm:$0xf]
  %v5191 = vld [vmem:[%s5 + $0x220] sm:$0xf]
  %v5192 = vld [vmem:[%s5 + $0x224] sm:$0xf]
  %v5193 = vld [vmem:[%s5 + $0x228] sm:$0xf]
  %v5194 = vld [vmem:[%s5 + $0x22c] sm:$0xf]
  %v5195 = vld [vmem:[%s5 + $0x230] sm:$0xf]
  %v5196 = vld [vmem:[%s5 + $0x234] sm:$0xf]
  %v5197 = vld [vmem:[%s5 + $0x238] sm:$0xf]
  %v5198 = vld [vmem:[%s5 + $0x23c] sm:$0xf]
  %v5215 = vunpack.c.l.b16 %v5183
  %v5216 = vunpack.c.l.b16 %v5184
  %v5217 = vunpack.c.l.b16 %v5185
  %v5218 = vunpack.c.l.b16 %v5186
  %v5219 = vunpack.c.l.b16 %v5187
  %v5220 = vunpack.c.l.b16 %v5188
  %v5221 = vunpack.c.l.b16 %v5189
  %v5222 = vunpack.c.l.b16 %v5190
  %v5223 = vunpack.c.l.b16 %v5191
  %v5224 = vunpack.c.l.b16 %v5192
  %v5225 = vunpack.c.l.b16 %v5193
  %v5226 = vunpack.c.l.b16 %v5194
  %v5227 = vunpack.c.l.b16 %v5195
  %v5228 = vunpack.c.l.b16 %v5196
  %v5229 = vunpack.c.l.b16 %v5197
  %v5230 = vunpack.c.l.b16 %v5198
  %v5231 = vpack.c.b16 %v5216, %v5215
  %v5232 = vpack.c.b16 %v5218, %v5217
  %v5233 = vpack.c.b16 %v5220, %v5219
  %v5234 = vpack.c.b16 %v5222, %v5221
  %v5235 = vpack.c.b16 %v5224, %v5223
  %v5236 = vpack.c.b16 %v5226, %v5225
  %v5237 = vpack.c.b16 %v5228, %v5227
  %v5238 = vpack.c.b16 %v5230, %v5229
  %5247 = vmatprep.subr.bf16.mxu0 0
  %5248 = vmatpush1.bf16.msra.mxu0 %v5231
  %5249 = vmatprep.subr.bf16.mxu0 0
  %5250 = vmatpush1.bf16.msra.mxu0 %v5232
  %5251 = vmatprep.subr.bf16.mxu0 0
  %5252 = vmatpush1.bf16.msra.mxu0 %v5233
  %5253 = vmatprep.subr.bf16.mxu0 0
  %5254 = vmatpush1.bf16.msra.mxu0 %v5234
  %5255 = vmatprep.subr.bf16.mxu0 0
  %5256 = vmatpush1.bf16.msra.mxu0 %v5235
  %5257 = vmatprep.subr.bf16.mxu0 0
  %5258 = vmatpush1.bf16.msra.mxu0 %v5236
  %5259 = vmatprep.subr.bf16.mxu0 0
  %5260 = vmatpush1.bf16.msra.mxu0 %v5237
  %5261 = vmatprep.subr.bf16.mxu0 0
  %5262 = vmatpush1.bf16.msra.mxu0 %v5238
  %5263 = vmatprep.subr.bf16.mxu0 0
  %5264 = vmatpush1.bf16.msra.mxu0 0
  %5265 = vmatprep.subr.bf16.mxu0 0
  %5266 = vmatpush1.bf16.msra.mxu0 0
  %5267 = vmatprep.subr.bf16.mxu0 0
  %5268 = vmatpush1.bf16.msra.mxu0 0
  %5269 = vmatprep.subr.bf16.mxu0 0
  %5270 = vmatpush1.bf16.msra.mxu0 0
  %5271 = vmatprep.subr.bf16.mxu0 0
  %5272 = vmatpush1.bf16.msra.mxu0 0
  %5273 = vmatprep.subr.bf16.mxu0 0
  %5274 = vmatpush1.bf16.msra.mxu0 0
  %5275 = vmatprep.subr.bf16.mxu0 0
  %5276 = vmatpush1.bf16.msra.mxu0 0
  %5277 = vmatprep.subr.bf16.mxu0 0
  %5278 = vmatpush1.bf16.msra.mxu0 0
  %5279 = vmatprep.mubr.bf16.mxu0 0
  %5280 = vmatmul.mubr.bf16.gmra.mrb[0].mxu0 %v5182
  %v5281 = vpop.f32.mrb[0].mxu0
  %v5282 = vadd.f32 0.0, %v5281
  %v5283 = vpop.f32.mrb[0].mxu0
  %v5284 = vpop.f32.mrb[0].mxu0
  %v5285 = vpop.f32.mrb[0].mxu0
  %5286 = vdwg.mxu0
  %v5287 = vadd.f32 %v5174, %v5282
  %v5288 = vmax.f32 %v4209, %v4210
  %v5289 = vmax.f32 %v4211, %v4212
  %5291 = vrot.lane.b32.xlu0 %v5289, 64
  %v5292 = vpop.permute.xlu0 %5291
  %v5294 = vsel %vm3383, %v5288, %v5292
  %v5295 = vpack.c.bf16 %v5294, %v5294
  %v5296 = vld [vmem:[%s5 + $0x240] sm:$0xf]
  %v5297 = vld [vmem:[%s5 + $0x244] sm:$0xf]
  %v5298 = vld [vmem:[%s5 + $0x248] sm:$0xf]
  %v5299 = vld [vmem:[%s5 + $0x24c] sm:$0xf]
  %v5300 = vld [vmem:[%s5 + $0x250] sm:$0xf]
  %v5301 = vld [vmem:[%s5 + $0x254] sm:$0xf]
  %v5302 = vld [vmem:[%s5 + $0x258] sm:$0xf]
  %v5303 = vld [vmem:[%s5 + $0x25c] sm:$0xf]
  %v5304 = vld [vmem:[%s5 + $0x260] sm:$0xf]
  %v5305 = vld [vmem:[%s5 + $0x264] sm:$0xf]
  %v5306 = vld [vmem:[%s5 + $0x268] sm:$0xf]
  %v5307 = vld [vmem:[%s5 + $0x26c] sm:$0xf]
  %v5308 = vld [vmem:[%s5 + $0x270] sm:$0xf]
  %v5309 = vld [vmem:[%s5 + $0x274] sm:$0xf]
  %v5310 = vld [vmem:[%s5 + $0x278] sm:$0xf]
  %v5311 = vld [vmem:[%s5 + $0x27c] sm:$0xf]
  %v5328 = vunpack.c.l.b16 %v5296
  %v5329 = vunpack.c.l.b16 %v5297
  %v5330 = vunpack.c.l.b16 %v5298
  %v5331 = vunpack.c.l.b16 %v5299
  %v5332 = vunpack.c.l.b16 %v5300
  %v5333 = vunpack.c.l.b16 %v5301
  %v5334 = vunpack.c.l.b16 %v5302
  %v5335 = vunpack.c.l.b16 %v5303
  %v5336 = vunpack.c.l.b16 %v5304
  %v5337 = vunpack.c.l.b16 %v5305
  %v5338 = vunpack.c.l.b16 %v5306
  %v5339 = vunpack.c.l.b16 %v5307
  %v5340 = vunpack.c.l.b16 %v5308
  %v5341 = vunpack.c.l.b16 %v5309
  %v5342 = vunpack.c.l.b16 %v5310
  %v5343 = vunpack.c.l.b16 %v5311
  %v5344 = vpack.c.b16 %v5329, %v5328
  %v5345 = vpack.c.b16 %v5331, %v5330
  %v5346 = vpack.c.b16 %v5333, %v5332
  %v5347 = vpack.c.b16 %v5335, %v5334
  %v5348 = vpack.c.b16 %v5337, %v5336
  %v5349 = vpack.c.b16 %v5339, %v5338
  %v5350 = vpack.c.b16 %v5341, %v5340
  %v5351 = vpack.c.b16 %v5343, %v5342
  %5360 = vmatprep.subr.bf16.mxu0 0
  %5361 = vmatpush1.bf16.msra.mxu0 %v5344
  %5362 = vmatprep.subr.bf16.mxu0 0
  %5363 = vmatpush1.bf16.msra.mxu0 %v5345
  %5364 = vmatprep.subr.bf16.mxu0 0
  %5365 = vmatpush1.bf16.msra.mxu0 %v5346
  %5366 = vmatprep.subr.bf16.mxu0 0
  %5367 = vmatpush1.bf16.msra.mxu0 %v5347
  %5368 = vmatprep.subr.bf16.mxu0 0
  %5369 = vmatpush1.bf16.msra.mxu0 %v5348
  %5370 = vmatprep.subr.bf16.mxu0 0
  %5371 = vmatpush1.bf16.msra.mxu0 %v5349
  %5372 = vmatprep.subr.bf16.mxu0 0
  %5373 = vmatpush1.bf16.msra.mxu0 %v5350
  %5374 = vmatprep.subr.bf16.mxu0 0
  %5375 = vmatpush1.bf16.msra.mxu0 %v5351
  %5376 = vmatprep.subr.bf16.mxu0 0
  %5377 = vmatpush1.bf16.msra.mxu0 0
  %5378 = vmatprep.subr.bf16.mxu0 0
  %5379 = vmatpush1.bf16.msra.mxu0 0
  %5380 = vmatprep.subr.bf16.mxu0 0
  %5381 = vmatpush1.bf16.msra.mxu0 0
  %5382 = vmatprep.subr.bf16.mxu0 0
  %5383 = vmatpush1.bf16.msra.mxu0 0
  %5384 = vmatprep.subr.bf16.mxu0 0
  %5385 = vmatpush1.bf16.msra.mxu0 0
  %5386 = vmatprep.subr.bf16.mxu0 0
  %5387 = vmatpush1.bf16.msra.mxu0 0
  %5388 = vmatprep.subr.bf16.mxu0 0
  %5389 = vmatpush1.bf16.msra.mxu0 0
  %5390 = vmatprep.subr.bf16.mxu0 0
  %5391 = vmatpush1.bf16.msra.mxu0 0
  %5392 = vmatprep.mubr.bf16.mxu0 0
  %5393 = vmatmul.mubr.bf16.gmra.mrb[0].mxu0 %v5295
  %v5394 = vpop.f32.mrb[0].mxu0
  %v5395 = vadd.f32 0.0, %v5394
  %v5396 = vpop.f32.mrb[0].mxu0
  %v5397 = vpop.f32.mrb[0].mxu0
  %v5398 = vpop.f32.mrb[0].mxu0
  %5399 = vdwg.mxu0
  %v5400 = vadd.f32 %v5287, %v5395
  %v5401 = vmax.f32 %v4213, %v4214
  %v5402 = vmax.f32 %v4215, %v4216
  %5404 = vrot.lane.b32.xlu0 %v5402, 64
  %v5405 = vpop.permute.xlu0 %5404
  %v5407 = vsel %vm3383, %v5401, %v5405
  %v5408 = vpack.c.bf16 %v5407, %v5407
  %v5409 = vld [vmem:[%s5 + $0x280] sm:$0xf]
  %v5410 = vld [vmem:[%s5 + $0x284] sm:$0xf]
  %v5411 = vld [vmem:[%s5 + $0x288] sm:$0xf]
  %v5412 = vld [vmem:[%s5 + $0x28c] sm:$0xf]
  %v5413 = vld [vmem:[%s5 + $0x290] sm:$0xf]
  %v5414 = vld [vmem:[%s5 + $0x294] sm:$0xf]
  %v5415 = vld [vmem:[%s5 + $0x298] sm:$0xf]
  %v5416 = vld [vmem:[%s5 + $0x29c] sm:$0xf]
  %v5417 = vld [vmem:[%s5 + $0x2a0] sm:$0xf]
  %v5418 = vld [vmem:[%s5 + $0x2a4] sm:$0xf]
  %v5419 = vld [vmem:[%s5 + $0x2a8] sm:$0xf]
  %v5420 = vld [vmem:[%s5 + $0x2ac] sm:$0xf]
  %v5421 = vld [vmem:[%s5 + $0x2b0] sm:$0xf]
  %v5422 = vld [vmem:[%s5 + $0x2b4] sm:$0xf]
  %v5423 = vld [vmem:[%s5 + $0x2b8] sm:$0xf]
  %v5424 = vld [vmem:[%s5 + $0x2bc] sm:$0xf]
  %v5441 = vunpack.c.l.b16 %v5409
  %v5442 = vunpack.c.l.b16 %v5410
  %v5443 = vunpack.c.l.b16 %v5411
  %v5444 = vunpack.c.l.b16 %v5412
  %v5445 = vunpack.c.l.b16 %v5413
  %v5446 = vunpack.c.l.b16 %v5414
  %v5447 = vunpack.c.l.b16 %v5415
  %v5448 = vunpack.c.l.b16 %v5416
  %v5449 = vunpack.c.l.b16 %v5417
  %v5450 = vunpack.c.l.b16 %v5418
  %v5451 = vunpack.c.l.b16 %v5419
  %v5452 = vunpack.c.l.b16 %v5420
  %v5453 = vunpack.c.l.b16 %v5421
  %v5454 = vunpack.c.l.b16 %v5422
  %v5455 = vunpack.c.l.b16 %v5423
  %v5456 = vunpack.c.l.b16 %v5424
  %v5457 = vpack.c.b16 %v5442, %v5441
  %v5458 = vpack.c.b16 %v5444, %v5443
  %v5459 = vpack.c.b16 %v5446, %v5445
  %v5460 = vpack.c.b16 %v5448, %v5447
  %v5461 = vpack.c.b16 %v5450, %v5449
  %v5462 = vpack.c.b16 %v5452, %v5451
  %v5463 = vpack.c.b16 %v5454, %v5453
  %v5464 = vpack.c.b16 %v5456, %v5455
  %5473 = vmatprep.subr.bf16.mxu0 0
  %5474 = vmatpush1.bf16.msra.mxu0 %v5457
  %5475 = vmatprep.subr.bf16.mxu0 0
  %5476 = vmatpush1.bf16.msra.mxu0 %v5458
  %5477 = vmatprep.subr.bf16.mxu0 0
  %5478 = vmatpush1.bf16.msra.mxu0 %v5459
  %5479 = vmatprep.subr.bf16.mxu0 0
  %5480 = vmatpush1.bf16.msra.mxu0 %v5460
  %5481 = vmatprep.subr.bf16.mxu0 0
  %5482 = vmatpush1.bf16.msra.mxu0 %v5461
  %5483 = vmatprep.subr.bf16.mxu0 0
  %5484 = vmatpush1.bf16.msra.mxu0 %v5462
  %5485 = vmatprep.subr.bf16.mxu0 0
  %5486 = vmatpush1.bf16.msra.mxu0 %v5463
  %5487 = vmatprep.subr.bf16.mxu0 0
  %5488 = vmatpush1.bf16.msra.mxu0 %v5464
  %5489 = vmatprep.subr.bf16.mxu0 0
  %5490 = vmatpush1.bf16.msra.mxu0 0
  %5491 = vmatprep.subr.bf16.mxu0 0
  %5492 = vmatpush1.bf16.msra.mxu0 0
  %5493 = vmatprep.subr.bf16.mxu0 0
  %5494 = vmatpush1.bf16.msra.mxu0 0
  %5495 = vmatprep.subr.bf16.mxu0 0
  %5496 = vmatpush1.bf16.msra.mxu0 0
  %5497 = vmatprep.subr.bf16.mxu0 0
  %5498 = vmatpush1.bf16.msra.mxu0 0
  %5499 = vmatprep.subr.bf16.mxu0 0
  %5500 = vmatpush1.bf16.msra.mxu0 0
  %5501 = vmatprep.subr.bf16.mxu0 0
  %5502 = vmatpush1.bf16.msra.mxu0 0
  %5503 = vmatprep.subr.bf16.mxu0 0
  %5504 = vmatpush1.bf16.msra.mxu0 0
  %5505 = vmatprep.mubr.bf16.mxu0 0
  %5506 = vmatmul.mubr.bf16.gmra.mrb[0].mxu0 %v5408
  %v5507 = vpop.f32.mrb[0].mxu0
  %v5508 = vadd.f32 0.0, %v5507
  %v5509 = vpop.f32.mrb[0].mxu0
  %v5510 = vpop.f32.mrb[0].mxu0
  %v5511 = vpop.f32.mrb[0].mxu0
  %5512 = vdwg.mxu0
  %v5513 = vadd.f32 %v5400, %v5508
  %v5514 = vmax.f32 %v4217, %v4218
  %v5515 = vmax.f32 %v4219, %v4220
  %5517 = vrot.lane.b32.xlu0 %v5515, 64
  %v5518 = vpop.permute.xlu0 %5517
  %v5520 = vsel %vm3383, %v5514, %v5518
  %v5521 = vpack.c.bf16 %v5520, %v5520
  %v5522 = vld [vmem:[%s5 + $0x2c0] sm:$0xf]
  %v5523 = vld [vmem:[%s5 + $0x2c4] sm:$0xf]
  %v5524 = vld [vmem:[%s5 + $0x2c8] sm:$0xf]
  %v5525 = vld [vmem:[%s5 + $0x2cc] sm:$0xf]
  %v5526 = vld [vmem:[%s5 + $0x2d0] sm:$0xf]
  %v5527 = vld [vmem:[%s5 + $0x2d4] sm:$0xf]
  %v5528 = vld [vmem:[%s5 + $0x2d8] sm:$0xf]
  %v5529 = vld [vmem:[%s5 + $0x2dc] sm:$0xf]
  %v5530 = vld [vmem:[%s5 + $0x2e0] sm:$0xf]
  %v5531 = vld [vmem:[%s5 + $0x2e4] sm:$0xf]
  %v5532 = vld [vmem:[%s5 + $0x2e8] sm:$0xf]
  %v5533 = vld [vmem:[%s5 + $0x2ec] sm:$0xf]
  %v5534 = vld [vmem:[%s5 + $0x2f0] sm:$0xf]
  %v5535 = vld [vmem:[%s5 + $0x2f4] sm:$0xf]
  %v5536 = vld [vmem:[%s5 + $0x2f8] sm:$0xf]
  %v5537 = vld [vmem:[%s5 + $0x2fc] sm:$0xf]
  %v5554 = vunpack.c.l.b16 %v5522
  %v5555 = vunpack.c.l.b16 %v5523
  %v5556 = vunpack.c.l.b16 %v5524
  %v5557 = vunpack.c.l.b16 %v5525
  %v5558 = vunpack.c.l.b16 %v5526
  %v5559 = vunpack.c.l.b16 %v5527
  %v5560 = vunpack.c.l.b16 %v5528
  %v5561 = vunpack.c.l.b16 %v5529
  %v5562 = vunpack.c.l.b16 %v5530
  %v5563 = vunpack.c.l.b16 %v5531
  %v5564 = vunpack.c.l.b16 %v5532
  %v5565 = vunpack.c.l.b16 %v5533
  %v5566 = vunpack.c.l.b16 %v5534
  %v5567 = vunpack.c.l.b16 %v5535
  %v5568 = vunpack.c.l.b16 %v5536
  %v5569 = vunpack.c.l.b16 %v5537
  %v5570 = vpack.c.b16 %v5555, %v5554
  %v5571 = vpack.c.b16 %v5557, %v5556
  %v5572 = vpack.c.b16 %v5559, %v5558
  %v5573 = vpack.c.b16 %v5561, %v5560
  %v5574 = vpack.c.b16 %v5563, %v5562
  %v5575 = vpack.c.b16 %v5565, %v5564
  %v5576 = vpack.c.b16 %v5567, %v5566
  %v5577 = vpack.c.b16 %v5569, %v5568
  %5586 = vmatprep.subr.bf16.mxu0 0
  %5587 = vmatpush1.bf16.msra.mxu0 %v5570
  %5588 = vmatprep.subr.bf16.mxu0 0
  %5589 = vmatpush1.bf16.msra.mxu0 %v5571
  %5590 = vmatprep.subr.bf16.mxu0 0
  %5591 = vmatpush1.bf16.msra.mxu0 %v5572
  %5592 = vmatprep.subr.bf16.mxu0 0
  %5593 = vmatpush1.bf16.msra.mxu0 %v5573
  %5594 = vmatprep.subr.bf16.mxu0 0
  %5595 = vmatpush1.bf16.msra.mxu0 %v5574
  %5596 = vmatprep.subr.bf16.mxu0 0
  %5597 = vmatpush1.bf16.msra.mxu0 %v5575
  %5598 = vmatprep.subr.bf16.mxu0 0
  %5599 = vmatpush1.bf16.msra.mxu0 %v5576
  %5600 = vmatprep.subr.bf16.mxu0 0
  %5601 = vmatpush1.bf16.msra.mxu0 %v5577
  %5602 = vmatprep.subr.bf16.mxu0 0
  %5603 = vmatpush1.bf16.msra.mxu0 0
  %5604 = vmatprep.subr.bf16.mxu0 0
  %5605 = vmatpush1.bf16.msra.mxu0 0
  %5606 = vmatprep.subr.bf16.mxu0 0
  %5607 = vmatpush1.bf16.msra.mxu0 0
  %5608 = vmatprep.subr.bf16.mxu0 0
  %5609 = vmatpush1.bf16.msra.mxu0 0
  %5610 = vmatprep.subr.bf16.mxu0 0
  %5611 = vmatpush1.bf16.msra.mxu0 0
  %5612 = vmatprep.subr.bf16.mxu0 0
  %5613 = vmatpush1.bf16.msra.mxu0 0
  %5614 = vmatprep.subr.bf16.mxu0 0
  %5615 = vmatpush1.bf16.msra.mxu0 0
  %5616 = vmatprep.subr.bf16.mxu0 0
  %5617 = vmatpush1.bf16.msra.mxu0 0
  %5618 = vmatprep.mubr.bf16.mxu0 0
  %5619 = vmatmul.mubr.bf16.gmra.mrb[0].mxu0 %v5521
  %v5620 = vpop.f32.mrb[0].mxu0
  %v5621 = vadd.f32 0.0, %v5620
  %v5622 = vpop.f32.mrb[0].mxu0
  %v5623 = vpop.f32.mrb[0].mxu0
  %v5624 = vpop.f32.mrb[0].mxu0
  %5625 = vdwg.mxu0
  %v5626 = vadd.f32 %v5513, %v5621
  %v5627 = vmax.f32 %v4221, %v4222
  %v5628 = vmax.f32 %v4223, %v4224
  %5630 = vrot.lane.b32.xlu0 %v5628, 64
  %v5631 = vpop.permute.xlu0 %5630
  %v5633 = vsel %vm3383, %v5627, %v5631
  %v5634 = vpack.c.bf16 %v5633, %v5633
  %v5635 = vld [vmem:[%s5 + $0x300] sm:$0xf]
  %v5636 = vld [vmem:[%s5 + $0x304] sm:$0xf]
  %v5637 = vld [vmem:[%s5 + $0x308] sm:$0xf]
  %v5638 = vld [vmem:[%s5 + $0x30c] sm:$0xf]
  %v5639 = vld [vmem:[%s5 + $0x310] sm:$0xf]
  %v5640 = vld [vmem:[%s5 + $0x314] sm:$0xf]
  %v5641 = vld [vmem:[%s5 + $0x318] sm:$0xf]
  %v5642 = vld [vmem:[%s5 + $0x31c] sm:$0xf]
  %v5643 = vld [vmem:[%s5 + $0x320] sm:$0xf]
  %v5644 = vld [vmem:[%s5 + $0x324] sm:$0xf]
  %v5645 = vld [vmem:[%s5 + $0x328] sm:$0xf]
  %v5646 = vld [vmem:[%s5 + $0x32c] sm:$0xf]
  %v5647 = vld [vmem:[%s5 + $0x330] sm:$0xf]
  %v5648 = vld [vmem:[%s5 + $0x334] sm:$0xf]
  %v5649 = vld [vmem:[%s5 + $0x338] sm:$0xf]
  %v5650 = vld [vmem:[%s5 + $0x33c] sm:$0xf]
  %v5667 = vunpack.c.l.b16 %v5635
  %v5668 = vunpack.c.l.b16 %v5636
  %v5669 = vunpack.c.l.b16 %v5637
  %v5670 = vunpack.c.l.b16 %v5638
  %v5671 = vunpack.c.l.b16 %v5639
  %v5672 = vunpack.c.l.b16 %v5640
  %v5673 = vunpack.c.l.b16 %v5641
  %v5674 = vunpack.c.l.b16 %v5642
  %v5675 = vunpack.c.l.b16 %v5643
  %v5676 = vunpack.c.l.b16 %v5644
  %v5677 = vunpack.c.l.b16 %v5645
  %v5678 = vunpack.c.l.b16 %v5646
  %v5679 = vunpack.c.l.b16 %v5647
  %v5680 = vunpack.c.l.b16 %v5648
  %v5681 = vunpack.c.l.b16 %v5649
  %v5682 = vunpack.c.l.b16 %v5650
  %v5683 = vpack.c.b16 %v5668, %v5667
  %v5684 = vpack.c.b16 %v5670, %v5669
  %v5685 = vpack.c.b16 %v5672, %v5671
  %v5686 = vpack.c.b16 %v5674, %v5673
  %v5687 = vpack.c.b16 %v5676, %v5675
  %v5688 = vpack.c.b16 %v5678, %v5677
  %v5689 = vpack.c.b16 %v5680, %v5679
  %v5690 = vpack.c.b16 %v5682, %v5681
  %5699 = vmatprep.subr.bf16.mxu0 0
  %5700 = vmatpush1.bf16.msra.mxu0 %v5683
  %5701 = vmatprep.subr.bf16.mxu0 0
  %5702 = vmatpush1.bf16.msra.mxu0 %v5684
  %5703 = vmatprep.subr.bf16.mxu0 0
  %5704 = vmatpush1.bf16.msra.mxu0 %v5685
  %5705 = vmatprep.subr.bf16.mxu0 0
  %5706 = vmatpush1.bf16.msra.mxu0 %v5686
  %5707 = vmatprep.subr.bf16.mxu0 0
  %5708 = vmatpush1.bf16.msra.mxu0 %v5687
  %5709 = vmatprep.subr.bf16.mxu0 0
  %5710 = vmatpush1.bf16.msra.mxu0 %v5688
  %5711 = vmatprep.subr.bf16.mxu0 0
  %5712 = vmatpush1.bf16.msra.mxu0 %v5689
  %5713 = vmatprep.subr.bf16.mxu0 0
  %5714 = vmatpush1.bf16.msra.mxu0 %v5690
  %5715 = vmatprep.subr.bf16.mxu0 0
  %5716 = vmatpush1.bf16.msra.mxu0 0
  %5717 = vmatprep.subr.bf16.mxu0 0
  %5718 = vmatpush1.bf16.msra.mxu0 0
  %5719 = vmatprep.subr.bf16.mxu0 0
  %5720 = vmatpush1.bf16.msra.mxu0 0
  %5721 = vmatprep.subr.bf16.mxu0 0
  %5722 = vmatpush1.bf16.msra.mxu0 0
  %5723 = vmatprep.subr.bf16.mxu0 0
  %5724 = vmatpush1.bf16.msra.mxu0 0
  %5725 = vmatprep.subr.bf16.mxu0 0
  %5726 = vmatpush1.bf16.msra.mxu0 0
  %5727 = vmatprep.subr.bf16.mxu0 0
  %5728 = vmatpush1.bf16.msra.mxu0 0
  %5729 = vmatprep.subr.bf16.mxu0 0
  %5730 = vmatpush1.bf16.msra.mxu0 0
  %5731 = vmatprep.mubr.bf16.mxu0 0
  %5732 = vmatmul.mubr.bf16.gmra.mrb[0].mxu0 %v5634
  %v5733 = vpop.f32.mrb[0].mxu0
  %v5734 = vadd.f32 0.0, %v5733
  %v5735 = vpop.f32.mrb[0].mxu0
  %v5736 = vpop.f32.mrb[0].mxu0
  %v5737 = vpop.f32.mrb[0].mxu0
  %5738 = vdwg.mxu0
  %v5739 = vadd.f32 %v5626, %v5734
  %v5740 = vmax.f32 %v4225, %v4226
  %v5741 = vmax.f32 %v4227, %v4228
  %5743 = vrot.lane.b32.xlu0 %v5741, 64
  %v5744 = vpop.permute.xlu0 %5743
  %v5746 = vsel %vm3383, %v5740, %v5744
  %v5747 = vpack.c.bf16 %v5746, %v5746
  %v5748 = vld [vmem:[%s5 + $0x340] sm:$0xf]
  %v5749 = vld [vmem:[%s5 + $0x344] sm:$0xf]
  %v5750 = vld [vmem:[%s5 + $0x348] sm:$0xf]
  %v5751 = vld [vmem:[%s5 + $0x34c] sm:$0xf]
  %v5752 = vld [vmem:[%s5 + $0x350] sm:$0xf]
  %v5753 = vld [vmem:[%s5 + $0x354] sm:$0xf]
  %v5754 = vld [vmem:[%s5 + $0x358] sm:$0xf]
  %v5755 = vld [vmem:[%s5 + $0x35c] sm:$0xf]
  %v5756 = vld [vmem:[%s5 + $0x360] sm:$0xf]
  %v5757 = vld [vmem:[%s5 + $0x364] sm:$0xf]
  %v5758 = vld [vmem:[%s5 + $0x368] sm:$0xf]
  %v5759 = vld [vmem:[%s5 + $0x36c] sm:$0xf]
  %v5760 = vld [vmem:[%s5 + $0x370] sm:$0xf]
  %v5761 = vld [vmem:[%s5 + $0x374] sm:$0xf]
  %v5762 = vld [vmem:[%s5 + $0x378] sm:$0xf]
  %v5763 = vld [vmem:[%s5 + $0x37c] sm:$0xf]
  %v5780 = vunpack.c.l.b16 %v5748
  %v5781 = vunpack.c.l.b16 %v5749
  %v5782 = vunpack.c.l.b16 %v5750
  %v5783 = vunpack.c.l.b16 %v5751
  %v5784 = vunpack.c.l.b16 %v5752
  %v5785 = vunpack.c.l.b16 %v5753
  %v5786 = vunpack.c.l.b16 %v5754
  %v5787 = vunpack.c.l.b16 %v5755
  %v5788 = vunpack.c.l.b16 %v5756
  %v5789 = vunpack.c.l.b16 %v5757
  %v5790 = vunpack.c.l.b16 %v5758
  %v5791 = vunpack.c.l.b16 %v5759
  %v5792 = vunpack.c.l.b16 %v5760
  %v5793 = vunpack.c.l.b16 %v5761
  %v5794 = vunpack.c.l.b16 %v5762
  %v5795 = vunpack.c.l.b16 %v5763
  %v5796 = vpack.c.b16 %v5781, %v5780
  %v5797 = vpack.c.b16 %v5783, %v5782
  %v5798 = vpack.c.b16 %v5785, %v5784
  %v5799 = vpack.c.b16 %v5787, %v5786
  %v5800 = vpack.c.b16 %v5789, %v5788
  %v5801 = vpack.c.b16 %v5791, %v5790
  %v5802 = vpack.c.b16 %v5793, %v5792
  %v5803 = vpack.c.b16 %v5795, %v5794
  %5812 = vmatprep.subr.bf16.mxu0 0
  %5813 = vmatpush1.bf16.msra.mxu0 %v5796
  %5814 = vmatprep.subr.bf16.mxu0 0
  %5815 = vmatpush1.bf16.msra.mxu0 %v5797
  %5816 = vmatprep.subr.bf16.mxu0 0
  %5817 = vmatpush1.bf16.msra.mxu0 %v5798
  %5818 = vmatprep.subr.bf16.mxu0 0
  %5819 = vmatpush1.bf16.msra.mxu0 %v5799
  %5820 = vmatprep.subr.bf16.mxu0 0
  %5821 = vmatpush1.bf16.msra.mxu0 %v5800
  %5822 = vmatprep.subr.bf16.mxu0 0
  %5823 = vmatpush1.bf16.msra.mxu0 %v5801
  %5824 = vmatprep.subr.bf16.mxu0 0
  %5825 = vmatpush1.bf16.msra.mxu0 %v5802
  %5826 = vmatprep.subr.bf16.mxu0 0
  %5827 = vmatpush1.bf16.msra.mxu0 %v5803
  %5828 = vmatprep.subr.bf16.mxu0 0
  %5829 = vmatpush1.bf16.msra.mxu0 0
  %5830 = vmatprep.subr.bf16.mxu0 0
  %5831 = vmatpush1.bf16.msra.mxu0 0
  %5832 = vmatprep.subr.bf16.mxu0 0
  %5833 = vmatpush1.bf16.msra.mxu0 0
  %5834 = vmatprep.subr.bf16.mxu0 0
  %5835 = vmatpush1.bf16.msra.mxu0 0
  %5836 = vmatprep.subr.bf16.mxu0 0
  %5837 = vmatpush1.bf16.msra.mxu0 0
  %5838 = vmatprep.subr.bf16.mxu0 0
  %5839 = vmatpush1.bf16.msra.mxu0 0
  %5840 = vmatprep.subr.bf16.mxu0 0
  %5841 = vmatpush1.bf16.msra.mxu0 0
  %5842 = vmatprep.subr.bf16.mxu0 0
  %5843 = vmatpush1.bf16.msra.mxu0 0
  %5844 = vmatprep.mubr.bf16.mxu0 0
  %5845 = vmatmul.mubr.bf16.gmra.mrb[0].mxu0 %v5747
  %v5846 = vpop.f32.mrb[0].mxu0
  %v5847 = vadd.f32 0.0, %v5846
  %v5848 = vpop.f32.mrb[0].mxu0
  %v5849 = vpop.f32.mrb[0].mxu0
  %v5850 = vpop.f32.mrb[0].mxu0
  %5851 = vdwg.mxu0
  %v5852 = vadd.f32 %v5739, %v5847
  %v5853 = vmax.f32 %v4229, %v4230
  %v5854 = vmax.f32 %v4231, %v4232
  %5856 = vrot.lane.b32.xlu0 %v5854, 64
  %v5857 = vpop.permute.xlu0 %5856
  %v5859 = vsel %vm3383, %v5853, %v5857
  %v5860 = vpack.c.bf16 %v5859, %v5859
  %v5861 = vld [vmem:[%s5 + $0x380] sm:$0xf]
  %v5862 = vld [vmem:[%s5 + $0x384] sm:$0xf]
  %v5863 = vld [vmem:[%s5 + $0x388] sm:$0xf]
  %v5864 = vld [vmem:[%s5 + $0x38c] sm:$0xf]
  %v5865 = vld [vmem:[%s5 + $0x390] sm:$0xf]
  %v5866 = vld [vmem:[%s5 + $0x394] sm:$0xf]
  %v5867 = vld [vmem:[%s5 + $0x398] sm:$0xf]
  %v5868 = vld [vmem:[%s5 + $0x39c] sm:$0xf]
  %v5869 = vld [vmem:[%s5 + $0x3a0] sm:$0xf]
  %v5870 = vld [vmem:[%s5 + $0x3a4] sm:$0xf]
  %v5871 = vld [vmem:[%s5 + $0x3a8] sm:$0xf]
  %v5872 = vld [vmem:[%s5 + $0x3ac] sm:$0xf]
  %v5873 = vld [vmem:[%s5 + $0x3b0] sm:$0xf]
  %v5874 = vld [vmem:[%s5 + $0x3b4] sm:$0xf]
  %v5875 = vld [vmem:[%s5 + $0x3b8] sm:$0xf]
  %v5876 = vld [vmem:[%s5 + $0x3bc] sm:$0xf]
  %v5893 = vunpack.c.l.b16 %v5861
  %v5894 = vunpack.c.l.b16 %v5862
  %v5895 = vunpack.c.l.b16 %v5863
  %v5896 = vunpack.c.l.b16 %v5864
  %v5897 = vunpack.c.l.b16 %v5865
  %v5898 = vunpack.c.l.b16 %v5866
  %v5899 = vunpack.c.l.b16 %v5867
  %v5900 = vunpack.c.l.b16 %v5868
  %v5901 = vunpack.c.l.b16 %v5869
  %v5902 = vunpack.c.l.b16 %v5870
  %v5903 = vunpack.c.l.b16 %v5871
  %v5904 = vunpack.c.l.b16 %v5872
  %v5905 = vunpack.c.l.b16 %v5873
  %v5906 = vunpack.c.l.b16 %v5874
  %v5907 = vunpack.c.l.b16 %v5875
  %v5908 = vunpack.c.l.b16 %v5876
  %v5909 = vpack.c.b16 %v5894, %v5893
  %v5910 = vpack.c.b16 %v5896, %v5895
  %v5911 = vpack.c.b16 %v5898, %v5897
  %v5912 = vpack.c.b16 %v5900, %v5899
  %v5913 = vpack.c.b16 %v5902, %v5901
  %v5914 = vpack.c.b16 %v5904, %v5903
  %v5915 = vpack.c.b16 %v5906, %v5905
  %v5916 = vpack.c.b16 %v5908, %v5907
  %5925 = vmatprep.subr.bf16.mxu0 0
  %5926 = vmatpush1.bf16.msra.mxu0 %v5909
  %5927 = vmatprep.subr.bf16.mxu0 0
  %5928 = vmatpush1.bf16.msra.mxu0 %v5910
  %5929 = vmatprep.subr.bf16.mxu0 0
  %5930 = vmatpush1.bf16.msra.mxu0 %v5911
  %5931 = vmatprep.subr.bf16.mxu0 0
  %5932 = vmatpush1.bf16.msra.mxu0 %v5912
  %5933 = vmatprep.subr.bf16.mxu0 0
  %5934 = vmatpush1.bf16.msra.mxu0 %v5913
  %5935 = vmatprep.subr.bf16.mxu0 0
  %5936 = vmatpush1.bf16.msra.mxu0 %v5914
  %5937 = vmatprep.subr.bf16.mxu0 0
  %5938 = vmatpush1.bf16.msra.mxu0 %v5915
  %5939 = vmatprep.subr.bf16.mxu0 0
  %5940 = vmatpush1.bf16.msra.mxu0 %v5916
  %5941 = vmatprep.subr.bf16.mxu0 0
  %5942 = vmatpush1.bf16.msra.mxu0 0
  %5943 = vmatprep.subr.bf16.mxu0 0
  %5944 = vmatpush1.bf16.msra.mxu0 0
  %5945 = vmatprep.subr.bf16.mxu0 0
  %5946 = vmatpush1.bf16.msra.mxu0 0
  %5947 = vmatprep.subr.bf16.mxu0 0
  %5948 = vmatpush1.bf16.msra.mxu0 0
  %5949 = vmatprep.subr.bf16.mxu0 0
  %5950 = vmatpush1.bf16.msra.mxu0 0
  %5951 = vmatprep.subr.bf16.mxu0 0
  %5952 = vmatpush1.bf16.msra.mxu0 0
  %5953 = vmatprep.subr.bf16.mxu0 0
  %5954 = vmatpush1.bf16.msra.mxu0 0
  %5955 = vmatprep.subr.bf16.mxu0 0
  %5956 = vmatpush1.bf16.msra.mxu0 0
  %5957 = vmatprep.mubr.bf16.mxu0 0
  %5958 = vmatmul.mubr.bf16.gmra.mrb[0].mxu0 %v5860
  %v5959 = vpop.f32.mrb[0].mxu0
  %v5960 = vadd.f32 0.0, %v5959
  %v5961 = vpop.f32.mrb[0].mxu0
  %v5962 = vpop.f32.mrb[0].mxu0
  %v5963 = vpop.f32.mrb[0].mxu0
  %5964 = vdwg.mxu0
  %v5965 = vadd.f32 %v5852, %v5960
  %v5966 = vmax.f32 %v4233, %v4234
  %v5967 = vmax.f32 %v4235, %v4236
  %5969 = vrot.lane.b32.xlu0 %v5967, 64
  %v5970 = vpop.permute.xlu0 %5969
  %v5972 = vsel %vm3383, %v5966, %v5970
  %v5973 = vpack.c.bf16 %v5972, %v5972
  %v5974 = vld [vmem:[%s5 + $0x3c0] sm:$0xf]
  %v5975 = vld [vmem:[%s5 + $0x3c4] sm:$0xf]
  %v5976 = vld [vmem:[%s5 + $0x3c8] sm:$0xf]
  %v5977 = vld [vmem:[%s5 + $0x3cc] sm:$0xf]
  %v5978 = vld [vmem:[%s5 + $0x3d0] sm:$0xf]
  %v5979 = vld [vmem:[%s5 + $0x3d4] sm:$0xf]
  %v5980 = vld [vmem:[%s5 + $0x3d8] sm:$0xf]
  %v5981 = vld [vmem:[%s5 + $0x3dc] sm:$0xf]
  %v5982 = vld [vmem:[%s5 + $0x3e0] sm:$0xf]
  %v5983 = vld [vmem:[%s5 + $0x3e4] sm:$0xf]
  %v5984 = vld [vmem:[%s5 + $0x3e8] sm:$0xf]
  %v5985 = vld [vmem:[%s5 + $0x3ec] sm:$0xf]
  %v5986 = vld [vmem:[%s5 + $0x3f0] sm:$0xf]
  %v5987 = vld [vmem:[%s5 + $0x3f4] sm:$0xf]
  %v5988 = vld [vmem:[%s5 + $0x3f8] sm:$0xf]
  %v5989 = vld [vmem:[%s5 + $0x3fc] sm:$0xf]
  %v6006 = vunpack.c.l.b16 %v5974
  %v6007 = vunpack.c.l.b16 %v5975
  %v6008 = vunpack.c.l.b16 %v5976
  %v6009 = vunpack.c.l.b16 %v5977
  %v6010 = vunpack.c.l.b16 %v5978
  %v6011 = vunpack.c.l.b16 %v5979
  %v6012 = vunpack.c.l.b16 %v5980
  %v6013 = vunpack.c.l.b16 %v5981
  %v6014 = vunpack.c.l.b16 %v5982
  %v6015 = vunpack.c.l.b16 %v5983
  %v6016 = vunpack.c.l.b16 %v5984
  %v6017 = vunpack.c.l.b16 %v5985
  %v6018 = vunpack.c.l.b16 %v5986
  %v6019 = vunpack.c.l.b16 %v5987
  %v6020 = vunpack.c.l.b16 %v5988
  %v6021 = vunpack.c.l.b16 %v5989
  %v6022 = vpack.c.b16 %v6007, %v6006
  %v6023 = vpack.c.b16 %v6009, %v6008
  %v6024 = vpack.c.b16 %v6011, %v6010
  %v6025 = vpack.c.b16 %v6013, %v6012
  %v6026 = vpack.c.b16 %v6015, %v6014
  %v6027 = vpack.c.b16 %v6017, %v6016
  %v6028 = vpack.c.b16 %v6019, %v6018
  %v6029 = vpack.c.b16 %v6021, %v6020
  %6038 = vmatprep.subr.bf16.mxu0 0
  %6039 = vmatpush1.bf16.msra.mxu0 %v6022
  %6040 = vmatprep.subr.bf16.mxu0 0
  %6041 = vmatpush1.bf16.msra.mxu0 %v6023
  %6042 = vmatprep.subr.bf16.mxu0 0
  %6043 = vmatpush1.bf16.msra.mxu0 %v6024
  %6044 = vmatprep.subr.bf16.mxu0 0
  %6045 = vmatpush1.bf16.msra.mxu0 %v6025
  %6046 = vmatprep.subr.bf16.mxu0 0
  %6047 = vmatpush1.bf16.msra.mxu0 %v6026
  %6048 = vmatprep.subr.bf16.mxu0 0
  %6049 = vmatpush1.bf16.msra.mxu0 %v6027
  %6050 = vmatprep.subr.bf16.mxu0 0
  %6051 = vmatpush1.bf16.msra.mxu0 %v6028
  %6052 = vmatprep.subr.bf16.mxu0 0
  %6053 = vmatpush1.bf16.msra.mxu0 %v6029
  %6054 = vmatprep.subr.bf16.mxu0 0
  %6055 = vmatpush1.bf16.msra.mxu0 0
  %6056 = vmatprep.subr.bf16.mxu0 0
  %6057 = vmatpush1.bf16.msra.mxu0 0
  %6058 = vmatprep.subr.bf16.mxu0 0
  %6059 = vmatpush1.bf16.msra.mxu0 0
  %6060 = vmatprep.subr.bf16.mxu0 0
  %6061 = vmatpush1.bf16.msra.mxu0 0
  %6062 = vmatprep.subr.bf16.mxu0 0
  %6063 = vmatpush1.bf16.msra.mxu0 0
  %6064 = vmatprep.subr.bf16.mxu0 0
  %6065 = vmatpush1.bf16.msra.mxu0 0
  %6066 = vmatprep.subr.bf16.mxu0 0
  %6067 = vmatpush1.bf16.msra.mxu0 0
  %6068 = vmatprep.subr.bf16.mxu0 0
  %6069 = vmatpush1.bf16.msra.mxu0 0
  %6070 = vmatprep.mubr.bf16.mxu0 0
  %6071 = vmatmul.mubr.bf16.gmra.mrb[0].mxu0 %v5973
  %v6072 = vpop.f32.mrb[0].mxu0
  %v6073 = vadd.f32 0.0, %v6072
  %v6074 = vpop.f32.mrb[0].mxu0
  %v6075 = vpop.f32.mrb[0].mxu0
  %v6076 = vpop.f32.mrb[0].mxu0
  %6077 = vdwg.mxu0
  %v6078 = vadd.f32 %v5965, %v6073
  %v6079 = vmax.f32 %v4237, %v4238
  %v6080 = vmax.f32 %v4239, %v4240
  %6082 = vrot.lane.b32.xlu0 %v6080, 64
  %v6083 = vpop.permute.xlu0 %6082
  %v6085 = vsel %vm3383, %v6079, %v6083
  %v6086 = vpack.c.bf16 %v6085, %v6085
  %v6087 = vld [vmem:[%s5 + $0x400] sm:$0xf]
  %v6088 = vld [vmem:[%s5 + $0x404] sm:$0xf]
  %v6089 = vld [vmem:[%s5 + $0x408] sm:$0xf]
  %v6090 = vld [vmem:[%s5 + $0x40c] sm:$0xf]
  %v6091 = vld [vmem:[%s5 + $0x410] sm:$0xf]
  %v6092 = vld [vmem:[%s5 + $0x414] sm:$0xf]
  %v6093 = vld [vmem:[%s5 + $0x418] sm:$0xf]
  %v6094 = vld [vmem:[%s5 + $0x41c] sm:$0xf]
  %v6095 = vld [vmem:[%s5 + $0x420] sm:$0xf]
  %v6096 = vld [vmem:[%s5 + $0x424] sm:$0xf]
  %v6097 = vld [vmem:[%s5 + $0x428] sm:$0xf]
  %v6098 = vld [vmem:[%s5 + $0x42c] sm:$0xf]
  %v6099 = vld [vmem:[%s5 + $0x430] sm:$0xf]
  %v6100 = vld [vmem:[%s5 + $0x434] sm:$0xf]
  %v6101 = vld [vmem:[%s5 + $0x438] sm:$0xf]
  %v6102 = vld [vmem:[%s5 + $0x43c] sm:$0xf]
  %v6119 = vunpack.c.l.b16 %v6087
  %v6120 = vunpack.c.l.b16 %v6088
  %v6121 = vunpack.c.l.b16 %v6089
  %v6122 = vunpack.c.l.b16 %v6090
  %v6123 = vunpack.c.l.b16 %v6091
  %v6124 = vunpack.c.l.b16 %v6092
  %v6125 = vunpack.c.l.b16 %v6093
  %v6126 = vunpack.c.l.b16 %v6094
  %v6127 = vunpack.c.l.b16 %v6095
  %v6128 = vunpack.c.l.b16 %v6096
  %v6129 = vunpack.c.l.b16 %v6097
  %v6130 = vunpack.c.l.b16 %v6098
  %v6131 = vunpack.c.l.b16 %v6099
  %v6132 = vunpack.c.l.b16 %v6100
  %v6133 = vunpack.c.l.b16 %v6101
  %v6134 = vunpack.c.l.b16 %v6102
  %v6135 = vpack.c.b16 %v6120, %v6119
  %v6136 = vpack.c.b16 %v6122, %v6121
  %v6137 = vpack.c.b16 %v6124, %v6123
  %v6138 = vpack.c.b16 %v6126, %v6125
  %v6139 = vpack.c.b16 %v6128, %v6127
  %v6140 = vpack.c.b16 %v6130, %v6129
  %v6141 = vpack.c.b16 %v6132, %v6131
  %v6142 = vpack.c.b16 %v6134, %v6133
  %6151 = vmatprep.subr.bf16.mxu0 0
  %6152 = vmatpush1.bf16.msra.mxu0 %v6135
  %6153 = vmatprep.subr.bf16.mxu0 0
  %6154 = vmatpush1.bf16.msra.mxu0 %v6136
  %6155 = vmatprep.subr.bf16.mxu0 0
  %6156 = vmatpush1.bf16.msra.mxu0 %v6137
  %6157 = vmatprep.subr.bf16.mxu0 0
  %6158 = vmatpush1.bf16.msra.mxu0 %v6138
  %6159 = vmatprep.subr.bf16.mxu0 0
  %6160 = vmatpush1.bf16.msra.mxu0 %v6139
  %6161 = vmatprep.subr.bf16.mxu0 0
  %6162 = vmatpush1.bf16.msra.mxu0 %v6140
  %6163 = vmatprep.subr.bf16.mxu0 0
  %6164 = vmatpush1.bf16.msra.mxu0 %v6141
  %6165 = vmatprep.subr.bf16.mxu0 0
  %6166 = vmatpush1.bf16.msra.mxu0 %v6142
  %6167 = vmatprep.subr.bf16.mxu0 0
  %6168 = vmatpush1.bf16.msra.mxu0 0
  %6169 = vmatprep.subr.bf16.mxu0 0
  %6170 = vmatpush1.bf16.msra.mxu0 0
  %6171 = vmatprep.subr.bf16.mxu0 0
  %6172 = vmatpush1.bf16.msra.mxu0 0
  %6173 = vmatprep.subr.bf16.mxu0 0
  %6174 = vmatpush1.bf16.msra.mxu0 0
  %6175 = vmatprep.subr.bf16.mxu0 0
  %6176 = vmatpush1.bf16.msra.mxu0 0
  %6177 = vmatprep.subr.bf16.mxu0 0
  %6178 = vmatpush1.bf16.msra.mxu0 0
  %6179 = vmatprep.subr.bf16.mxu0 0
  %6180 = vmatpush1.bf16.msra.mxu0 0
  %6181 = vmatprep.subr.bf16.mxu0 0
  %6182 = vmatpush1.bf16.msra.mxu0 0
  %6183 = vmatprep.mubr.bf16.mxu0 0
  %6184 = vmatmul.mubr.bf16.gmra.mrb[0].mxu0 %v6086
  %v6185 = vpop.f32.mrb[0].mxu0
  %v6186 = vadd.f32 0.0, %v6185
  %v6187 = vpop.f32.mrb[0].mxu0
  %v6188 = vpop.f32.mrb[0].mxu0
  %v6189 = vpop.f32.mrb[0].mxu0
  %6190 = vdwg.mxu0
  %v6191 = vadd.f32 %v6078, %v6186
  %v6192 = vmax.f32 %v4241, %v4242
  %v6193 = vmax.f32 %v4243, %v4244
  %6195 = vrot.lane.b32.xlu0 %v6193, 64
  %v6196 = vpop.permute.xlu0 %6195
  %v6198 = vsel %vm3383, %v6192, %v6196
  %v6199 = vpack.c.bf16 %v6198, %v6198
  %v6200 = vld [vmem:[%s5 + $0x440] sm:$0xf]
  %v6201 = vld [vmem:[%s5 + $0x444] sm:$0xf]
  %v6202 = vld [vmem:[%s5 + $0x448] sm:$0xf]
  %v6203 = vld [vmem:[%s5 + $0x44c] sm:$0xf]
  %v6204 = vld [vmem:[%s5 + $0x450] sm:$0xf]
  %v6205 = vld [vmem:[%s5 + $0x454] sm:$0xf]
  %v6206 = vld [vmem:[%s5 + $0x458] sm:$0xf]
  %v6207 = vld [vmem:[%s5 + $0x45c] sm:$0xf]
  %v6208 = vld [vmem:[%s5 + $0x460] sm:$0xf]
  %v6209 = vld [vmem:[%s5 + $0x464] sm:$0xf]
  %v6210 = vld [vmem:[%s5 + $0x468] sm:$0xf]
  %v6211 = vld [vmem:[%s5 + $0x46c] sm:$0xf]
  %v6212 = vld [vmem:[%s5 + $0x470] sm:$0xf]
  %v6213 = vld [vmem:[%s5 + $0x474] sm:$0xf]
  %v6214 = vld [vmem:[%s5 + $0x478] sm:$0xf]
  %v6215 = vld [vmem:[%s5 + $0x47c] sm:$0xf]
  %v6232 = vunpack.c.l.b16 %v6200
  %v6233 = vunpack.c.l.b16 %v6201
  %v6234 = vunpack.c.l.b16 %v6202
  %v6235 = vunpack.c.l.b16 %v6203
  %v6236 = vunpack.c.l.b16 %v6204
  %v6237 = vunpack.c.l.b16 %v6205
  %v6238 = vunpack.c.l.b16 %v6206
  %v6239 = vunpack.c.l.b16 %v6207
  %v6240 = vunpack.c.l.b16 %v6208
  %v6241 = vunpack.c.l.b16 %v6209
  %v6242 = vunpack.c.l.b16 %v6210
  %v6243 = vunpack.c.l.b16 %v6211
  %v6244 = vunpack.c.l.b16 %v6212
  %v6245 = vunpack.c.l.b16 %v6213
  %v6246 = vunpack.c.l.b16 %v6214
  %v6247 = vunpack.c.l.b16 %v6215
  %v6248 = vpack.c.b16 %v6233, %v6232
  %v6249 = vpack.c.b16 %v6235, %v6234
  %v6250 = vpack.c.b16 %v6237, %v6236
  %v6251 = vpack.c.b16 %v6239, %v6238
  %v6252 = vpack.c.b16 %v6241, %v6240
  %v6253 = vpack.c.b16 %v6243, %v6242
  %v6254 = vpack.c.b16 %v6245, %v6244
  %v6255 = vpack.c.b16 %v6247, %v6246
  %6264 = vmatprep.subr.bf16.mxu0 0
  %6265 = vmatpush1.bf16.msra.mxu0 %v6248
  %6266 = vmatprep.subr.bf16.mxu0 0
  %6267 = vmatpush1.bf16.msra.mxu0 %v6249
  %6268 = vmatprep.subr.bf16.mxu0 0
  %6269 = vmatpush1.bf16.msra.mxu0 %v6250
  %6270 = vmatprep.subr.bf16.mxu0 0
  %6271 = vmatpush1.bf16.msra.mxu0 %v6251
  %6272 = vmatprep.subr.bf16.mxu0 0
  %6273 = vmatpush1.bf16.msra.mxu0 %v6252
  %6274 = vmatprep.subr.bf16.mxu0 0
  %6275 = vmatpush1.bf16.msra.mxu0 %v6253
  %6276 = vmatprep.subr.bf16.mxu0 0
  %6277 = vmatpush1.bf16.msra.mxu0 %v6254
  %6278 = vmatprep.subr.bf16.mxu0 0
  %6279 = vmatpush1.bf16.msra.mxu0 %v6255
  %6280 = vmatprep.subr.bf16.mxu0 0
  %6281 = vmatpush1.bf16.msra.mxu0 0
  %6282 = vmatprep.subr.bf16.mxu0 0
  %6283 = vmatpush1.bf16.msra.mxu0 0
  %6284 = vmatprep.subr.bf16.mxu0 0
  %6285 = vmatpush1.bf16.msra.mxu0 0
  %6286 = vmatprep.subr.bf16.mxu0 0
  %6287 = vmatpush1.bf16.msra.mxu0 0
  %6288 = vmatprep.subr.bf16.mxu0 0
  %6289 = vmatpush1.bf16.msra.mxu0 0
  %6290 = vmatprep.subr.bf16.mxu0 0
  %6291 = vmatpush1.bf16.msra.mxu0 0
  %6292 = vmatprep.subr.bf16.mxu0 0
  %6293 = vmatpush1.bf16.msra.mxu0 0
  %6294 = vmatprep.subr.bf16.mxu0 0
  %6295 = vmatpush1.bf16.msra.mxu0 0
  %6296 = vmatprep.mubr.bf16.mxu0 0
  %6297 = vmatmul.mubr.bf16.gmra.mrb[0].mxu0 %v6199
  %v6298 = vpop.f32.mrb[0].mxu0
  %v6299 = vadd.f32 0.0, %v6298
  %v6300 = vpop.f32.mrb[0].mxu0
  %v6301 = vpop.f32.mrb[0].mxu0
  %v6302 = vpop.f32.mrb[0].mxu0
  %6303 = vdwg.mxu0
  %v6304 = vadd.f32 %v6191, %v6299
  %v6305 = vmax.f32 %v4245, %v4246
  %v6306 = vmax.f32 %v4247, %v4248
  %6308 = vrot.lane.b32.xlu0 %v6306, 64
  %v6309 = vpop.permute.xlu0 %6308
  %v6311 = vsel %vm3383, %v6305, %v6309
  %v6312 = vpack.c.bf16 %v6311, %v6311
  %v6313 = vld [vmem:[%s5 + $0x480] sm:$0xf]
  %v6314 = vld [vmem:[%s5 + $0x484] sm:$0xf]
  %v6315 = vld [vmem:[%s5 + $0x488] sm:$0xf]
  %v6316 = vld [vmem:[%s5 + $0x48c] sm:$0xf]
  %v6317 = vld [vmem:[%s5 + $0x490] sm:$0xf]
  %v6318 = vld [vmem:[%s5 + $0x494] sm:$0xf]
  %v6319 = vld [vmem:[%s5 + $0x498] sm:$0xf]
  %v6320 = vld [vmem:[%s5 + $0x49c] sm:$0xf]
  %v6321 = vld [vmem:[%s5 + $0x4a0] sm:$0xf]
  %v6322 = vld [vmem:[%s5 + $0x4a4] sm:$0xf]
  %v6323 = vld [vmem:[%s5 + $0x4a8] sm:$0xf]
  %v6324 = vld [vmem:[%s5 + $0x4ac] sm:$0xf]
  %v6325 = vld [vmem:[%s5 + $0x4b0] sm:$0xf]
  %v6326 = vld [vmem:[%s5 + $0x4b4] sm:$0xf]
  %v6327 = vld [vmem:[%s5 + $0x4b8] sm:$0xf]
  %v6328 = vld [vmem:[%s5 + $0x4bc] sm:$0xf]
  %v6345 = vunpack.c.l.b16 %v6313
  %v6346 = vunpack.c.l.b16 %v6314
  %v6347 = vunpack.c.l.b16 %v6315
  %v6348 = vunpack.c.l.b16 %v6316
  %v6349 = vunpack.c.l.b16 %v6317
  %v6350 = vunpack.c.l.b16 %v6318
  %v6351 = vunpack.c.l.b16 %v6319
  %v6352 = vunpack.c.l.b16 %v6320
  %v6353 = vunpack.c.l.b16 %v6321
  %v6354 = vunpack.c.l.b16 %v6322
  %v6355 = vunpack.c.l.b16 %v6323
  %v6356 = vunpack.c.l.b16 %v6324
  %v6357 = vunpack.c.l.b16 %v6325
  %v6358 = vunpack.c.l.b16 %v6326
  %v6359 = vunpack.c.l.b16 %v6327
  %v6360 = vunpack.c.l.b16 %v6328
  %v6361 = vpack.c.b16 %v6346, %v6345
  %v6362 = vpack.c.b16 %v6348, %v6347
  %v6363 = vpack.c.b16 %v6350, %v6349
  %v6364 = vpack.c.b16 %v6352, %v6351
  %v6365 = vpack.c.b16 %v6354, %v6353
  %v6366 = vpack.c.b16 %v6356, %v6355
  %v6367 = vpack.c.b16 %v6358, %v6357
  %v6368 = vpack.c.b16 %v6360, %v6359
  %6377 = vmatprep.subr.bf16.mxu0 0
  %6378 = vmatpush1.bf16.msra.mxu0 %v6361
  %6379 = vmatprep.subr.bf16.mxu0 0
  %6380 = vmatpush1.bf16.msra.mxu0 %v6362
  %6381 = vmatprep.subr.bf16.mxu0 0
  %6382 = vmatpush1.bf16.msra.mxu0 %v6363
  %6383 = vmatprep.subr.bf16.mxu0 0
  %6384 = vmatpush1.bf16.msra.mxu0 %v6364
  %6385 = vmatprep.subr.bf16.mxu0 0
  %6386 = vmatpush1.bf16.msra.mxu0 %v6365
  %6387 = vmatprep.subr.bf16.mxu0 0
  %6388 = vmatpush1.bf16.msra.mxu0 %v6366
  %6389 = vmatprep.subr.bf16.mxu0 0
  %6390 = vmatpush1.bf16.msra.mxu0 %v6367
  %6391 = vmatprep.subr.bf16.mxu0 0
  %6392 = vmatpush1.bf16.msra.mxu0 %v6368
  %6393 = vmatprep.subr.bf16.mxu0 0
  %6394 = vmatpush1.bf16.msra.mxu0 0
  %6395 = vmatprep.subr.bf16.mxu0 0
  %6396 = vmatpush1.bf16.msra.mxu0 0
  %6397 = vmatprep.subr.bf16.mxu0 0
  %6398 = vmatpush1.bf16.msra.mxu0 0
  %6399 = vmatprep.subr.bf16.mxu0 0
  %6400 = vmatpush1.bf16.msra.mxu0 0
  %6401 = vmatprep.subr.bf16.mxu0 0
  %6402 = vmatpush1.bf16.msra.mxu0 0
  %6403 = vmatprep.subr.bf16.mxu0 0
  %6404 = vmatpush1.bf16.msra.mxu0 0
  %6405 = vmatprep.subr.bf16.mxu0 0
  %6406 = vmatpush1.bf16.msra.mxu0 0
  %6407 = vmatprep.subr.bf16.mxu0 0
  %6408 = vmatpush1.bf16.msra.mxu0 0
  %6409 = vmatprep.mubr.bf16.mxu0 0
  %6410 = vmatmul.mubr.bf16.gmra.mrb[0].mxu0 %v6312
  %v6411 = vpop.f32.mrb[0].mxu0
  %v6412 = vadd.f32 0.0, %v6411
  %v6413 = vpop.f32.mrb[0].mxu0
  %v6414 = vpop.f32.mrb[0].mxu0
  %v6415 = vpop.f32.mrb[0].mxu0
  %6416 = vdwg.mxu0
  %v6417 = vadd.f32 %v6304, %v6412
  %v6418 = vmax.f32 %v4249, %v4250
  %v6419 = vmax.f32 %v4251, %v4252
  %6421 = vrot.lane.b32.xlu0 %v6419, 64
  %v6422 = vpop.permute.xlu0 %6421
  %v6424 = vsel %vm3383, %v6418, %v6422
  %v6425 = vpack.c.bf16 %v6424, %v6424
  %v6426 = vld [vmem:[%s5 + $0x4c0] sm:$0xf]
  %v6427 = vld [vmem:[%s5 + $0x4c4] sm:$0xf]
  %v6428 = vld [vmem:[%s5 + $0x4c8] sm:$0xf]
  %v6429 = vld [vmem:[%s5 + $0x4cc] sm:$0xf]
  %v6430 = vld [vmem:[%s5 + $0x4d0] sm:$0xf]
  %v6431 = vld [vmem:[%s5 + $0x4d4] sm:$0xf]
  %v6432 = vld [vmem:[%s5 + $0x4d8] sm:$0xf]
  %v6433 = vld [vmem:[%s5 + $0x4dc] sm:$0xf]
  %v6434 = vld [vmem:[%s5 + $0x4e0] sm:$0xf]
  %v6435 = vld [vmem:[%s5 + $0x4e4] sm:$0xf]
  %v6436 = vld [vmem:[%s5 + $0x4e8] sm:$0xf]
  %v6437 = vld [vmem:[%s5 + $0x4ec] sm:$0xf]
  %v6438 = vld [vmem:[%s5 + $0x4f0] sm:$0xf]
  %v6439 = vld [vmem:[%s5 + $0x4f4] sm:$0xf]
  %v6440 = vld [vmem:[%s5 + $0x4f8] sm:$0xf]
  %v6441 = vld [vmem:[%s5 + $0x4fc] sm:$0xf]
  %v6458 = vunpack.c.l.b16 %v6426
  %v6459 = vunpack.c.l.b16 %v6427
  %v6460 = vunpack.c.l.b16 %v6428
  %v6461 = vunpack.c.l.b16 %v6429
  %v6462 = vunpack.c.l.b16 %v6430
  %v6463 = vunpack.c.l.b16 %v6431
  %v6464 = vunpack.c.l.b16 %v6432
  %v6465 = vunpack.c.l.b16 %v6433
  %v6466 = vunpack.c.l.b16 %v6434
  %v6467 = vunpack.c.l.b16 %v6435
  %v6468 = vunpack.c.l.b16 %v6436
  %v6469 = vunpack.c.l.b16 %v6437
  %v6470 = vunpack.c.l.b16 %v6438
  %v6471 = vunpack.c.l.b16 %v6439
  %v6472 = vunpack.c.l.b16 %v6440
  %v6473 = vunpack.c.l.b16 %v6441
  %v6474 = vpack.c.b16 %v6459, %v6458
  %v6475 = vpack.c.b16 %v6461, %v6460
  %v6476 = vpack.c.b16 %v6463, %v6462
  %v6477 = vpack.c.b16 %v6465, %v6464
  %v6478 = vpack.c.b16 %v6467, %v6466
  %v6479 = vpack.c.b16 %v6469, %v6468
  %v6480 = vpack.c.b16 %v6471, %v6470
  %v6481 = vpack.c.b16 %v6473, %v6472
  %6490 = vmatprep.subr.bf16.mxu0 0
  %6491 = vmatpush1.bf16.msra.mxu0 %v6474
  %6492 = vmatprep.subr.bf16.mxu0 0
  %6493 = vmatpush1.bf16.msra.mxu0 %v6475
  %6494 = vmatprep.subr.bf16.mxu0 0
  %6495 = vmatpush1.bf16.msra.mxu0 %v6476
  %6496 = vmatprep.subr.bf16.mxu0 0
  %6497 = vmatpush1.bf16.msra.mxu0 %v6477
  %6498 = vmatprep.subr.bf16.mxu0 0
  %6499 = vmatpush1.bf16.msra.mxu0 %v6478
  %6500 = vmatprep.subr.bf16.mxu0 0
  %6501 = vmatpush1.bf16.msra.mxu0 %v6479
  %6502 = vmatprep.subr.bf16.mxu0 0
  %6503 = vmatpush1.bf16.msra.mxu0 %v6480
  %6504 = vmatprep.subr.bf16.mxu0 0
  %6505 = vmatpush1.bf16.msra.mxu0 %v6481
  %6506 = vmatprep.subr.bf16.mxu0 0
  %6507 = vmatpush1.bf16.msra.mxu0 0
  %6508 = vmatprep.subr.bf16.mxu0 0
  %6509 = vmatpush1.bf16.msra.mxu0 0
  %6510 = vmatprep.subr.bf16.mxu0 0
  %6511 = vmatpush1.bf16.msra.mxu0 0
  %6512 = vmatprep.subr.bf16.mxu0 0
  %6513 = vmatpush1.bf16.msra.mxu0 0
  %6514 = vmatprep.subr.bf16.mxu0 0
  %6515 = vmatpush1.bf16.msra.mxu0 0
  %6516 = vmatprep.subr.bf16.mxu0 0
  %6517 = vmatpush1.bf16.msra.mxu0 0
  %6518 = vmatprep.subr.bf16.mxu0 0
  %6519 = vmatpush1.bf16.msra.mxu0 0
  %6520 = vmatprep.subr.bf16.mxu0 0
  %6521 = vmatpush1.bf16.msra.mxu0 0
  %6522 = vmatprep.mubr.bf16.mxu0 0
  %6523 = vmatmul.mubr.bf16.gmra.mrb[0].mxu0 %v6425
  %v6524 = vpop.f32.mrb[0].mxu0
  %v6525 = vadd.f32 0.0, %v6524
  %v6526 = vpop.f32.mrb[0].mxu0
  %v6527 = vpop.f32.mrb[0].mxu0
  %v6528 = vpop.f32.mrb[0].mxu0
  %6529 = vdwg.mxu0
  %v6530 = vadd.f32 %v6417, %v6525
  %v6531 = vmax.f32 %v4253, %v4254
  %v6532 = vmax.f32 %v4255, %v4256
  %6534 = vrot.lane.b32.xlu0 %v6532, 64
  %v6535 = vpop.permute.xlu0 %6534
  %v6537 = vsel %vm3383, %v6531, %v6535
  %v6538 = vpack.c.bf16 %v6537, %v6537
  %v6539 = vld [vmem:[%s5 + $0x500] sm:$0xf]
  %v6540 = vld [vmem:[%s5 + $0x504] sm:$0xf]
  %v6541 = vld [vmem:[%s5 + $0x508] sm:$0xf]
  %v6542 = vld [vmem:[%s5 + $0x50c] sm:$0xf]
  %v6543 = vld [vmem:[%s5 + $0x510] sm:$0xf]
  %v6544 = vld [vmem:[%s5 + $0x514] sm:$0xf]
  %v6545 = vld [vmem:[%s5 + $0x518] sm:$0xf]
  %v6546 = vld [vmem:[%s5 + $0x51c] sm:$0xf]
  %v6547 = vld [vmem:[%s5 + $0x520] sm:$0xf]
  %v6548 = vld [vmem:[%s5 + $0x524] sm:$0xf]
  %v6549 = vld [vmem:[%s5 + $0x528] sm:$0xf]
  %v6550 = vld [vmem:[%s5 + $0x52c] sm:$0xf]
  %v6551 = vld [vmem:[%s5 + $0x530] sm:$0xf]
  %v6552 = vld [vmem:[%s5 + $0x534] sm:$0xf]
  %v6553 = vld [vmem:[%s5 + $0x538] sm:$0xf]
  %v6554 = vld [vmem:[%s5 + $0x53c] sm:$0xf]
  %v6571 = vunpack.c.l.b16 %v6539
  %v6572 = vunpack.c.l.b16 %v6540
  %v6573 = vunpack.c.l.b16 %v6541
  %v6574 = vunpack.c.l.b16 %v6542
  %v6575 = vunpack.c.l.b16 %v6543
  %v6576 = vunpack.c.l.b16 %v6544
  %v6577 = vunpack.c.l.b16 %v6545
  %v6578 = vunpack.c.l.b16 %v6546
  %v6579 = vunpack.c.l.b16 %v6547
  %v6580 = vunpack.c.l.b16 %v6548
  %v6581 = vunpack.c.l.b16 %v6549
  %v6582 = vunpack.c.l.b16 %v6550
  %v6583 = vunpack.c.l.b16 %v6551
  %v6584 = vunpack.c.l.b16 %v6552
  %v6585 = vunpack.c.l.b16 %v6553
  %v6586 = vunpack.c.l.b16 %v6554
  %v6587 = vpack.c.b16 %v6572, %v6571
  %v6588 = vpack.c.b16 %v6574, %v6573
  %v6589 = vpack.c.b16 %v6576, %v6575
  %v6590 = vpack.c.b16 %v6578, %v6577
  %v6591 = vpack.c.b16 %v6580, %v6579
  %v6592 = vpack.c.b16 %v6582, %v6581
  %v6593 = vpack.c.b16 %v6584, %v6583
  %v6594 = vpack.c.b16 %v6586, %v6585
  %6603 = vmatprep.subr.bf16.mxu0 0
  %6604 = vmatpush1.bf16.msra.mxu0 %v6587
  %6605 = vmatprep.subr.bf16.mxu0 0
  %6606 = vmatpush1.bf16.msra.mxu0 %v6588
  %6607 = vmatprep.subr.bf16.mxu0 0
  %6608 = vmatpush1.bf16.msra.mxu0 %v6589
  %6609 = vmatprep.subr.bf16.mxu0 0
  %6610 = vmatpush1.bf16.msra.mxu0 %v6590
  %6611 = vmatprep.subr.bf16.mxu0 0
  %6612 = vmatpush1.bf16.msra.mxu0 %v6591
  %6613 = vmatprep.subr.bf16.mxu0 0
  %6614 = vmatpush1.bf16.msra.mxu0 %v6592
  %6615 = vmatprep.subr.bf16.mxu0 0
  %6616 = vmatpush1.bf16.msra.mxu0 %v6593
  %6617 = vmatprep.subr.bf16.mxu0 0
  %6618 = vmatpush1.bf16.msra.mxu0 %v6594
  %6619 = vmatprep.subr.bf16.mxu0 0
  %6620 = vmatpush1.bf16.msra.mxu0 0
  %6621 = vmatprep.subr.bf16.mxu0 0
  %6622 = vmatpush1.bf16.msra.mxu0 0
  %6623 = vmatprep.subr.bf16.mxu0 0
  %6624 = vmatpush1.bf16.msra.mxu0 0
  %6625 = vmatprep.subr.bf16.mxu0 0
  %6626 = vmatpush1.bf16.msra.mxu0 0
  %6627 = vmatprep.subr.bf16.mxu0 0
  %6628 = vmatpush1.bf16.msra.mxu0 0
  %6629 = vmatprep.subr.bf16.mxu0 0
  %6630 = vmatpush1.bf16.msra.mxu0 0
  %6631 = vmatprep.subr.bf16.mxu0 0
  %6632 = vmatpush1.bf16.msra.mxu0 0
  %6633 = vmatprep.subr.bf16.mxu0 0
  %6634 = vmatpush1.bf16.msra.mxu0 0
  %6635 = vmatprep.mubr.bf16.mxu0 0
  %6636 = vmatmul.mubr.bf16.gmra.mrb[0].mxu0 %v6538
  %v6637 = vpop.f32.mrb[0].mxu0
  %v6638 = vadd.f32 0.0, %v6637
  %v6639 = vpop.f32.mrb[0].mxu0
  %v6640 = vpop.f32.mrb[0].mxu0
  %v6641 = vpop.f32.mrb[0].mxu0
  %6642 = vdwg.mxu0
  %v6643 = vadd.f32 %v6530, %v6638
  %v6644 = vmax.f32 %v4257, %v4258
  %v6645 = vmax.f32 %v4259, %v4260
  %6647 = vrot.lane.b32.xlu0 %v6645, 64
  %v6648 = vpop.permute.xlu0 %6647
  %v6650 = vsel %vm3383, %v6644, %v6648
  %v6651 = vpack.c.bf16 %v6650, %v6650
  %v6652 = vld [vmem:[%s5 + $0x540] sm:$0xf]
  %v6653 = vld [vmem:[%s5 + $0x544] sm:$0xf]
  %v6654 = vld [vmem:[%s5 + $0x548] sm:$0xf]
  %v6655 = vld [vmem:[%s5 + $0x54c] sm:$0xf]
  %v6656 = vld [vmem:[%s5 + $0x550] sm:$0xf]
  %v6657 = vld [vmem:[%s5 + $0x554] sm:$0xf]
  %v6658 = vld [vmem:[%s5 + $0x558] sm:$0xf]
  %v6659 = vld [vmem:[%s5 + $0x55c] sm:$0xf]
  %v6660 = vld [vmem:[%s5 + $0x560] sm:$0xf]
  %v6661 = vld [vmem:[%s5 + $0x564] sm:$0xf]
  %v6662 = vld [vmem:[%s5 + $0x568] sm:$0xf]
  %v6663 = vld [vmem:[%s5 + $0x56c] sm:$0xf]
  %v6664 = vld [vmem:[%s5 + $0x570] sm:$0xf]
  %v6665 = vld [vmem:[%s5 + $0x574] sm:$0xf]
  %v6666 = vld [vmem:[%s5 + $0x578] sm:$0xf]
  %v6667 = vld [vmem:[%s5 + $0x57c] sm:$0xf]
  %v6684 = vunpack.c.l.b16 %v6652
  %v6685 = vunpack.c.l.b16 %v6653
  %v6686 = vunpack.c.l.b16 %v6654
  %v6687 = vunpack.c.l.b16 %v6655
  %v6688 = vunpack.c.l.b16 %v6656
  %v6689 = vunpack.c.l.b16 %v6657
  %v6690 = vunpack.c.l.b16 %v6658
  %v6691 = vunpack.c.l.b16 %v6659
  %v6692 = vunpack.c.l.b16 %v6660
  %v6693 = vunpack.c.l.b16 %v6661
  %v6694 = vunpack.c.l.b16 %v6662
  %v6695 = vunpack.c.l.b16 %v6663
  %v6696 = vunpack.c.l.b16 %v6664
  %v6697 = vunpack.c.l.b16 %v6665
  %v6698 = vunpack.c.l.b16 %v6666
  %v6699 = vunpack.c.l.b16 %v6667
  %v6700 = vpack.c.b16 %v6685, %v6684
  %v6701 = vpack.c.b16 %v6687, %v6686
  %v6702 = vpack.c.b16 %v6689, %v6688
  %v6703 = vpack.c.b16 %v6691, %v6690
  %v6704 = vpack.c.b16 %v6693, %v6692
  %v6705 = vpack.c.b16 %v6695, %v6694
  %v6706 = vpack.c.b16 %v6697, %v6696
  %v6707 = vpack.c.b16 %v6699, %v6698
  %6716 = vmatprep.subr.bf16.mxu0 0
  %6717 = vmatpush1.bf16.msra.mxu0 %v6700
  %6718 = vmatprep.subr.bf16.mxu0 0
  %6719 = vmatpush1.bf16.msra.mxu0 %v6701
  %6720 = vmatprep.subr.bf16.mxu0 0
  %6721 = vmatpush1.bf16.msra.mxu0 %v6702
  %6722 = vmatprep.subr.bf16.mxu0 0
  %6723 = vmatpush1.bf16.msra.mxu0 %v6703
  %6724 = vmatprep.subr.bf16.mxu0 0
  %6725 = vmatpush1.bf16.msra.mxu0 %v6704
  %6726 = vmatprep.subr.bf16.mxu0 0
  %6727 = vmatpush1.bf16.msra.mxu0 %v6705
  %6728 = vmatprep.subr.bf16.mxu0 0
  %6729 = vmatpush1.bf16.msra.mxu0 %v6706
  %6730 = vmatprep.subr.bf16.mxu0 0
  %6731 = vmatpush1.bf16.msra.mxu0 %v6707
  %6732 = vmatprep.subr.bf16.mxu0 0
  %6733 = vmatpush1.bf16.msra.mxu0 0
  %6734 = vmatprep.subr.bf16.mxu0 0
  %6735 = vmatpush1.bf16.msra.mxu0 0
  %6736 = vmatprep.subr.bf16.mxu0 0
  %6737 = vmatpush1.bf16.msra.mxu0 0
  %6738 = vmatprep.subr.bf16.mxu0 0
  %6739 = vmatpush1.bf16.msra.mxu0 0
  %6740 = vmatprep.subr.bf16.mxu0 0
  %6741 = vmatpush1.bf16.msra.mxu0 0
  %6742 = vmatprep.subr.bf16.mxu0 0
  %6743 = vmatpush1.bf16.msra.mxu0 0
  %6744 = vmatprep.subr.bf16.mxu0 0
  %6745 = vmatpush1.bf16.msra.mxu0 0
  %6746 = vmatprep.subr.bf16.mxu0 0
  %6747 = vmatpush1.bf16.msra.mxu0 0
  %6748 = vmatprep.mubr.bf16.mxu0 0
  %6749 = vmatmul.mubr.bf16.gmra.mrb[0].mxu0 %v6651
  %v6750 = vpop.f32.mrb[0].mxu0
  %v6751 = vadd.f32 0.0, %v6750
  %v6752 = vpop.f32.mrb[0].mxu0
  %v6753 = vpop.f32.mrb[0].mxu0
  %v6754 = vpop.f32.mrb[0].mxu0
  %6755 = vdwg.mxu0
  %v6756 = vadd.f32 %v6643, %v6751
  %v6757 = vmax.f32 %v4261, %v4262
  %v6758 = vmax.f32 %v4263, %v4264
  %6760 = vrot.lane.b32.xlu0 %v6758, 64
  %v6761 = vpop.permute.xlu0 %6760
  %v6763 = vsel %vm3383, %v6757, %v6761
  %v6764 = vpack.c.bf16 %v6763, %v6763
  %v6765 = vld [vmem:[%s5 + $0x580] sm:$0xf]
  %v6766 = vld [vmem:[%s5 + $0x584] sm:$0xf]
  %v6767 = vld [vmem:[%s5 + $0x588] sm:$0xf]
  %v6768 = vld [vmem:[%s5 + $0x58c] sm:$0xf]
  %v6769 = vld [vmem:[%s5 + $0x590] sm:$0xf]
  %v6770 = vld [vmem:[%s5 + $0x594] sm:$0xf]
  %v6771 = vld [vmem:[%s5 + $0x598] sm:$0xf]
  %v6772 = vld [vmem:[%s5 + $0x59c] sm:$0xf]
  %v6773 = vld [vmem:[%s5 + $0x5a0] sm:$0xf]
  %v6774 = vld [vmem:[%s5 + $0x5a4] sm:$0xf]
  %v6775 = vld [vmem:[%s5 + $0x5a8] sm:$0xf]
  %v6776 = vld [vmem:[%s5 + $0x5ac] sm:$0xf]
  %v6777 = vld [vmem:[%s5 + $0x5b0] sm:$0xf]
  %v6778 = vld [vmem:[%s5 + $0x5b4] sm:$0xf]
  %v6779 = vld [vmem:[%s5 + $0x5b8] sm:$0xf]
  %v6780 = vld [vmem:[%s5 + $0x5bc] sm:$0xf]
  %v6797 = vunpack.c.l.b16 %v6765
  %v6798 = vunpack.c.l.b16 %v6766
  %v6799 = vunpack.c.l.b16 %v6767
  %v6800 = vunpack.c.l.b16 %v6768
  %v6801 = vunpack.c.l.b16 %v6769
  %v6802 = vunpack.c.l.b16 %v6770
  %v6803 = vunpack.c.l.b16 %v6771
  %v6804 = vunpack.c.l.b16 %v6772
  %v6805 = vunpack.c.l.b16 %v6773
  %v6806 = vunpack.c.l.b16 %v6774
  %v6807 = vunpack.c.l.b16 %v6775
  %v6808 = vunpack.c.l.b16 %v6776
  %v6809 = vunpack.c.l.b16 %v6777
  %v6810 = vunpack.c.l.b16 %v6778
  %v6811 = vunpack.c.l.b16 %v6779
  %v6812 = vunpack.c.l.b16 %v6780
  %v6813 = vpack.c.b16 %v6798, %v6797
  %v6814 = vpack.c.b16 %v6800, %v6799
  %v6815 = vpack.c.b16 %v6802, %v6801
  %v6816 = vpack.c.b16 %v6804, %v6803
  %v6817 = vpack.c.b16 %v6806, %v6805
  %v6818 = vpack.c.b16 %v6808, %v6807
  %v6819 = vpack.c.b16 %v6810, %v6809
  %v6820 = vpack.c.b16 %v6812, %v6811
  %6829 = vmatprep.subr.bf16.mxu0 0
  %6830 = vmatpush1.bf16.msra.mxu0 %v6813
  %6831 = vmatprep.subr.bf16.mxu0 0
  %6832 = vmatpush1.bf16.msra.mxu0 %v6814
  %6833 = vmatprep.subr.bf16.mxu0 0
  %6834 = vmatpush1.bf16.msra.mxu0 %v6815
  %6835 = vmatprep.subr.bf16.mxu0 0
  %6836 = vmatpush1.bf16.msra.mxu0 %v6816
  %6837 = vmatprep.subr.bf16.mxu0 0
  %6838 = vmatpush1.bf16.msra.mxu0 %v6817
  %6839 = vmatprep.subr.bf16.mxu0 0
  %6840 = vmatpush1.bf16.msra.mxu0 %v6818
  %6841 = vmatprep.subr.bf16.mxu0 0
  %6842 = vmatpush1.bf16.msra.mxu0 %v6819
  %6843 = vmatprep.subr.bf16.mxu0 0
  %6844 = vmatpush1.bf16.msra.mxu0 %v6820
  %6845 = vmatprep.subr.bf16.mxu0 0
  %6846 = vmatpush1.bf16.msra.mxu0 0
  %6847 = vmatprep.subr.bf16.mxu0 0
  %6848 = vmatpush1.bf16.msra.mxu0 0
  %6849 = vmatprep.subr.bf16.mxu0 0
  %6850 = vmatpush1.bf16.msra.mxu0 0
  %6851 = vmatprep.subr.bf16.mxu0 0
  %6852 = vmatpush1.bf16.msra.mxu0 0
  %6853 = vmatprep.subr.bf16.mxu0 0
  %6854 = vmatpush1.bf16.msra.mxu0 0
  %6855 = vmatprep.subr.bf16.mxu0 0
  %6856 = vmatpush1.bf16.msra.mxu0 0
  %6857 = vmatprep.subr.bf16.mxu0 0
  %6858 = vmatpush1.bf16.msra.mxu0 0
  %6859 = vmatprep.subr.bf16.mxu0 0
  %6860 = vmatpush1.bf16.msra.mxu0 0
  %6861 = vmatprep.mubr.bf16.mxu0 0
  %6862 = vmatmul.mubr.bf16.gmra.mrb[0].mxu0 %v6764
  %v6863 = vpop.f32.mrb[0].mxu0
  %v6864 = vadd.f32 0.0, %v6863
  %v6865 = vpop.f32.mrb[0].mxu0
  %v6866 = vpop.f32.mrb[0].mxu0
  %v6867 = vpop.f32.mrb[0].mxu0
  %6868 = vdwg.mxu0
  %v6869 = vadd.f32 %v6756, %v6864
  %v6870 = vmax.f32 %v4265, %v4266
  %v6871 = vmax.f32 %v4267, %v4268
  %6873 = vrot.lane.b32.xlu0 %v6871, 64
  %v6874 = vpop.permute.xlu0 %6873
  %v6876 = vsel %vm3383, %v6870, %v6874
  %v6877 = vpack.c.bf16 %v6876, %v6876
  %v6878 = vld [vmem:[%s5 + $0x5c0] sm:$0xf]
  %v6879 = vld [vmem:[%s5 + $0x5c4] sm:$0xf]
  %v6880 = vld [vmem:[%s5 + $0x5c8] sm:$0xf]
  %v6881 = vld [vmem:[%s5 + $0x5cc] sm:$0xf]
  %v6882 = vld [vmem:[%s5 + $0x5d0] sm:$0xf]
  %v6883 = vld [vmem:[%s5 + $0x5d4] sm:$0xf]
  %v6884 = vld [vmem:[%s5 + $0x5d8] sm:$0xf]
  %v6885 = vld [vmem:[%s5 + $0x5dc] sm:$0xf]
  %v6886 = vld [vmem:[%s5 + $0x5e0] sm:$0xf]
  %v6887 = vld [vmem:[%s5 + $0x5e4] sm:$0xf]
  %v6888 = vld [vmem:[%s5 + $0x5e8] sm:$0xf]
  %v6889 = vld [vmem:[%s5 + $0x5ec] sm:$0xf]
  %v6890 = vld [vmem:[%s5 + $0x5f0] sm:$0xf]
  %v6891 = vld [vmem:[%s5 + $0x5f4] sm:$0xf]
  %v6892 = vld [vmem:[%s5 + $0x5f8] sm:$0xf]
  %v6893 = vld [vmem:[%s5 + $0x5fc] sm:$0xf]
  %v6910 = vunpack.c.l.b16 %v6878
  %v6911 = vunpack.c.l.b16 %v6879
  %v6912 = vunpack.c.l.b16 %v6880
  %v6913 = vunpack.c.l.b16 %v6881
  %v6914 = vunpack.c.l.b16 %v6882
  %v6915 = vunpack.c.l.b16 %v6883
  %v6916 = vunpack.c.l.b16 %v6884
  %v6917 = vunpack.c.l.b16 %v6885
  %v6918 = vunpack.c.l.b16 %v6886
  %v6919 = vunpack.c.l.b16 %v6887
  %v6920 = vunpack.c.l.b16 %v6888
  %v6921 = vunpack.c.l.b16 %v6889
  %v6922 = vunpack.c.l.b16 %v6890
  %v6923 = vunpack.c.l.b16 %v6891
  %v6924 = vunpack.c.l.b16 %v6892
  %v6925 = vunpack.c.l.b16 %v6893
  %v6926 = vpack.c.b16 %v6911, %v6910
  %v6927 = vpack.c.b16 %v6913, %v6912
  %v6928 = vpack.c.b16 %v6915, %v6914
  %v6929 = vpack.c.b16 %v6917, %v6916
  %v6930 = vpack.c.b16 %v6919, %v6918
  %v6931 = vpack.c.b16 %v6921, %v6920
  %v6932 = vpack.c.b16 %v6923, %v6922
  %v6933 = vpack.c.b16 %v6925, %v6924
  %6942 = vmatprep.subr.bf16.mxu0 0
  %6943 = vmatpush1.bf16.msra.mxu0 %v6926
  %6944 = vmatprep.subr.bf16.mxu0 0
  %6945 = vmatpush1.bf16.msra.mxu0 %v6927
  %6946 = vmatprep.subr.bf16.mxu0 0
  %6947 = vmatpush1.bf16.msra.mxu0 %v6928
  %6948 = vmatprep.subr.bf16.mxu0 0
  %6949 = vmatpush1.bf16.msra.mxu0 %v6929
  %6950 = vmatprep.subr.bf16.mxu0 0
  %6951 = vmatpush1.bf16.msra.mxu0 %v6930
  %6952 = vmatprep.subr.bf16.mxu0 0
  %6953 = vmatpush1.bf16.msra.mxu0 %v6931
  %6954 = vmatprep.subr.bf16.mxu0 0
  %6955 = vmatpush1.bf16.msra.mxu0 %v6932
  %6956 = vmatprep.subr.bf16.mxu0 0
  %6957 = vmatpush1.bf16.msra.mxu0 %v6933
  %6958 = vmatprep.subr.bf16.mxu0 0
  %6959 = vmatpush1.bf16.msra.mxu0 0
  %6960 = vmatprep.subr.bf16.mxu0 0
  %6961 = vmatpush1.bf16.msra.mxu0 0
  %6962 = vmatprep.subr.bf16.mxu0 0
  %6963 = vmatpush1.bf16.msra.mxu0 0
  %6964 = vmatprep.subr.bf16.mxu0 0
  %6965 = vmatpush1.bf16.msra.mxu0 0
  %6966 = vmatprep.subr.bf16.mxu0 0
  %6967 = vmatpush1.bf16.msra.mxu0 0
  %6968 = vmatprep.subr.bf16.mxu0 0
  %6969 = vmatpush1.bf16.msra.mxu0 0
  %6970 = vmatprep.subr.bf16.mxu0 0
  %6971 = vmatpush1.bf16.msra.mxu0 0
  %6972 = vmatprep.subr.bf16.mxu0 0
  %6973 = vmatpush1.bf16.msra.mxu0 0
  %6974 = vmatprep.mubr.bf16.mxu0 0
  %6975 = vmatmul.mubr.bf16.gmra.mrb[0].mxu0 %v6877
  %v6976 = vpop.f32.mrb[0].mxu0
  %v6977 = vadd.f32 0.0, %v6976
  %v6978 = vpop.f32.mrb[0].mxu0
  %v6979 = vpop.f32.mrb[0].mxu0
  %v6980 = vpop.f32.mrb[0].mxu0
  %6981 = vdwg.mxu0
  %v6982 = vadd.f32 %v6869, %v6977
  %v6983 = vmax.f32 %v4269, %v4270
  %v6984 = vmax.f32 %v4271, %v4272
  %6986 = vrot.lane.b32.xlu0 %v6984, 64
  %v6987 = vpop.permute.xlu0 %6986
  %v6989 = vsel %vm3383, %v6983, %v6987
  %v6990 = vpack.c.bf16 %v6989, %v6989
  %v6991 = vld [vmem:[%s5 + $0x600] sm:$0xf]
  %v6992 = vld [vmem:[%s5 + $0x604] sm:$0xf]
  %v6993 = vld [vmem:[%s5 + $0x608] sm:$0xf]
  %v6994 = vld [vmem:[%s5 + $0x60c] sm:$0xf]
  %v6995 = vld [vmem:[%s5 + $0x610] sm:$0xf]
  %v6996 = vld [vmem:[%s5 + $0x614] sm:$0xf]
  %v6997 = vld [vmem:[%s5 + $0x618] sm:$0xf]
  %v6998 = vld [vmem:[%s5 + $0x61c] sm:$0xf]
  %v6999 = vld [vmem:[%s5 + $0x620] sm:$0xf]
  %v7000 = vld [vmem:[%s5 + $0x624] sm:$0xf]
  %v7001 = vld [vmem:[%s5 + $0x628] sm:$0xf]
  %v7002 = vld [vmem:[%s5 + $0x62c] sm:$0xf]
  %v7003 = vld [vmem:[%s5 + $0x630] sm:$0xf]
  %v7004 = vld [vmem:[%s5 + $0x634] sm:$0xf]
  %v7005 = vld [vmem:[%s5 + $0x638] sm:$0xf]
  %v7006 = vld [vmem:[%s5 + $0x63c] sm:$0xf]
  %v7023 = vunpack.c.l.b16 %v6991
  %v7024 = vunpack.c.l.b16 %v6992
  %v7025 = vunpack.c.l.b16 %v6993
  %v7026 = vunpack.c.l.b16 %v6994
  %v7027 = vunpack.c.l.b16 %v6995
  %v7028 = vunpack.c.l.b16 %v6996
  %v7029 = vunpack.c.l.b16 %v6997
  %v7030 = vunpack.c.l.b16 %v6998
  %v7031 = vunpack.c.l.b16 %v6999
  %v7032 = vunpack.c.l.b16 %v7000
  %v7033 = vunpack.c.l.b16 %v7001
  %v7034 = vunpack.c.l.b16 %v7002
  %v7035 = vunpack.c.l.b16 %v7003
  %v7036 = vunpack.c.l.b16 %v7004
  %v7037 = vunpack.c.l.b16 %v7005
  %v7038 = vunpack.c.l.b16 %v7006
  %v7039 = vpack.c.b16 %v7024, %v7023
  %v7040 = vpack.c.b16 %v7026, %v7025
  %v7041 = vpack.c.b16 %v7028, %v7027
  %v7042 = vpack.c.b16 %v7030, %v7029
  %v7043 = vpack.c.b16 %v7032, %v7031
  %v7044 = vpack.c.b16 %v7034, %v7033
  %v7045 = vpack.c.b16 %v7036, %v7035
  %v7046 = vpack.c.b16 %v7038, %v7037
  %7055 = vmatprep.subr.bf16.mxu0 0
  %7056 = vmatpush1.bf16.msra.mxu0 %v7039
  %7057 = vmatprep.subr.bf16.mxu0 0
  %7058 = vmatpush1.bf16.msra.mxu0 %v7040
  %7059 = vmatprep.subr.bf16.mxu0 0
  %7060 = vmatpush1.bf16.msra.mxu0 %v7041
  %7061 = vmatprep.subr.bf16.mxu0 0
  %7062 = vmatpush1.bf16.msra.mxu0 %v7042
  %7063 = vmatprep.subr.bf16.mxu0 0
  %7064 = vmatpush1.bf16.msra.mxu0 %v7043
  %7065 = vmatprep.subr.bf16.mxu0 0
  %7066 = vmatpush1.bf16.msra.mxu0 %v7044
  %7067 = vmatprep.subr.bf16.mxu0 0
  %7068 = vmatpush1.bf16.msra.mxu0 %v7045
  %7069 = vmatprep.subr.bf16.mxu0 0
  %7070 = vmatpush1.bf16.msra.mxu0 %v7046
  %7071 = vmatprep.subr.bf16.mxu0 0
  %7072 = vmatpush1.bf16.msra.mxu0 0
  %7073 = vmatprep.subr.bf16.mxu0 0
  %7074 = vmatpush1.bf16.msra.mxu0 0
  %7075 = vmatprep.subr.bf16.mxu0 0
  %7076 = vmatpush1.bf16.msra.mxu0 0
  %7077 = vmatprep.subr.bf16.mxu0 0
  %7078 = vmatpush1.bf16.msra.mxu0 0
  %7079 = vmatprep.subr.bf16.mxu0 0
  %7080 = vmatpush1.bf16.msra.mxu0 0
  %7081 = vmatprep.subr.bf16.mxu0 0
  %7082 = vmatpush1.bf16.msra.mxu0 0
  %7083 = vmatprep.subr.bf16.mxu0 0
  %7084 = vmatpush1.bf16.msra.mxu0 0
  %7085 = vmatprep.subr.bf16.mxu0 0
  %7086 = vmatpush1.bf16.msra.mxu0 0
  %7087 = vmatprep.mubr.bf16.mxu0 0
  %7088 = vmatmul.mubr.bf16.gmra.mrb[0].mxu0 %v6990
  %v7089 = vpop.f32.mrb[0].mxu0
  %v7090 = vadd.f32 0.0, %v7089
  %v7091 = vpop.f32.mrb[0].mxu0
  %v7092 = vpop.f32.mrb[0].mxu0
  %v7093 = vpop.f32.mrb[0].mxu0
  %7094 = vdwg.mxu0
  %v7095 = vadd.f32 %v6982, %v7090
  %v7096 = vld [vmem:[%s6] sm:$0x1]
  %v7098 = vlaneseq
  %v7099 = vshrl.u32 %v7098, 7
  %v7100 = vsub.s32 0, %v7099
  %v7101 = vrot.slane %v7096, %v7100
  %v7103 = vadd.f32 %v7095, %v7101
  %v7104 = vmax.f32 %v7103, 0.0
  %7105 = vxpose.xlu0.b32.start [1/16] %v7104, 128
  %7106 = vxpose.xlu0.b32.cont [2/16] 0.0, 128
  %7107 = vxpose.xlu0.b32.cont [3/16] 0.0, 128
  %7108 = vxpose.xlu0.b32.cont [4/16] 0.0, 128
  %7109 = vxpose.xlu0.b32.cont [5/16] 0.0, 128
  %7110 = vxpose.xlu0.b32.cont [6/16] 0.0, 128
  %7111 = vxpose.xlu0.b32.cont [7/16] 0.0, 128
  %7112 = vxpose.xlu0.b32.cont [8/16] 0.0, 128
  %7113 = vxpose.xlu0.b32.cont [9/16] 0.0, 128
  %7114 = vxpose.xlu0.b32.cont [10/16] 0.0, 128
  %7115 = vxpose.xlu0.b32.cont [11/16] 0.0, 128
  %7116 = vxpose.xlu0.b32.cont [12/16] 0.0, 128
  %7117 = vxpose.xlu0.b32.cont [13/16] 0.0, 128
  %7118 = vxpose.xlu0.b32.cont [14/16] 0.0, 128
  %7119 = vxpose.xlu0.b32.cont [15/16] 0.0, 128
  %7120 = vxpose.xlu0.b32.end [16/16] 0.0, 128
  %v7121 = vpop.trf.xlu0
  %v7122 = vpop.trf.xlu0
  %v7123 = vpop.trf.xlu0
  %v7124 = vpop.trf.xlu0
  %v7125 = vpop.trf.xlu0
  %v7126 = vpop.trf.xlu0
  %v7127 = vpop.trf.xlu0
  %v7128 = vpop.trf.xlu0
  %v7129 = vpop.trf.xlu0
  %v7130 = vpop.trf.xlu0
  %v7131 = vpop.trf.xlu0
  %v7132 = vpop.trf.xlu0
  %v7133 = vpop.trf.xlu0
  %v7134 = vpop.trf.xlu0
  %v7135 = vpop.trf.xlu0
  %v7136 = vpop.trf.xlu0
  %v7137 = vld [vmem:[%s7] sm:$0xff]
  %v7138 = vld [vmem:[%s7 + $0x8] sm:$0xff]
  %v7139 = vld [vmem:[%s7 + $0x10] sm:$0xff]
  %v7140 = vld [vmem:[%s7 + $0x18] sm:$0xff]
  %v7141 = vld [vmem:[%s7 + $0x20] sm:$0xff]
  %v7142 = vld [vmem:[%s7 + $0x28] sm:$0xff]
  %v7143 = vld [vmem:[%s7 + $0x30] sm:$0xff]
  %v7144 = vld [vmem:[%s7 + $0x38] sm:$0xff]
  %v7145 = vld [vmem:[%s7 + $0x40] sm:$0xff]
  %v7146 = vld [vmem:[%s7 + $0x48] sm:$0xff]
  %v7147 = vld [vmem:[%s7 + $0x50] sm:$0xff]
  %v7148 = vld [vmem:[%s7 + $0x58] sm:$0xff]
  %v7149 = vld [vmem:[%s7 + $0x60] sm:$0xff]
  %v7150 = vld [vmem:[%s7 + $0x68] sm:$0xff]
  %v7151 = vld [vmem:[%s7 + $0x70] sm:$0xff]
  %v7152 = vld [vmem:[%s7 + $0x78] sm:$0xff]
  %7154 = vset.pattern.permute.xlu0 0
  %7155 = vperm.xlu0 %7154, %v7137
  %v7156 = vpop.permute.xlu0 %7155
  %7159 = vset.pattern.permute.xlu0 0
  %7160 = vperm.xlu0 %7159, %v7138
  %v7161 = vpop.permute.xlu0 %7160
  %7164 = vset.pattern.permute.xlu0 0
  %7165 = vperm.xlu0 %7164, %v7139
  %v7166 = vpop.permute.xlu0 %7165
  %7169 = vset.pattern.permute.xlu0 0
  %7170 = vperm.xlu0 %7169, %v7140
  %v7171 = vpop.permute.xlu0 %7170
  %7174 = vset.pattern.permute.xlu0 0
  %7175 = vperm.xlu0 %7174, %v7141
  %v7176 = vpop.permute.xlu0 %7175
  %7179 = vset.pattern.permute.xlu0 0
  %7180 = vperm.xlu0 %7179, %v7142
  %v7181 = vpop.permute.xlu0 %7180
  %7184 = vset.pattern.permute.xlu0 0
  %7185 = vperm.xlu0 %7184, %v7143
  %v7186 = vpop.permute.xlu0 %7185
  %7189 = vset.pattern.permute.xlu0 0
  %7190 = vperm.xlu0 %7189, %v7144
  %v7191 = vpop.permute.xlu0 %7190
  %7194 = vset.pattern.permute.xlu0 0
  %7195 = vperm.xlu0 %7194, %v7145
  %v7196 = vpop.permute.xlu0 %7195
  %7199 = vset.pattern.permute.xlu0 0
  %7200 = vperm.xlu0 %7199, %v7146
  %v7201 = vpop.permute.xlu0 %7200
  %7204 = vset.pattern.permute.xlu0 0
  %7205 = vperm.xlu0 %7204, %v7147
  %v7206 = vpop.permute.xlu0 %7205
  %7209 = vset.pattern.permute.xlu0 0
  %7210 = vperm.xlu0 %7209, %v7148
  %v7211 = vpop.permute.xlu0 %7210
  %7214 = vset.pattern.permute.xlu0 0
  %7215 = vperm.xlu0 %7214, %v7149
  %v7216 = vpop.permute.xlu0 %7215
  %7219 = vset.pattern.permute.xlu0 0
  %7220 = vperm.xlu0 %7219, %v7150
  %v7221 = vpop.permute.xlu0 %7220
  %7224 = vset.pattern.permute.xlu0 0
  %7225 = vperm.xlu0 %7224, %v7151
  %v7226 = vpop.permute.xlu0 %7225
  %7229 = vset.pattern.permute.xlu0 0
  %7230 = vperm.xlu0 %7229, %v7152
  %v7231 = vpop.permute.xlu0 %7230
  %v7233 = vmul.f32 %v7121, %v7156
  %v7234 = vmul.f32 %v7122, %v7161
  %v7235 = vmul.f32 %v7123, %v7166
  %v7236 = vmul.f32 %v7124, %v7171
  %v7237 = vmul.f32 %v7125, %v7176
  %v7238 = vmul.f32 %v7126, %v7181
  %v7239 = vmul.f32 %v7127, %v7186
  %v7240 = vmul.f32 %v7128, %v7191
  %v7241 = vmul.f32 %v7129, %v7196
  %v7242 = vmul.f32 %v7130, %v7201
  %v7243 = vmul.f32 %v7131, %v7206
  %v7244 = vmul.f32 %v7132, %v7211
  %v7245 = vmul.f32 %v7133, %v7216
  %v7246 = vmul.f32 %v7134, %v7221
  %v7247 = vmul.f32 %v7135, %v7226
  %v7248 = vmul.f32 %v7136, %v7231
  %vm7249 = vcmask 64512
  %v7250 = vsel %vm7249, %v7233, 0.0
  %v7251 = vsel %vm7249, %v7234, 0.0
  %v7252 = vadd.f32 %v7250, %v7251
  %v7253 = vsel %vm7249, %v7235, 0.0
  %v7254 = vadd.f32 %v7252, %v7253
  %v7255 = vsel %vm7249, %v7236, 0.0
  %v7256 = vadd.f32 %v7254, %v7255
  %v7257 = vsel %vm7249, %v7237, 0.0
  %v7258 = vadd.f32 %v7256, %v7257
  %v7259 = vsel %vm7249, %v7238, 0.0
  %v7260 = vadd.f32 %v7258, %v7259
  %v7261 = vsel %vm7249, %v7239, 0.0
  %v7262 = vadd.f32 %v7260, %v7261
  %v7263 = vsel %vm7249, %v7240, 0.0
  %v7264 = vadd.f32 %v7262, %v7263
  %v7265 = vsel %vm7249, %v7241, 0.0
  %v7266 = vadd.f32 %v7264, %v7265
  %v7267 = vsel %vm7249, %v7242, 0.0
  %v7268 = vadd.f32 %v7266, %v7267
  %v7269 = vsel %vm7249, %v7243, 0.0
  %v7270 = vadd.f32 %v7268, %v7269
  %v7271 = vsel %vm7249, %v7244, 0.0
  %v7272 = vadd.f32 %v7270, %v7271
  %v7273 = vsel %vm7249, %v7245, 0.0
  %v7274 = vadd.f32 %v7272, %v7273
  %v7275 = vsel %vm7249, %v7246, 0.0
  %v7276 = vadd.f32 %v7274, %v7275
  %v7277 = vsel %vm7249, %v7247, 0.0
  %v7278 = vadd.f32 %v7276, %v7277
  %v7279 = vsel %vm7249, %v7248, 0.0
  %v7280 = vadd.f32 %v7278, %v7279
  %v7281 = vrot.slane %v7280, 4
  %v7282 = vadd.f32 %v7280, %v7281
  %v7283 = vrot.slane %v7282, 2
  %v7284 = vadd.f32 %v7282, %v7283
  %v7285 = vrot.slane %v7284, 1
  %v7286 = vadd.f32 %v7284, %v7285
  %v7287 = vld [vmem:[#allocation2] sm:$0x1]
  %7289 = vset.pattern.permute.xlu0 0
  %7290 = vperm.xlu0 %7289, %v7287
  %v7291 = vpop.permute.xlu0 %7290
  %v7293 = vlaneseq
  %v7294 = vshrl.u32 %v7293, 7
  %v7295 = vsub.s32 0, %v7294
  %v7296 = vrot.slane %v7291, %v7295
  %v7297 = vadd.f32 %v7286, %v7296
  %v7298 = vsub.f32 0.0, %v7297
  %v7299 = vmul.f32 %v7298, 1.442695
  %v7300 = vpow.pop %v7299
  %v7301 = vadd.f32 %v7300, 1.0
  %v7302 = vrcp.pop %v7301
  %v7303 = vmul.f32 1.0, %v7302
  %vm7304 = vcmask 57344
  %7305 = vst.msk [vmem:[%s9] sm:$0x1] %vm7304, %v7303
  // Predicated region
  $region38: #{protein_cnn_forward.1} parent=0 // pred_check
    _
  $region39: #{protein_cnn_forward.1} parent=0 // pred_check_branch
    %7307 = sbr.rel (0) target = $region41
  $region40: #{protein_cnn_forward.1} parent=0 // pred_region
    _
  $region41: #{protein_cnn_forward.1} parent=0 // pred_fallthru
    _
  // Predicated region
  $region42: #{protein_cnn_forward.1} parent=0 // pred_check
    _
  $region43: #{protein_cnn_forward.1} parent=0 // pred_check_branch
    %7309 = sbr.rel (0) target = $region45
  $region44: #{protein_cnn_forward.1} parent=0 // pred_region
    _
  $region45: #{protein_cnn_forward.1} parent=0 // pred_fallthru
    _

</llo_original>
